<compile_context>
chip_gen: v6e
topology: v6e:2x2x1
jax: 0.10.0
libtpu: 0.0.40
codegen_flags: <defaults>
</compile_context>

<pallas_src>
import functools

import numpy as np
import jax
import jax.numpy as jnp
from jax.experimental import pallas as pl
from jax.experimental.pallas import tpu as pltpu

EPS = 1e-5


def _round_up(x, m):
    return ((x + m - 1) // m) * m


# ----------------------------------------------------------------------------
# In-kernel helpers
# ----------------------------------------------------------------------------
def _conv3x3_s1(x, w0, w1, w2, scale, bias, mask, *, relu, residual=None):
    """Stride-1 3x3 'same' conv on a row-stacked, per-image zero-padded slab.

    x:      (R, W*Cin) value; zero rows at slab boundaries give the H padding,
            the W padding is folded into the banded weights.
    w0..w2: (W*Cin, W*Cout) banded weights for kernel rows di = 0, 1, 2.
    mask:   (R, 1) float, 1.0 on real rows, 0.0 on pad rows.
    """
    xb = x.astype(jnp.bfloat16)
    r = xb.shape[0]
    zrow = jnp.zeros((1, xb.shape[1]), jnp.bfloat16)
    x_up = jnp.concatenate([zrow, xb[: r - 1]], axis=0)     # row g-1
    x_dn = jnp.concatenate([xb[1:], zrow], axis=0)          # row g+1
    acc = jnp.dot(x_up, w0, preferred_element_type=jnp.float32)
    acc = acc + jnp.dot(xb, w1, preferred_element_type=jnp.float32)
    acc = acc + jnp.dot(x_dn, w2, preferred_element_type=jnp.float32)
    out = acc * scale + bias
    if relu:
        out = jnp.maximum(out, 0.0)
    if residual is not None:
        out = out + residual
    return out * mask          # re-zero the per-image padding rows


# ----------------------------------------------------------------------------
# Kernel 1: gate conv + BN + ReLU + 3x3/s2 max-pool + ResNet layer 1
# ----------------------------------------------------------------------------
def _stem_layer1_kernel(planes_ref, m_ref, wg_ref, sg_ref, bg_ref,
                        w1_ref, s1_ref, b1_ref, o_ref, *, nb, oh, slab, cout):
    owc = wg_ref.shape[2]          # OW * Cout of the gate conv
    half = owc // 2                # pooled lane width = (OW/2) * Cout
    hh = oh // 2                   # rows per parity group == pooled height
    rows = nb * oh

    # Gate 7x7/s2 conv: one banded matmul per kernel row; all images' rows are
    # stacked in M, output rows ordered [even h ..., odd h ...] per image.
    acc = jnp.zeros((rows, owc), jnp.float32)
    for di in range(7):
        qe, re = di % 4, di // 4
        qo, ro = (di + 2) % 4, (di + 2) // 4
        pieces = []
        for m in range(nb):
            pieces.append(planes_ref[m, qe, re:re + hh, :])
            pieces.append(planes_ref[m, qo, ro:ro + hh, :])
        lhs = jnp.concatenate(pieces, axis=0)
        acc = acc + jnp.dot(lhs, wg_ref[di], preferred_element_type=jnp.float32)
    y = jnp.maximum(acc * sg_ref[...] + bg_ref[...], 0.0)

    # 3x3/s2 max-pool (ReLU output >= 0 so zero padding == -inf padding).
    # W direction: even output columns are lanes [:half], odd columns [half:].
    ev, od = y[:, :half], y[:, half:]
    lane = jax.lax.broadcasted_iota(jnp.int32, od.shape, 1)
    od_shift = jnp.where(lane >= cout, pltpu.roll(od, shift=cout, axis=1), 0.0)
    wmax = jnp.maximum(jnp.maximum(ev, od), od_shift)
    # H direction: even conv rows are the first hh rows of each image slab.
    zero1 = jnp.zeros((1, half), jnp.float32)
    out_pieces = []
    for m in range(nb):
        blk = wmax[m * oh:(m + 1) * oh]
        mid, nxt = blk[:hh], blk[hh:]
        prv = jnp.concatenate([zero1, blk[hh:oh - 1]], axis=0)
        pooled = jnp.maximum(jnp.maximum(mid, nxt), prv)
        out_pieces.append(zero1)
        out_pieces.append(pooled)
        out_pieces.append(jnp.zeros((slab - hh - 1, half), jnp.float32))
    x0 = jnp.concatenate(out_pieces, axis=0)   # (nb*slab, half), zero pad rows

    # ResNet layer 1: two residual blocks (identity shortcut, no post-add act).
    mask = m_ref[...]
    h = _conv3x3_s1(x0, w1_ref[0, 0], w1_ref[0, 1], w1_ref[0, 2],
                    s1_ref[0], b1_ref[0], mask, relu=True)
    x1 = _conv3x3_s1(h, w1_ref[1, 0], w1_ref[1, 1], w1_ref[1, 2],
                     s1_ref[1], b1_ref[1], mask, relu=False, residual=x0)
    h = _conv3x3_s1(x1, w1_ref[2, 0], w1_ref[2, 1], w1_ref[2, 2],
                    s1_ref[2], b1_ref[2], mask, relu=True)
    x2 = _conv3x3_s1(h, w1_ref[3, 0], w1_ref[3, 1], w1_ref[3, 2],
                     s1_ref[3], b1_ref[3], mask, relu=False, residual=x1)
    o_ref[...] = x2.astype(o_ref.dtype)


# ----------------------------------------------------------------------------
# Kernel 2: ResNet layer 2 (stride-2 block + stride-1 block) + global avg pool
# ----------------------------------------------------------------------------
def _layer2_pool_kernel(xe_ref, xo_ref, m_ref, wd_ref, sd_ref, bd_ref,
                        wsc_ref, ssc_ref, bsc_ref, wS_ref, sS_ref, bS_ref,
                        pool_ref, o_ref, *, slab):
    mask = m_ref[...]
    xe = xe_ref[...]               # even input rows, slab layout
    xo = xo_ref[...]               # odd input rows,  slab layout
    r = xe.shape[0]
    nb = r // slab
    zrow = jnp.zeros((1, xe.shape[1]), xe.dtype)

    # 3x3 stride-2 conv (16->32): output row oh reads rows 2oh-1, 2oh, 2oh+1.
    x_prev = jnp.concatenate([zrow, xo[: r - 1]], axis=0)
    acc = jnp.dot(x_prev, wd_ref[0], preferred_element_type=jnp.float32)
    acc = acc + jnp.dot(xe, wd_ref[1], preferred_element_type=jnp.float32)
    acc = acc + jnp.dot(xo, wd_ref[2], preferred_element_type=jnp.float32)
    h = jnp.maximum(acc * sd_ref[...] + bd_ref[...], 0.0) * mask

    # 1x1 stride-2 shortcut + BN.
    sc = jnp.dot(xe, wsc_ref[...], preferred_element_type=jnp.float32)
    sc = (sc * ssc_ref[...] + bsc_ref[...]) * mask

    x2 = _conv3x3_s1(h, wS_ref[0, 0], wS_ref[0, 1], wS_ref[0, 2],
                     sS_ref[0], bS_ref[0], mask, relu=False, residual=sc)
    h2 = _conv3x3_s1(x2, wS_ref[1, 0], wS_ref[1, 1], wS_ref[1, 2],
                     sS_ref[1], bS_ref[1], mask, relu=True)
    x3 = _conv3x3_s1(h2, wS_ref[2, 0], wS_ref[2, 1], wS_ref[2, 2],
                     sS_ref[2], bS_ref[2], mask, relu=False, residual=x2)

    # Global average pool: per-image row sums (pad rows are zero) x pool matrix.
    sums = [jnp.sum(x3[m * slab:(m + 1) * slab], axis=0, keepdims=True)
            for m in range(nb)]
    feats = jnp.dot(jnp.concatenate(sums, axis=0), pool_ref[...],
                    preferred_element_type=jnp.float32)
    o_ref[0] = feats.astype(o_ref.dtype)


# ----------------------------------------------------------------------------
# Kernel 3: FC head (fc1 + ReLU + mean over sites + fc3 + sigmoid)
# ----------------------------------------------------------------------------
def _head_kernel(x_ref, w1_ref, b1_ref, mm_ref, w3_ref, b3_ref, o_ref):
    h = jnp.dot(x_ref[...], w1_ref[...], preferred_element_type=jnp.float32)
    h = jnp.maximum(h + b1_ref[...], 0.0)
    hm = jnp.dot(mm_ref[...], h, preferred_element_type=jnp.float32)
    out = jnp.dot(hm, w3_ref[...], preferred_element_type=jnp.float32) + b3_ref[...]
    o_ref[...] = 1.0 / (1.0 + jnp.exp(-out))


# ----------------------------------------------------------------------------
# Forward pass wrapper
# ----------------------------------------------------------------------------
def model_forward(prep, images, sites, masks):
    """images: (B, NS, 3, H, W) f32; sites: (B, NS) int32; masks: (B, NS) int."""
    b, ns = images.shape[0], images.shape[1]
    cin, h0, w0 = images.shape[2], images.shape[3], images.shape[4]
    n = b * ns
    g = 2 if n % 2 == 0 else 1          # >= 2 parallel grid steps for v7x
    nb = n // g

    oh_g, ow_g = h0 // 2, w0 // 2       # gate conv output
    h1, w1s = oh_g // 2, ow_g // 2      # after max-pool (layer-1 spatial)
    h2, w2s = h1 // 2, w1s // 2         # layer-2 spatial
    slab1 = _round_up(h1 + 2, 8)        # per-image row-slab heights
    slab2 = _round_up(h2 + 2, 8)
    c1 = prep["l1_scale"].shape[-1] // w1s
    c2 = prep["l2_pool"].shape[-1]
    lane1 = w1s * c1
    lane2 = w2s * c2

    # Gate input: padded NHWC image split into 4 row-parity planes so the
    # in-kernel stride-2 row access is a contiguous slice.
    x = jnp.transpose(images.reshape(n, cin, h0, w0), (0, 2, 3, 1))
    xp = jnp.pad(x, ((0, 0), (3, 3), (3, 3), (0, 0)))
    hp = _round_up(h0 + 6, 4)
    xp = jnp.pad(xp, ((0, 0), (0, hp - (h0 + 6)), (0, 0), (0, 0)))
    xp = xp.reshape(n, hp, (w0 + 6) * cin)
    planes = xp.reshape(n, hp // 4, 4, (w0 + 6) * cin)
    planes = jnp.transpose(planes, (0, 2, 1, 3)).astype(jnp.bfloat16)

    m1 = np.zeros((slab1, 1), np.float32)
    m1[1:1 + h1] = 1.0
    mask1 = jnp.asarray(np.tile(m1, (n, 1)))
    m2 = np.zeros((slab2, 1), np.float32)
    m2[1:1 + h2] = 1.0
    mask2 = jnp.asarray(np.tile(m2, (n, 1)))

    # Kernel 1: gate + max-pool + layer 1.
    x1 = pl.pallas_call(
        functools.partial(_stem_layer1_kernel, nb=nb, oh=oh_g, slab=slab1, cout=c1),
        out_shape=jax.ShapeDtypeStruct((n * slab1, lane1), jnp.bfloat16),
        grid=(g,),
        in_specs=[
            pl.BlockSpec((nb, 4, hp // 4, (w0 + 6) * cin), lambda i: (i, 0, 0, 0)),
            pl.BlockSpec((nb * slab1, 1), lambda i: (i, 0)),
            pl.BlockSpec(prep["gate_band"].shape, lambda i: (0, 0, 0)),
            pl.BlockSpec(prep["gate_scale"].shape, lambda i: (0, 0)),
            pl.BlockSpec(prep["gate_bias"].shape, lambda i: (0, 0)),
            pl.BlockSpec(prep["l1_bands"].shape, lambda i: (0, 0, 0, 0)),
            pl.BlockSpec(prep["l1_scale"].shape, lambda i: (0, 0, 0)),
            pl.BlockSpec(prep["l1_bias"].shape, lambda i: (0, 0, 0)),
        ],
        out_specs=pl.BlockSpec((nb * slab1, lane1), lambda i: (i, 0)),
        compiler_params=pltpu.CompilerParams(dimension_semantics=("parallel",)),
    )(planes, mask1, prep["gate_band"], prep["gate_scale"], prep["gate_bias"],
      prep["l1_bands"], prep["l1_scale"], prep["l1_bias"])

    # Even / odd rows for layer-2's stride-2 convs (tiny XLA slices + pads).
    # TODO(synk): could be written directly by kernel 1 with strided stores.
    x1r = x1.reshape(n, slab1, lane1)
    pad_tail = slab2 - 1 - h2
    xe = jnp.pad(x1r[:, 1:1 + h1:2, :], ((0, 0), (1, pad_tail), (0, 0)))
    xo = jnp.pad(x1r[:, 2:2 + h1:2, :], ((0, 0), (1, pad_tail), (0, 0)))
    xe = xe.reshape(n * slab2, lane1)
    xo = xo.reshape(n * slab2, lane1)

    # Kernel 2: layer 2 + global average pool.
    feats = pl.pallas_call(
        functools.partial(_layer2_pool_kernel, slab=slab2),
        out_shape=jax.ShapeDtypeStruct((g, nb, c2), jnp.float32),
        grid=(g,),
        in_specs=[
            pl.BlockSpec((nb * slab2, lane1), lambda i: (i, 0)),
            pl.BlockSpec((nb * slab2, lane1), lambda i: (i, 0)),
            pl.BlockSpec((nb * slab2, 1), lambda i: (i, 0)),
            pl.BlockSpec(prep["l2_c1_band"].shape, lambda i: (0, 0, 0)),
            pl.BlockSpec((1, lane2), lambda i: (0, 0)),
            pl.BlockSpec((1, lane2), lambda i: (0, 0)),
            pl.BlockSpec(prep["l2_sc_band"].shape, lambda i: (0, 0)),
            pl.BlockSpec((1, lane2), lambda i: (0, 0)),
            pl.BlockSpec((1, lane2), lambda i: (0, 0)),
            pl.BlockSpec(prep["l2_s1_bands"].shape, lambda i: (0, 0, 0, 0)),
            pl.BlockSpec(prep["l2_s1_scale"].shape, lambda i: (0, 0, 0)),
            pl.BlockSpec(prep["l2_s1_bias"].shape, lambda i: (0, 0, 0)),
            pl.BlockSpec(prep["l2_pool"].shape, lambda i: (0, 0)),
        ],
        out_specs=pl.BlockSpec((1, nb, c2), lambda i: (i, 0, 0)),
        compiler_params=pltpu.CompilerParams(dimension_semantics=("parallel",)),
    )(xe, xo, mask2, prep["l2_c1_band"], prep["l2_c1_scale"], prep["l2_c1_bias"],
      prep["l2_sc_band"], prep["l2_sc_scale"], prep["l2_sc_bias"],
      prep["l2_s1_bands"], prep["l2_s1_scale"], prep["l2_s1_bias"],
      prep["l2_pool"])
    feats = feats.reshape(b, ns, c2)

    # FC head (embedding lookup / concat / mask are trivial XLA ops).
    emb = prep["pos_embedding"][sites]                       # (B, NS, 12)
    xcat = jnp.concatenate([feats, emb], axis=2)             # (B, NS, 44)
    xcat = xcat * (masks == 1).astype(jnp.float32)[..., None]
    xin = xcat.reshape(n, xcat.shape[-1])
    mean_mat = jnp.repeat(jnp.eye(b, dtype=jnp.float32), ns, axis=1) / float(ns)

    out = pl.pallas_call(
        _head_kernel,
        out_shape=jax.ShapeDtypeStruct((b, 1), jnp.float32),
        grid=(1,),
        in_specs=[
            pl.BlockSpec(xin.shape, lambda i: (0, 0)),
            pl.BlockSpec(prep["fc1_wT"].shape, lambda i: (0, 0)),
            pl.BlockSpec(prep["fc1_b"].shape, lambda i: (0, 0)),
            pl.BlockSpec(mean_mat.shape, lambda i: (0, 0)),
            pl.BlockSpec(prep["fc3_wT"].shape, lambda i: (0, 0)),
            pl.BlockSpec(prep["fc3_b"].shape, lambda i: (0, 0)),
        ],
        out_specs=pl.BlockSpec((b, 1), lambda i: (0, 0)),
        compiler_params=pltpu.CompilerParams(dimension_semantics=("arbitrary",)),
    )(xin, prep["fc1_wT"], prep["fc1_b"], mean_mat, prep["fc3_wT"], prep["fc3_b"])
    return out


# ----------------------------------------------------------------------------
# One-time parameter preparation (BN folding, banded weight construction)
# ----------------------------------------------------------------------------
def _np(x):
    return np.asarray(jax.device_get(x), dtype=np.float32)


def _fold_bn(bn):
    gamma, beta = _np(bn["gamma"]), _np(bn["beta"])
    mean, var = _np(bn["mean"]), _np(bn["var"])
    scale = gamma / np.sqrt(var + EPS)
    return scale, beta - mean * scale


def _gate_band(w, wp, col_order):
    """7x7 stride-2 conv (pad folded in) -> (7, Wp*Cin, OW*Cout), even cols first."""
    cout, cin, kh, kw = w.shape
    ow = len(col_order)
    band = np.zeros((kh, wp * cin, ow * cout), np.float32)
    for di in range(kh):
        for dj in range(kw):
            blk = w[:, :, di, dj].T
            for p, c in enumerate(col_order):
                wi = 2 * c + dj
                band[di, wi * cin:(wi + 1) * cin, p * cout:(p + 1) * cout] += blk
    return band


def _s1_band(w, ww):
    """3x3 stride-1 'same' conv -> (3, W*Cin, W*Cout), W padding folded out."""
    cout, cin, kh, kw = w.shape
    band = np.zeros((kh, ww * cin, ww * cout), np.float32)
    for di in range(kh):
        for dj in range(kw):
            blk = w[:, :, di, dj].T
            for wo in range(ww):
                wi = wo + dj - 1
                if 0 <= wi < ww:
                    band[di, wi * cin:(wi + 1) * cin, wo * cout:(wo + 1) * cout] += blk
    return band


def _s2_band(w, w_in, w_out):
    """3x3 stride-2 pad-1 conv -> (3, W_in*Cin, W_out*Cout)."""
    cout, cin, kh, kw = w.shape
    band = np.zeros((kh, w_in * cin, w_out * cout), np.float32)
    for di in range(kh):
        for dj in range(kw):
            blk = w[:, :, di, dj].T
            for wo in range(w_out):
                wi = 2 * wo + dj - 1
                if 0 <= wi < w_in:
                    band[di, wi * cin:(wi + 1) * cin, wo * cout:(wo + 1) * cout] += blk
    return band


def _sc_band(w, w_in, w_out):
    """1x1 stride-2 conv -> (W_in*Cin, W_out*Cout)."""
    cout, cin = w.shape[:2]
    band = np.zeros((w_in * cin, w_out * cout), np.float32)
    blk = w[:, :, 0, 0].T
    for wo in range(w_out):
        wi = 2 * wo
        band[wi * cin:(wi + 1) * cin, wo * cout:(wo + 1) * cout] = blk
    return band


def prepare_params(params, image_hw):
    h0, w0 = image_hw
    assert h0 % 8 == 0 and w0 % 8 == 0, "image H/W must be multiples of 8"
    ow_g = w0 // 2
    w1s = ow_g // 2
    w2s = w1s // 2
    h2 = h0 // 8
    c2 = 32

    gate_w = _np(params["gate_w"])
    gs, gb = _fold_bn(params["gate_bn"])
    col_order = list(range(0, ow_g, 2)) + list(range(1, ow_g, 2))
    prep = {
        "gate_band": jnp.asarray(_gate_band(gate_w, w0 + 6, col_order), dtype=jnp.bfloat16),
        "gate_scale": jnp.asarray(np.tile(gs, ow_g)[None, :], dtype=jnp.float32),
        "gate_bias": jnp.asarray(np.tile(gb, ow_g)[None, :], dtype=jnp.float32),
    }

    # Layer 1: four stride-1 convs (two residual blocks, 16 -> 16).
    bands, scales, biases = [], [], []
    for bp in params["layers"][0]:
        for wkey, bnkey in (("w1", "bn1"), ("w2", "bn2")):
            bands.append(_s1_band(_np(bp[wkey]), w1s))
            s, b_ = _fold_bn(bp[bnkey])
            scales.append(np.tile(s, w1s)[None, :])
            biases.append(np.tile(b_, w1s)[None, :])
    prep["l1_bands"] = jnp.asarray(np.stack(bands), dtype=jnp.bfloat16)
    prep["l1_scale"] = jnp.asarray(np.stack(scales), dtype=jnp.float32)
    prep["l1_bias"] = jnp.asarray(np.stack(biases), dtype=jnp.float32)

    # Layer 2: stride-2 block (with 1x1 shortcut) + stride-1 block (16 -> 32).
    b1, b2 = params["layers"][1]
    s, b_ = _fold_bn(b1["bn1"])
    prep["l2_c1_band"] = jnp.asarray(_s2_band(_np(b1["w1"]), w1s, w2s), dtype=jnp.bfloat16)
    prep["l2_c1_scale"] = jnp.asarray(np.tile(s, w2s)[None, :], dtype=jnp.float32)
    prep["l2_c1_bias"] = jnp.asarray(np.tile(b_, w2s)[None, :], dtype=jnp.float32)
    s, b_ = _fold_bn(b1["shortcut"]["bn"])
    prep["l2_sc_band"] = jnp.asarray(_sc_band(_np(b1["shortcut"]["w"]), w1s, w2s),
                                     dtype=jnp.bfloat16)
    prep["l2_sc_scale"] = jnp.asarray(np.tile(s, w2s)[None, :], dtype=jnp.float32)
    prep["l2_sc_bias"] = jnp.asarray(np.tile(b_, w2s)[None, :], dtype=jnp.float32)
    bands, scales, biases = [], [], []
    for w_, bn_ in ((b1["w2"], b1["bn2"]), (b2["w1"], b2["bn1"]), (b2["w2"], b2["bn2"])):
        bands.append(_s1_band(_np(w_), w2s))
        s, b_ = _fold_bn(bn_)
        scales.append(np.tile(s, w2s)[None, :])
        biases.append(np.tile(b_, w2s)[None, :])
    prep["l2_s1_bands"] = jnp.asarray(np.stack(bands), dtype=jnp.bfloat16)
    prep["l2_s1_scale"] = jnp.asarray(np.stack(scales), dtype=jnp.float32)
    prep["l2_s1_bias"] = jnp.asarray(np.stack(biases), dtype=jnp.float32)

    pool = np.zeros((w2s * c2, c2), np.float32)
    for wc in range(w2s):
        pool[wc * c2:(wc + 1) * c2, :] = np.eye(c2, dtype=np.float32)
    prep["l2_pool"] = jnp.asarray(pool / float(h2 * w2s), dtype=jnp.float32)

    prep["pos_embedding"] = jnp.asarray(_np(params["pos_embedding"]), dtype=jnp.float32)
    prep["fc1_wT"] = jnp.asarray(_np(params["fc1_w"]).T, dtype=jnp.float32)
    prep["fc1_b"] = jnp.asarray(_np(params["fc1_b"])[None, :], dtype=jnp.float32)
    prep["fc3_wT"] = jnp.asarray(_np(params["fc3_w"]).T, dtype=jnp.float32)
    prep["fc3_b"] = jnp.asarray(_np(params["fc3_b"])[None, :], dtype=jnp.float32)
    return prep


# ----------------------------------------------------------------------------
# Deterministic parameter initialization (shapes from the PyTorch __init__)
# ----------------------------------------------------------------------------
def _bn_params(key, c):
    k1, k2, k3, k4 = jax.random.split(key, 4)
    return {
        "gamma": 1.0 + 0.1 * jax.random.normal(k1, (c,), jnp.float32),
        "beta": 0.1 * jax.random.normal(k2, (c,), jnp.float32),
        "mean": 0.1 * jax.random.normal(k3, (c,), jnp.float32),
        "var": 1.0 + 0.1 * jnp.abs(jax.random.normal(k4, (c,), jnp.float32)),
    }


def _conv_w(key, cout, cin, kh, kw):
    fan_in = cin * kh * kw
    return jax.random.normal(key, (cout, cin, kh, kw), jnp.float32) / jnp.sqrt(fan_in)


def init_params(key):
    keys = jax.random.split(key, 64)
    it = iter(keys)
    params = {}
    params["gate_w"] = _conv_w(next(it), 16, 3, 7, 7)
    params["gate_bn"] = _bn_params(next(it), 16)
    layer_cfg = [
        [(16, 16, False), (16, 16, False)],   # ResNetLayer(16, 16, n=2)
        [(16, 32, True), (32, 32, False)],    # ResNetLayer(16, 32, n=2)
    ]
    layers = []
    for cfg in layer_cfg:
        blocks = []
        for (cin, cout, has_sc) in cfg:
            bp = {
                "w1": _conv_w(next(it), cout, cin, 3, 3),
                "bn1": _bn_params(next(it), cout),
                "w2": _conv_w(next(it), cout, cout, 3, 3),
                "bn2": _bn_params(next(it), cout),
                "shortcut": None,
            }
            if has_sc:
                bp["shortcut"] = {
                    "w": _conv_w(next(it), cout, cin, 1, 1),
                    "bn": _bn_params(next(it), cout),
                }
            blocks.append(bp)
        layers.append(blocks)
    params["layers"] = layers
    params["pos_embedding"] = 0.1 * jax.random.normal(next(it), (12, 12), jnp.float32)
    params["fc1_w"] = jax.random.normal(next(it), (1024, 44), jnp.float32) / jnp.sqrt(44.0)
    params["fc1_b"] = 0.1 * jax.random.normal(next(it), (1024,), jnp.float32)
    params["fc3_w"] = jax.random.normal(next(it), (1, 1024), jnp.float32) / jnp.sqrt(1024.0)
    params["fc3_b"] = 0.1 * jax.random.normal(next(it), (1,), jnp.float32)
    return params


if __name__ == "__main__":
    key = jax.random.PRNGKey(0)
    kp, ki, ks, km = jax.random.split(key, 4)
    params = init_params(kp)

    B, NSITES, H, W = 2, 3, 32, 32
    images = jax.random.normal(ki, (B, NSITES, 3, H, W), jnp.float32)
    sites = jax.random.randint(ks, (B, NSITES), 0, 12, jnp.int32)
    masks = jax.random.randint(km, (B, NSITES), 0, 2, jnp.int32)

    prep = prepare_params(params, image_hw=(H, W))
    forward = jax.jit(model_forward)
    out = forward(prep, images, sites, masks)
    out = jax.block_until_ready(out)
    assert out.shape == (B, 1)
    assert bool(jnp.all(jnp.isfinite(out)))
    print("KERNEL_OK")
</pallas_src>

<mosaic_0001>
module attributes {stable_mosaic.version = 11 : i64} {
  func.func @_stem_layer1_kernel(%arg0: i32, %arg1: memref<3x4x10x114xbf16, #tpu.memory_space<vmem>>, %arg2: memref<48x1xf32, #tpu.memory_space<vmem>>, %arg3: memref<7x114x256xbf16, #tpu.memory_space<vmem>>, %arg4: memref<1x256xf32, #tpu.memory_space<vmem>>, %arg5: memref<1x256xf32, #tpu.memory_space<vmem>>, %arg6: memref<4x3x128x128xbf16, #tpu.memory_space<vmem>>, %arg7: memref<4x1x128xf32, #tpu.memory_space<vmem>>, %arg8: memref<4x1x128xf32, #tpu.memory_space<vmem>>, %arg9: memref<48x128xbf16, #tpu.memory_space<vmem>>) attributes {dimension_semantics = [#tpu.dimension_semantics<parallel>], iteration_bounds = array<i64: 2>, scalar_prefetch = 0 : i64, scratch_operands = 0 : i64, tpu.core_type = #tpu.core_type<tc>, window_params = [{transform_indices = @transform_0, window_bounds = array<i64: 3, 4, 10, 114>}, {transform_indices = @transform_1, window_bounds = array<i64: 48, 1>}, {pipeline_mode = #tpu.pipeline_mode<synchronous>, transform_indices = @transform_2, window_bounds = array<i64: 7, 114, 256>}, {pipeline_mode = #tpu.pipeline_mode<synchronous>, transform_indices = @transform_3, window_bounds = array<i64: 1, 256>}, {pipeline_mode = #tpu.pipeline_mode<synchronous>, transform_indices = @transform_4, window_bounds = array<i64: 1, 256>}, {pipeline_mode = #tpu.pipeline_mode<synchronous>, transform_indices = @transform_5, window_bounds = array<i64: 4, 3, 128, 128>}, {pipeline_mode = #tpu.pipeline_mode<synchronous>, transform_indices = @transform_6, window_bounds = array<i64: 4, 1, 128>}, {pipeline_mode = #tpu.pipeline_mode<synchronous>, transform_indices = @transform_7, window_bounds = array<i64: 4, 1, 128>}, {transform_indices = @transform_8, window_bounds = array<i64: 48, 128>}]} {
    %cst = arith.constant 0.000000e+00 : f32
    %0 = vector.broadcast %cst : f32 to vector<48x256xf32>
    %c0 = arith.constant 0 : index
    %c0_0 = arith.constant 0 : index
    %c0_1 = arith.constant 0 : index
    %c0_2 = arith.constant 0 : index
    %1 = vector.load %arg1[%c0, %c0_0, %c0_1, %c0_2] : memref<3x4x10x114xbf16, #tpu.memory_space<vmem>>, vector<1x1x8x114xbf16>
    %2 = vector.shape_cast %1 : vector<1x1x8x114xbf16> to vector<8x114xbf16>
    %c0_3 = arith.constant 0 : index
    %c2 = arith.constant 2 : index
    %c0_4 = arith.constant 0 : index
    %c0_5 = arith.constant 0 : index
    %3 = vector.load %arg1[%c0_3, %c2, %c0_4, %c0_5] : memref<3x4x10x114xbf16, #tpu.memory_space<vmem>>, vector<1x1x8x114xbf16>
    %4 = vector.shape_cast %3 : vector<1x1x8x114xbf16> to vector<8x114xbf16>
    %c1 = arith.constant 1 : index
    %c0_6 = arith.constant 0 : index
    %c0_7 = arith.constant 0 : index
    %c0_8 = arith.constant 0 : index
    %5 = vector.load %arg1[%c1, %c0_6, %c0_7, %c0_8] : memref<3x4x10x114xbf16, #tpu.memory_space<vmem>>, vector<1x1x8x114xbf16>
    %6 = vector.shape_cast %5 : vector<1x1x8x114xbf16> to vector<8x114xbf16>
    %c1_9 = arith.constant 1 : index
    %c2_10 = arith.constant 2 : index
    %c0_11 = arith.constant 0 : index
    %c0_12 = arith.constant 0 : index
    %7 = vector.load %arg1[%c1_9, %c2_10, %c0_11, %c0_12] : memref<3x4x10x114xbf16, #tpu.memory_space<vmem>>, vector<1x1x8x114xbf16>
    %8 = vector.shape_cast %7 : vector<1x1x8x114xbf16> to vector<8x114xbf16>
    %c2_13 = arith.constant 2 : index
    %c0_14 = arith.constant 0 : index
    %c0_15 = arith.constant 0 : index
    %c0_16 = arith.constant 0 : index
    %9 = vector.load %arg1[%c2_13, %c0_14, %c0_15, %c0_16] : memref<3x4x10x114xbf16, #tpu.memory_space<vmem>>, vector<1x1x8x114xbf16>
    %10 = vector.shape_cast %9 : vector<1x1x8x114xbf16> to vector<8x114xbf16>
    %c2_17 = arith.constant 2 : index
    %c2_18 = arith.constant 2 : index
    %c0_19 = arith.constant 0 : index
    %c0_20 = arith.constant 0 : index
    %11 = vector.load %arg1[%c2_17, %c2_18, %c0_19, %c0_20] : memref<3x4x10x114xbf16, #tpu.memory_space<vmem>>, vector<1x1x8x114xbf16>
    %12 = vector.shape_cast %11 : vector<1x1x8x114xbf16> to vector<8x114xbf16>
    %13 = tpu.concatenate %2, %4, %6, %8, %10, %12 in 0 : vector<8x114xbf16>, vector<8x114xbf16>, vector<8x114xbf16>, vector<8x114xbf16>, vector<8x114xbf16>, vector<8x114xbf16> -> vector<48x114xbf16>
    %c0_21 = arith.constant 0 : index
    %c0_22 = arith.constant 0 : index
    %c0_23 = arith.constant 0 : index
    %14 = vector.load %arg3[%c0_21, %c0_22, %c0_23] : memref<7x114x256xbf16, #tpu.memory_space<vmem>>, vector<1x114x256xbf16>
    %15 = vector.shape_cast %14 : vector<1x114x256xbf16> to vector<114x256xbf16>
    %cst_24 = arith.constant dense<0.000000e+00> : vector<48x256xf32>
    %16 = tpu.matmul %13, %15, %cst_24 {dimension_numbers = #tpu.dot_dimension_numbers<[1], [0], [0], [1], [0, 0, 1, 1], [], []>} : vector<48x114xbf16>, vector<114x256xbf16>, vector<48x256xf32> -> vector<48x256xf32>
    %17 = arith.addf %0, %16 : vector<48x256xf32>
    %c0_25 = arith.constant 0 : index
    %c1_26 = arith.constant 1 : index
    %c0_27 = arith.constant 0 : index
    %c0_28 = arith.constant 0 : index
    %18 = vector.load %arg1[%c0_25, %c1_26, %c0_27, %c0_28] : memref<3x4x10x114xbf16, #tpu.memory_space<vmem>>, vector<1x1x8x114xbf16>
    %19 = vector.shape_cast %18 : vector<1x1x8x114xbf16> to vector<8x114xbf16>
    %c0_29 = arith.constant 0 : index
    %c3 = arith.constant 3 : index
    %c0_30 = arith.constant 0 : index
    %c0_31 = arith.constant 0 : index
    %20 = vector.load %arg1[%c0_29, %c3, %c0_30, %c0_31] : memref<3x4x10x114xbf16, #tpu.memory_space<vmem>>, vector<1x1x8x114xbf16>
    %21 = vector.shape_cast %20 : vector<1x1x8x114xbf16> to vector<8x114xbf16>
    %c1_32 = arith.constant 1 : index
    %c1_33 = arith.constant 1 : index
    %c0_34 = arith.constant 0 : index
    %c0_35 = arith.constant 0 : index
    %22 = vector.load %arg1[%c1_32, %c1_33, %c0_34, %c0_35] : memref<3x4x10x114xbf16, #tpu.memory_space<vmem>>, vector<1x1x8x114xbf16>
    %23 = vector.shape_cast %22 : vector<1x1x8x114xbf16> to vector<8x114xbf16>
    %c1_36 = arith.constant 1 : index
    %c3_37 = arith.constant 3 : index
    %c0_38 = arith.constant 0 : index
    %c0_39 = arith.constant 0 : index
    %24 = vector.load %arg1[%c1_36, %c3_37, %c0_38, %c0_39] : memref<3x4x10x114xbf16, #tpu.memory_space<vmem>>, vector<1x1x8x114xbf16>
    %25 = vector.shape_cast %24 : vector<1x1x8x114xbf16> to vector<8x114xbf16>
    %c2_40 = arith.constant 2 : index
    %c1_41 = arith.constant 1 : index
    %c0_42 = arith.constant 0 : index
    %c0_43 = arith.constant 0 : index
    %26 = vector.load %arg1[%c2_40, %c1_41, %c0_42, %c0_43] : memref<3x4x10x114xbf16, #tpu.memory_space<vmem>>, vector<1x1x8x114xbf16>
    %27 = vector.shape_cast %26 : vector<1x1x8x114xbf16> to vector<8x114xbf16>
    %c2_44 = arith.constant 2 : index
    %c3_45 = arith.constant 3 : index
    %c0_46 = arith.constant 0 : index
    %c0_47 = arith.constant 0 : index
    %28 = vector.load %arg1[%c2_44, %c3_45, %c0_46, %c0_47] : memref<3x4x10x114xbf16, #tpu.memory_space<vmem>>, vector<1x1x8x114xbf16>
    %29 = vector.shape_cast %28 : vector<1x1x8x114xbf16> to vector<8x114xbf16>
    %30 = tpu.concatenate %19, %21, %23, %25, %27, %29 in 0 : vector<8x114xbf16>, vector<8x114xbf16>, vector<8x114xbf16>, vector<8x114xbf16>, vector<8x114xbf16>, vector<8x114xbf16> -> vector<48x114xbf16>
    %c1_48 = arith.constant 1 : index
    %c0_49 = arith.constant 0 : index
    %c0_50 = arith.constant 0 : index
    %31 = vector.load %arg3[%c1_48, %c0_49, %c0_50] : memref<7x114x256xbf16, #tpu.memory_space<vmem>>, vector<1x114x256xbf16>
    %32 = vector.shape_cast %31 : vector<1x114x256xbf16> to vector<114x256xbf16>
    %cst_51 = arith.constant dense<0.000000e+00> : vector<48x256xf32>
    %33 = tpu.matmul %30, %32, %cst_51 {dimension_numbers = #tpu.dot_dimension_numbers<[1], [0], [0], [1], [0, 0, 1, 1], [], []>} : vector<48x114xbf16>, vector<114x256xbf16>, vector<48x256xf32> -> vector<48x256xf32>
    %34 = arith.addf %17, %33 : vector<48x256xf32>
    %c0_52 = arith.constant 0 : index
    %c2_53 = arith.constant 2 : index
    %c0_54 = arith.constant 0 : index
    %c0_55 = arith.constant 0 : index
    %35 = vector.load %arg1[%c0_52, %c2_53, %c0_54, %c0_55] : memref<3x4x10x114xbf16, #tpu.memory_space<vmem>>, vector<1x1x8x114xbf16>
    %36 = vector.shape_cast %35 : vector<1x1x8x114xbf16> to vector<8x114xbf16>
    %c0_56 = arith.constant 0 : index
    %c0_57 = arith.constant 0 : index
    %c1_58 = arith.constant 1 : index
    %c0_59 = arith.constant 0 : index
    %37 = vector.load %arg1[%c0_56, %c0_57, %c1_58, %c0_59] : memref<3x4x10x114xbf16, #tpu.memory_space<vmem>>, vector<1x1x8x114xbf16>
    %38 = vector.shape_cast %37 : vector<1x1x8x114xbf16> to vector<8x114xbf16>
    %c1_60 = arith.constant 1 : index
    %c2_61 = arith.constant 2 : index
    %c0_62 = arith.constant 0 : index
    %c0_63 = arith.constant 0 : index
    %39 = vector.load %arg1[%c1_60, %c2_61, %c0_62, %c0_63] : memref<3x4x10x114xbf16, #tpu.memory_space<vmem>>, vector<1x1x8x114xbf16>
    %40 = vector.shape_cast %39 : vector<1x1x8x114xbf16> to vector<8x114xbf16>
    %c1_64 = arith.constant 1 : index
    %c0_65 = arith.constant 0 : index
    %c1_66 = arith.constant 1 : index
    %c0_67 = arith.constant 0 : index
    %41 = vector.load %arg1[%c1_64, %c0_65, %c1_66, %c0_67] : memref<3x4x10x114xbf16, #tpu.memory_space<vmem>>, vector<1x1x8x114xbf16>
    %42 = vector.shape_cast %41 : vector<1x1x8x114xbf16> to vector<8x114xbf16>
    %c2_68 = arith.constant 2 : index
    %c2_69 = arith.constant 2 : index
    %c0_70 = arith.constant 0 : index
    %c0_71 = arith.constant 0 : index
    %43 = vector.load %arg1[%c2_68, %c2_69, %c0_70, %c0_71] : memref<3x4x10x114xbf16, #tpu.memory_space<vmem>>, vector<1x1x8x114xbf16>
    %44 = vector.shape_cast %43 : vector<1x1x8x114xbf16> to vector<8x114xbf16>
    %c2_72 = arith.constant 2 : index
    %c0_73 = arith.constant 0 : index
    %c1_74 = arith.constant 1 : index
    %c0_75 = arith.constant 0 : index
    %45 = vector.load %arg1[%c2_72, %c0_73, %c1_74, %c0_75] : memref<3x4x10x114xbf16, #tpu.memory_space<vmem>>, vector<1x1x8x114xbf16>
    %46 = vector.shape_cast %45 : vector<1x1x8x114xbf16> to vector<8x114xbf16>
    %47 = tpu.concatenate %36, %38, %40, %42, %44, %46 in 0 : vector<8x114xbf16>, vector<8x114xbf16>, vector<8x114xbf16>, vector<8x114xbf16>, vector<8x114xbf16>, vector<8x114xbf16> -> vector<48x114xbf16>
    %c2_76 = arith.constant 2 : index
    %c0_77 = arith.constant 0 : index
    %c0_78 = arith.constant 0 : index
    %48 = vector.load %arg3[%c2_76, %c0_77, %c0_78] : memref<7x114x256xbf16, #tpu.memory_space<vmem>>, vector<1x114x256xbf16>
    %49 = vector.shape_cast %48 : vector<1x114x256xbf16> to vector<114x256xbf16>
    %cst_79 = arith.constant dense<0.000000e+00> : vector<48x256xf32>
    %50 = tpu.matmul %47, %49, %cst_79 {dimension_numbers = #tpu.dot_dimension_numbers<[1], [0], [0], [1], [0, 0, 1, 1], [], []>} : vector<48x114xbf16>, vector<114x256xbf16>, vector<48x256xf32> -> vector<48x256xf32>
    %51 = arith.addf %34, %50 : vector<48x256xf32>
    %c0_80 = arith.constant 0 : index
    %c3_81 = arith.constant 3 : index
    %c0_82 = arith.constant 0 : index
    %c0_83 = arith.constant 0 : index
    %52 = vector.load %arg1[%c0_80, %c3_81, %c0_82, %c0_83] : memref<3x4x10x114xbf16, #tpu.memory_space<vmem>>, vector<1x1x8x114xbf16>
    %53 = vector.shape_cast %52 : vector<1x1x8x114xbf16> to vector<8x114xbf16>
    %c0_84 = arith.constant 0 : index
    %c1_85 = arith.constant 1 : index
    %c1_86 = arith.constant 1 : index
    %c0_87 = arith.constant 0 : index
    %54 = vector.load %arg1[%c0_84, %c1_85, %c1_86, %c0_87] : memref<3x4x10x114xbf16, #tpu.memory_space<vmem>>, vector<1x1x8x114xbf16>
    %55 = vector.shape_cast %54 : vector<1x1x8x114xbf16> to vector<8x114xbf16>
    %c1_88 = arith.constant 1 : index
    %c3_89 = arith.constant 3 : index
    %c0_90 = arith.constant 0 : index
    %c0_91 = arith.constant 0 : index
    %56 = vector.load %arg1[%c1_88, %c3_89, %c0_90, %c0_91] : memref<3x4x10x114xbf16, #tpu.memory_space<vmem>>, vector<1x1x8x114xbf16>
    %57 = vector.shape_cast %56 : vector<1x1x8x114xbf16> to vector<8x114xbf16>
    %c1_92 = arith.constant 1 : index
    %c1_93 = arith.constant 1 : index
    %c1_94 = arith.constant 1 : index
    %c0_95 = arith.constant 0 : index
    %58 = vector.load %arg1[%c1_92, %c1_93, %c1_94, %c0_95] : memref<3x4x10x114xbf16, #tpu.memory_space<vmem>>, vector<1x1x8x114xbf16>
    %59 = vector.shape_cast %58 : vector<1x1x8x114xbf16> to vector<8x114xbf16>
    %c2_96 = arith.constant 2 : index
    %c3_97 = arith.constant 3 : index
    %c0_98 = arith.constant 0 : index
    %c0_99 = arith.constant 0 : index
    %60 = vector.load %arg1[%c2_96, %c3_97, %c0_98, %c0_99] : memref<3x4x10x114xbf16, #tpu.memory_space<vmem>>, vector<1x1x8x114xbf16>
    %61 = vector.shape_cast %60 : vector<1x1x8x114xbf16> to vector<8x114xbf16>
    %c2_100 = arith.constant 2 : index
    %c1_101 = arith.constant 1 : index
    %c1_102 = arith.constant 1 : index
    %c0_103 = arith.constant 0 : index
    %62 = vector.load %arg1[%c2_100, %c1_101, %c1_102, %c0_103] : memref<3x4x10x114xbf16, #tpu.memory_space<vmem>>, vector<1x1x8x114xbf16>
    %63 = vector.shape_cast %62 : vector<1x1x8x114xbf16> to vector<8x114xbf16>
    %64 = tpu.concatenate %53, %55, %57, %59, %61, %63 in 0 : vector<8x114xbf16>, vector<8x114xbf16>, vector<8x114xbf16>, vector<8x114xbf16>, vector<8x114xbf16>, vector<8x114xbf16> -> vector<48x114xbf16>
    %c3_104 = arith.constant 3 : index
    %c0_105 = arith.constant 0 : index
    %c0_106 = arith.constant 0 : index
    %65 = vector.load %arg3[%c3_104, %c0_105, %c0_106] : memref<7x114x256xbf16, #tpu.memory_space<vmem>>, vector<1x114x256xbf16>
    %66 = vector.shape_cast %65 : vector<1x114x256xbf16> to vector<114x256xbf16>
    %cst_107 = arith.constant dense<0.000000e+00> : vector<48x256xf32>
    %67 = tpu.matmul %64, %66, %cst_107 {dimension_numbers = #tpu.dot_dimension_numbers<[1], [0], [0], [1], [0, 0, 1, 1], [], []>} : vector<48x114xbf16>, vector<114x256xbf16>, vector<48x256xf32> -> vector<48x256xf32>
    %68 = arith.addf %51, %67 : vector<48x256xf32>
    %c0_108 = arith.constant 0 : index
    %c0_109 = arith.constant 0 : index
    %c1_110 = arith.constant 1 : index
    %c0_111 = arith.constant 0 : index
    %69 = vector.load %arg1[%c0_108, %c0_109, %c1_110, %c0_111] : memref<3x4x10x114xbf16, #tpu.memory_space<vmem>>, vector<1x1x8x114xbf16>
    %70 = vector.shape_cast %69 : vector<1x1x8x114xbf16> to vector<8x114xbf16>
    %c0_112 = arith.constant 0 : index
    %c2_113 = arith.constant 2 : index
    %c1_114 = arith.constant 1 : index
    %c0_115 = arith.constant 0 : index
    %71 = vector.load %arg1[%c0_112, %c2_113, %c1_114, %c0_115] : memref<3x4x10x114xbf16, #tpu.memory_space<vmem>>, vector<1x1x8x114xbf16>
    %72 = vector.shape_cast %71 : vector<1x1x8x114xbf16> to vector<8x114xbf16>
    %c1_116 = arith.constant 1 : index
    %c0_117 = arith.constant 0 : index
    %c1_118 = arith.constant 1 : index
    %c0_119 = arith.constant 0 : index
    %73 = vector.load %arg1[%c1_116, %c0_117, %c1_118, %c0_119] : memref<3x4x10x114xbf16, #tpu.memory_space<vmem>>, vector<1x1x8x114xbf16>
    %74 = vector.shape_cast %73 : vector<1x1x8x114xbf16> to vector<8x114xbf16>
    %c1_120 = arith.constant 1 : index
    %c2_121 = arith.constant 2 : index
    %c1_122 = arith.constant 1 : index
    %c0_123 = arith.constant 0 : index
    %75 = vector.load %arg1[%c1_120, %c2_121, %c1_122, %c0_123] : memref<3x4x10x114xbf16, #tpu.memory_space<vmem>>, vector<1x1x8x114xbf16>
    %76 = vector.shape_cast %75 : vector<1x1x8x114xbf16> to vector<8x114xbf16>
    %c2_124 = arith.constant 2 : index
    %c0_125 = arith.constant 0 : index
    %c1_126 = arith.constant 1 : index
    %c0_127 = arith.constant 0 : index
    %77 = vector.load %arg1[%c2_124, %c0_125, %c1_126, %c0_127] : memref<3x4x10x114xbf16, #tpu.memory_space<vmem>>, vector<1x1x8x114xbf16>
    %78 = vector.shape_cast %77 : vector<1x1x8x114xbf16> to vector<8x114xbf16>
    %c2_128 = arith.constant 2 : index
    %c2_129 = arith.constant 2 : index
    %c1_130 = arith.constant 1 : index
    %c0_131 = arith.constant 0 : index
    %79 = vector.load %arg1[%c2_128, %c2_129, %c1_130, %c0_131] : memref<3x4x10x114xbf16, #tpu.memory_space<vmem>>, vector<1x1x8x114xbf16>
    %80 = vector.shape_cast %79 : vector<1x1x8x114xbf16> to vector<8x114xbf16>
    %81 = tpu.concatenate %70, %72, %74, %76, %78, %80 in 0 : vector<8x114xbf16>, vector<8x114xbf16>, vector<8x114xbf16>, vector<8x114xbf16>, vector<8x114xbf16>, vector<8x114xbf16> -> vector<48x114xbf16>
    %c4 = arith.constant 4 : index
    %c0_132 = arith.constant 0 : index
    %c0_133 = arith.constant 0 : index
    %82 = vector.load %arg3[%c4, %c0_132, %c0_133] : memref<7x114x256xbf16, #tpu.memory_space<vmem>>, vector<1x114x256xbf16>
    %83 = vector.shape_cast %82 : vector<1x114x256xbf16> to vector<114x256xbf16>
    %cst_134 = arith.constant dense<0.000000e+00> : vector<48x256xf32>
    %84 = tpu.matmul %81, %83, %cst_134 {dimension_numbers = #tpu.dot_dimension_numbers<[1], [0], [0], [1], [0, 0, 1, 1], [], []>} : vector<48x114xbf16>, vector<114x256xbf16>, vector<48x256xf32> -> vector<48x256xf32>
    %85 = arith.addf %68, %84 : vector<48x256xf32>
    %c0_135 = arith.constant 0 : index
    %c1_136 = arith.constant 1 : index
    %c1_137 = arith.constant 1 : index
    %c0_138 = arith.constant 0 : index
    %86 = vector.load %arg1[%c0_135, %c1_136, %c1_137, %c0_138] : memref<3x4x10x114xbf16, #tpu.memory_space<vmem>>, vector<1x1x8x114xbf16>
    %87 = vector.shape_cast %86 : vector<1x1x8x114xbf16> to vector<8x114xbf16>
    %c0_139 = arith.constant 0 : index
    %c3_140 = arith.constant 3 : index
    %c1_141 = arith.constant 1 : index
    %c0_142 = arith.constant 0 : index
    %88 = vector.load %arg1[%c0_139, %c3_140, %c1_141, %c0_142] : memref<3x4x10x114xbf16, #tpu.memory_space<vmem>>, vector<1x1x8x114xbf16>
    %89 = vector.shape_cast %88 : vector<1x1x8x114xbf16> to vector<8x114xbf16>
    %c1_143 = arith.constant 1 : index
    %c1_144 = arith.constant 1 : index
    %c1_145 = arith.constant 1 : index
    %c0_146 = arith.constant 0 : index
    %90 = vector.load %arg1[%c1_143, %c1_144, %c1_145, %c0_146] : memref<3x4x10x114xbf16, #tpu.memory_space<vmem>>, vector<1x1x8x114xbf16>
    %91 = vector.shape_cast %90 : vector<1x1x8x114xbf16> to vector<8x114xbf16>
    %c1_147 = arith.constant 1 : index
    %c3_148 = arith.constant 3 : index
    %c1_149 = arith.constant 1 : index
    %c0_150 = arith.constant 0 : index
    %92 = vector.load %arg1[%c1_147, %c3_148, %c1_149, %c0_150] : memref<3x4x10x114xbf16, #tpu.memory_space<vmem>>, vector<1x1x8x114xbf16>
    %93 = vector.shape_cast %92 : vector<1x1x8x114xbf16> to vector<8x114xbf16>
    %c2_151 = arith.constant 2 : index
    %c1_152 = arith.constant 1 : index
    %c1_153 = arith.constant 1 : index
    %c0_154 = arith.constant 0 : index
    %94 = vector.load %arg1[%c2_151, %c1_152, %c1_153, %c0_154] : memref<3x4x10x114xbf16, #tpu.memory_space<vmem>>, vector<1x1x8x114xbf16>
    %95 = vector.shape_cast %94 : vector<1x1x8x114xbf16> to vector<8x114xbf16>
    %c2_155 = arith.constant 2 : index
    %c3_156 = arith.constant 3 : index
    %c1_157 = arith.constant 1 : index
    %c0_158 = arith.constant 0 : index
    %96 = vector.load %arg1[%c2_155, %c3_156, %c1_157, %c0_158] : memref<3x4x10x114xbf16, #tpu.memory_space<vmem>>, vector<1x1x8x114xbf16>
    %97 = vector.shape_cast %96 : vector<1x1x8x114xbf16> to vector<8x114xbf16>
    %98 = tpu.concatenate %87, %89, %91, %93, %95, %97 in 0 : vector<8x114xbf16>, vector<8x114xbf16>, vector<8x114xbf16>, vector<8x114xbf16>, vector<8x114xbf16>, vector<8x114xbf16> -> vector<48x114xbf16>
    %c5 = arith.constant 5 : index
    %c0_159 = arith.constant 0 : index
    %c0_160 = arith.constant 0 : index
    %99 = vector.load %arg3[%c5, %c0_159, %c0_160] : memref<7x114x256xbf16, #tpu.memory_space<vmem>>, vector<1x114x256xbf16>
    %100 = vector.shape_cast %99 : vector<1x114x256xbf16> to vector<114x256xbf16>
    %cst_161 = arith.constant dense<0.000000e+00> : vector<48x256xf32>
    %101 = tpu.matmul %98, %100, %cst_161 {dimension_numbers = #tpu.dot_dimension_numbers<[1], [0], [0], [1], [0, 0, 1, 1], [], []>} : vector<48x114xbf16>, vector<114x256xbf16>, vector<48x256xf32> -> vector<48x256xf32>
    %102 = arith.addf %85, %101 : vector<48x256xf32>
    %c0_162 = arith.constant 0 : index
    %c2_163 = arith.constant 2 : index
    %c1_164 = arith.constant 1 : index
    %c0_165 = arith.constant 0 : index
    %103 = vector.load %arg1[%c0_162, %c2_163, %c1_164, %c0_165] : memref<3x4x10x114xbf16, #tpu.memory_space<vmem>>, vector<1x1x8x114xbf16>
    %104 = vector.shape_cast %103 : vector<1x1x8x114xbf16> to vector<8x114xbf16>
    %c0_166 = arith.constant 0 : index
    %c0_167 = arith.constant 0 : index
    %c2_168 = arith.constant 2 : index
    %c0_169 = arith.constant 0 : index
    %105 = vector.load %arg1[%c0_166, %c0_167, %c2_168, %c0_169] : memref<3x4x10x114xbf16, #tpu.memory_space<vmem>>, vector<1x1x8x114xbf16>
    %106 = vector.shape_cast %105 : vector<1x1x8x114xbf16> to vector<8x114xbf16>
    %c1_170 = arith.constant 1 : index
    %c2_171 = arith.constant 2 : index
    %c1_172 = arith.constant 1 : index
    %c0_173 = arith.constant 0 : index
    %107 = vector.load %arg1[%c1_170, %c2_171, %c1_172, %c0_173] : memref<3x4x10x114xbf16, #tpu.memory_space<vmem>>, vector<1x1x8x114xbf16>
    %108 = vector.shape_cast %107 : vector<1x1x8x114xbf16> to vector<8x114xbf16>
    %c1_174 = arith.constant 1 : index
    %c0_175 = arith.constant 0 : index
    %c2_176 = arith.constant 2 : index
    %c0_177 = arith.constant 0 : index
    %109 = vector.load %arg1[%c1_174, %c0_175, %c2_176, %c0_177] : memref<3x4x10x114xbf16, #tpu.memory_space<vmem>>, vector<1x1x8x114xbf16>
    %110 = vector.shape_cast %109 : vector<1x1x8x114xbf16> to vector<8x114xbf16>
    %c2_178 = arith.constant 2 : index
    %c2_179 = arith.constant 2 : index
    %c1_180 = arith.constant 1 : index
    %c0_181 = arith.constant 0 : index
    %111 = vector.load %arg1[%c2_178, %c2_179, %c1_180, %c0_181] : memref<3x4x10x114xbf16, #tpu.memory_space<vmem>>, vector<1x1x8x114xbf16>
    %112 = vector.shape_cast %111 : vector<1x1x8x114xbf16> to vector<8x114xbf16>
    %c2_182 = arith.constant 2 : index
    %c0_183 = arith.constant 0 : index
    %c2_184 = arith.constant 2 : index
    %c0_185 = arith.constant 0 : index
    %113 = vector.load %arg1[%c2_182, %c0_183, %c2_184, %c0_185] : memref<3x4x10x114xbf16, #tpu.memory_space<vmem>>, vector<1x1x8x114xbf16>
    %114 = vector.shape_cast %113 : vector<1x1x8x114xbf16> to vector<8x114xbf16>
    %115 = tpu.concatenate %104, %106, %108, %110, %112, %114 in 0 : vector<8x114xbf16>, vector<8x114xbf16>, vector<8x114xbf16>, vector<8x114xbf16>, vector<8x114xbf16>, vector<8x114xbf16> -> vector<48x114xbf16>
    %c6 = arith.constant 6 : index
    %c0_186 = arith.constant 0 : index
    %c0_187 = arith.constant 0 : index
    %116 = vector.load %arg3[%c6, %c0_186, %c0_187] : memref<7x114x256xbf16, #tpu.memory_space<vmem>>, vector<1x114x256xbf16>
    %117 = vector.shape_cast %116 : vector<1x114x256xbf16> to vector<114x256xbf16>
    %cst_188 = arith.constant dense<0.000000e+00> : vector<48x256xf32>
    %118 = tpu.matmul %115, %117, %cst_188 {dimension_numbers = #tpu.dot_dimension_numbers<[1], [0], [0], [1], [0, 0, 1, 1], [], []>} : vector<48x114xbf16>, vector<114x256xbf16>, vector<48x256xf32> -> vector<48x256xf32>
    %119 = arith.addf %102, %118 : vector<48x256xf32>
    %c0_189 = arith.constant 0 : index
    %c0_190 = arith.constant 0 : index
    %120 = vector.load %arg4[%c0_189, %c0_190] : memref<1x256xf32, #tpu.memory_space<vmem>>, vector<1x256xf32>
    %121 = vector.broadcast %120 : vector<1x256xf32> to vector<48x256xf32>
    %122 = arith.mulf %119, %121 : vector<48x256xf32>
    %c0_191 = arith.constant 0 : index
    %c0_192 = arith.constant 0 : index
    %123 = vector.load %arg5[%c0_191, %c0_192] : memref<1x256xf32, #tpu.memory_space<vmem>>, vector<1x256xf32>
    %124 = vector.broadcast %123 : vector<1x256xf32> to vector<48x256xf32>
    %125 = arith.addf %122, %124 : vector<48x256xf32>
    %cst_193 = arith.constant 0.000000e+00 : f32
    %126 = vector.broadcast %cst_193 : f32 to vector<48x256xf32>
    %127 = arith.maximumf %125, %126 : vector<48x256xf32>
    %128 = vector.extract_strided_slice %127 {offsets = [0, 0], sizes = [48, 128], strides = [1, 1]} : vector<48x256xf32> to vector<48x128xf32>
    %129 = vector.extract_strided_slice %127 {offsets = [0, 128], sizes = [48, 128], strides = [1, 1]} : vector<48x256xf32> to vector<48x128xf32>
    %130 = tpu.iota {dimensions = array<i32: 1>} : vector<48x128xi32>
    %c16_i32 = arith.constant 16 : i32
    %131 = vector.broadcast %c16_i32 : i32 to vector<48x128xi32>
    %132 = arith.cmpi sge, %130, %131 : vector<48x128xi32>
    %c16_i32_194 = arith.constant 16 : i32
    %133 = tpu.dynamic_rotate %129 by %c16_i32_194 dim 1 : vector<48x128xf32>, i32 -> vector<48x128xf32>
    %cst_195 = arith.constant 0.000000e+00 : f32
    %134 = vector.broadcast %cst_195 : f32 to vector<48x128xf32>
    %135 = arith.select %132, %133, %134 : vector<48x128xi1>, vector<48x128xf32>
    %136 = arith.maximumf %128, %129 : vector<48x128xf32>
    %137 = arith.maximumf %136, %135 : vector<48x128xf32>
    %cst_196 = arith.constant 0.000000e+00 : f32
    %138 = vector.broadcast %cst_196 : f32 to vector<1x128xf32>
    %139 = vector.extract_strided_slice %137 {offsets = [0, 0], sizes = [16, 128], strides = [1, 1]} : vector<48x128xf32> to vector<16x128xf32>
    %140 = vector.extract_strided_slice %139 {offsets = [0, 0], sizes = [8, 128], strides = [1, 1]} : vector<16x128xf32> to vector<8x128xf32>
    %141 = vector.extract_strided_slice %139 {offsets = [8, 0], sizes = [8, 128], strides = [1, 1]} : vector<16x128xf32> to vector<8x128xf32>
    %142 = vector.extract_strided_slice %139 {offsets = [8, 0], sizes = [7, 128], strides = [1, 1]} : vector<16x128xf32> to vector<7x128xf32>
    %143 = tpu.concatenate %138, %142 in 0 : vector<1x128xf32>, vector<7x128xf32> -> vector<8x128xf32>
    %144 = arith.maximumf %140, %141 : vector<8x128xf32>
    %145 = arith.maximumf %144, %143 : vector<8x128xf32>
    %cst_197 = arith.constant 0.000000e+00 : f32
    %146 = vector.broadcast %cst_197 : f32 to vector<7x128xf32>
    %147 = vector.extract_strided_slice %137 {offsets = [16, 0], sizes = [16, 128], strides = [1, 1]} : vector<48x128xf32> to vector<16x128xf32>
    %148 = vector.extract_strided_slice %147 {offsets = [0, 0], sizes = [8, 128], strides = [1, 1]} : vector<16x128xf32> to vector<8x128xf32>
    %149 = vector.extract_strided_slice %147 {offsets = [8, 0], sizes = [8, 128], strides = [1, 1]} : vector<16x128xf32> to vector<8x128xf32>
    %150 = vector.extract_strided_slice %147 {offsets = [8, 0], sizes = [7, 128], strides = [1, 1]} : vector<16x128xf32> to vector<7x128xf32>
    %151 = tpu.concatenate %138, %150 in 0 : vector<1x128xf32>, vector<7x128xf32> -> vector<8x128xf32>
    %152 = arith.maximumf %148, %149 : vector<8x128xf32>
    %153 = arith.maximumf %152, %151 : vector<8x128xf32>
    %cst_198 = arith.constant 0.000000e+00 : f32
    %154 = vector.broadcast %cst_198 : f32 to vector<7x128xf32>
    %155 = vector.extract_strided_slice %137 {offsets = [32, 0], sizes = [16, 128], strides = [1, 1]} : vector<48x128xf32> to vector<16x128xf32>
    %156 = vector.extract_strided_slice %155 {offsets = [0, 0], sizes = [8, 128], strides = [1, 1]} : vector<16x128xf32> to vector<8x128xf32>
    %157 = vector.extract_strided_slice %155 {offsets = [8, 0], sizes = [8, 128], strides = [1, 1]} : vector<16x128xf32> to vector<8x128xf32>
    %158 = vector.extract_strided_slice %155 {offsets = [8, 0], sizes = [7, 128], strides = [1, 1]} : vector<16x128xf32> to vector<7x128xf32>
    %159 = tpu.concatenate %138, %158 in 0 : vector<1x128xf32>, vector<7x128xf32> -> vector<8x128xf32>
    %160 = arith.maximumf %156, %157 : vector<8x128xf32>
    %161 = arith.maximumf %160, %159 : vector<8x128xf32>
    %cst_199 = arith.constant 0.000000e+00 : f32
    %162 = vector.broadcast %cst_199 : f32 to vector<7x128xf32>
    %163 = tpu.concatenate %138, %145, %146, %138, %153, %154, %138, %161, %162 in 0 : vector<1x128xf32>, vector<8x128xf32>, vector<7x128xf32>, vector<1x128xf32>, vector<8x128xf32>, vector<7x128xf32>, vector<1x128xf32>, vector<8x128xf32>, vector<7x128xf32> -> vector<48x128xf32>
    %c0_200 = arith.constant 0 : index
    %c0_201 = arith.constant 0 : index
    %164 = vector.load %arg2[%c0_200, %c0_201] : memref<48x1xf32, #tpu.memory_space<vmem>>, vector<48x1xf32>
    %c0_202 = arith.constant 0 : index
    %c0_203 = arith.constant 0 : index
    %c0_204 = arith.constant 0 : index
    %c0_205 = arith.constant 0 : index
    %165 = vector.load %arg6[%c0_202, %c0_203, %c0_204, %c0_205] : memref<4x3x128x128xbf16, #tpu.memory_space<vmem>>, vector<1x1x128x128xbf16>
    %166 = vector.shape_cast %165 : vector<1x1x128x128xbf16> to vector<128x128xbf16>
    %c0_206 = arith.constant 0 : index
    %c1_207 = arith.constant 1 : index
    %c0_208 = arith.constant 0 : index
    %c0_209 = arith.constant 0 : index
    %167 = vector.load %arg6[%c0_206, %c1_207, %c0_208, %c0_209] : memref<4x3x128x128xbf16, #tpu.memory_space<vmem>>, vector<1x1x128x128xbf16>
    %168 = vector.shape_cast %167 : vector<1x1x128x128xbf16> to vector<128x128xbf16>
    %c0_210 = arith.constant 0 : index
    %c2_211 = arith.constant 2 : index
    %c0_212 = arith.constant 0 : index
    %c0_213 = arith.constant 0 : index
    %169 = vector.load %arg6[%c0_210, %c2_211, %c0_212, %c0_213] : memref<4x3x128x128xbf16, #tpu.memory_space<vmem>>, vector<1x1x128x128xbf16>
    %170 = vector.shape_cast %169 : vector<1x1x128x128xbf16> to vector<128x128xbf16>
    %c0_214 = arith.constant 0 : index
    %c0_215 = arith.constant 0 : index
    %c0_216 = arith.constant 0 : index
    %171 = vector.load %arg7[%c0_214, %c0_215, %c0_216] : memref<4x1x128xf32, #tpu.memory_space<vmem>>, vector<1x1x128xf32>
    %172 = vector.shape_cast %171 : vector<1x1x128xf32> to vector<1x128xf32>
    %c0_217 = arith.constant 0 : index
    %c0_218 = arith.constant 0 : index
    %c0_219 = arith.constant 0 : index
    %173 = vector.load %arg8[%c0_217, %c0_218, %c0_219] : memref<4x1x128xf32, #tpu.memory_space<vmem>>, vector<1x1x128xf32>
    %174 = vector.shape_cast %173 : vector<1x1x128xf32> to vector<1x128xf32>
    %175 = arith.truncf %163 : vector<48x128xf32> to vector<48x128xbf16>
    %cst_220 = arith.constant 0.000000e+00 : bf16
    %176 = vector.broadcast %cst_220 : bf16 to vector<1x128xbf16>
    %177 = vector.extract_strided_slice %175 {offsets = [0, 0], sizes = [47, 128], strides = [1, 1]} : vector<48x128xbf16> to vector<47x128xbf16>
    %178 = tpu.concatenate %176, %177 in 0 : vector<1x128xbf16>, vector<47x128xbf16> -> vector<48x128xbf16>
    %179 = vector.extract_strided_slice %175 {offsets = [1, 0], sizes = [47, 128], strides = [1, 1]} : vector<48x128xbf16> to vector<47x128xbf16>
    %180 = tpu.concatenate %179, %176 in 0 : vector<47x128xbf16>, vector<1x128xbf16> -> vector<48x128xbf16>
    %cst_221 = arith.constant dense<0.000000e+00> : vector<48x128xf32>
    %181 = tpu.matmul %178, %166, %cst_221 {dimension_numbers = #tpu.dot_dimension_numbers<[1], [0], [0], [1], [0, 0, 1, 1], [], []>} : vector<48x128xbf16>, vector<128x128xbf16>, vector<48x128xf32> -> vector<48x128xf32>
    %cst_222 = arith.constant dense<0.000000e+00> : vector<48x128xf32>
    %182 = tpu.matmul %175, %168, %cst_222 {dimension_numbers = #tpu.dot_dimension_numbers<[1], [0], [0], [1], [0, 0, 1, 1], [], []>} : vector<48x128xbf16>, vector<128x128xbf16>, vector<48x128xf32> -> vector<48x128xf32>
    %183 = arith.addf %181, %182 : vector<48x128xf32>
    %cst_223 = arith.constant dense<0.000000e+00> : vector<48x128xf32>
    %184 = tpu.matmul %180, %170, %cst_223 {dimension_numbers = #tpu.dot_dimension_numbers<[1], [0], [0], [1], [0, 0, 1, 1], [], []>} : vector<48x128xbf16>, vector<128x128xbf16>, vector<48x128xf32> -> vector<48x128xf32>
    %185 = arith.addf %183, %184 : vector<48x128xf32>
    %186 = vector.broadcast %172 : vector<1x128xf32> to vector<48x128xf32>
    %187 = arith.mulf %185, %186 : vector<48x128xf32>
    %188 = vector.broadcast %174 : vector<1x128xf32> to vector<48x128xf32>
    %189 = arith.addf %187, %188 : vector<48x128xf32>
    %cst_224 = arith.constant 0.000000e+00 : f32
    %190 = vector.broadcast %cst_224 : f32 to vector<48x128xf32>
    %191 = arith.maximumf %189, %190 : vector<48x128xf32>
    %192 = vector.broadcast %164 : vector<48x1xf32> to vector<48x128xf32>
    %193 = arith.mulf %191, %192 : vector<48x128xf32>
    %c1_225 = arith.constant 1 : index
    %c0_226 = arith.constant 0 : index
    %c0_227 = arith.constant 0 : index
    %c0_228 = arith.constant 0 : index
    %194 = vector.load %arg6[%c1_225, %c0_226, %c0_227, %c0_228] : memref<4x3x128x128xbf16, #tpu.memory_space<vmem>>, vector<1x1x128x128xbf16>
    %195 = vector.shape_cast %194 : vector<1x1x128x128xbf16> to vector<128x128xbf16>
    %c1_229 = arith.constant 1 : index
    %c1_230 = arith.constant 1 : index
    %c0_231 = arith.constant 0 : index
    %c0_232 = arith.constant 0 : index
    %196 = vector.load %arg6[%c1_229, %c1_230, %c0_231, %c0_232] : memref<4x3x128x128xbf16, #tpu.memory_space<vmem>>, vector<1x1x128x128xbf16>
    %197 = vector.shape_cast %196 : vector<1x1x128x128xbf16> to vector<128x128xbf16>
    %c1_233 = arith.constant 1 : index
    %c2_234 = arith.constant 2 : index
    %c0_235 = arith.constant 0 : index
    %c0_236 = arith.constant 0 : index
    %198 = vector.load %arg6[%c1_233, %c2_234, %c0_235, %c0_236] : memref<4x3x128x128xbf16, #tpu.memory_space<vmem>>, vector<1x1x128x128xbf16>
    %199 = vector.shape_cast %198 : vector<1x1x128x128xbf16> to vector<128x128xbf16>
    %c1_237 = arith.constant 1 : index
    %c0_238 = arith.constant 0 : index
    %c0_239 = arith.constant 0 : index
    %200 = vector.load %arg7[%c1_237, %c0_238, %c0_239] : memref<4x1x128xf32, #tpu.memory_space<vmem>>, vector<1x1x128xf32>
    %201 = vector.shape_cast %200 : vector<1x1x128xf32> to vector<1x128xf32>
    %c1_240 = arith.constant 1 : index
    %c0_241 = arith.constant 0 : index
    %c0_242 = arith.constant 0 : index
    %202 = vector.load %arg8[%c1_240, %c0_241, %c0_242] : memref<4x1x128xf32, #tpu.memory_space<vmem>>, vector<1x1x128xf32>
    %203 = vector.shape_cast %202 : vector<1x1x128xf32> to vector<1x128xf32>
    %204 = arith.truncf %193 : vector<48x128xf32> to vector<48x128xbf16>
    %cst_243 = arith.constant 0.000000e+00 : bf16
    %205 = vector.broadcast %cst_243 : bf16 to vector<1x128xbf16>
    %206 = vector.extract_strided_slice %204 {offsets = [0, 0], sizes = [47, 128], strides = [1, 1]} : vector<48x128xbf16> to vector<47x128xbf16>
    %207 = tpu.concatenate %205, %206 in 0 : vector<1x128xbf16>, vector<47x128xbf16> -> vector<48x128xbf16>
    %208 = vector.extract_strided_slice %204 {offsets = [1, 0], sizes = [47, 128], strides = [1, 1]} : vector<48x128xbf16> to vector<47x128xbf16>
    %209 = tpu.concatenate %208, %205 in 0 : vector<47x128xbf16>, vector<1x128xbf16> -> vector<48x128xbf16>
    %cst_244 = arith.constant dense<0.000000e+00> : vector<48x128xf32>
    %210 = tpu.matmul %207, %195, %cst_244 {dimension_numbers = #tpu.dot_dimension_numbers<[1], [0], [0], [1], [0, 0, 1, 1], [], []>} : vector<48x128xbf16>, vector<128x128xbf16>, vector<48x128xf32> -> vector<48x128xf32>
    %cst_245 = arith.constant dense<0.000000e+00> : vector<48x128xf32>
    %211 = tpu.matmul %204, %197, %cst_245 {dimension_numbers = #tpu.dot_dimension_numbers<[1], [0], [0], [1], [0, 0, 1, 1], [], []>} : vector<48x128xbf16>, vector<128x128xbf16>, vector<48x128xf32> -> vector<48x128xf32>
    %212 = arith.addf %210, %211 : vector<48x128xf32>
    %cst_246 = arith.constant dense<0.000000e+00> : vector<48x128xf32>
    %213 = tpu.matmul %209, %199, %cst_246 {dimension_numbers = #tpu.dot_dimension_numbers<[1], [0], [0], [1], [0, 0, 1, 1], [], []>} : vector<48x128xbf16>, vector<128x128xbf16>, vector<48x128xf32> -> vector<48x128xf32>
    %214 = arith.addf %212, %213 : vector<48x128xf32>
    %215 = vector.broadcast %201 : vector<1x128xf32> to vector<48x128xf32>
    %216 = arith.mulf %214, %215 : vector<48x128xf32>
    %217 = vector.broadcast %203 : vector<1x128xf32> to vector<48x128xf32>
    %218 = arith.addf %216, %217 : vector<48x128xf32>
    %219 = arith.addf %218, %163 : vector<48x128xf32>
    %220 = vector.broadcast %164 : vector<48x1xf32> to vector<48x128xf32>
    %221 = arith.mulf %219, %220 : vector<48x128xf32>
    %c2_247 = arith.constant 2 : index
    %c0_248 = arith.constant 0 : index
    %c0_249 = arith.constant 0 : index
    %c0_250 = arith.constant 0 : index
    %222 = vector.load %arg6[%c2_247, %c0_248, %c0_249, %c0_250] : memref<4x3x128x128xbf16, #tpu.memory_space<vmem>>, vector<1x1x128x128xbf16>
    %223 = vector.shape_cast %222 : vector<1x1x128x128xbf16> to vector<128x128xbf16>
    %c2_251 = arith.constant 2 : index
    %c1_252 = arith.constant 1 : index
    %c0_253 = arith.constant 0 : index
    %c0_254 = arith.constant 0 : index
    %224 = vector.load %arg6[%c2_251, %c1_252, %c0_253, %c0_254] : memref<4x3x128x128xbf16, #tpu.memory_space<vmem>>, vector<1x1x128x128xbf16>
    %225 = vector.shape_cast %224 : vector<1x1x128x128xbf16> to vector<128x128xbf16>
    %c2_255 = arith.constant 2 : index
    %c2_256 = arith.constant 2 : index
    %c0_257 = arith.constant 0 : index
    %c0_258 = arith.constant 0 : index
    %226 = vector.load %arg6[%c2_255, %c2_256, %c0_257, %c0_258] : memref<4x3x128x128xbf16, #tpu.memory_space<vmem>>, vector<1x1x128x128xbf16>
    %227 = vector.shape_cast %226 : vector<1x1x128x128xbf16> to vector<128x128xbf16>
    %c2_259 = arith.constant 2 : index
    %c0_260 = arith.constant 0 : index
    %c0_261 = arith.constant 0 : index
    %228 = vector.load %arg7[%c2_259, %c0_260, %c0_261] : memref<4x1x128xf32, #tpu.memory_space<vmem>>, vector<1x1x128xf32>
    %229 = vector.shape_cast %228 : vector<1x1x128xf32> to vector<1x128xf32>
    %c2_262 = arith.constant 2 : index
    %c0_263 = arith.constant 0 : index
    %c0_264 = arith.constant 0 : index
    %230 = vector.load %arg8[%c2_262, %c0_263, %c0_264] : memref<4x1x128xf32, #tpu.memory_space<vmem>>, vector<1x1x128xf32>
    %231 = vector.shape_cast %230 : vector<1x1x128xf32> to vector<1x128xf32>
    %232 = arith.truncf %221 : vector<48x128xf32> to vector<48x128xbf16>
    %cst_265 = arith.constant 0.000000e+00 : bf16
    %233 = vector.broadcast %cst_265 : bf16 to vector<1x128xbf16>
    %234 = vector.extract_strided_slice %232 {offsets = [0, 0], sizes = [47, 128], strides = [1, 1]} : vector<48x128xbf16> to vector<47x128xbf16>
    %235 = tpu.concatenate %233, %234 in 0 : vector<1x128xbf16>, vector<47x128xbf16> -> vector<48x128xbf16>
    %236 = vector.extract_strided_slice %232 {offsets = [1, 0], sizes = [47, 128], strides = [1, 1]} : vector<48x128xbf16> to vector<47x128xbf16>
    %237 = tpu.concatenate %236, %233 in 0 : vector<47x128xbf16>, vector<1x128xbf16> -> vector<48x128xbf16>
    %cst_266 = arith.constant dense<0.000000e+00> : vector<48x128xf32>
    %238 = tpu.matmul %235, %223, %cst_266 {dimension_numbers = #tpu.dot_dimension_numbers<[1], [0], [0], [1], [0, 0, 1, 1], [], []>} : vector<48x128xbf16>, vector<128x128xbf16>, vector<48x128xf32> -> vector<48x128xf32>
    %cst_267 = arith.constant dense<0.000000e+00> : vector<48x128xf32>
    %239 = tpu.matmul %232, %225, %cst_267 {dimension_numbers = #tpu.dot_dimension_numbers<[1], [0], [0], [1], [0, 0, 1, 1], [], []>} : vector<48x128xbf16>, vector<128x128xbf16>, vector<48x128xf32> -> vector<48x128xf32>
    %240 = arith.addf %238, %239 : vector<48x128xf32>
    %cst_268 = arith.constant dense<0.000000e+00> : vector<48x128xf32>
    %241 = tpu.matmul %237, %227, %cst_268 {dimension_numbers = #tpu.dot_dimension_numbers<[1], [0], [0], [1], [0, 0, 1, 1], [], []>} : vector<48x128xbf16>, vector<128x128xbf16>, vector<48x128xf32> -> vector<48x128xf32>
    %242 = arith.addf %240, %241 : vector<48x128xf32>
    %243 = vector.broadcast %229 : vector<1x128xf32> to vector<48x128xf32>
    %244 = arith.mulf %242, %243 : vector<48x128xf32>
    %245 = vector.broadcast %231 : vector<1x128xf32> to vector<48x128xf32>
    %246 = arith.addf %244, %245 : vector<48x128xf32>
    %cst_269 = arith.constant 0.000000e+00 : f32
    %247 = vector.broadcast %cst_269 : f32 to vector<48x128xf32>
    %248 = arith.maximumf %246, %247 : vector<48x128xf32>
    %249 = vector.broadcast %164 : vector<48x1xf32> to vector<48x128xf32>
    %250 = arith.mulf %248, %249 : vector<48x128xf32>
    %c3_270 = arith.constant 3 : index
    %c0_271 = arith.constant 0 : index
    %c0_272 = arith.constant 0 : index
    %c0_273 = arith.constant 0 : index
    %251 = vector.load %arg6[%c3_270, %c0_271, %c0_272, %c0_273] : memref<4x3x128x128xbf16, #tpu.memory_space<vmem>>, vector<1x1x128x128xbf16>
    %252 = vector.shape_cast %251 : vector<1x1x128x128xbf16> to vector<128x128xbf16>
    %c3_274 = arith.constant 3 : index
    %c1_275 = arith.constant 1 : index
    %c0_276 = arith.constant 0 : index
    %c0_277 = arith.constant 0 : index
    %253 = vector.load %arg6[%c3_274, %c1_275, %c0_276, %c0_277] : memref<4x3x128x128xbf16, #tpu.memory_space<vmem>>, vector<1x1x128x128xbf16>
    %254 = vector.shape_cast %253 : vector<1x1x128x128xbf16> to vector<128x128xbf16>
    %c3_278 = arith.constant 3 : index
    %c2_279 = arith.constant 2 : index
    %c0_280 = arith.constant 0 : index
    %c0_281 = arith.constant 0 : index
    %255 = vector.load %arg6[%c3_278, %c2_279, %c0_280, %c0_281] : memref<4x3x128x128xbf16, #tpu.memory_space<vmem>>, vector<1x1x128x128xbf16>
    %256 = vector.shape_cast %255 : vector<1x1x128x128xbf16> to vector<128x128xbf16>
    %c3_282 = arith.constant 3 : index
    %c0_283 = arith.constant 0 : index
    %c0_284 = arith.constant 0 : index
    %257 = vector.load %arg7[%c3_282, %c0_283, %c0_284] : memref<4x1x128xf32, #tpu.memory_space<vmem>>, vector<1x1x128xf32>
    %258 = vector.shape_cast %257 : vector<1x1x128xf32> to vector<1x128xf32>
    %c3_285 = arith.constant 3 : index
    %c0_286 = arith.constant 0 : index
    %c0_287 = arith.constant 0 : index
    %259 = vector.load %arg8[%c3_285, %c0_286, %c0_287] : memref<4x1x128xf32, #tpu.memory_space<vmem>>, vector<1x1x128xf32>
    %260 = vector.shape_cast %259 : vector<1x1x128xf32> to vector<1x128xf32>
    %261 = arith.truncf %250 : vector<48x128xf32> to vector<48x128xbf16>
    %cst_288 = arith.constant 0.000000e+00 : bf16
    %262 = vector.broadcast %cst_288 : bf16 to vector<1x128xbf16>
    %263 = vector.extract_strided_slice %261 {offsets = [0, 0], sizes = [47, 128], strides = [1, 1]} : vector<48x128xbf16> to vector<47x128xbf16>
    %264 = tpu.concatenate %262, %263 in 0 : vector<1x128xbf16>, vector<47x128xbf16> -> vector<48x128xbf16>
    %265 = vector.extract_strided_slice %261 {offsets = [1, 0], sizes = [47, 128], strides = [1, 1]} : vector<48x128xbf16> to vector<47x128xbf16>
    %266 = tpu.concatenate %265, %262 in 0 : vector<47x128xbf16>, vector<1x128xbf16> -> vector<48x128xbf16>
    %cst_289 = arith.constant dense<0.000000e+00> : vector<48x128xf32>
    %267 = tpu.matmul %264, %252, %cst_289 {dimension_numbers = #tpu.dot_dimension_numbers<[1], [0], [0], [1], [0, 0, 1, 1], [], []>} : vector<48x128xbf16>, vector<128x128xbf16>, vector<48x128xf32> -> vector<48x128xf32>
    %cst_290 = arith.constant dense<0.000000e+00> : vector<48x128xf32>
    %268 = tpu.matmul %261, %254, %cst_290 {dimension_numbers = #tpu.dot_dimension_numbers<[1], [0], [0], [1], [0, 0, 1, 1], [], []>} : vector<48x128xbf16>, vector<128x128xbf16>, vector<48x128xf32> -> vector<48x128xf32>
    %269 = arith.addf %267, %268 : vector<48x128xf32>
    %cst_291 = arith.constant dense<0.000000e+00> : vector<48x128xf32>
    %270 = tpu.matmul %266, %256, %cst_291 {dimension_numbers = #tpu.dot_dimension_numbers<[1], [0], [0], [1], [0, 0, 1, 1], [], []>} : vector<48x128xbf16>, vector<128x128xbf16>, vector<48x128xf32> -> vector<48x128xf32>
    %271 = arith.addf %269, %270 : vector<48x128xf32>
    %272 = vector.broadcast %258 : vector<1x128xf32> to vector<48x128xf32>
    %273 = arith.mulf %271, %272 : vector<48x128xf32>
    %274 = vector.broadcast %260 : vector<1x128xf32> to vector<48x128xf32>
    %275 = arith.addf %273, %274 : vector<48x128xf32>
    %276 = arith.addf %275, %221 : vector<48x128xf32>
    %277 = vector.broadcast %164 : vector<48x1xf32> to vector<48x128xf32>
    %278 = arith.mulf %276, %277 : vector<48x128xf32>
    %279 = arith.truncf %278 : vector<48x128xf32> to vector<48x128xbf16>
    %c0_292 = arith.constant 0 : index
    %c0_293 = arith.constant 0 : index
    %280 = vector.load %arg9[%c0_292, %c0_293] : memref<48x128xbf16, #tpu.memory_space<vmem>>, vector<48x128xbf16>
    tpu.vector_store %arg9[%c0_292, %c0_293], %279 {strides = array<i32>} : memref<48x128xbf16, #tpu.memory_space<vmem>>, vector<48x128xbf16>,
    return
  }
  func.func @transform_0(%arg0: i32) -> (i32, i32, i32, i32) {
    %c0_i32 = arith.constant 0 : i32
    %c0_i32_0 = arith.constant 0 : i32
    %c0_i32_1 = arith.constant 0 : i32
    %c0_i32_2 = arith.constant 0 : i32
    return %arg0, %c0_i32, %c0_i32_0, %c0_i32_1 : i32, i32, i32, i32
  }
  func.func @transform_1(%arg0: i32) -> (i32, i32) {
    %c0_i32 = arith.constant 0 : i32
    %c0_i32_0 = arith.constant 0 : i32
    return %arg0, %c0_i32 : i32, i32
  }
  func.func @transform_2(%arg0: i32) -> (i32, i32, i32) {
    %c0_i32 = arith.constant 0 : i32
    %c0_i32_0 = arith.constant 0 : i32
    %c0_i32_1 = arith.constant 0 : i32
    %c0_i32_2 = arith.constant 0 : i32
    return %c0_i32, %c0_i32_0, %c0_i32_1 : i32, i32, i32
  }
  func.func @transform_3(%arg0: i32) -> (i32, i32) {
    %c0_i32 = arith.constant 0 : i32
    %c0_i32_0 = arith.constant 0 : i32
    %c0_i32_1 = arith.constant 0 : i32
    return %c0_i32, %c0_i32_0 : i32, i32
  }
  func.func @transform_4(%arg0: i32) -> (i32, i32) {
    %c0_i32 = arith.constant 0 : i32
    %c0_i32_0 = arith.constant 0 : i32
    %c0_i32_1 = arith.constant 0 : i32
    return %c0_i32, %c0_i32_0 : i32, i32
  }
  func.func @transform_5(%arg0: i32) -> (i32, i32, i32, i32) {
    %c0_i32 = arith.constant 0 : i32
    %c0_i32_0 = arith.constant 0 : i32
    %c0_i32_1 = arith.constant 0 : i32
    %c0_i32_2 = arith.constant 0 : i32
    %c0_i32_3 = arith.constant 0 : i32
    return %c0_i32, %c0_i32_0, %c0_i32_1, %c0_i32_2 : i32, i32, i32, i32
  }
  func.func @transform_6(%arg0: i32) -> (i32, i32, i32) {
    %c0_i32 = arith.constant 0 : i32
    %c0_i32_0 = arith.constant 0 : i32
    %c0_i32_1 = arith.constant 0 : i32
    %c0_i32_2 = arith.constant 0 : i32
    return %c0_i32, %c0_i32_0, %c0_i32_1 : i32, i32, i32
  }
  func.func @transform_7(%arg0: i32) -> (i32, i32, i32) {
    %c0_i32 = arith.constant 0 : i32
    %c0_i32_0 = arith.constant 0 : i32
    %c0_i32_1 = arith.constant 0 : i32
    %c0_i32_2 = arith.constant 0 : i32
    return %c0_i32, %c0_i32_0, %c0_i32_1 : i32, i32, i32
  }
  func.func @transform_8(%arg0: i32) -> (i32, i32) {
    %c0_i32 = arith.constant 0 : i32
    %c0_i32_0 = arith.constant 0 : i32
    return %arg0, %c0_i32 : i32, i32
  }
}

module attributes {stable_mosaic.version = 11 : i64} {
  func.func @_layer2_pool_kernel(%arg0: i32, %arg1: memref<24x128xbf16, #tpu.memory_space<vmem>>, %arg2: memref<24x128xbf16, #tpu.memory_space<vmem>>, %arg3: memref<24x1xf32, #tpu.memory_space<vmem>>, %arg4: memref<3x128x128xbf16, #tpu.memory_space<vmem>>, %arg5: memref<1x128xf32, #tpu.memory_space<vmem>>, %arg6: memref<1x128xf32, #tpu.memory_space<vmem>>, %arg7: memref<128x128xbf16, #tpu.memory_space<vmem>>, %arg8: memref<1x128xf32, #tpu.memory_space<vmem>>, %arg9: memref<1x128xf32, #tpu.memory_space<vmem>>, %arg10: memref<3x3x128x128xbf16, #tpu.memory_space<vmem>>, %arg11: memref<3x1x128xf32, #tpu.memory_space<vmem>>, %arg12: memref<3x1x128xf32, #tpu.memory_space<vmem>>, %arg13: memref<128x32xf32, #tpu.memory_space<vmem>>, %arg14: memref<1x3x32xf32, #tpu.memory_space<vmem>>) attributes {dimension_semantics = [#tpu.dimension_semantics<parallel>], iteration_bounds = array<i64: 2>, scalar_prefetch = 0 : i64, scratch_operands = 0 : i64, tpu.core_type = #tpu.core_type<tc>, window_params = [{transform_indices = @transform_0, window_bounds = array<i64: 24, 128>}, {transform_indices = @transform_1, window_bounds = array<i64: 24, 128>}, {transform_indices = @transform_2, window_bounds = array<i64: 24, 1>}, {pipeline_mode = #tpu.pipeline_mode<synchronous>, transform_indices = @transform_3, window_bounds = array<i64: 3, 128, 128>}, {pipeline_mode = #tpu.pipeline_mode<synchronous>, transform_indices = @transform_4, window_bounds = array<i64: 1, 128>}, {pipeline_mode = #tpu.pipeline_mode<synchronous>, transform_indices = @transform_5, window_bounds = array<i64: 1, 128>}, {pipeline_mode = #tpu.pipeline_mode<synchronous>, transform_indices = @transform_6, window_bounds = array<i64: 128, 128>}, {pipeline_mode = #tpu.pipeline_mode<synchronous>, transform_indices = @transform_7, window_bounds = array<i64: 1, 128>}, {pipeline_mode = #tpu.pipeline_mode<synchronous>, transform_indices = @transform_8, window_bounds = array<i64: 1, 128>}, {pipeline_mode = #tpu.pipeline_mode<synchronous>, transform_indices = @transform_9, window_bounds = array<i64: 3, 3, 128, 128>}, {pipeline_mode = #tpu.pipeline_mode<synchronous>, transform_indices = @transform_10, window_bounds = array<i64: 3, 1, 128>}, {pipeline_mode = #tpu.pipeline_mode<synchronous>, transform_indices = @transform_11, window_bounds = array<i64: 3, 1, 128>}, {pipeline_mode = #tpu.pipeline_mode<synchronous>, transform_indices = @transform_12, window_bounds = array<i64: 128, 32>}, {transform_indices = @transform_13, window_bounds = array<i64: 1, 3, 32>}]} {
    %c0 = arith.constant 0 : index
    %c0_0 = arith.constant 0 : index
    %0 = vector.load %arg3[%c0, %c0_0] : memref<24x1xf32, #tpu.memory_space<vmem>>, vector<24x1xf32>
    %c0_1 = arith.constant 0 : index
    %c0_2 = arith.constant 0 : index
    %1 = vector.load %arg1[%c0_1, %c0_2] : memref<24x128xbf16, #tpu.memory_space<vmem>>, vector<24x128xbf16>
    %c0_3 = arith.constant 0 : index
    %c0_4 = arith.constant 0 : index
    %2 = vector.load %arg2[%c0_3, %c0_4] : memref<24x128xbf16, #tpu.memory_space<vmem>>, vector<24x128xbf16>
    %cst = arith.constant 0.000000e+00 : bf16
    %3 = vector.broadcast %cst : bf16 to vector<1x128xbf16>
    %4 = vector.extract_strided_slice %2 {offsets = [0, 0], sizes = [23, 128], strides = [1, 1]} : vector<24x128xbf16> to vector<23x128xbf16>
    %5 = tpu.concatenate %3, %4 in 0 : vector<1x128xbf16>, vector<23x128xbf16> -> vector<24x128xbf16>
    %c0_5 = arith.constant 0 : index
    %c0_6 = arith.constant 0 : index
    %c0_7 = arith.constant 0 : index
    %6 = vector.load %arg4[%c0_5, %c0_6, %c0_7] : memref<3x128x128xbf16, #tpu.memory_space<vmem>>, vector<1x128x128xbf16>
    %7 = vector.shape_cast %6 : vector<1x128x128xbf16> to vector<128x128xbf16>
    %cst_8 = arith.constant dense<0.000000e+00> : vector<24x128xf32>
    %8 = tpu.matmul %5, %7, %cst_8 {dimension_numbers = #tpu.dot_dimension_numbers<[1], [0], [0], [1], [0, 0, 1, 1], [], []>} : vector<24x128xbf16>, vector<128x128xbf16>, vector<24x128xf32> -> vector<24x128xf32>
    %c1 = arith.constant 1 : index
    %c0_9 = arith.constant 0 : index
    %c0_10 = arith.constant 0 : index
    %9 = vector.load %arg4[%c1, %c0_9, %c0_10] : memref<3x128x128xbf16, #tpu.memory_space<vmem>>, vector<1x128x128xbf16>
    %10 = vector.shape_cast %9 : vector<1x128x128xbf16> to vector<128x128xbf16>
    %cst_11 = arith.constant dense<0.000000e+00> : vector<24x128xf32>
    %11 = tpu.matmul %1, %10, %cst_11 {dimension_numbers = #tpu.dot_dimension_numbers<[1], [0], [0], [1], [0, 0, 1, 1], [], []>} : vector<24x128xbf16>, vector<128x128xbf16>, vector<24x128xf32> -> vector<24x128xf32>
    %12 = arith.addf %8, %11 : vector<24x128xf32>
    %c2 = arith.constant 2 : index
    %c0_12 = arith.constant 0 : index
    %c0_13 = arith.constant 0 : index
    %13 = vector.load %arg4[%c2, %c0_12, %c0_13] : memref<3x128x128xbf16, #tpu.memory_space<vmem>>, vector<1x128x128xbf16>
    %14 = vector.shape_cast %13 : vector<1x128x128xbf16> to vector<128x128xbf16>
    %cst_14 = arith.constant dense<0.000000e+00> : vector<24x128xf32>
    %15 = tpu.matmul %2, %14, %cst_14 {dimension_numbers = #tpu.dot_dimension_numbers<[1], [0], [0], [1], [0, 0, 1, 1], [], []>} : vector<24x128xbf16>, vector<128x128xbf16>, vector<24x128xf32> -> vector<24x128xf32>
    %16 = arith.addf %12, %15 : vector<24x128xf32>
    %c0_15 = arith.constant 0 : index
    %c0_16 = arith.constant 0 : index
    %17 = vector.load %arg5[%c0_15, %c0_16] : memref<1x128xf32, #tpu.memory_space<vmem>>, vector<1x128xf32>
    %18 = vector.broadcast %17 : vector<1x128xf32> to vector<24x128xf32>
    %19 = arith.mulf %16, %18 : vector<24x128xf32>
    %c0_17 = arith.constant 0 : index
    %c0_18 = arith.constant 0 : index
    %20 = vector.load %arg6[%c0_17, %c0_18] : memref<1x128xf32, #tpu.memory_space<vmem>>, vector<1x128xf32>
    %21 = vector.broadcast %20 : vector<1x128xf32> to vector<24x128xf32>
    %22 = arith.addf %19, %21 : vector<24x128xf32>
    %cst_19 = arith.constant 0.000000e+00 : f32
    %23 = vector.broadcast %cst_19 : f32 to vector<24x128xf32>
    %24 = arith.maximumf %22, %23 : vector<24x128xf32>
    %25 = vector.broadcast %0 : vector<24x1xf32> to vector<24x128xf32>
    %26 = arith.mulf %24, %25 : vector<24x128xf32>
    %c0_20 = arith.constant 0 : index
    %c0_21 = arith.constant 0 : index
    %27 = vector.load %arg7[%c0_20, %c0_21] : memref<128x128xbf16, #tpu.memory_space<vmem>>, vector<128x128xbf16>
    %cst_22 = arith.constant dense<0.000000e+00> : vector<24x128xf32>
    %28 = tpu.matmul %1, %27, %cst_22 {dimension_numbers = #tpu.dot_dimension_numbers<[1], [0], [0], [1], [0, 0, 1, 1], [], []>} : vector<24x128xbf16>, vector<128x128xbf16>, vector<24x128xf32> -> vector<24x128xf32>
    %c0_23 = arith.constant 0 : index
    %c0_24 = arith.constant 0 : index
    %29 = vector.load %arg8[%c0_23, %c0_24] : memref<1x128xf32, #tpu.memory_space<vmem>>, vector<1x128xf32>
    %30 = vector.broadcast %29 : vector<1x128xf32> to vector<24x128xf32>
    %31 = arith.mulf %28, %30 : vector<24x128xf32>
    %c0_25 = arith.constant 0 : index
    %c0_26 = arith.constant 0 : index
    %32 = vector.load %arg9[%c0_25, %c0_26] : memref<1x128xf32, #tpu.memory_space<vmem>>, vector<1x128xf32>
    %33 = vector.broadcast %32 : vector<1x128xf32> to vector<24x128xf32>
    %34 = arith.addf %31, %33 : vector<24x128xf32>
    %35 = vector.broadcast %0 : vector<24x1xf32> to vector<24x128xf32>
    %36 = arith.mulf %34, %35 : vector<24x128xf32>
    %c0_27 = arith.constant 0 : index
    %c0_28 = arith.constant 0 : index
    %c0_29 = arith.constant 0 : index
    %c0_30 = arith.constant 0 : index
    %37 = vector.load %arg10[%c0_27, %c0_28, %c0_29, %c0_30] : memref<3x3x128x128xbf16, #tpu.memory_space<vmem>>, vector<1x1x128x128xbf16>
    %38 = vector.shape_cast %37 : vector<1x1x128x128xbf16> to vector<128x128xbf16>
    %c0_31 = arith.constant 0 : index
    %c1_32 = arith.constant 1 : index
    %c0_33 = arith.constant 0 : index
    %c0_34 = arith.constant 0 : index
    %39 = vector.load %arg10[%c0_31, %c1_32, %c0_33, %c0_34] : memref<3x3x128x128xbf16, #tpu.memory_space<vmem>>, vector<1x1x128x128xbf16>
    %40 = vector.shape_cast %39 : vector<1x1x128x128xbf16> to vector<128x128xbf16>
    %c0_35 = arith.constant 0 : index
    %c2_36 = arith.constant 2 : index
    %c0_37 = arith.constant 0 : index
    %c0_38 = arith.constant 0 : index
    %41 = vector.load %arg10[%c0_35, %c2_36, %c0_37, %c0_38] : memref<3x3x128x128xbf16, #tpu.memory_space<vmem>>, vector<1x1x128x128xbf16>
    %42 = vector.shape_cast %41 : vector<1x1x128x128xbf16> to vector<128x128xbf16>
    %c0_39 = arith.constant 0 : index
    %c0_40 = arith.constant 0 : index
    %c0_41 = arith.constant 0 : index
    %43 = vector.load %arg11[%c0_39, %c0_40, %c0_41] : memref<3x1x128xf32, #tpu.memory_space<vmem>>, vector<1x1x128xf32>
    %44 = vector.shape_cast %43 : vector<1x1x128xf32> to vector<1x128xf32>
    %c0_42 = arith.constant 0 : index
    %c0_43 = arith.constant 0 : index
    %c0_44 = arith.constant 0 : index
    %45 = vector.load %arg12[%c0_42, %c0_43, %c0_44] : memref<3x1x128xf32, #tpu.memory_space<vmem>>, vector<1x1x128xf32>
    %46 = vector.shape_cast %45 : vector<1x1x128xf32> to vector<1x128xf32>
    %47 = arith.truncf %26 : vector<24x128xf32> to vector<24x128xbf16>
    %cst_45 = arith.constant 0.000000e+00 : bf16
    %48 = vector.broadcast %cst_45 : bf16 to vector<1x128xbf16>
    %49 = vector.extract_strided_slice %47 {offsets = [0, 0], sizes = [23, 128], strides = [1, 1]} : vector<24x128xbf16> to vector<23x128xbf16>
    %50 = tpu.concatenate %48, %49 in 0 : vector<1x128xbf16>, vector<23x128xbf16> -> vector<24x128xbf16>
    %51 = vector.extract_strided_slice %47 {offsets = [1, 0], sizes = [23, 128], strides = [1, 1]} : vector<24x128xbf16> to vector<23x128xbf16>
    %52 = tpu.concatenate %51, %48 in 0 : vector<23x128xbf16>, vector<1x128xbf16> -> vector<24x128xbf16>
    %cst_46 = arith.constant dense<0.000000e+00> : vector<24x128xf32>
    %53 = tpu.matmul %50, %38, %cst_46 {dimension_numbers = #tpu.dot_dimension_numbers<[1], [0], [0], [1], [0, 0, 1, 1], [], []>} : vector<24x128xbf16>, vector<128x128xbf16>, vector<24x128xf32> -> vector<24x128xf32>
    %cst_47 = arith.constant dense<0.000000e+00> : vector<24x128xf32>
    %54 = tpu.matmul %47, %40, %cst_47 {dimension_numbers = #tpu.dot_dimension_numbers<[1], [0], [0], [1], [0, 0, 1, 1], [], []>} : vector<24x128xbf16>, vector<128x128xbf16>, vector<24x128xf32> -> vector<24x128xf32>
    %55 = arith.addf %53, %54 : vector<24x128xf32>
    %cst_48 = arith.constant dense<0.000000e+00> : vector<24x128xf32>
    %56 = tpu.matmul %52, %42, %cst_48 {dimension_numbers = #tpu.dot_dimension_numbers<[1], [0], [0], [1], [0, 0, 1, 1], [], []>} : vector<24x128xbf16>, vector<128x128xbf16>, vector<24x128xf32> -> vector<24x128xf32>
    %57 = arith.addf %55, %56 : vector<24x128xf32>
    %58 = vector.broadcast %44 : vector<1x128xf32> to vector<24x128xf32>
    %59 = arith.mulf %57, %58 : vector<24x128xf32>
    %60 = vector.broadcast %46 : vector<1x128xf32> to vector<24x128xf32>
    %61 = arith.addf %59, %60 : vector<24x128xf32>
    %62 = arith.addf %61, %36 : vector<24x128xf32>
    %63 = vector.broadcast %0 : vector<24x1xf32> to vector<24x128xf32>
    %64 = arith.mulf %62, %63 : vector<24x128xf32>
    %c1_49 = arith.constant 1 : index
    %c0_50 = arith.constant 0 : index
    %c0_51 = arith.constant 0 : index
    %c0_52 = arith.constant 0 : index
    %65 = vector.load %arg10[%c1_49, %c0_50, %c0_51, %c0_52] : memref<3x3x128x128xbf16, #tpu.memory_space<vmem>>, vector<1x1x128x128xbf16>
    %66 = vector.shape_cast %65 : vector<1x1x128x128xbf16> to vector<128x128xbf16>
    %c1_53 = arith.constant 1 : index
    %c1_54 = arith.constant 1 : index
    %c0_55 = arith.constant 0 : index
    %c0_56 = arith.constant 0 : index
    %67 = vector.load %arg10[%c1_53, %c1_54, %c0_55, %c0_56] : memref<3x3x128x128xbf16, #tpu.memory_space<vmem>>, vector<1x1x128x128xbf16>
    %68 = vector.shape_cast %67 : vector<1x1x128x128xbf16> to vector<128x128xbf16>
    %c1_57 = arith.constant 1 : index
    %c2_58 = arith.constant 2 : index
    %c0_59 = arith.constant 0 : index
    %c0_60 = arith.constant 0 : index
    %69 = vector.load %arg10[%c1_57, %c2_58, %c0_59, %c0_60] : memref<3x3x128x128xbf16, #tpu.memory_space<vmem>>, vector<1x1x128x128xbf16>
    %70 = vector.shape_cast %69 : vector<1x1x128x128xbf16> to vector<128x128xbf16>
    %c1_61 = arith.constant 1 : index
    %c0_62 = arith.constant 0 : index
    %c0_63 = arith.constant 0 : index
    %71 = vector.load %arg11[%c1_61, %c0_62, %c0_63] : memref<3x1x128xf32, #tpu.memory_space<vmem>>, vector<1x1x128xf32>
    %72 = vector.shape_cast %71 : vector<1x1x128xf32> to vector<1x128xf32>
    %c1_64 = arith.constant 1 : index
    %c0_65 = arith.constant 0 : index
    %c0_66 = arith.constant 0 : index
    %73 = vector.load %arg12[%c1_64, %c0_65, %c0_66] : memref<3x1x128xf32, #tpu.memory_space<vmem>>, vector<1x1x128xf32>
    %74 = vector.shape_cast %73 : vector<1x1x128xf32> to vector<1x128xf32>
    %75 = arith.truncf %64 : vector<24x128xf32> to vector<24x128xbf16>
    %cst_67 = arith.constant 0.000000e+00 : bf16
    %76 = vector.broadcast %cst_67 : bf16 to vector<1x128xbf16>
    %77 = vector.extract_strided_slice %75 {offsets = [0, 0], sizes = [23, 128], strides = [1, 1]} : vector<24x128xbf16> to vector<23x128xbf16>
    %78 = tpu.concatenate %76, %77 in 0 : vector<1x128xbf16>, vector<23x128xbf16> -> vector<24x128xbf16>
    %79 = vector.extract_strided_slice %75 {offsets = [1, 0], sizes = [23, 128], strides = [1, 1]} : vector<24x128xbf16> to vector<23x128xbf16>
    %80 = tpu.concatenate %79, %76 in 0 : vector<23x128xbf16>, vector<1x128xbf16> -> vector<24x128xbf16>
    %cst_68 = arith.constant dense<0.000000e+00> : vector<24x128xf32>
    %81 = tpu.matmul %78, %66, %cst_68 {dimension_numbers = #tpu.dot_dimension_numbers<[1], [0], [0], [1], [0, 0, 1, 1], [], []>} : vector<24x128xbf16>, vector<128x128xbf16>, vector<24x128xf32> -> vector<24x128xf32>
    %cst_69 = arith.constant dense<0.000000e+00> : vector<24x128xf32>
    %82 = tpu.matmul %75, %68, %cst_69 {dimension_numbers = #tpu.dot_dimension_numbers<[1], [0], [0], [1], [0, 0, 1, 1], [], []>} : vector<24x128xbf16>, vector<128x128xbf16>, vector<24x128xf32> -> vector<24x128xf32>
    %83 = arith.addf %81, %82 : vector<24x128xf32>
    %cst_70 = arith.constant dense<0.000000e+00> : vector<24x128xf32>
    %84 = tpu.matmul %80, %70, %cst_70 {dimension_numbers = #tpu.dot_dimension_numbers<[1], [0], [0], [1], [0, 0, 1, 1], [], []>} : vector<24x128xbf16>, vector<128x128xbf16>, vector<24x128xf32> -> vector<24x128xf32>
    %85 = arith.addf %83, %84 : vector<24x128xf32>
    %86 = vector.broadcast %72 : vector<1x128xf32> to vector<24x128xf32>
    %87 = arith.mulf %85, %86 : vector<24x128xf32>
    %88 = vector.broadcast %74 : vector<1x128xf32> to vector<24x128xf32>
    %89 = arith.addf %87, %88 : vector<24x128xf32>
    %cst_71 = arith.constant 0.000000e+00 : f32
    %90 = vector.broadcast %cst_71 : f32 to vector<24x128xf32>
    %91 = arith.maximumf %89, %90 : vector<24x128xf32>
    %92 = vector.broadcast %0 : vector<24x1xf32> to vector<24x128xf32>
    %93 = arith.mulf %91, %92 : vector<24x128xf32>
    %c2_72 = arith.constant 2 : index
    %c0_73 = arith.constant 0 : index
    %c0_74 = arith.constant 0 : index
    %c0_75 = arith.constant 0 : index
    %94 = vector.load %arg10[%c2_72, %c0_73, %c0_74, %c0_75] : memref<3x3x128x128xbf16, #tpu.memory_space<vmem>>, vector<1x1x128x128xbf16>
    %95 = vector.shape_cast %94 : vector<1x1x128x128xbf16> to vector<128x128xbf16>
    %c2_76 = arith.constant 2 : index
    %c1_77 = arith.constant 1 : index
    %c0_78 = arith.constant 0 : index
    %c0_79 = arith.constant 0 : index
    %96 = vector.load %arg10[%c2_76, %c1_77, %c0_78, %c0_79] : memref<3x3x128x128xbf16, #tpu.memory_space<vmem>>, vector<1x1x128x128xbf16>
    %97 = vector.shape_cast %96 : vector<1x1x128x128xbf16> to vector<128x128xbf16>
    %c2_80 = arith.constant 2 : index
    %c2_81 = arith.constant 2 : index
    %c0_82 = arith.constant 0 : index
    %c0_83 = arith.constant 0 : index
    %98 = vector.load %arg10[%c2_80, %c2_81, %c0_82, %c0_83] : memref<3x3x128x128xbf16, #tpu.memory_space<vmem>>, vector<1x1x128x128xbf16>
    %99 = vector.shape_cast %98 : vector<1x1x128x128xbf16> to vector<128x128xbf16>
    %c2_84 = arith.constant 2 : index
    %c0_85 = arith.constant 0 : index
    %c0_86 = arith.constant 0 : index
    %100 = vector.load %arg11[%c2_84, %c0_85, %c0_86] : memref<3x1x128xf32, #tpu.memory_space<vmem>>, vector<1x1x128xf32>
    %101 = vector.shape_cast %100 : vector<1x1x128xf32> to vector<1x128xf32>
    %c2_87 = arith.constant 2 : index
    %c0_88 = arith.constant 0 : index
    %c0_89 = arith.constant 0 : index
    %102 = vector.load %arg12[%c2_87, %c0_88, %c0_89] : memref<3x1x128xf32, #tpu.memory_space<vmem>>, vector<1x1x128xf32>
    %103 = vector.shape_cast %102 : vector<1x1x128xf32> to vector<1x128xf32>
    %104 = arith.truncf %93 : vector<24x128xf32> to vector<24x128xbf16>
    %cst_90 = arith.constant 0.000000e+00 : bf16
    %105 = vector.broadcast %cst_90 : bf16 to vector<1x128xbf16>
    %106 = vector.extract_strided_slice %104 {offsets = [0, 0], sizes = [23, 128], strides = [1, 1]} : vector<24x128xbf16> to vector<23x128xbf16>
    %107 = tpu.concatenate %105, %106 in 0 : vector<1x128xbf16>, vector<23x128xbf16> -> vector<24x128xbf16>
    %108 = vector.extract_strided_slice %104 {offsets = [1, 0], sizes = [23, 128], strides = [1, 1]} : vector<24x128xbf16> to vector<23x128xbf16>
    %109 = tpu.concatenate %108, %105 in 0 : vector<23x128xbf16>, vector<1x128xbf16> -> vector<24x128xbf16>
    %cst_91 = arith.constant dense<0.000000e+00> : vector<24x128xf32>
    %110 = tpu.matmul %107, %95, %cst_91 {dimension_numbers = #tpu.dot_dimension_numbers<[1], [0], [0], [1], [0, 0, 1, 1], [], []>} : vector<24x128xbf16>, vector<128x128xbf16>, vector<24x128xf32> -> vector<24x128xf32>
    %cst_92 = arith.constant dense<0.000000e+00> : vector<24x128xf32>
    %111 = tpu.matmul %104, %97, %cst_92 {dimension_numbers = #tpu.dot_dimension_numbers<[1], [0], [0], [1], [0, 0, 1, 1], [], []>} : vector<24x128xbf16>, vector<128x128xbf16>, vector<24x128xf32> -> vector<24x128xf32>
    %112 = arith.addf %110, %111 : vector<24x128xf32>
    %cst_93 = arith.constant dense<0.000000e+00> : vector<24x128xf32>
    %113 = tpu.matmul %109, %99, %cst_93 {dimension_numbers = #tpu.dot_dimension_numbers<[1], [0], [0], [1], [0, 0, 1, 1], [], []>} : vector<24x128xbf16>, vector<128x128xbf16>, vector<24x128xf32> -> vector<24x128xf32>
    %114 = arith.addf %112, %113 : vector<24x128xf32>
    %115 = vector.broadcast %101 : vector<1x128xf32> to vector<24x128xf32>
    %116 = arith.mulf %114, %115 : vector<24x128xf32>
    %117 = vector.broadcast %103 : vector<1x128xf32> to vector<24x128xf32>
    %118 = arith.addf %116, %117 : vector<24x128xf32>
    %119 = arith.addf %118, %64 : vector<24x128xf32>
    %120 = vector.broadcast %0 : vector<24x1xf32> to vector<24x128xf32>
    %121 = arith.mulf %119, %120 : vector<24x128xf32>
    %122 = vector.extract_strided_slice %121 {offsets = [0, 0], sizes = [8, 128], strides = [1, 1]} : vector<24x128xf32> to vector<8x128xf32>
    %cst_94 = arith.constant dense<0.000000e+00> : vector<128xf32>
    %123 = vector.multi_reduction <add>, %122, %cst_94 [0] : vector<8x128xf32> to vector<128xf32>
    %124 = vector.shape_cast %123 : vector<128xf32> to vector<1x128xf32>
    %125 = vector.extract_strided_slice %121 {offsets = [8, 0], sizes = [8, 128], strides = [1, 1]} : vector<24x128xf32> to vector<8x128xf32>
    %cst_95 = arith.constant dense<0.000000e+00> : vector<128xf32>
    %126 = vector.multi_reduction <add>, %125, %cst_95 [0] : vector<8x128xf32> to vector<128xf32>
    %127 = vector.shape_cast %126 : vector<128xf32> to vector<1x128xf32>
    %128 = vector.extract_strided_slice %121 {offsets = [16, 0], sizes = [8, 128], strides = [1, 1]} : vector<24x128xf32> to vector<8x128xf32>
    %cst_96 = arith.constant dense<0.000000e+00> : vector<128xf32>
    %129 = vector.multi_reduction <add>, %128, %cst_96 [0] : vector<8x128xf32> to vector<128xf32>
    %130 = vector.shape_cast %129 : vector<128xf32> to vector<1x128xf32>
    %131 = tpu.concatenate %124, %127, %130 in 0 : vector<1x128xf32>, vector<1x128xf32>, vector<1x128xf32> -> vector<3x128xf32>
    %c0_97 = arith.constant 0 : index
    %c0_98 = arith.constant 0 : index
    %132 = vector.load %arg13[%c0_97, %c0_98] : memref<128x32xf32, #tpu.memory_space<vmem>>, vector<128x32xf32>
    %cst_99 = arith.constant dense<0.000000e+00> : vector<3x32xf32>
    %133 = tpu.matmul %131, %132, %cst_99 {dimension_numbers = #tpu.dot_dimension_numbers<[1], [0], [0], [1], [0, 0, 1, 1], [], []>} : vector<3x128xf32>, vector<128x32xf32>, vector<3x32xf32> -> vector<3x32xf32>
    %c0_100 = arith.constant 0 : index
    %c0_101 = arith.constant 0 : index
    %c0_102 = arith.constant 0 : index
    %134 = vector.load %arg14[%c0_100, %c0_101, %c0_102] : memref<1x3x32xf32, #tpu.memory_space<vmem>>, vector<1x3x32xf32>
    %135 = vector.shape_cast %134 : vector<1x3x32xf32> to vector<3x32xf32>
    %136 = vector.shape_cast %133 : vector<3x32xf32> to vector<1x3x32xf32>
    tpu.vector_store %arg14[%c0_100, %c0_101, %c0_102], %136 {strides = array<i32>} : memref<1x3x32xf32, #tpu.memory_space<vmem>>, vector<1x3x32xf32>,
    return
  }
  func.func @transform_0(%arg0: i32) -> (i32, i32) {
    %c0_i32 = arith.constant 0 : i32
    %c0_i32_0 = arith.constant 0 : i32
    return %arg0, %c0_i32 : i32, i32
  }
  func.func @transform_1(%arg0: i32) -> (i32, i32) {
    %c0_i32 = arith.constant 0 : i32
    %c0_i32_0 = arith.constant 0 : i32
    return %arg0, %c0_i32 : i32, i32
  }
  func.func @transform_2(%arg0: i32) -> (i32, i32) {
    %c0_i32 = arith.constant 0 : i32
    %c0_i32_0 = arith.constant 0 : i32
    return %arg0, %c0_i32 : i32, i32
  }
  func.func @transform_3(%arg0: i32) -> (i32, i32, i32) {
    %c0_i32 = arith.constant 0 : i32
    %c0_i32_0 = arith.constant 0 : i32
    %c0_i32_1 = arith.constant 0 : i32
    %c0_i32_2 = arith.constant 0 : i32
    return %c0_i32, %c0_i32_0, %c0_i32_1 : i32, i32, i32
  }
  func.func @transform_4(%arg0: i32) -> (i32, i32) {
    %c0_i32 = arith.constant 0 : i32
    %c0_i32_0 = arith.constant 0 : i32
    %c0_i32_1 = arith.constant 0 : i32
    return %c0_i32, %c0_i32_0 : i32, i32
  }
  func.func @transform_5(%arg0: i32) -> (i32, i32) {
    %c0_i32 = arith.constant 0 : i32
    %c0_i32_0 = arith.constant 0 : i32
    %c0_i32_1 = arith.constant 0 : i32
    return %c0_i32, %c0_i32_0 : i32, i32
  }
  func.func @transform_6(%arg0: i32) -> (i32, i32) {
    %c0_i32 = arith.constant 0 : i32
    %c0_i32_0 = arith.constant 0 : i32
    %c0_i32_1 = arith.constant 0 : i32
    return %c0_i32, %c0_i32_0 : i32, i32
  }
  func.func @transform_7(%arg0: i32) -> (i32, i32) {
    %c0_i32 = arith.constant 0 : i32
    %c0_i32_0 = arith.constant 0 : i32
    %c0_i32_1 = arith.constant 0 : i32
    return %c0_i32, %c0_i32_0 : i32, i32
  }
  func.func @transform_8(%arg0: i32) -> (i32, i32) {
    %c0_i32 = arith.constant 0 : i32
    %c0_i32_0 = arith.constant 0 : i32
    %c0_i32_1 = arith.constant 0 : i32
    return %c0_i32, %c0_i32_0 : i32, i32
  }
  func.func @transform_9(%arg0: i32) -> (i32, i32, i32, i32) {
    %c0_i32 = arith.constant 0 : i32
    %c0_i32_0 = arith.constant 0 : i32
    %c0_i32_1 = arith.constant 0 : i32
    %c0_i32_2 = arith.constant 0 : i32
    %c0_i32_3 = arith.constant 0 : i32
    return %c0_i32, %c0_i32_0, %c0_i32_1, %c0_i32_2 : i32, i32, i32, i32
  }
  func.func @transform_10(%arg0: i32) -> (i32, i32, i32) {
    %c0_i32 = arith.constant 0 : i32
    %c0_i32_0 = arith.constant 0 : i32
    %c0_i32_1 = arith.constant 0 : i32
    %c0_i32_2 = arith.constant 0 : i32
    return %c0_i32, %c0_i32_0, %c0_i32_1 : i32, i32, i32
  }
  func.func @transform_11(%arg0: i32) -> (i32, i32, i32) {
    %c0_i32 = arith.constant 0 : i32
    %c0_i32_0 = arith.constant 0 : i32
    %c0_i32_1 = arith.constant 0 : i32
    %c0_i32_2 = arith.constant 0 : i32
    return %c0_i32, %c0_i32_0, %c0_i32_1 : i32, i32, i32
  }
  func.func @transform_12(%arg0: i32) -> (i32, i32) {
    %c0_i32 = arith.constant 0 : i32
    %c0_i32_0 = arith.constant 0 : i32
    %c0_i32_1 = arith.constant 0 : i32
    return %c0_i32, %c0_i32_0 : i32, i32
  }
  func.func @transform_13(%arg0: i32) -> (i32, i32, i32) {
    %c0_i32 = arith.constant 0 : i32
    %c0_i32_0 = arith.constant 0 : i32
    %c0_i32_1 = arith.constant 0 : i32
    return %arg0, %c0_i32, %c0_i32_0 : i32, i32, i32
  }
}

module attributes {stable_mosaic.version = 11 : i64} {
  func.func @_head_kernel(%arg0: i32, %arg1: memref<6x44xf32, #tpu.memory_space<vmem>>, %arg2: memref<44x1024xf32, #tpu.memory_space<vmem>>, %arg3: memref<1x1024xf32, #tpu.memory_space<vmem>>, %arg4: memref<2x6xf32, #tpu.memory_space<vmem>>, %arg5: memref<1024x1xf32, #tpu.memory_space<vmem>>, %arg6: memref<1x1xf32, #tpu.memory_space<vmem>>, %arg7: memref<2x1xf32, #tpu.memory_space<vmem>>) attributes {dimension_semantics = [#tpu.dimension_semantics<arbitrary>], iteration_bounds = array<i64: 1>, scalar_prefetch = 0 : i64, scratch_operands = 0 : i64, tpu.core_type = #tpu.core_type<tc>, window_params = [{pipeline_mode = #tpu.pipeline_mode<synchronous>, transform_indices = @transform_0, window_bounds = array<i64: 6, 44>}, {pipeline_mode = #tpu.pipeline_mode<synchronous>, transform_indices = @transform_1, window_bounds = array<i64: 44, 1024>}, {pipeline_mode = #tpu.pipeline_mode<synchronous>, transform_indices = @transform_2, window_bounds = array<i64: 1, 1024>}, {pipeline_mode = #tpu.pipeline_mode<synchronous>, transform_indices = @transform_3, window_bounds = array<i64: 2, 6>}, {pipeline_mode = #tpu.pipeline_mode<synchronous>, transform_indices = @transform_4, window_bounds = array<i64: 1024, 1>}, {pipeline_mode = #tpu.pipeline_mode<synchronous>, transform_indices = @transform_5, window_bounds = array<i64: 1, 1>}, {pipeline_mode = #tpu.pipeline_mode<synchronous>, transform_indices = @transform_6, window_bounds = array<i64: 2, 1>}]} {
    %c0 = arith.constant 0 : index
    %c0_0 = arith.constant 0 : index
    %0 = vector.load %arg1[%c0, %c0_0] : memref<6x44xf32, #tpu.memory_space<vmem>>, vector<6x44xf32>
    %c0_1 = arith.constant 0 : index
    %c0_2 = arith.constant 0 : index
    %1 = vector.load %arg2[%c0_1, %c0_2] : memref<44x1024xf32, #tpu.memory_space<vmem>>, vector<44x1024xf32>
    %cst = arith.constant dense<0.000000e+00> : vector<6x1024xf32>
    %2 = tpu.matmul %0, %1, %cst {dimension_numbers = #tpu.dot_dimension_numbers<[1], [0], [0], [1], [0, 0, 1, 1], [], []>} : vector<6x44xf32>, vector<44x1024xf32>, vector<6x1024xf32> -> vector<6x1024xf32>
    %c0_3 = arith.constant 0 : index
    %c0_4 = arith.constant 0 : index
    %3 = vector.load %arg3[%c0_3, %c0_4] : memref<1x1024xf32, #tpu.memory_space<vmem>>, vector<1x1024xf32>
    %4 = vector.broadcast %3 : vector<1x1024xf32> to vector<6x1024xf32>
    %5 = arith.addf %2, %4 : vector<6x1024xf32>
    %cst_5 = arith.constant 0.000000e+00 : f32
    %6 = vector.broadcast %cst_5 : f32 to vector<6x1024xf32>
    %7 = arith.maximumf %5, %6 : vector<6x1024xf32>
    %c0_6 = arith.constant 0 : index
    %c0_7 = arith.constant 0 : index
    %8 = vector.load %arg4[%c0_6, %c0_7] : memref<2x6xf32, #tpu.memory_space<vmem>>, vector<2x6xf32>
    %cst_8 = arith.constant dense<0.000000e+00> : vector<2x1024xf32>
    %9 = tpu.matmul %8, %7, %cst_8 {dimension_numbers = #tpu.dot_dimension_numbers<[1], [0], [0], [1], [0, 0, 1, 1], [], []>} : vector<2x6xf32>, vector<6x1024xf32>, vector<2x1024xf32> -> vector<2x1024xf32>
    %c0_9 = arith.constant 0 : index
    %c0_10 = arith.constant 0 : index
    %10 = vector.load %arg5[%c0_9, %c0_10] : memref<1024x1xf32, #tpu.memory_space<vmem>>, vector<1024x1xf32>
    %cst_11 = arith.constant dense<0.000000e+00> : vector<2x1xf32>
    %11 = tpu.matmul %9, %10, %cst_11 {dimension_numbers = #tpu.dot_dimension_numbers<[1], [0], [0], [1], [0, 0, 1, 1], [], []>} : vector<2x1024xf32>, vector<1024x1xf32>, vector<2x1xf32> -> vector<2x1xf32>
    %c0_12 = arith.constant 0 : index
    %c0_13 = arith.constant 0 : index
    %12 = vector.load %arg6[%c0_12, %c0_13] : memref<1x1xf32, #tpu.memory_space<vmem>>, vector<1x1xf32>
    %13 = vector.broadcast %12 : vector<1x1xf32> to vector<2x1xf32>
    %14 = arith.addf %11, %13 : vector<2x1xf32>
    %cst_14 = arith.constant 0.000000e+00 : f32
    %15 = vector.broadcast %cst_14 : f32 to vector<2x1xf32>
    %16 = arith.subf %15, %14 : vector<2x1xf32>
    %17 = math.exp %16 : vector<2x1xf32>
    %cst_15 = arith.constant 1.000000e+00 : f32
    %18 = vector.broadcast %cst_15 : f32 to vector<2x1xf32>
    %19 = arith.addf %18, %17 : vector<2x1xf32>
    %cst_16 = arith.constant 1.000000e+00 : f32
    %20 = vector.broadcast %cst_16 : f32 to vector<2x1xf32>
    %21 = arith.divf %20, %19 : vector<2x1xf32>
    %c0_17 = arith.constant 0 : index
    %c0_18 = arith.constant 0 : index
    %22 = vector.load %arg7[%c0_17, %c0_18] : memref<2x1xf32, #tpu.memory_space<vmem>>, vector<2x1xf32>
    tpu.vector_store %arg7[%c0_17, %c0_18], %21 {strides = array<i32>} : memref<2x1xf32, #tpu.memory_space<vmem>>, vector<2x1xf32>,
    return
  }
  func.func @transform_0(%arg0: i32) -> (i32, i32) {
    %c0_i32 = arith.constant 0 : i32
    %c0_i32_0 = arith.constant 0 : i32
    %c0_i32_1 = arith.constant 0 : i32
    return %c0_i32, %c0_i32_0 : i32, i32
  }
  func.func @transform_1(%arg0: i32) -> (i32, i32) {
    %c0_i32 = arith.constant 0 : i32
    %c0_i32_0 = arith.constant 0 : i32
    %c0_i32_1 = arith.constant 0 : i32
    return %c0_i32, %c0_i32_0 : i32, i32
  }
  func.func @transform_2(%arg0: i32) -> (i32, i32) {
    %c0_i32 = arith.constant 0 : i32
    %c0_i32_0 = arith.constant 0 : i32
    %c0_i32_1 = arith.constant 0 : i32
    return %c0_i32, %c0_i32_0 : i32, i32
  }
  func.func @transform_3(%arg0: i32) -> (i32, i32) {
    %c0_i32 = arith.constant 0 : i32
    %c0_i32_0 = arith.constant 0 : i32
    %c0_i32_1 = arith.constant 0 : i32
    return %c0_i32, %c0_i32_0 : i32, i32
  }
  func.func @transform_4(%arg0: i32) -> (i32, i32) {
    %c0_i32 = arith.constant 0 : i32
    %c0_i32_0 = arith.constant 0 : i32
    %c0_i32_1 = arith.constant 0 : i32
    return %c0_i32, %c0_i32_0 : i32, i32
  }
  func.func @transform_5(%arg0: i32) -> (i32, i32) {
    %c0_i32 = arith.constant 0 : i32
    %c0_i32_0 = arith.constant 0 : i32
    %c0_i32_1 = arith.constant 0 : i32
    return %c0_i32, %c0_i32_0 : i32, i32
  }
  func.func @transform_6(%arg0: i32) -> (i32, i32) {
    %c0_i32 = arith.constant 0 : i32
    %c0_i32_0 = arith.constant 0 : i32
    %c0_i32_1 = arith.constant 0 : i32
    return %c0_i32, %c0_i32_0 : i32, i32
  }
}

</mosaic_0001>

<llo_original>
// kernel: model_forward.3
$region0: #{model_forward.3}
  #allocation0 [shape = 'u32[]', space=smem, size = 0x4, offset = 0x4, fixed_abs, tag = 'smem constant byte address 0x4 - core index']
  #allocation1 [shape = 'u32[144,128]{1,0:T(1,128)}', space=vmem, size = 0x12000, scoped, tag = 'internal scratch']
  %s0 = inlined_call_operand.vmem [shape: bf16[6,4,10,114], index: 0, kind: input, shape index: {}]
  %s1 = inlined_call_operand.vmem [shape: f32[96,1], index: 1, kind: input, shape index: {}]
  %s2 = inlined_call_operand.vmem [shape: bf16[7,114,256], index: 2, kind: input, shape index: {}]
  %s3 = inlined_call_operand.vmem [shape: f32[1,256], index: 3, kind: input, shape index: {}]
  %s4 = inlined_call_operand.vmem [shape: f32[1,256], index: 4, kind: input, shape index: {}]
  %s5 = inlined_call_operand.vmem [shape: bf16[4,3,128,128], index: 5, kind: input, shape index: {}]
  %s6 = inlined_call_operand.vmem [shape: f32[4,1,128], index: 6, kind: input, shape index: {}]
  %s7 = inlined_call_operand.vmem [shape: f32[4,1,128], index: 7, kind: input, shape index: {}]
  %s8 = inlined_call_operand.vmem [shape: bf16[96,128], index: 8, kind: output, shape index: {}]
  %s9 = sld [smem:[#allocation0]]
  $region65: #{model_forward.3} parent=0
    _
  %s11 = ssub.s32 1, %s9
  %s12 = scalar_select 0, %s11, %s9
  loop: start=0, step=1, limit=4
  $region2: #{model_forward.3} parent=0 // loop_pre_header
    _
  $region3: #{model_forward.3} parent=0 // loop_header
    %s14 = sphi 0, %s18
    %p15 = scmp.ge.s32.totalorder %s14, 4
    %s24 = sphi 0, %s26
    %s27 = sphi 0, %s24
    %s28 = sphi 0, %s27
    %s44 = sphi 0, %s28
    %s50 = sphi 0, %s52
    %s53 = sphi 0, %s50
    %s54 = sphi 0, %s53
    %s70 = sphi 0, %s54
    %s74 = sphi 0, %s74
    %s76 = sphi 0, %s74
    %s77 = sphi 0, %s76
    %s91 = sphi 0, %s77
    %s95 = sphi 0, %s95
    %s97 = sphi 0, %s95
    %s98 = sphi 0, %s97
    %s112 = sphi 0, %s98
    %s116 = sphi 0, %s116
    %s118 = sphi 0, %s116
    %s119 = sphi 0, %s118
    %s133 = sphi 0, %s119
    %s137 = sphi 0, %s137
    %s139 = sphi 0, %s137
    %s140 = sphi 0, %s139
    %s154 = sphi 0, %s140
    %s158 = sphi 0, %s158
    %s160 = sphi 0, %s158
    %s161 = sphi 0, %s160
    %s175 = sphi 0, %s161
    %s179 = sphi 0, %s179
    %s181 = sphi 0, %s179
    %s182 = sphi 0, %s181
    %s196 = sphi 0, %s182
    %s202 = sphi 0, %s204
    %s205 = sphi 0, %s202
    %s206 = sphi 0, %s205
    %s222 = sphi 0, %s206
  $region4: #{model_forward.3} parent=0 // loop_header_branch
    %17 = sbr.rel (%p15) target = $region8
  $region5: #{model_forward.3} parent=0 // loop_body
    %s19 = ssub.s32 %s14, 1
    %s20 = ssub.s32 %s14, 2
    %s21 = sadd.s32 %s14, 1
    %s22 = ssub.s32 %s14, %s21
    %p23 = scmp.eq.s32.totalorder %s22, 0
    %s25 = sadd.s32 %s24, 1
    %s26 = scalar_select %p23, %s24, %s25
    %p29 = pneg %p23
    %p30 = scmp.eq.s32.totalorder %s14, 1
    %p31 = por %p29, %p30
    %p32 = scmp.ne.s32.totalorder %s24, %s27
    %p33 = scmp.eq.s32.totalorder %s14, 0
    %p34 = por %p32, %p33
    %p35 = scmp.ne.s32.totalorder %s24, %s27
    %p36 = scmp.eq.s32.totalorder %s19, 1
    %p37 = por %p35, %p36
    %p38 = scmp.ne.s32.totalorder %s27, %s28
    %p39 = scmp.eq.s32.totalorder %s19, 0
    %p40 = por %p38, %p39
    %p41 = scmp.ne.s32.totalorder %s27, %s28
    %p42 = scmp.eq.s32.totalorder %s20, 1
    %p43 = por %p41, %p42
    %p45 = scmp.ne.s32.totalorder %s28, %s44
    %p46 = scmp.eq.s32.totalorder %s20, 0
    %p47 = por %p45, %p46
    %s48 = ssub.s32 %s14, %s21
    %p49 = scmp.eq.s32.totalorder %s48, 0
    %s51 = sadd.s32 %s50, 1
    %s52 = scalar_select %p49, %s50, %s51
    %p55 = pneg %p49
    %p56 = scmp.eq.s32.totalorder %s14, 1
    %p57 = por %p55, %p56
    %p58 = scmp.ne.s32.totalorder %s50, %s53
    %p59 = scmp.eq.s32.totalorder %s14, 0
    %p60 = por %p58, %p59
    %p61 = scmp.ne.s32.totalorder %s50, %s53
    %p62 = scmp.eq.s32.totalorder %s19, 1
    %p63 = por %p61, %p62
    %p64 = scmp.ne.s32.totalorder %s53, %s54
    %p65 = scmp.eq.s32.totalorder %s19, 0
    %p66 = por %p64, %p65
    %p67 = scmp.ne.s32.totalorder %s53, %s54
    %p68 = scmp.eq.s32.totalorder %s20, 1
    %p69 = por %p67, %p68
    %p71 = scmp.ne.s32.totalorder %s54, %s70
    %p72 = scmp.eq.s32.totalorder %s20, 0
    %p73 = por %p71, %p72
    %s75 = sadd.s32 %s74, 1
    %p78 = scmp.eq.s32.totalorder %s14, 1
    %p79 = scmp.ne.s32.totalorder %s74, %s76
    %p80 = scmp.eq.s32.totalorder %s14, 0
    %p81 = por %p79, %p80
    %p82 = scmp.ne.s32.totalorder %s74, %s76
    %p83 = scmp.eq.s32.totalorder %s19, 1
    %p84 = por %p82, %p83
    %p85 = scmp.ne.s32.totalorder %s76, %s77
    %p86 = scmp.eq.s32.totalorder %s19, 0
    %p87 = por %p85, %p86
    %p88 = scmp.ne.s32.totalorder %s76, %s77
    %p89 = scmp.eq.s32.totalorder %s20, 1
    %p90 = por %p88, %p89
    %p92 = scmp.ne.s32.totalorder %s77, %s91
    %p93 = scmp.eq.s32.totalorder %s20, 0
    %p94 = por %p92, %p93
    %s96 = sadd.s32 %s95, 1
    %p99 = scmp.eq.s32.totalorder %s14, 1
    %p100 = scmp.ne.s32.totalorder %s95, %s97
    %p101 = scmp.eq.s32.totalorder %s14, 0
    %p102 = por %p100, %p101
    %p103 = scmp.ne.s32.totalorder %s95, %s97
    %p104 = scmp.eq.s32.totalorder %s19, 1
    %p105 = por %p103, %p104
    %p106 = scmp.ne.s32.totalorder %s97, %s98
    %p107 = scmp.eq.s32.totalorder %s19, 0
    %p108 = por %p106, %p107
    %p109 = scmp.ne.s32.totalorder %s97, %s98
    %p110 = scmp.eq.s32.totalorder %s20, 1
    %p111 = por %p109, %p110
    %p113 = scmp.ne.s32.totalorder %s98, %s112
    %p114 = scmp.eq.s32.totalorder %s20, 0
    %p115 = por %p113, %p114
    %s117 = sadd.s32 %s116, 1
    %p120 = scmp.eq.s32.totalorder %s14, 1
    %p121 = scmp.ne.s32.totalorder %s116, %s118
    %p122 = scmp.eq.s32.totalorder %s14, 0
    %p123 = por %p121, %p122
    %p124 = scmp.ne.s32.totalorder %s116, %s118
    %p125 = scmp.eq.s32.totalorder %s19, 1
    %p126 = por %p124, %p125
    %p127 = scmp.ne.s32.totalorder %s118, %s119
    %p128 = scmp.eq.s32.totalorder %s19, 0
    %p129 = por %p127, %p128
    %p130 = scmp.ne.s32.totalorder %s118, %s119
    %p131 = scmp.eq.s32.totalorder %s20, 1
    %p132 = por %p130, %p131
    %p134 = scmp.ne.s32.totalorder %s119, %s133
    %p135 = scmp.eq.s32.totalorder %s20, 0
    %p136 = por %p134, %p135
    %s138 = sadd.s32 %s137, 1
    %p141 = scmp.eq.s32.totalorder %s14, 1
    %p142 = scmp.ne.s32.totalorder %s137, %s139
    %p143 = scmp.eq.s32.totalorder %s14, 0
    %p144 = por %p142, %p143
    %p145 = scmp.ne.s32.totalorder %s137, %s139
    %p146 = scmp.eq.s32.totalorder %s19, 1
    %p147 = por %p145, %p146
    %p148 = scmp.ne.s32.totalorder %s139, %s140
    %p149 = scmp.eq.s32.totalorder %s19, 0
    %p150 = por %p148, %p149
    %p151 = scmp.ne.s32.totalorder %s139, %s140
    %p152 = scmp.eq.s32.totalorder %s20, 1
    %p153 = por %p151, %p152
    %p155 = scmp.ne.s32.totalorder %s140, %s154
    %p156 = scmp.eq.s32.totalorder %s20, 0
    %p157 = por %p155, %p156
    %s159 = sadd.s32 %s158, 1
    %p162 = scmp.eq.s32.totalorder %s14, 1
    %p163 = scmp.ne.s32.totalorder %s158, %s160
    %p164 = scmp.eq.s32.totalorder %s14, 0
    %p165 = por %p163, %p164
    %p166 = scmp.ne.s32.totalorder %s158, %s160
    %p167 = scmp.eq.s32.totalorder %s19, 1
    %p168 = por %p166, %p167
    %p169 = scmp.ne.s32.totalorder %s160, %s161
    %p170 = scmp.eq.s32.totalorder %s19, 0
    %p171 = por %p169, %p170
    %p172 = scmp.ne.s32.totalorder %s160, %s161
    %p173 = scmp.eq.s32.totalorder %s20, 1
    %p174 = por %p172, %p173
    %p176 = scmp.ne.s32.totalorder %s161, %s175
    %p177 = scmp.eq.s32.totalorder %s20, 0
    %p178 = por %p176, %p177
    %s180 = sadd.s32 %s179, 1
    %p183 = scmp.eq.s32.totalorder %s14, 1
    %p184 = scmp.ne.s32.totalorder %s179, %s181
    %p185 = scmp.eq.s32.totalorder %s14, 0
    %p186 = por %p184, %p185
    %p187 = scmp.ne.s32.totalorder %s179, %s181
    %p188 = scmp.eq.s32.totalorder %s19, 1
    %p189 = por %p187, %p188
    %p190 = scmp.ne.s32.totalorder %s181, %s182
    %p191 = scmp.eq.s32.totalorder %s19, 0
    %p192 = por %p190, %p191
    %p193 = scmp.ne.s32.totalorder %s181, %s182
    %p194 = scmp.eq.s32.totalorder %s20, 1
    %p195 = por %p193, %p194
    %p197 = scmp.ne.s32.totalorder %s182, %s196
    %p198 = scmp.eq.s32.totalorder %s20, 0
    %p199 = por %p197, %p198
    %s200 = ssub.s32 %s14, %s21
    %p201 = scmp.eq.s32.totalorder %s200, 0
    %s203 = sadd.s32 %s202, 1
    %s204 = scalar_select %p201, %s202, %s203
    %p207 = pneg %p201
    %p208 = scmp.eq.s32.totalorder %s14, 1
    %p209 = por %p207, %p208
    %p210 = scmp.ne.s32.totalorder %s202, %s205
    %p211 = scmp.eq.s32.totalorder %s14, 0
    %p212 = por %p210, %p211
    %p213 = scmp.ne.s32.totalorder %s202, %s205
    %p214 = scmp.eq.s32.totalorder %s19, 1
    %p215 = por %p213, %p214
    %p216 = scmp.ne.s32.totalorder %s205, %s206
    %p217 = scmp.eq.s32.totalorder %s19, 0
    %p218 = por %p216, %p217
    %p219 = scmp.ne.s32.totalorder %s205, %s206
    %p220 = scmp.eq.s32.totalorder %s20, 1
    %p221 = por %p219, %p220
    %p223 = scmp.ne.s32.totalorder %s206, %s222
    %p224 = scmp.eq.s32.totalorder %s20, 0
    %p225 = por %p223, %p224
    %p226 = scmp.le.s32.totalorder 1, %s14
    %p227 = scmp.lt.s32.totalorder %s14, 3
    %p228 = pnand %p226, %p227
    %p229 = pneg %p228
    // Predicated region
    $region9: #{model_forward.3} parent=5 // pred_check
      _
    $region10: #{model_forward.3} parent=5 // pred_check_branch
      %231 = sbr.rel (%p228) target = $region12
    $region11: #{model_forward.3} parent=5 // pred_region
      %s232 = ssub.s32 %s14, 1
      // Predicated region
      $region13: #{model_forward.3} parent=11 // pred_check
        %p233 = pneg %p87
      $region14: #{model_forward.3} parent=11 // pred_check_branch
        %235 = sbr.rel (%p233) target = $region16
      $region15: #{model_forward.3} parent=11 // pred_region
        _
      $region16: #{model_forward.3} parent=11 // pred_fallthru
        _
      // Predicated region
      $region17: #{model_forward.3} parent=11 // pred_check
        %p236 = pneg %p108
      $region18: #{model_forward.3} parent=11 // pred_check_branch
        %238 = sbr.rel (%p236) target = $region20
      $region19: #{model_forward.3} parent=11 // pred_region
        _
      $region20: #{model_forward.3} parent=11 // pred_fallthru
        _
      // Predicated region
      $region21: #{model_forward.3} parent=11 // pred_check
        %p239 = pneg %p129
      $region22: #{model_forward.3} parent=11 // pred_check_branch
        %241 = sbr.rel (%p239) target = $region24
      $region23: #{model_forward.3} parent=11 // pred_region
        _
      $region24: #{model_forward.3} parent=11 // pred_fallthru
        _
      // Predicated region
      $region25: #{model_forward.3} parent=11 // pred_check
        %p242 = pneg %p150
      $region26: #{model_forward.3} parent=11 // pred_check_branch
        %244 = sbr.rel (%p242) target = $region28
      $region27: #{model_forward.3} parent=11 // pred_region
        _
      $region28: #{model_forward.3} parent=11 // pred_fallthru
        _
      // Predicated region
      $region29: #{model_forward.3} parent=11 // pred_check
        %p245 = pneg %p171
      $region30: #{model_forward.3} parent=11 // pred_check_branch
        %247 = sbr.rel (%p245) target = $region32
      $region31: #{model_forward.3} parent=11 // pred_region
        _
      $region32: #{model_forward.3} parent=11 // pred_fallthru
        _
      // Predicated region
      $region33: #{model_forward.3} parent=11 // pred_check
        %p248 = pneg %p192
      $region34: #{model_forward.3} parent=11 // pred_check_branch
        %250 = sbr.rel (%p248) target = $region36
      $region35: #{model_forward.3} parent=11 // pred_region
        _
      $region36: #{model_forward.3} parent=11 // pred_fallthru
        _
    $region12: #{model_forward.3} parent=5 // pred_fallthru
      _
    %p251 = scmp.lt.s32.totalorder %s14, 2
    // Predicated region
    $region37: #{model_forward.3} parent=5 // pred_check
      %p252 = pneg %p251
    $region38: #{model_forward.3} parent=5 // pred_check_branch
      %254 = sbr.rel (%p252) target = $region40
    $region39: #{model_forward.3} parent=5 // pred_region
      // Predicated region
      $region41: #{model_forward.3} parent=39 // pred_check
        %p255 = pneg %p34
      $region42: #{model_forward.3} parent=39 // pred_check_branch
        %257 = sbr.rel (%p255) target = $region44
      $region43: #{model_forward.3} parent=39 // pred_region
        %s258 = smul.u32 3, %s14
        %p259 = scmp.lt.s32.totalorder %s258, 5
        %s260 = scalar_select %p259, %s258, 5
        %s261 = smul.addr %s260, 8
        %s262 = smul.addr %s261, 4
        %s263 = scalar_lea.vmem %s0, %s262
        %s264 = smul.u32 3, %s14
      $region44: #{model_forward.3} parent=39 // pred_fallthru
        _
      // Predicated region
      $region45: #{model_forward.3} parent=39 // pred_check
        %p265 = pneg %p60
      $region46: #{model_forward.3} parent=39 // pred_check_branch
        %267 = sbr.rel (%p265) target = $region48
      $region47: #{model_forward.3} parent=39 // pred_region
        %s268 = smul.u32 6, %s14
        %p269 = scmp.lt.s32.totalorder %s268, 11
        %s270 = scalar_select %p269, %s268, 11
        %s271 = smul.addr %s270, 8
        %s272 = scalar_lea.vmem %s1, %s271
        %s273 = smul.u32 6, %s14
      $region48: #{model_forward.3} parent=39 // pred_fallthru
        _
    $region40: #{model_forward.3} parent=5 // pred_fallthru
      _
    %p274 = scmp.le.s32.totalorder 1, %s14
    %p275 = scmp.lt.s32.totalorder %s14, 3
    %p276 = pnand %p274, %p275
    %p277 = pneg %p276
    // Predicated region
    $region49: #{model_forward.3} parent=5 // pred_check
      _
    $region50: #{model_forward.3} parent=5 // pred_check_branch
      %279 = sbr.rel (%p276) target = $region52
    $region51: #{model_forward.3} parent=5 // pred_region
      %s280 = ssub.s32 %s14, 1
      %s281 = smul.u32 3, %s19
      %p282 = scmp.lt.s32.totalorder %s281, 5
      %s283 = scalar_select %p282, %s281, 5
      %s284 = smul.addr %s283, 8
      %s285 = smul.addr %s284, 4
      %s286 = scalar_lea.vmem %s0, %s285
      %p287 = pneg %p40
      %p288 = pneg %p37
      %s289 = smul.u32 6, %s19
      %p290 = scmp.lt.s32.totalorder %s289, 11
      %s291 = scalar_select %p290, %s289, 11
      %s292 = smul.addr %s291, 8
      %s293 = scalar_lea.vmem %s1, %s292
      %p294 = pneg %p66
      %p295 = pneg %p63
      %p296 = pneg %p87
      %p297 = pneg %p84
      %p298 = pneg %p108
      %p299 = pneg %p105
      %p300 = pneg %p129
      %p301 = pneg %p126
      %p302 = pneg %p150
      %p303 = pneg %p147
      %p304 = pneg %p171
      %p305 = pneg %p168
      %p306 = pneg %p192
      %p307 = pneg %p189
      %p308 = pneg %p218
      %p309 = pneg %p215
      %s310 = smul.u32 6, %s19
      %p311 = scmp.lt.s32.totalorder %s310, 11
      %s312 = scalar_select %p311, %s310, 11
      %s313 = smul.addr %s312, 4
      %s314 = scalar_lea.vmem %s8, %s313
      %s315 = smul.u32 3, %s19
      %p316 = scmp.lt.s32.totalorder %s315, 5
      %s317 = scalar_select %p316, %s315, 5
      %s318 = smul.addr %s317, 8
      %s319 = smul.addr %s318, 4
      %s320 = scalar_lea.vmem %s0, %s319
      %s321 = smul.u32 3, %s19
      %s322 = smul.u32 6, %s19
      %p323 = scmp.lt.s32.totalorder %s322, 11
      %s324 = scalar_select %p323, %s322, 11
      %s325 = smul.addr %s324, 8
      %s326 = scalar_lea.vmem %s1, %s325
      %s327 = smul.u32 6, %s19
      %s328 = smul.u32 6, %s19
      %p329 = scmp.lt.s32.totalorder %s328, 11
      %s330 = scalar_select %p329, %s328, 11
      %s331 = smul.addr %s330, 4
      %s332 = scalar_lea.vmem %s8, %s331
      %s333 = smul.u32 6, %s19
      %v335 = vld [vmem:[%s320] sm:$0xf]
      %s336 = scalar_lea.vmem %s320, 16
      %v337 = vld [vmem:[%s336] sm:$0xf]
      %s338 = scalar_lea.vmem %s320, 32
      %v339 = vld [vmem:[%s338] sm:$0xf]
      %s340 = scalar_lea.vmem %s320, 48
      %v341 = vld [vmem:[%s340] sm:$0xf]
      %s342 = scalar_lea.vmem %s320, 64
      %v343 = vld [vmem:[%s342] sm:$0xf]
      %s344 = scalar_lea.vmem %s320, 80
      %v345 = vld [vmem:[%s344] sm:$0xf]
      %v347 = vunpack.c.l.b16 %v337
      %v348 = vpack.c.b16 %v347, %v347
      %v350 = vunpack.c.l.b16 %v341
      %v351 = vpack.c.b16 %v350, %v350
      %v353 = vunpack.c.l.b16 %v345
      %v354 = vpack.c.b16 %v353, %v353
      %vm355 = vcmask 1043456
      %v358 = vsel %vm355, %v335, %v348
      %v361 = vsel %vm355, %v339, %v351
      %v364 = vsel %vm355, %v343, %v354
      %v365 = vld [vmem:[%s2] sm:$0xff]
      %v366 = vld [vmem:[%s2 + $0x8] sm:$0xff]
      %v367 = vld [vmem:[%s2 + $0x10] sm:$0xff]
      %v368 = vld [vmem:[%s2 + $0x18] sm:$0xff]
      %v369 = vld [vmem:[%s2 + $0x20] sm:$0xff]
      %v370 = vld [vmem:[%s2 + $0x28] sm:$0xff]
      %v371 = vld [vmem:[%s2 + $0x30] sm:$0xff]
      %v372 = vld [vmem:[%s2 + $0x38] sm:$0xff]
      %v373 = vld [vmem:[%s2 + $0x40] sm:$0xff]
      %v374 = vld [vmem:[%s2 + $0x48] sm:$0xff]
      %v375 = vld [vmem:[%s2 + $0x50] sm:$0xff]
      %v376 = vld [vmem:[%s2 + $0x58] sm:$0xff]
      %v377 = vld [vmem:[%s2 + $0x60] sm:$0xff]
      %v378 = vld [vmem:[%s2 + $0x68] sm:$0xff]
      %v379 = vld [vmem:[%s2 + $0x70] sm:$0x11]
      %s380 = scalar_lea.vmem %s320, 8
      %v381 = vld [vmem:[%s380] sm:$0xf]
      %s382 = scalar_lea.vmem %s320, 24
      %v383 = vld [vmem:[%s382] sm:$0xf]
      %s384 = scalar_lea.vmem %s320, 40
      %v385 = vld [vmem:[%s384] sm:$0xf]
      %s386 = scalar_lea.vmem %s320, 56
      %v387 = vld [vmem:[%s386] sm:$0xf]
      %s388 = scalar_lea.vmem %s320, 72
      %v389 = vld [vmem:[%s388] sm:$0xf]
      %s390 = scalar_lea.vmem %s320, 88
      %v391 = vld [vmem:[%s390] sm:$0xf]
      %v393 = vunpack.c.l.b16 %v383
      %v394 = vpack.c.b16 %v393, %v393
      %v396 = vunpack.c.l.b16 %v387
      %v397 = vpack.c.b16 %v396, %v396
      %v399 = vunpack.c.l.b16 %v391
      %v400 = vpack.c.b16 %v399, %v399
      %v403 = vsel %vm355, %v381, %v394
      %v406 = vsel %vm355, %v385, %v397
      %v409 = vsel %vm355, %v389, %v400
      %s410 = scalar_lea.vmem %s2, 120
      %v411 = vld [vmem:[%s410] sm:$0xff]
      %v412 = vld [vmem:[%s410 + $0x8] sm:$0xff]
      %v413 = vld [vmem:[%s410 + $0x10] sm:$0xff]
      %v414 = vld [vmem:[%s410 + $0x18] sm:$0xff]
      %v415 = vld [vmem:[%s410 + $0x20] sm:$0xff]
      %v416 = vld [vmem:[%s410 + $0x28] sm:$0xff]
      %v417 = vld [vmem:[%s410 + $0x30] sm:$0xff]
      %v418 = vld [vmem:[%s410 + $0x38] sm:$0xff]
      %v419 = vld [vmem:[%s410 + $0x40] sm:$0xff]
      %v420 = vld [vmem:[%s410 + $0x48] sm:$0xff]
      %v421 = vld [vmem:[%s410 + $0x50] sm:$0xff]
      %v422 = vld [vmem:[%s410 + $0x58] sm:$0xff]
      %v423 = vld [vmem:[%s410 + $0x60] sm:$0xff]
      %v424 = vld [vmem:[%s410 + $0x68] sm:$0xff]
      %v425 = vld [vmem:[%s410 + $0x70] sm:$0x11]
      %v441 = vunpack.c.l.b16 %v411
      %v442 = vunpack.c.h.b16 %v411
      %v443 = vunpack.c.l.b16 %v412
      %v444 = vunpack.c.h.b16 %v412
      %v445 = vunpack.c.l.b16 %v413
      %v446 = vunpack.c.h.b16 %v413
      %v447 = vunpack.c.l.b16 %v414
      %v448 = vunpack.c.h.b16 %v414
      %v449 = vunpack.c.l.b16 %v415
      %v450 = vunpack.c.h.b16 %v415
      %v451 = vunpack.c.l.b16 %v416
      %v452 = vunpack.c.h.b16 %v416
      %v453 = vunpack.c.l.b16 %v417
      %v454 = vunpack.c.h.b16 %v417
      %v455 = vunpack.c.l.b16 %v418
      %v456 = vunpack.c.h.b16 %v418
      %v457 = vunpack.c.l.b16 %v419
      %v458 = vunpack.c.h.b16 %v419
      %v459 = vunpack.c.l.b16 %v420
      %v460 = vunpack.c.h.b16 %v420
      %v461 = vunpack.c.l.b16 %v421
      %v462 = vunpack.c.h.b16 %v421
      %v463 = vunpack.c.l.b16 %v422
      %v464 = vunpack.c.h.b16 %v422
      %v465 = vunpack.c.l.b16 %v423
      %v466 = vunpack.c.h.b16 %v423
      %v467 = vunpack.c.l.b16 %v424
      %v468 = vunpack.c.h.b16 %v424
      %v469 = vunpack.c.l.b16 %v425
      %v470 = vunpack.c.h.b16 %v425
      %v471 = vpack.c.b16 %v443, %v441
      %v472 = vpack.c.b16 %v444, %v442
      %v473 = vpack.c.b16 %v447, %v445
      %v474 = vpack.c.b16 %v448, %v446
      %v475 = vpack.c.b16 %v451, %v449
      %v476 = vpack.c.b16 %v452, %v450
      %v477 = vpack.c.b16 %v455, %v453
      %v478 = vpack.c.b16 %v456, %v454
      %v479 = vpack.c.b16 %v459, %v457
      %v480 = vpack.c.b16 %v460, %v458
      %v481 = vpack.c.b16 %v463, %v461
      %v482 = vpack.c.b16 %v464, %v462
      %v483 = vpack.c.b16 %v467, %v465
      %v484 = vpack.c.b16 %v468, %v466
      %v485 = vpack.c.b16 %v469, %v469
      %v486 = vpack.c.b16 %v470, %v470
      %vm501 = vcmask 932864
      %v502 = vsel %vm501, %v403, 0
      %v504 = vsel %vm501, %v406, 0
      %v506 = vsel %vm501, %v409, 0
      %vm508 = vcmask 1040384
      %v510 = vsel %vm508, %v485, 0
      %v513 = vsel %vm508, %v486, 0
      %515 = vmatprep.subr.bf16.mxu0 %v513
      %516 = vmatpush1.bf16.msra.mxu0 %v510
      %517 = vmatprep.subr.bf16.mxu0 %v484
      %518 = vmatpush1.bf16.msra.mxu0 %v483
      %519 = vmatprep.subr.bf16.mxu0 %v482
      %520 = vmatpush1.bf16.msra.mxu0 %v481
      %521 = vmatprep.subr.bf16.mxu0 %v480
      %522 = vmatpush1.bf16.msra.mxu0 %v479
      %523 = vmatprep.subr.bf16.mxu0 %v478
      %524 = vmatpush1.bf16.msra.mxu0 %v477
      %525 = vmatprep.subr.bf16.mxu0 %v476
      %526 = vmatpush1.bf16.msra.mxu0 %v475
      %527 = vmatprep.subr.bf16.mxu0 %v474
      %528 = vmatpush1.bf16.msra.mxu0 %v473
      %529 = vmatprep.subr.bf16.mxu0 %v472
      %530 = vmatpush1.bf16.msra.mxu0 %v471
      %531 = vmatprep.subr.bf16.mxu0 0
      %532 = vmatpush2.bf16.msra.mxu0 0
      %533 = vmatprep.subr.bf16.mxu0 0
      %534 = vmatpush2.bf16.msra.mxu0 0
      %535 = vmatprep.subr.bf16.mxu0 0
      %536 = vmatpush2.bf16.msra.mxu0 0
      %537 = vmatprep.subr.bf16.mxu0 0
      %538 = vmatpush2.bf16.msra.mxu0 0
      %539 = vmatprep.subr.bf16.mxu0 0
      %540 = vmatpush2.bf16.msra.mxu0 0
      %541 = vmatprep.subr.bf16.mxu0 0
      %542 = vmatpush2.bf16.msra.mxu0 0
      %543 = vmatprep.subr.bf16.mxu0 0
      %544 = vmatpush2.bf16.msra.mxu0 0
      %545 = vmatprep.subr.bf16.mxu0 0
      %546 = vmatpush2.bf16.msra.mxu0 0
      %547 = vmatprep.mubr.bf16.mxu0 0
      %548 = vmatmul.mubr.bf16.gmra.mxu0 %v502
      %v549 = vpop.f32.mrf.mxu0
      %v550 = vadd.f32 0.0, %v549
      %v551 = vpop.f32.mrf.mxu0
      %v552 = vadd.f32 0.0, %v551
      %v553 = vpop.f32.mrf.mxu0
      %v554 = vadd.f32 0.0, %v553
      %v555 = vpop.f32.mrf.mxu0
      %v556 = vadd.f32 0.0, %v555
      %557 = vmatprep.mubr.bf16.mxu0 0
      %558 = vmatmul.mubr.bf16.gmra.mxu0 %v504
      %v559 = vpop.f32.mrf.mxu0
      %v560 = vadd.f32 0.0, %v559
      %v561 = vpop.f32.mrf.mxu0
      %v562 = vadd.f32 0.0, %v561
      %v563 = vpop.f32.mrf.mxu0
      %v564 = vadd.f32 0.0, %v563
      %v565 = vpop.f32.mrf.mxu0
      %v566 = vadd.f32 0.0, %v565
      %567 = vmatprep.mubr.bf16.mxu0 0
      %568 = vmatmul.mubr.bf16.gmra.mxu0 %v506
      %v569 = vpop.f32.mrf.mxu0
      %v570 = vadd.f32 0.0, %v569
      %v571 = vpop.f32.mrf.mxu0
      %v572 = vadd.f32 0.0, %v571
      %v573 = vpop.f32.mrf.mxu0
      %v574 = vadd.f32 0.0, %v573
      %v575 = vpop.f32.mrf.mxu0
      %v576 = vadd.f32 0.0, %v575
      %577 = vdwg.mxu0
      %v593 = vunpack.c.l.b16 %v365
      %v594 = vunpack.c.h.b16 %v365
      %v595 = vunpack.c.l.b16 %v366
      %v596 = vunpack.c.h.b16 %v366
      %v597 = vunpack.c.l.b16 %v367
      %v598 = vunpack.c.h.b16 %v367
      %v599 = vunpack.c.l.b16 %v368
      %v600 = vunpack.c.h.b16 %v368
      %v601 = vunpack.c.l.b16 %v369
      %v602 = vunpack.c.h.b16 %v369
      %v603 = vunpack.c.l.b16 %v370
      %v604 = vunpack.c.h.b16 %v370
      %v605 = vunpack.c.l.b16 %v371
      %v606 = vunpack.c.h.b16 %v371
      %v607 = vunpack.c.l.b16 %v372
      %v608 = vunpack.c.h.b16 %v372
      %v609 = vunpack.c.l.b16 %v373
      %v610 = vunpack.c.h.b16 %v373
      %v611 = vunpack.c.l.b16 %v374
      %v612 = vunpack.c.h.b16 %v374
      %v613 = vunpack.c.l.b16 %v375
      %v614 = vunpack.c.h.b16 %v375
      %v615 = vunpack.c.l.b16 %v376
      %v616 = vunpack.c.h.b16 %v376
      %v617 = vunpack.c.l.b16 %v377
      %v618 = vunpack.c.h.b16 %v377
      %v619 = vunpack.c.l.b16 %v378
      %v620 = vunpack.c.h.b16 %v378
      %v621 = vunpack.c.l.b16 %v379
      %v622 = vunpack.c.h.b16 %v379
      %v623 = vpack.c.b16 %v595, %v593
      %v624 = vpack.c.b16 %v596, %v594
      %v625 = vpack.c.b16 %v599, %v597
      %v626 = vpack.c.b16 %v600, %v598
      %v627 = vpack.c.b16 %v603, %v601
      %v628 = vpack.c.b16 %v604, %v602
      %v629 = vpack.c.b16 %v607, %v605
      %v630 = vpack.c.b16 %v608, %v606
      %v631 = vpack.c.b16 %v611, %v609
      %v632 = vpack.c.b16 %v612, %v610
      %v633 = vpack.c.b16 %v615, %v613
      %v634 = vpack.c.b16 %v616, %v614
      %v635 = vpack.c.b16 %v619, %v617
      %v636 = vpack.c.b16 %v620, %v618
      %v637 = vpack.c.b16 %v621, %v621
      %v638 = vpack.c.b16 %v622, %v622
      %v653 = vsel %vm501, %v358, 0
      %v655 = vsel %vm501, %v361, 0
      %v657 = vsel %vm501, %v364, 0
      %v660 = vsel %vm508, %v637, 0
      %v663 = vsel %vm508, %v638, 0
      %665 = vmatprep.subr.bf16.mxu0 %v663
      %666 = vmatpush1.bf16.msra.mxu0 %v660
      %667 = vmatprep.subr.bf16.mxu0 %v636
      %668 = vmatpush1.bf16.msra.mxu0 %v635
      %669 = vmatprep.subr.bf16.mxu0 %v634
      %670 = vmatpush1.bf16.msra.mxu0 %v633
      %671 = vmatprep.subr.bf16.mxu0 %v632
      %672 = vmatpush1.bf16.msra.mxu0 %v631
      %673 = vmatprep.subr.bf16.mxu0 %v630
      %674 = vmatpush1.bf16.msra.mxu0 %v629
      %675 = vmatprep.subr.bf16.mxu0 %v628
      %676 = vmatpush1.bf16.msra.mxu0 %v627
      %677 = vmatprep.subr.bf16.mxu0 %v626
      %678 = vmatpush1.bf16.msra.mxu0 %v625
      %679 = vmatprep.subr.bf16.mxu0 %v624
      %680 = vmatpush1.bf16.msra.mxu0 %v623
      %681 = vmatprep.subr.bf16.mxu0 0
      %682 = vmatpush2.bf16.msra.mxu0 0
      %683 = vmatprep.subr.bf16.mxu0 0
      %684 = vmatpush2.bf16.msra.mxu0 0
      %685 = vmatprep.subr.bf16.mxu0 0
      %686 = vmatpush2.bf16.msra.mxu0 0
      %687 = vmatprep.subr.bf16.mxu0 0
      %688 = vmatpush2.bf16.msra.mxu0 0
      %689 = vmatprep.subr.bf16.mxu0 0
      %690 = vmatpush2.bf16.msra.mxu0 0
      %691 = vmatprep.subr.bf16.mxu0 0
      %692 = vmatpush2.bf16.msra.mxu0 0
      %693 = vmatprep.subr.bf16.mxu0 0
      %694 = vmatpush2.bf16.msra.mxu0 0
      %695 = vmatprep.subr.bf16.mxu0 0
      %696 = vmatpush2.bf16.msra.mxu0 0
      %697 = vmatprep.mubr.bf16.mxu0 0
      %698 = vmatmul.mubr.bf16.gmra.mxu0 %v653
      %v699 = vpop.f32.mrf.mxu0
      %v700 = vadd.f32 %v550, %v699
      %v701 = vpop.f32.mrf.mxu0
      %v702 = vadd.f32 %v552, %v701
      %v703 = vpop.f32.mrf.mxu0
      %v704 = vadd.f32 %v554, %v703
      %v705 = vpop.f32.mrf.mxu0
      %v706 = vadd.f32 %v556, %v705
      %707 = vmatprep.mubr.bf16.mxu0 0
      %708 = vmatmul.mubr.bf16.gmra.mxu0 %v655
      %v709 = vpop.f32.mrf.mxu0
      %v710 = vadd.f32 %v560, %v709
      %v711 = vpop.f32.mrf.mxu0
      %v712 = vadd.f32 %v562, %v711
      %v713 = vpop.f32.mrf.mxu0
      %v714 = vadd.f32 %v564, %v713
      %v715 = vpop.f32.mrf.mxu0
      %v716 = vadd.f32 %v566, %v715
      %717 = vmatprep.mubr.bf16.mxu0 0
      %718 = vmatmul.mubr.bf16.gmra.mxu0 %v657
      %v719 = vpop.f32.mrf.mxu0
      %v720 = vadd.f32 %v570, %v719
      %v721 = vpop.f32.mrf.mxu0
      %v722 = vadd.f32 %v572, %v721
      %v723 = vpop.f32.mrf.mxu0
      %v724 = vadd.f32 %v574, %v723
      %v725 = vpop.f32.mrf.mxu0
      %v726 = vadd.f32 %v576, %v725
      %727 = vdwg.mxu0
      %v728 = vld [vmem:[%s320] sm:$0xf]
      %v729 = vld [vmem:[%s320 + $0x4] sm:$0x1]
      %v730 = vld [vmem:[%s338] sm:$0xf]
      %v731 = vld [vmem:[%s338 + $0x4] sm:$0x1]
      %v732 = vld [vmem:[%s342] sm:$0xf]
      %v733 = vld [vmem:[%s342 + $0x4] sm:$0x1]
      %v736 = vunpack.c.l.b16 %v728
      %v737 = vunpack.c.l.b16 %v729
      %v738 = vpack.c.b16 %v737, %v736
      %v740 = vshrl.u32 %v738, 16
      %v742 = vrot.slane %v740, 4
      %v743 = vshll.u32 %v738, 16
      %v745 = vrot.slane %v743, 5
      %v746 = vor.u32 %v742, %v745
      %v749 = vunpack.c.l.b16 %v730
      %v750 = vunpack.c.l.b16 %v731
      %v751 = vpack.c.b16 %v750, %v749
      %v753 = vshrl.u32 %v751, 16
      %v755 = vrot.slane %v753, 4
      %v756 = vshll.u32 %v751, 16
      %v758 = vrot.slane %v756, 5
      %v759 = vor.u32 %v755, %v758
      %v762 = vunpack.c.l.b16 %v732
      %v763 = vunpack.c.l.b16 %v733
      %v764 = vpack.c.b16 %v763, %v762
      %v766 = vshrl.u32 %v764, 16
      %v768 = vrot.slane %v766, 4
      %v769 = vshll.u32 %v764, 16
      %v771 = vrot.slane %v769, 5
      %v772 = vor.u32 %v768, %v771
      %v775 = vsel %vm355, %v337, %v746
      %v778 = vsel %vm355, %v341, %v759
      %v781 = vsel %vm355, %v345, %v772
      %s782 = scalar_lea.vmem %s2, 240
      %v783 = vld [vmem:[%s782] sm:$0xff]
      %v784 = vld [vmem:[%s782 + $0x8] sm:$0xff]
      %v785 = vld [vmem:[%s782 + $0x10] sm:$0xff]
      %v786 = vld [vmem:[%s782 + $0x18] sm:$0xff]
      %v787 = vld [vmem:[%s782 + $0x20] sm:$0xff]
      %v788 = vld [vmem:[%s782 + $0x28] sm:$0xff]
      %v789 = vld [vmem:[%s782 + $0x30] sm:$0xff]
      %v790 = vld [vmem:[%s782 + $0x38] sm:$0xff]
      %v791 = vld [vmem:[%s782 + $0x40] sm:$0xff]
      %v792 = vld [vmem:[%s782 + $0x48] sm:$0xff]
      %v793 = vld [vmem:[%s782 + $0x50] sm:$0xff]
      %v794 = vld [vmem:[%s782 + $0x58] sm:$0xff]
      %v795 = vld [vmem:[%s782 + $0x60] sm:$0xff]
      %v796 = vld [vmem:[%s782 + $0x68] sm:$0xff]
      %v797 = vld [vmem:[%s782 + $0x70] sm:$0x11]
      %v813 = vunpack.c.l.b16 %v783
      %v814 = vunpack.c.h.b16 %v783
      %v815 = vunpack.c.l.b16 %v784
      %v816 = vunpack.c.h.b16 %v784
      %v817 = vunpack.c.l.b16 %v785
      %v818 = vunpack.c.h.b16 %v785
      %v819 = vunpack.c.l.b16 %v786
      %v820 = vunpack.c.h.b16 %v786
      %v821 = vunpack.c.l.b16 %v787
      %v822 = vunpack.c.h.b16 %v787
      %v823 = vunpack.c.l.b16 %v788
      %v824 = vunpack.c.h.b16 %v788
      %v825 = vunpack.c.l.b16 %v789
      %v826 = vunpack.c.h.b16 %v789
      %v827 = vunpack.c.l.b16 %v790
      %v828 = vunpack.c.h.b16 %v790
      %v829 = vunpack.c.l.b16 %v791
      %v830 = vunpack.c.h.b16 %v791
      %v831 = vunpack.c.l.b16 %v792
      %v832 = vunpack.c.h.b16 %v792
      %v833 = vunpack.c.l.b16 %v793
      %v834 = vunpack.c.h.b16 %v793
      %v835 = vunpack.c.l.b16 %v794
      %v836 = vunpack.c.h.b16 %v794
      %v837 = vunpack.c.l.b16 %v795
      %v838 = vunpack.c.h.b16 %v795
      %v839 = vunpack.c.l.b16 %v796
      %v840 = vunpack.c.h.b16 %v796
      %v841 = vunpack.c.l.b16 %v797
      %v842 = vunpack.c.h.b16 %v797
      %v843 = vpack.c.b16 %v815, %v813
      %v844 = vpack.c.b16 %v816, %v814
      %v845 = vpack.c.b16 %v819, %v817
      %v846 = vpack.c.b16 %v820, %v818
      %v847 = vpack.c.b16 %v823, %v821
      %v848 = vpack.c.b16 %v824, %v822
      %v849 = vpack.c.b16 %v827, %v825
      %v850 = vpack.c.b16 %v828, %v826
      %v851 = vpack.c.b16 %v831, %v829
      %v852 = vpack.c.b16 %v832, %v830
      %v853 = vpack.c.b16 %v835, %v833
      %v854 = vpack.c.b16 %v836, %v834
      %v855 = vpack.c.b16 %v839, %v837
      %v856 = vpack.c.b16 %v840, %v838
      %v857 = vpack.c.b16 %v841, %v841
      %v858 = vpack.c.b16 %v842, %v842
      %v873 = vsel %vm501, %v775, 0
      %v875 = vsel %vm501, %v778, 0
      %v877 = vsel %vm501, %v781, 0
      %v880 = vsel %vm508, %v857, 0
      %v883 = vsel %vm508, %v858, 0
      %885 = vmatprep.subr.bf16.mxu0 %v883
      %886 = vmatpush1.bf16.msra.mxu0 %v880
      %887 = vmatprep.subr.bf16.mxu0 %v856
      %888 = vmatpush1.bf16.msra.mxu0 %v855
      %889 = vmatprep.subr.bf16.mxu0 %v854
      %890 = vmatpush1.bf16.msra.mxu0 %v853
      %891 = vmatprep.subr.bf16.mxu0 %v852
      %892 = vmatpush1.bf16.msra.mxu0 %v851
      %893 = vmatprep.subr.bf16.mxu0 %v850
      %894 = vmatpush1.bf16.msra.mxu0 %v849
      %895 = vmatprep.subr.bf16.mxu0 %v848
      %896 = vmatpush1.bf16.msra.mxu0 %v847
      %897 = vmatprep.subr.bf16.mxu0 %v846
      %898 = vmatpush1.bf16.msra.mxu0 %v845
      %899 = vmatprep.subr.bf16.mxu0 %v844
      %900 = vmatpush1.bf16.msra.mxu0 %v843
      %901 = vmatprep.subr.bf16.mxu0 0
      %902 = vmatpush2.bf16.msra.mxu0 0
      %903 = vmatprep.subr.bf16.mxu0 0
      %904 = vmatpush2.bf16.msra.mxu0 0
      %905 = vmatprep.subr.bf16.mxu0 0
      %906 = vmatpush2.bf16.msra.mxu0 0
      %907 = vmatprep.subr.bf16.mxu0 0
      %908 = vmatpush2.bf16.msra.mxu0 0
      %909 = vmatprep.subr.bf16.mxu0 0
      %910 = vmatpush2.bf16.msra.mxu0 0
      %911 = vmatprep.subr.bf16.mxu0 0
      %912 = vmatpush2.bf16.msra.mxu0 0
      %913 = vmatprep.subr.bf16.mxu0 0
      %914 = vmatpush2.bf16.msra.mxu0 0
      %915 = vmatprep.subr.bf16.mxu0 0
      %916 = vmatpush2.bf16.msra.mxu0 0
      %917 = vmatprep.mubr.bf16.mxu0 0
      %918 = vmatmul.mubr.bf16.gmra.mxu0 %v873
      %v919 = vpop.f32.mrf.mxu0
      %v920 = vadd.f32 0.0, %v919
      %v921 = vpop.f32.mrf.mxu0
      %v922 = vadd.f32 0.0, %v921
      %v923 = vpop.f32.mrf.mxu0
      %v924 = vadd.f32 0.0, %v923
      %v925 = vpop.f32.mrf.mxu0
      %v926 = vadd.f32 0.0, %v925
      %927 = vmatprep.mubr.bf16.mxu0 0
      %928 = vmatmul.mubr.bf16.gmra.mxu0 %v875
      %v929 = vpop.f32.mrf.mxu0
      %v930 = vadd.f32 0.0, %v929
      %v931 = vpop.f32.mrf.mxu0
      %v932 = vadd.f32 0.0, %v931
      %v933 = vpop.f32.mrf.mxu0
      %v934 = vadd.f32 0.0, %v933
      %v935 = vpop.f32.mrf.mxu0
      %v936 = vadd.f32 0.0, %v935
      %937 = vmatprep.mubr.bf16.mxu0 0
      %938 = vmatmul.mubr.bf16.gmra.mxu0 %v877
      %v939 = vpop.f32.mrf.mxu0
      %v940 = vadd.f32 0.0, %v939
      %v941 = vpop.f32.mrf.mxu0
      %v942 = vadd.f32 0.0, %v941
      %v943 = vpop.f32.mrf.mxu0
      %v944 = vadd.f32 0.0, %v943
      %v945 = vpop.f32.mrf.mxu0
      %v946 = vadd.f32 0.0, %v945
      %947 = vdwg.mxu0
      %v948 = vadd.f32 %v700, %v920
      %v949 = vadd.f32 %v702, %v922
      %v950 = vadd.f32 %v704, %v924
      %v951 = vadd.f32 %v706, %v926
      %v952 = vadd.f32 %v710, %v930
      %v953 = vadd.f32 %v712, %v932
      %v954 = vadd.f32 %v714, %v934
      %v955 = vadd.f32 %v716, %v936
      %v956 = vadd.f32 %v720, %v940
      %v957 = vadd.f32 %v722, %v942
      %v958 = vadd.f32 %v724, %v944
      %v959 = vadd.f32 %v726, %v946
      %v960 = vld [vmem:[%s380] sm:$0xf]
      %v961 = vld [vmem:[%s380 + $0x4] sm:$0x1]
      %v962 = vld [vmem:[%s384] sm:$0xf]
      %v963 = vld [vmem:[%s384 + $0x4] sm:$0x1]
      %v964 = vld [vmem:[%s388] sm:$0xf]
      %v965 = vld [vmem:[%s388 + $0x4] sm:$0x1]
      %v968 = vunpack.c.l.b16 %v960
      %v969 = vunpack.c.l.b16 %v961
      %v970 = vpack.c.b16 %v969, %v968
      %v972 = vshrl.u32 %v970, 16
      %v974 = vrot.slane %v972, 4
      %v975 = vshll.u32 %v970, 16
      %v977 = vrot.slane %v975, 5
      %v978 = vor.u32 %v974, %v977
      %v981 = vunpack.c.l.b16 %v962
      %v982 = vunpack.c.l.b16 %v963
      %v983 = vpack.c.b16 %v982, %v981
      %v985 = vshrl.u32 %v983, 16
      %v987 = vrot.slane %v985, 4
      %v988 = vshll.u32 %v983, 16
      %v990 = vrot.slane %v988, 5
      %v991 = vor.u32 %v987, %v990
      %v994 = vunpack.c.l.b16 %v964
      %v995 = vunpack.c.l.b16 %v965
      %v996 = vpack.c.b16 %v995, %v994
      %v998 = vshrl.u32 %v996, 16
      %v1000 = vrot.slane %v998, 4
      %v1001 = vshll.u32 %v996, 16
      %v1003 = vrot.slane %v1001, 5
      %v1004 = vor.u32 %v1000, %v1003
      %v1007 = vsel %vm355, %v383, %v978
      %v1010 = vsel %vm355, %v387, %v991
      %v1013 = vsel %vm355, %v391, %v1004
      %s1014 = scalar_lea.vmem %s2, 360
      %v1015 = vld [vmem:[%s1014] sm:$0xff]
      %v1016 = vld [vmem:[%s1014 + $0x8] sm:$0xff]
      %v1017 = vld [vmem:[%s1014 + $0x10] sm:$0xff]
      %v1018 = vld [vmem:[%s1014 + $0x18] sm:$0xff]
      %v1019 = vld [vmem:[%s1014 + $0x20] sm:$0xff]
      %v1020 = vld [vmem:[%s1014 + $0x28] sm:$0xff]
      %v1021 = vld [vmem:[%s1014 + $0x30] sm:$0xff]
      %v1022 = vld [vmem:[%s1014 + $0x38] sm:$0xff]
      %v1023 = vld [vmem:[%s1014 + $0x40] sm:$0xff]
      %v1024 = vld [vmem:[%s1014 + $0x48] sm:$0xff]
      %v1025 = vld [vmem:[%s1014 + $0x50] sm:$0xff]
      %v1026 = vld [vmem:[%s1014 + $0x58] sm:$0xff]
      %v1027 = vld [vmem:[%s1014 + $0x60] sm:$0xff]
      %v1028 = vld [vmem:[%s1014 + $0x68] sm:$0xff]
      %v1029 = vld [vmem:[%s1014 + $0x70] sm:$0x11]
      %v1045 = vunpack.c.l.b16 %v1015
      %v1046 = vunpack.c.h.b16 %v1015
      %v1047 = vunpack.c.l.b16 %v1016
      %v1048 = vunpack.c.h.b16 %v1016
      %v1049 = vunpack.c.l.b16 %v1017
      %v1050 = vunpack.c.h.b16 %v1017
      %v1051 = vunpack.c.l.b16 %v1018
      %v1052 = vunpack.c.h.b16 %v1018
      %v1053 = vunpack.c.l.b16 %v1019
      %v1054 = vunpack.c.h.b16 %v1019
      %v1055 = vunpack.c.l.b16 %v1020
      %v1056 = vunpack.c.h.b16 %v1020
      %v1057 = vunpack.c.l.b16 %v1021
      %v1058 = vunpack.c.h.b16 %v1021
      %v1059 = vunpack.c.l.b16 %v1022
      %v1060 = vunpack.c.h.b16 %v1022
      %v1061 = vunpack.c.l.b16 %v1023
      %v1062 = vunpack.c.h.b16 %v1023
      %v1063 = vunpack.c.l.b16 %v1024
      %v1064 = vunpack.c.h.b16 %v1024
      %v1065 = vunpack.c.l.b16 %v1025
      %v1066 = vunpack.c.h.b16 %v1025
      %v1067 = vunpack.c.l.b16 %v1026
      %v1068 = vunpack.c.h.b16 %v1026
      %v1069 = vunpack.c.l.b16 %v1027
      %v1070 = vunpack.c.h.b16 %v1027
      %v1071 = vunpack.c.l.b16 %v1028
      %v1072 = vunpack.c.h.b16 %v1028
      %v1073 = vunpack.c.l.b16 %v1029
      %v1074 = vunpack.c.h.b16 %v1029
      %v1075 = vpack.c.b16 %v1047, %v1045
      %v1076 = vpack.c.b16 %v1048, %v1046
      %v1077 = vpack.c.b16 %v1051, %v1049
      %v1078 = vpack.c.b16 %v1052, %v1050
      %v1079 = vpack.c.b16 %v1055, %v1053
      %v1080 = vpack.c.b16 %v1056, %v1054
      %v1081 = vpack.c.b16 %v1059, %v1057
      %v1082 = vpack.c.b16 %v1060, %v1058
      %v1083 = vpack.c.b16 %v1063, %v1061
      %v1084 = vpack.c.b16 %v1064, %v1062
      %v1085 = vpack.c.b16 %v1067, %v1065
      %v1086 = vpack.c.b16 %v1068, %v1066
      %v1087 = vpack.c.b16 %v1071, %v1069
      %v1088 = vpack.c.b16 %v1072, %v1070
      %v1089 = vpack.c.b16 %v1073, %v1073
      %v1090 = vpack.c.b16 %v1074, %v1074
      %v1105 = vsel %vm501, %v1007, 0
      %v1107 = vsel %vm501, %v1010, 0
      %v1109 = vsel %vm501, %v1013, 0
      %v1112 = vsel %vm508, %v1089, 0
      %v1115 = vsel %vm508, %v1090, 0
      %1117 = vmatprep.subr.bf16.mxu0 %v1115
      %1118 = vmatpush1.bf16.msra.mxu0 %v1112
      %1119 = vmatprep.subr.bf16.mxu0 %v1088
      %1120 = vmatpush1.bf16.msra.mxu0 %v1087
      %1121 = vmatprep.subr.bf16.mxu0 %v1086
      %1122 = vmatpush1.bf16.msra.mxu0 %v1085
      %1123 = vmatprep.subr.bf16.mxu0 %v1084
      %1124 = vmatpush1.bf16.msra.mxu0 %v1083
      %1125 = vmatprep.subr.bf16.mxu0 %v1082
      %1126 = vmatpush1.bf16.msra.mxu0 %v1081
      %1127 = vmatprep.subr.bf16.mxu0 %v1080
      %1128 = vmatpush1.bf16.msra.mxu0 %v1079
      %1129 = vmatprep.subr.bf16.mxu0 %v1078
      %1130 = vmatpush1.bf16.msra.mxu0 %v1077
      %1131 = vmatprep.subr.bf16.mxu0 %v1076
      %1132 = vmatpush1.bf16.msra.mxu0 %v1075
      %1133 = vmatprep.subr.bf16.mxu0 0
      %1134 = vmatpush2.bf16.msra.mxu0 0
      %1135 = vmatprep.subr.bf16.mxu0 0
      %1136 = vmatpush2.bf16.msra.mxu0 0
      %1137 = vmatprep.subr.bf16.mxu0 0
      %1138 = vmatpush2.bf16.msra.mxu0 0
      %1139 = vmatprep.subr.bf16.mxu0 0
      %1140 = vmatpush2.bf16.msra.mxu0 0
      %1141 = vmatprep.subr.bf16.mxu0 0
      %1142 = vmatpush2.bf16.msra.mxu0 0
      %1143 = vmatprep.subr.bf16.mxu0 0
      %1144 = vmatpush2.bf16.msra.mxu0 0
      %1145 = vmatprep.subr.bf16.mxu0 0
      %1146 = vmatpush2.bf16.msra.mxu0 0
      %1147 = vmatprep.subr.bf16.mxu0 0
      %1148 = vmatpush2.bf16.msra.mxu0 0
      %1149 = vmatprep.mubr.bf16.mxu0 0
      %1150 = vmatmul.mubr.bf16.gmra.mxu0 %v1105
      %v1151 = vpop.f32.mrf.mxu0
      %v1152 = vadd.f32 0.0, %v1151
      %v1153 = vpop.f32.mrf.mxu0
      %v1154 = vadd.f32 0.0, %v1153
      %v1155 = vpop.f32.mrf.mxu0
      %v1156 = vadd.f32 0.0, %v1155
      %v1157 = vpop.f32.mrf.mxu0
      %v1158 = vadd.f32 0.0, %v1157
      %1159 = vmatprep.mubr.bf16.mxu0 0
      %1160 = vmatmul.mubr.bf16.gmra.mxu0 %v1107
      %v1161 = vpop.f32.mrf.mxu0
      %v1162 = vadd.f32 0.0, %v1161
      %v1163 = vpop.f32.mrf.mxu0
      %v1164 = vadd.f32 0.0, %v1163
      %v1165 = vpop.f32.mrf.mxu0
      %v1166 = vadd.f32 0.0, %v1165
      %v1167 = vpop.f32.mrf.mxu0
      %v1168 = vadd.f32 0.0, %v1167
      %1169 = vmatprep.mubr.bf16.mxu0 0
      %1170 = vmatmul.mubr.bf16.gmra.mxu0 %v1109
      %v1171 = vpop.f32.mrf.mxu0
      %v1172 = vadd.f32 0.0, %v1171
      %v1173 = vpop.f32.mrf.mxu0
      %v1174 = vadd.f32 0.0, %v1173
      %v1175 = vpop.f32.mrf.mxu0
      %v1176 = vadd.f32 0.0, %v1175
      %v1177 = vpop.f32.mrf.mxu0
      %v1178 = vadd.f32 0.0, %v1177
      %1179 = vdwg.mxu0
      %v1180 = vadd.f32 %v948, %v1152
      %v1181 = vadd.f32 %v949, %v1154
      %v1182 = vadd.f32 %v950, %v1156
      %v1183 = vadd.f32 %v951, %v1158
      %v1184 = vadd.f32 %v952, %v1162
      %v1185 = vadd.f32 %v953, %v1164
      %v1186 = vadd.f32 %v954, %v1166
      %v1187 = vadd.f32 %v955, %v1168
      %v1188 = vadd.f32 %v956, %v1172
      %v1189 = vadd.f32 %v957, %v1174
      %v1190 = vadd.f32 %v958, %v1176
      %v1191 = vadd.f32 %v959, %v1178
      %v1192 = vld [vmem:[%s336] sm:$0xf]
      %v1193 = vld [vmem:[%s336 + $0x4] sm:$0x1]
      %v1194 = vld [vmem:[%s340] sm:$0xf]
      %v1195 = vld [vmem:[%s340 + $0x4] sm:$0x1]
      %v1196 = vld [vmem:[%s344] sm:$0xf]
      %v1197 = vld [vmem:[%s344 + $0x4] sm:$0x1]
      %v1198 = vrot.slane %v743, 1
      %v1199 = vor.u32 %v740, %v1198
      %v1202 = vunpack.c.l.b16 %v1192
      %v1203 = vunpack.c.l.b16 %v1193
      %v1204 = vpack.c.b16 %v1203, %v1202
      %v1206 = vshrl.u32 %v1204, 16
      %v1208 = vrot.slane %v1206, 4
      %v1209 = vshll.u32 %v1204, 16
      %v1211 = vrot.slane %v1209, 5
      %v1212 = vor.u32 %v1208, %v1211
      %v1213 = vrot.slane %v756, 1
      %v1214 = vor.u32 %v753, %v1213
      %v1217 = vunpack.c.l.b16 %v1194
      %v1218 = vunpack.c.l.b16 %v1195
      %v1219 = vpack.c.b16 %v1218, %v1217
      %v1221 = vshrl.u32 %v1219, 16
      %v1223 = vrot.slane %v1221, 4
      %v1224 = vshll.u32 %v1219, 16
      %v1226 = vrot.slane %v1224, 5
      %v1227 = vor.u32 %v1223, %v1226
      %v1228 = vrot.slane %v769, 1
      %v1229 = vor.u32 %v766, %v1228
      %v1232 = vunpack.c.l.b16 %v1196
      %v1233 = vunpack.c.l.b16 %v1197
      %v1234 = vpack.c.b16 %v1233, %v1232
      %v1236 = vshrl.u32 %v1234, 16
      %v1238 = vrot.slane %v1236, 4
      %v1239 = vshll.u32 %v1234, 16
      %v1241 = vrot.slane %v1239, 5
      %v1242 = vor.u32 %v1238, %v1241
      %v1245 = vsel %vm355, %v1199, %v1212
      %v1248 = vsel %vm355, %v1214, %v1227
      %v1251 = vsel %vm355, %v1229, %v1242
      %s1252 = scalar_lea.vmem %s2, 480
      %v1253 = vld [vmem:[%s1252] sm:$0xff]
      %v1254 = vld [vmem:[%s1252 + $0x8] sm:$0xff]
      %v1255 = vld [vmem:[%s1252 + $0x10] sm:$0xff]
      %v1256 = vld [vmem:[%s1252 + $0x18] sm:$0xff]
      %v1257 = vld [vmem:[%s1252 + $0x20] sm:$0xff]
      %v1258 = vld [vmem:[%s1252 + $0x28] sm:$0xff]
      %v1259 = vld [vmem:[%s1252 + $0x30] sm:$0xff]
      %v1260 = vld [vmem:[%s1252 + $0x38] sm:$0xff]
      %v1261 = vld [vmem:[%s1252 + $0x40] sm:$0xff]
      %v1262 = vld [vmem:[%s1252 + $0x48] sm:$0xff]
      %v1263 = vld [vmem:[%s1252 + $0x50] sm:$0xff]
      %v1264 = vld [vmem:[%s1252 + $0x58] sm:$0xff]
      %v1265 = vld [vmem:[%s1252 + $0x60] sm:$0xff]
      %v1266 = vld [vmem:[%s1252 + $0x68] sm:$0xff]
      %v1267 = vld [vmem:[%s1252 + $0x70] sm:$0x11]
      %v1283 = vunpack.c.l.b16 %v1253
      %v1284 = vunpack.c.h.b16 %v1253
      %v1285 = vunpack.c.l.b16 %v1254
      %v1286 = vunpack.c.h.b16 %v1254
      %v1287 = vunpack.c.l.b16 %v1255
      %v1288 = vunpack.c.h.b16 %v1255
      %v1289 = vunpack.c.l.b16 %v1256
      %v1290 = vunpack.c.h.b16 %v1256
      %v1291 = vunpack.c.l.b16 %v1257
      %v1292 = vunpack.c.h.b16 %v1257
      %v1293 = vunpack.c.l.b16 %v1258
      %v1294 = vunpack.c.h.b16 %v1258
      %v1295 = vunpack.c.l.b16 %v1259
      %v1296 = vunpack.c.h.b16 %v1259
      %v1297 = vunpack.c.l.b16 %v1260
      %v1298 = vunpack.c.h.b16 %v1260
      %v1299 = vunpack.c.l.b16 %v1261
      %v1300 = vunpack.c.h.b16 %v1261
      %v1301 = vunpack.c.l.b16 %v1262
      %v1302 = vunpack.c.h.b16 %v1262
      %v1303 = vunpack.c.l.b16 %v1263
      %v1304 = vunpack.c.h.b16 %v1263
      %v1305 = vunpack.c.l.b16 %v1264
      %v1306 = vunpack.c.h.b16 %v1264
      %v1307 = vunpack.c.l.b16 %v1265
      %v1308 = vunpack.c.h.b16 %v1265
      %v1309 = vunpack.c.l.b16 %v1266
      %v1310 = vunpack.c.h.b16 %v1266
      %v1311 = vunpack.c.l.b16 %v1267
      %v1312 = vunpack.c.h.b16 %v1267
      %v1313 = vpack.c.b16 %v1285, %v1283
      %v1314 = vpack.c.b16 %v1286, %v1284
      %v1315 = vpack.c.b16 %v1289, %v1287
      %v1316 = vpack.c.b16 %v1290, %v1288
      %v1317 = vpack.c.b16 %v1293, %v1291
      %v1318 = vpack.c.b16 %v1294, %v1292
      %v1319 = vpack.c.b16 %v1297, %v1295
      %v1320 = vpack.c.b16 %v1298, %v1296
      %v1321 = vpack.c.b16 %v1301, %v1299
      %v1322 = vpack.c.b16 %v1302, %v1300
      %v1323 = vpack.c.b16 %v1305, %v1303
      %v1324 = vpack.c.b16 %v1306, %v1304
      %v1325 = vpack.c.b16 %v1309, %v1307
      %v1326 = vpack.c.b16 %v1310, %v1308
      %v1327 = vpack.c.b16 %v1311, %v1311
      %v1328 = vpack.c.b16 %v1312, %v1312
      %v1343 = vsel %vm501, %v1245, 0
      %v1345 = vsel %vm501, %v1248, 0
      %v1347 = vsel %vm501, %v1251, 0
      %v1350 = vsel %vm508, %v1327, 0
      %v1353 = vsel %vm508, %v1328, 0
      %1355 = vmatprep.subr.bf16.mxu0 %v1353
      %1356 = vmatpush1.bf16.msra.mxu0 %v1350
      %1357 = vmatprep.subr.bf16.mxu0 %v1326
      %1358 = vmatpush1.bf16.msra.mxu0 %v1325
      %1359 = vmatprep.subr.bf16.mxu0 %v1324
      %1360 = vmatpush1.bf16.msra.mxu0 %v1323
      %1361 = vmatprep.subr.bf16.mxu0 %v1322
      %1362 = vmatpush1.bf16.msra.mxu0 %v1321
      %1363 = vmatprep.subr.bf16.mxu0 %v1320
      %1364 = vmatpush1.bf16.msra.mxu0 %v1319
      %1365 = vmatprep.subr.bf16.mxu0 %v1318
      %1366 = vmatpush1.bf16.msra.mxu0 %v1317
      %1367 = vmatprep.subr.bf16.mxu0 %v1316
      %1368 = vmatpush1.bf16.msra.mxu0 %v1315
      %1369 = vmatprep.subr.bf16.mxu0 %v1314
      %1370 = vmatpush1.bf16.msra.mxu0 %v1313
      %1371 = vmatprep.subr.bf16.mxu0 0
      %1372 = vmatpush2.bf16.msra.mxu0 0
      %1373 = vmatprep.subr.bf16.mxu0 0
      %1374 = vmatpush2.bf16.msra.mxu0 0
      %1375 = vmatprep.subr.bf16.mxu0 0
      %1376 = vmatpush2.bf16.msra.mxu0 0
      %1377 = vmatprep.subr.bf16.mxu0 0
      %1378 = vmatpush2.bf16.msra.mxu0 0
      %1379 = vmatprep.subr.bf16.mxu0 0
      %1380 = vmatpush2.bf16.msra.mxu0 0
      %1381 = vmatprep.subr.bf16.mxu0 0
      %1382 = vmatpush2.bf16.msra.mxu0 0
      %1383 = vmatprep.subr.bf16.mxu0 0
      %1384 = vmatpush2.bf16.msra.mxu0 0
      %1385 = vmatprep.subr.bf16.mxu0 0
      %1386 = vmatpush2.bf16.msra.mxu0 0
      %1387 = vmatprep.mubr.bf16.mxu0 0
      %1388 = vmatmul.mubr.bf16.gmra.mxu0 %v1343
      %v1389 = vpop.f32.mrf.mxu0
      %v1390 = vadd.f32 0.0, %v1389
      %v1391 = vpop.f32.mrf.mxu0
      %v1392 = vadd.f32 0.0, %v1391
      %v1393 = vpop.f32.mrf.mxu0
      %v1394 = vadd.f32 0.0, %v1393
      %v1395 = vpop.f32.mrf.mxu0
      %v1396 = vadd.f32 0.0, %v1395
      %1397 = vmatprep.mubr.bf16.mxu0 0
      %1398 = vmatmul.mubr.bf16.gmra.mxu0 %v1345
      %v1399 = vpop.f32.mrf.mxu0
      %v1400 = vadd.f32 0.0, %v1399
      %v1401 = vpop.f32.mrf.mxu0
      %v1402 = vadd.f32 0.0, %v1401
      %v1403 = vpop.f32.mrf.mxu0
      %v1404 = vadd.f32 0.0, %v1403
      %v1405 = vpop.f32.mrf.mxu0
      %v1406 = vadd.f32 0.0, %v1405
      %1407 = vmatprep.mubr.bf16.mxu0 0
      %1408 = vmatmul.mubr.bf16.gmra.mxu0 %v1347
      %v1409 = vpop.f32.mrf.mxu0
      %v1410 = vadd.f32 0.0, %v1409
      %v1411 = vpop.f32.mrf.mxu0
      %v1412 = vadd.f32 0.0, %v1411
      %v1413 = vpop.f32.mrf.mxu0
      %v1414 = vadd.f32 0.0, %v1413
      %v1415 = vpop.f32.mrf.mxu0
      %v1416 = vadd.f32 0.0, %v1415
      %1417 = vdwg.mxu0
      %v1418 = vadd.f32 %v1180, %v1390
      %v1419 = vadd.f32 %v1181, %v1392
      %v1420 = vadd.f32 %v1182, %v1394
      %v1421 = vadd.f32 %v1183, %v1396
      %v1422 = vadd.f32 %v1184, %v1400
      %v1423 = vadd.f32 %v1185, %v1402
      %v1424 = vadd.f32 %v1186, %v1404
      %v1425 = vadd.f32 %v1187, %v1406
      %v1426 = vadd.f32 %v1188, %v1410
      %v1427 = vadd.f32 %v1189, %v1412
      %v1428 = vadd.f32 %v1190, %v1414
      %v1429 = vadd.f32 %v1191, %v1416
      %v1430 = vld [vmem:[%s382] sm:$0xf]
      %v1431 = vld [vmem:[%s382 + $0x4] sm:$0x1]
      %v1432 = vld [vmem:[%s386] sm:$0xf]
      %v1433 = vld [vmem:[%s386 + $0x4] sm:$0x1]
      %v1434 = vld [vmem:[%s390] sm:$0xf]
      %v1435 = vld [vmem:[%s390 + $0x4] sm:$0x1]
      %v1436 = vrot.slane %v975, 1
      %v1437 = vor.u32 %v972, %v1436
      %v1440 = vunpack.c.l.b16 %v1430
      %v1441 = vunpack.c.l.b16 %v1431
      %v1442 = vpack.c.b16 %v1441, %v1440
      %v1444 = vshrl.u32 %v1442, 16
      %v1446 = vrot.slane %v1444, 4
      %v1447 = vshll.u32 %v1442, 16
      %v1449 = vrot.slane %v1447, 5
      %v1450 = vor.u32 %v1446, %v1449
      %v1451 = vrot.slane %v988, 1
      %v1452 = vor.u32 %v985, %v1451
      %v1455 = vunpack.c.l.b16 %v1432
      %v1456 = vunpack.c.l.b16 %v1433
      %v1457 = vpack.c.b16 %v1456, %v1455
      %v1459 = vshrl.u32 %v1457, 16
      %v1461 = vrot.slane %v1459, 4
      %v1462 = vshll.u32 %v1457, 16
      %v1464 = vrot.slane %v1462, 5
      %v1465 = vor.u32 %v1461, %v1464
      %v1466 = vrot.slane %v1001, 1
      %v1467 = vor.u32 %v998, %v1466
      %v1470 = vunpack.c.l.b16 %v1434
      %v1471 = vunpack.c.l.b16 %v1435
      %v1472 = vpack.c.b16 %v1471, %v1470
      %v1474 = vshrl.u32 %v1472, 16
      %v1476 = vrot.slane %v1474, 4
      %v1477 = vshll.u32 %v1472, 16
      %v1479 = vrot.slane %v1477, 5
      %v1480 = vor.u32 %v1476, %v1479
      %v1483 = vsel %vm355, %v1437, %v1450
      %v1486 = vsel %vm355, %v1452, %v1465
      %v1489 = vsel %vm355, %v1467, %v1480
      %s1490 = scalar_lea.vmem %s2, 600
      %v1491 = vld [vmem:[%s1490] sm:$0xff]
      %v1492 = vld [vmem:[%s1490 + $0x8] sm:$0xff]
      %v1493 = vld [vmem:[%s1490 + $0x10] sm:$0xff]
      %v1494 = vld [vmem:[%s1490 + $0x18] sm:$0xff]
      %v1495 = vld [vmem:[%s1490 + $0x20] sm:$0xff]
      %v1496 = vld [vmem:[%s1490 + $0x28] sm:$0xff]
      %v1497 = vld [vmem:[%s1490 + $0x30] sm:$0xff]
      %v1498 = vld [vmem:[%s1490 + $0x38] sm:$0xff]
      %v1499 = vld [vmem:[%s1490 + $0x40] sm:$0xff]
      %v1500 = vld [vmem:[%s1490 + $0x48] sm:$0xff]
      %v1501 = vld [vmem:[%s1490 + $0x50] sm:$0xff]
      %v1502 = vld [vmem:[%s1490 + $0x58] sm:$0xff]
      %v1503 = vld [vmem:[%s1490 + $0x60] sm:$0xff]
      %v1504 = vld [vmem:[%s1490 + $0x68] sm:$0xff]
      %v1505 = vld [vmem:[%s1490 + $0x70] sm:$0x11]
      %v1521 = vunpack.c.l.b16 %v1491
      %v1522 = vunpack.c.h.b16 %v1491
      %v1523 = vunpack.c.l.b16 %v1492
      %v1524 = vunpack.c.h.b16 %v1492
      %v1525 = vunpack.c.l.b16 %v1493
      %v1526 = vunpack.c.h.b16 %v1493
      %v1527 = vunpack.c.l.b16 %v1494
      %v1528 = vunpack.c.h.b16 %v1494
      %v1529 = vunpack.c.l.b16 %v1495
      %v1530 = vunpack.c.h.b16 %v1495
      %v1531 = vunpack.c.l.b16 %v1496
      %v1532 = vunpack.c.h.b16 %v1496
      %v1533 = vunpack.c.l.b16 %v1497
      %v1534 = vunpack.c.h.b16 %v1497
      %v1535 = vunpack.c.l.b16 %v1498
      %v1536 = vunpack.c.h.b16 %v1498
      %v1537 = vunpack.c.l.b16 %v1499
      %v1538 = vunpack.c.h.b16 %v1499
      %v1539 = vunpack.c.l.b16 %v1500
      %v1540 = vunpack.c.h.b16 %v1500
      %v1541 = vunpack.c.l.b16 %v1501
      %v1542 = vunpack.c.h.b16 %v1501
      %v1543 = vunpack.c.l.b16 %v1502
      %v1544 = vunpack.c.h.b16 %v1502
      %v1545 = vunpack.c.l.b16 %v1503
      %v1546 = vunpack.c.h.b16 %v1503
      %v1547 = vunpack.c.l.b16 %v1504
      %v1548 = vunpack.c.h.b16 %v1504
      %v1549 = vunpack.c.l.b16 %v1505
      %v1550 = vunpack.c.h.b16 %v1505
      %v1551 = vpack.c.b16 %v1523, %v1521
      %v1552 = vpack.c.b16 %v1524, %v1522
      %v1553 = vpack.c.b16 %v1527, %v1525
      %v1554 = vpack.c.b16 %v1528, %v1526
      %v1555 = vpack.c.b16 %v1531, %v1529
      %v1556 = vpack.c.b16 %v1532, %v1530
      %v1557 = vpack.c.b16 %v1535, %v1533
      %v1558 = vpack.c.b16 %v1536, %v1534
      %v1559 = vpack.c.b16 %v1539, %v1537
      %v1560 = vpack.c.b16 %v1540, %v1538
      %v1561 = vpack.c.b16 %v1543, %v1541
      %v1562 = vpack.c.b16 %v1544, %v1542
      %v1563 = vpack.c.b16 %v1547, %v1545
      %v1564 = vpack.c.b16 %v1548, %v1546
      %v1565 = vpack.c.b16 %v1549, %v1549
      %v1566 = vpack.c.b16 %v1550, %v1550
      %v1581 = vsel %vm501, %v1483, 0
      %v1583 = vsel %vm501, %v1486, 0
      %v1585 = vsel %vm501, %v1489, 0
      %v1588 = vsel %vm508, %v1565, 0
      %v1591 = vsel %vm508, %v1566, 0
      %1593 = vmatprep.subr.bf16.mxu0 %v1591
      %1594 = vmatpush1.bf16.msra.mxu0 %v1588
      %1595 = vmatprep.subr.bf16.mxu0 %v1564
      %1596 = vmatpush1.bf16.msra.mxu0 %v1563
      %1597 = vmatprep.subr.bf16.mxu0 %v1562
      %1598 = vmatpush1.bf16.msra.mxu0 %v1561
      %1599 = vmatprep.subr.bf16.mxu0 %v1560
      %1600 = vmatpush1.bf16.msra.mxu0 %v1559
      %1601 = vmatprep.subr.bf16.mxu0 %v1558
      %1602 = vmatpush1.bf16.msra.mxu0 %v1557
      %1603 = vmatprep.subr.bf16.mxu0 %v1556
      %1604 = vmatpush1.bf16.msra.mxu0 %v1555
      %1605 = vmatprep.subr.bf16.mxu0 %v1554
      %1606 = vmatpush1.bf16.msra.mxu0 %v1553
      %1607 = vmatprep.subr.bf16.mxu0 %v1552
      %1608 = vmatpush1.bf16.msra.mxu0 %v1551
      %1609 = vmatprep.subr.bf16.mxu0 0
      %1610 = vmatpush2.bf16.msra.mxu0 0
      %1611 = vmatprep.subr.bf16.mxu0 0
      %1612 = vmatpush2.bf16.msra.mxu0 0
      %1613 = vmatprep.subr.bf16.mxu0 0
      %1614 = vmatpush2.bf16.msra.mxu0 0
      %1615 = vmatprep.subr.bf16.mxu0 0
      %1616 = vmatpush2.bf16.msra.mxu0 0
      %1617 = vmatprep.subr.bf16.mxu0 0
      %1618 = vmatpush2.bf16.msra.mxu0 0
      %1619 = vmatprep.subr.bf16.mxu0 0
      %1620 = vmatpush2.bf16.msra.mxu0 0
      %1621 = vmatprep.subr.bf16.mxu0 0
      %1622 = vmatpush2.bf16.msra.mxu0 0
      %1623 = vmatprep.subr.bf16.mxu0 0
      %1624 = vmatpush2.bf16.msra.mxu0 0
      %1625 = vmatprep.mubr.bf16.mxu0 0
      %1626 = vmatmul.mubr.bf16.gmra.mxu0 %v1581
      %v1627 = vpop.f32.mrf.mxu0
      %v1628 = vadd.f32 0.0, %v1627
      %v1629 = vpop.f32.mrf.mxu0
      %v1630 = vadd.f32 0.0, %v1629
      %v1631 = vpop.f32.mrf.mxu0
      %v1632 = vadd.f32 0.0, %v1631
      %v1633 = vpop.f32.mrf.mxu0
      %v1634 = vadd.f32 0.0, %v1633
      %1635 = vmatprep.mubr.bf16.mxu0 0
      %1636 = vmatmul.mubr.bf16.gmra.mxu0 %v1583
      %v1637 = vpop.f32.mrf.mxu0
      %v1638 = vadd.f32 0.0, %v1637
      %v1639 = vpop.f32.mrf.mxu0
      %v1640 = vadd.f32 0.0, %v1639
      %v1641 = vpop.f32.mrf.mxu0
      %v1642 = vadd.f32 0.0, %v1641
      %v1643 = vpop.f32.mrf.mxu0
      %v1644 = vadd.f32 0.0, %v1643
      %1645 = vmatprep.mubr.bf16.mxu0 0
      %1646 = vmatmul.mubr.bf16.gmra.mxu0 %v1585
      %v1647 = vpop.f32.mrf.mxu0
      %v1648 = vadd.f32 0.0, %v1647
      %v1649 = vpop.f32.mrf.mxu0
      %v1650 = vadd.f32 0.0, %v1649
      %v1651 = vpop.f32.mrf.mxu0
      %v1652 = vadd.f32 0.0, %v1651
      %v1653 = vpop.f32.mrf.mxu0
      %v1654 = vadd.f32 0.0, %v1653
      %1655 = vdwg.mxu0
      %v1656 = vadd.f32 %v1418, %v1628
      %v1657 = vadd.f32 %v1419, %v1630
      %v1658 = vadd.f32 %v1420, %v1632
      %v1659 = vadd.f32 %v1421, %v1634
      %v1660 = vadd.f32 %v1422, %v1638
      %v1661 = vadd.f32 %v1423, %v1640
      %v1662 = vadd.f32 %v1424, %v1642
      %v1663 = vadd.f32 %v1425, %v1644
      %v1664 = vadd.f32 %v1426, %v1648
      %v1665 = vadd.f32 %v1427, %v1650
      %v1666 = vadd.f32 %v1428, %v1652
      %v1667 = vadd.f32 %v1429, %v1654
      %v1668 = vld [vmem:[%s320] sm:$0xe]
      %v1669 = vld [vmem:[%s338] sm:$0xe]
      %v1670 = vld [vmem:[%s342] sm:$0xe]
      %v1671 = vrot.slane %v1209, 1
      %v1672 = vor.u32 %v1206, %v1671
      %v1674 = vunpack.c.l.b16 %v1668
      %v1675 = vpack.c.b16 %v737, %v1674
      %v1676 = vrot.slane %v1675, 5
      %v1677 = vrot.slane %v1224, 1
      %v1678 = vor.u32 %v1221, %v1677
      %v1680 = vunpack.c.l.b16 %v1669
      %v1681 = vpack.c.b16 %v750, %v1680
      %v1682 = vrot.slane %v1681, 5
      %v1683 = vrot.slane %v1239, 1
      %v1684 = vor.u32 %v1236, %v1683
      %v1686 = vunpack.c.l.b16 %v1670
      %v1687 = vpack.c.b16 %v763, %v1686
      %v1688 = vrot.slane %v1687, 5
      %v1691 = vsel %vm355, %v1672, %v1676
      %v1694 = vsel %vm355, %v1678, %v1682
      %v1697 = vsel %vm355, %v1684, %v1688
      %s1698 = scalar_lea.vmem %s2, 720
      %v1699 = vld [vmem:[%s1698] sm:$0xff]
      %v1700 = vld [vmem:[%s1698 + $0x8] sm:$0xff]
      %v1701 = vld [vmem:[%s1698 + $0x10] sm:$0xff]
      %v1702 = vld [vmem:[%s1698 + $0x18] sm:$0xff]
      %v1703 = vld [vmem:[%s1698 + $0x20] sm:$0xff]
      %v1704 = vld [vmem:[%s1698 + $0x28] sm:$0xff]
      %v1705 = vld [vmem:[%s1698 + $0x30] sm:$0xff]
      %v1706 = vld [vmem:[%s1698 + $0x38] sm:$0xff]
      %v1707 = vld [vmem:[%s1698 + $0x40] sm:$0xff]
      %v1708 = vld [vmem:[%s1698 + $0x48] sm:$0xff]
      %v1709 = vld [vmem:[%s1698 + $0x50] sm:$0xff]
      %v1710 = vld [vmem:[%s1698 + $0x58] sm:$0xff]
      %v1711 = vld [vmem:[%s1698 + $0x60] sm:$0xff]
      %v1712 = vld [vmem:[%s1698 + $0x68] sm:$0xff]
      %v1713 = vld [vmem:[%s1698 + $0x70] sm:$0x11]
      %v1729 = vunpack.c.l.b16 %v1699
      %v1730 = vunpack.c.h.b16 %v1699
      %v1731 = vunpack.c.l.b16 %v1700
      %v1732 = vunpack.c.h.b16 %v1700
      %v1733 = vunpack.c.l.b16 %v1701
      %v1734 = vunpack.c.h.b16 %v1701
      %v1735 = vunpack.c.l.b16 %v1702
      %v1736 = vunpack.c.h.b16 %v1702
      %v1737 = vunpack.c.l.b16 %v1703
      %v1738 = vunpack.c.h.b16 %v1703
      %v1739 = vunpack.c.l.b16 %v1704
      %v1740 = vunpack.c.h.b16 %v1704
      %v1741 = vunpack.c.l.b16 %v1705
      %v1742 = vunpack.c.h.b16 %v1705
      %v1743 = vunpack.c.l.b16 %v1706
      %v1744 = vunpack.c.h.b16 %v1706
      %v1745 = vunpack.c.l.b16 %v1707
      %v1746 = vunpack.c.h.b16 %v1707
      %v1747 = vunpack.c.l.b16 %v1708
      %v1748 = vunpack.c.h.b16 %v1708
      %v1749 = vunpack.c.l.b16 %v1709
      %v1750 = vunpack.c.h.b16 %v1709
      %v1751 = vunpack.c.l.b16 %v1710
      %v1752 = vunpack.c.h.b16 %v1710
      %v1753 = vunpack.c.l.b16 %v1711
      %v1754 = vunpack.c.h.b16 %v1711
      %v1755 = vunpack.c.l.b16 %v1712
      %v1756 = vunpack.c.h.b16 %v1712
      %v1757 = vunpack.c.l.b16 %v1713
      %v1758 = vunpack.c.h.b16 %v1713
      %v1759 = vpack.c.b16 %v1731, %v1729
      %v1760 = vpack.c.b16 %v1732, %v1730
      %v1761 = vpack.c.b16 %v1735, %v1733
      %v1762 = vpack.c.b16 %v1736, %v1734
      %v1763 = vpack.c.b16 %v1739, %v1737
      %v1764 = vpack.c.b16 %v1740, %v1738
      %v1765 = vpack.c.b16 %v1743, %v1741
      %v1766 = vpack.c.b16 %v1744, %v1742
      %v1767 = vpack.c.b16 %v1747, %v1745
      %v1768 = vpack.c.b16 %v1748, %v1746
      %v1769 = vpack.c.b16 %v1751, %v1749
      %v1770 = vpack.c.b16 %v1752, %v1750
      %v1771 = vpack.c.b16 %v1755, %v1753
      %v1772 = vpack.c.b16 %v1756, %v1754
      %v1773 = vpack.c.b16 %v1757, %v1757
      %v1774 = vpack.c.b16 %v1758, %v1758
      %v1789 = vsel %vm501, %v1691, 0
      %v1791 = vsel %vm501, %v1694, 0
      %v1793 = vsel %vm501, %v1697, 0
      %v1796 = vsel %vm508, %v1773, 0
      %v1799 = vsel %vm508, %v1774, 0
      %1801 = vmatprep.subr.bf16.mxu0 %v1799
      %1802 = vmatpush1.bf16.msra.mxu0 %v1796
      %1803 = vmatprep.subr.bf16.mxu0 %v1772
      %1804 = vmatpush1.bf16.msra.mxu0 %v1771
      %1805 = vmatprep.subr.bf16.mxu0 %v1770
      %1806 = vmatpush1.bf16.msra.mxu0 %v1769
      %1807 = vmatprep.subr.bf16.mxu0 %v1768
      %1808 = vmatpush1.bf16.msra.mxu0 %v1767
      %1809 = vmatprep.subr.bf16.mxu0 %v1766
      %1810 = vmatpush1.bf16.msra.mxu0 %v1765
      %1811 = vmatprep.subr.bf16.mxu0 %v1764
      %1812 = vmatpush1.bf16.msra.mxu0 %v1763
      %1813 = vmatprep.subr.bf16.mxu0 %v1762
      %1814 = vmatpush1.bf16.msra.mxu0 %v1761
      %1815 = vmatprep.subr.bf16.mxu0 %v1760
      %1816 = vmatpush1.bf16.msra.mxu0 %v1759
      %1817 = vmatprep.subr.bf16.mxu0 0
      %1818 = vmatpush2.bf16.msra.mxu0 0
      %1819 = vmatprep.subr.bf16.mxu0 0
      %1820 = vmatpush2.bf16.msra.mxu0 0
      %1821 = vmatprep.subr.bf16.mxu0 0
      %1822 = vmatpush2.bf16.msra.mxu0 0
      %1823 = vmatprep.subr.bf16.mxu0 0
      %1824 = vmatpush2.bf16.msra.mxu0 0
      %1825 = vmatprep.subr.bf16.mxu0 0
      %1826 = vmatpush2.bf16.msra.mxu0 0
      %1827 = vmatprep.subr.bf16.mxu0 0
      %1828 = vmatpush2.bf16.msra.mxu0 0
      %1829 = vmatprep.subr.bf16.mxu0 0
      %1830 = vmatpush2.bf16.msra.mxu0 0
      %1831 = vmatprep.subr.bf16.mxu0 0
      %1832 = vmatpush2.bf16.msra.mxu0 0
      %1833 = vmatprep.mubr.bf16.mxu0 0
      %1834 = vmatmul.mubr.bf16.gmra.mxu0 %v1789
      %v1835 = vpop.f32.mrf.mxu0
      %v1836 = vadd.f32 0.0, %v1835
      %v1837 = vpop.f32.mrf.mxu0
      %v1838 = vadd.f32 0.0, %v1837
      %v1839 = vpop.f32.mrf.mxu0
      %v1840 = vadd.f32 0.0, %v1839
      %v1841 = vpop.f32.mrf.mxu0
      %v1842 = vadd.f32 0.0, %v1841
      %1843 = vmatprep.mubr.bf16.mxu0 0
      %1844 = vmatmul.mubr.bf16.gmra.mxu0 %v1791
      %v1845 = vpop.f32.mrf.mxu0
      %v1846 = vadd.f32 0.0, %v1845
      %v1847 = vpop.f32.mrf.mxu0
      %v1848 = vadd.f32 0.0, %v1847
      %v1849 = vpop.f32.mrf.mxu0
      %v1850 = vadd.f32 0.0, %v1849
      %v1851 = vpop.f32.mrf.mxu0
      %v1852 = vadd.f32 0.0, %v1851
      %1853 = vmatprep.mubr.bf16.mxu0 0
      %1854 = vmatmul.mubr.bf16.gmra.mxu0 %v1793
      %v1855 = vpop.f32.mrf.mxu0
      %v1856 = vadd.f32 0.0, %v1855
      %v1857 = vpop.f32.mrf.mxu0
      %v1858 = vadd.f32 0.0, %v1857
      %v1859 = vpop.f32.mrf.mxu0
      %v1860 = vadd.f32 0.0, %v1859
      %v1861 = vpop.f32.mrf.mxu0
      %v1862 = vadd.f32 0.0, %v1861
      %1863 = vdwg.mxu0
      %v1864 = vadd.f32 %v1656, %v1836
      %v1865 = vadd.f32 %v1657, %v1838
      %v1866 = vadd.f32 %v1658, %v1840
      %v1867 = vadd.f32 %v1659, %v1842
      %v1868 = vadd.f32 %v1660, %v1846
      %v1869 = vadd.f32 %v1661, %v1848
      %v1870 = vadd.f32 %v1662, %v1850
      %v1871 = vadd.f32 %v1663, %v1852
      %v1872 = vadd.f32 %v1664, %v1856
      %v1873 = vadd.f32 %v1665, %v1858
      %v1874 = vadd.f32 %v1666, %v1860
      %v1875 = vadd.f32 %v1667, %v1862
      %v1876 = vld [vmem:[%s3] sm:$0x3]
      %v1878 = vlaneseq
      %v1879 = vshrl.u32 %v1878, 7
      %v1880 = vsub.s32 0, %v1879
      %v1881 = vrot.slane %v1876, %v1880
      %v1882 = vlaneseq
      %v1883 = vshrl.u32 %v1882, 7
      %v1884 = vsub.s32 1, %v1883
      %v1885 = vrot.slane %v1876, %v1884
      %v1888 = vmul.f32 %v1864, %v1881
      %v1889 = vmul.f32 %v1865, %v1885
      %v1890 = vmul.f32 %v1866, %v1881
      %v1891 = vmul.f32 %v1867, %v1885
      %v1892 = vmul.f32 %v1868, %v1881
      %v1893 = vmul.f32 %v1869, %v1885
      %v1894 = vmul.f32 %v1870, %v1881
      %v1895 = vmul.f32 %v1871, %v1885
      %v1896 = vmul.f32 %v1872, %v1881
      %v1897 = vmul.f32 %v1873, %v1885
      %v1898 = vmul.f32 %v1874, %v1881
      %v1899 = vmul.f32 %v1875, %v1885
      %v1900 = vld [vmem:[%s4] sm:$0x3]
      %v1902 = vlaneseq
      %v1903 = vshrl.u32 %v1902, 7
      %v1904 = vsub.s32 0, %v1903
      %v1905 = vrot.slane %v1900, %v1904
      %v1906 = vlaneseq
      %v1907 = vshrl.u32 %v1906, 7
      %v1908 = vsub.s32 1, %v1907
      %v1909 = vrot.slane %v1900, %v1908
      %v1912 = vadd.f32 %v1888, %v1905
      %v1913 = vadd.f32 %v1889, %v1909
      %v1914 = vadd.f32 %v1890, %v1905
      %v1915 = vadd.f32 %v1891, %v1909
      %v1916 = vadd.f32 %v1892, %v1905
      %v1917 = vadd.f32 %v1893, %v1909
      %v1918 = vadd.f32 %v1894, %v1905
      %v1919 = vadd.f32 %v1895, %v1909
      %v1920 = vadd.f32 %v1896, %v1905
      %v1921 = vadd.f32 %v1897, %v1909
      %v1922 = vadd.f32 %v1898, %v1905
      %v1923 = vadd.f32 %v1899, %v1909
      %v1924 = vmax.f32 %v1912, 0.0
      %v1925 = vmax.f32 %v1913, 0.0
      %v1926 = vmax.f32 %v1914, 0.0
      %v1927 = vmax.f32 %v1915, 0.0
      %v1928 = vmax.f32 %v1916, 0.0
      %v1929 = vmax.f32 %v1917, 0.0
      %v1930 = vmax.f32 %v1918, 0.0
      %v1931 = vmax.f32 %v1919, 0.0
      %v1932 = vmax.f32 %v1920, 0.0
      %v1933 = vmax.f32 %v1921, 0.0
      %v1934 = vmax.f32 %v1922, 0.0
      %v1935 = vmax.f32 %v1923, 0.0
      %v1936 = vlaneseq
      %v1937 = vand.u32 %v1936, 127
      %vm1938 = vcmp.ge.s32.totalorder %v1937, 16
      %1939 = vrot.lane.b32.xlu0 %v1925, 16
      %v1940 = vpop.permute.xlu0 %1939
      %1941 = vrot.lane.b32.xlu0 %v1927, 16
      %v1942 = vpop.permute.xlu0 %1941
      %1943 = vrot.lane.b32.xlu0 %v1929, 16
      %v1944 = vpop.permute.xlu0 %1943
      %1945 = vrot.lane.b32.xlu0 %v1931, 16
      %v1946 = vpop.permute.xlu0 %1945
      %1947 = vrot.lane.b32.xlu0 %v1933, 16
      %v1948 = vpop.permute.xlu0 %1947
      %1949 = vrot.lane.b32.xlu0 %v1935, 16
      %v1950 = vpop.permute.xlu0 %1949
      %v1951 = vsel %vm1938, %v1940, 0.0
      %v1952 = vsel %vm1938, %v1942, 0.0
      %v1953 = vsel %vm1938, %v1944, 0.0
      %v1954 = vsel %vm1938, %v1946, 0.0
      %v1955 = vsel %vm1938, %v1948, 0.0
      %v1956 = vsel %vm1938, %v1950, 0.0
      %v1957 = vmax.f32 %v1924, %v1925
      %v1958 = vmax.f32 %v1926, %v1927
      %v1959 = vmax.f32 %v1928, %v1929
      %v1960 = vmax.f32 %v1930, %v1931
      %v1961 = vmax.f32 %v1932, %v1933
      %v1962 = vmax.f32 %v1934, %v1935
      %v1963 = vmax.f32 %v1957, %v1951
      %v1964 = vmax.f32 %v1958, %v1952
      %v1965 = vmax.f32 %v1959, %v1953
      %v1966 = vmax.f32 %v1960, %v1954
      %v1967 = vmax.f32 %v1961, %v1955
      %v1968 = vmax.f32 %v1962, %v1956
      %v1970 = vrot.slane %v1964, 7
      %v1972 = vsel %vm508, 0.0, %v1970
      %v1973 = vmax.f32 %v1963, %v1964
      %v1974 = vmax.f32 %v1973, %v1972
      %v1976 = vrot.slane %v1966, 7
      %v1978 = vsel %vm508, 0.0, %v1976
      %v1979 = vmax.f32 %v1965, %v1966
      %v1980 = vmax.f32 %v1979, %v1978
      %v1982 = vrot.slane %v1968, 7
      %v1984 = vsel %vm508, 0.0, %v1982
      %v1985 = vmax.f32 %v1967, %v1968
      %v1986 = vmax.f32 %v1985, %v1984
      %v1988 = vrot.slane %v1974, 7
      %v1991 = vrot.slane %v1980, 7
      %v1994 = vrot.slane %v1986, 7
      %v1996 = vsel %vm508, 0.0, %v1988
      %v1997 = vsel %vm508, %v1988, 0.0
      %v1998 = vsel %vm508, 0.0, %v1991
      %v1999 = vsel %vm508, %v1991, 0.0
      %v2000 = vsel %vm508, 0.0, %v1994
      %v2001 = vsel %vm508, %v1994, 0.0
      %v2002 = vld [vmem:[%s326] sm:$0xff]
      %v2003 = vld [vmem:[%s326 + $0x8] sm:$0xff]
      %v2004 = vld [vmem:[%s326 + $0x10] sm:$0xff]
      %v2005 = vld [vmem:[%s326 + $0x18] sm:$0xff]
      %v2006 = vld [vmem:[%s326 + $0x20] sm:$0xff]
      %v2007 = vld [vmem:[%s326 + $0x28] sm:$0xff]
      %v2008 = vld [vmem:[%s5] sm:$0xf]
      %v2009 = vld [vmem:[%s5 + $0x4] sm:$0xf]
      %v2010 = vld [vmem:[%s5 + $0x8] sm:$0xf]
      %v2011 = vld [vmem:[%s5 + $0xc] sm:$0xf]
      %v2012 = vld [vmem:[%s5 + $0x10] sm:$0xf]
      %v2013 = vld [vmem:[%s5 + $0x14] sm:$0xf]
      %v2014 = vld [vmem:[%s5 + $0x18] sm:$0xf]
      %v2015 = vld [vmem:[%s5 + $0x1c] sm:$0xf]
      %v2016 = vld [vmem:[%s5 + $0x20] sm:$0xf]
      %v2017 = vld [vmem:[%s5 + $0x24] sm:$0xf]
      %v2018 = vld [vmem:[%s5 + $0x28] sm:$0xf]
      %v2019 = vld [vmem:[%s5 + $0x2c] sm:$0xf]
      %v2020 = vld [vmem:[%s5 + $0x30] sm:$0xf]
      %v2021 = vld [vmem:[%s5 + $0x34] sm:$0xf]
      %v2022 = vld [vmem:[%s5 + $0x38] sm:$0xf]
      %v2023 = vld [vmem:[%s5 + $0x3c] sm:$0xf]
      %s2024 = scalar_lea.vmem %s5, 64
      %v2025 = vld [vmem:[%s2024] sm:$0xf]
      %v2026 = vld [vmem:[%s2024 + $0x4] sm:$0xf]
      %v2027 = vld [vmem:[%s2024 + $0x8] sm:$0xf]
      %v2028 = vld [vmem:[%s2024 + $0xc] sm:$0xf]
      %v2029 = vld [vmem:[%s2024 + $0x10] sm:$0xf]
      %v2030 = vld [vmem:[%s2024 + $0x14] sm:$0xf]
      %v2031 = vld [vmem:[%s2024 + $0x18] sm:$0xf]
      %v2032 = vld [vmem:[%s2024 + $0x1c] sm:$0xf]
      %v2033 = vld [vmem:[%s2024 + $0x20] sm:$0xf]
      %v2034 = vld [vmem:[%s2024 + $0x24] sm:$0xf]
      %v2035 = vld [vmem:[%s2024 + $0x28] sm:$0xf]
      %v2036 = vld [vmem:[%s2024 + $0x2c] sm:$0xf]
      %v2037 = vld [vmem:[%s2024 + $0x30] sm:$0xf]
      %v2038 = vld [vmem:[%s2024 + $0x34] sm:$0xf]
      %v2039 = vld [vmem:[%s2024 + $0x38] sm:$0xf]
      %v2040 = vld [vmem:[%s2024 + $0x3c] sm:$0xf]
      %s2041 = scalar_lea.vmem %s5, 128
      %v2042 = vld [vmem:[%s2041] sm:$0xf]
      %v2043 = vld [vmem:[%s2041 + $0x4] sm:$0xf]
      %v2044 = vld [vmem:[%s2041 + $0x8] sm:$0xf]
      %v2045 = vld [vmem:[%s2041 + $0xc] sm:$0xf]
      %v2046 = vld [vmem:[%s2041 + $0x10] sm:$0xf]
      %v2047 = vld [vmem:[%s2041 + $0x14] sm:$0xf]
      %v2048 = vld [vmem:[%s2041 + $0x18] sm:$0xf]
      %v2049 = vld [vmem:[%s2041 + $0x1c] sm:$0xf]
      %v2050 = vld [vmem:[%s2041 + $0x20] sm:$0xf]
      %v2051 = vld [vmem:[%s2041 + $0x24] sm:$0xf]
      %v2052 = vld [vmem:[%s2041 + $0x28] sm:$0xf]
      %v2053 = vld [vmem:[%s2041 + $0x2c] sm:$0xf]
      %v2054 = vld [vmem:[%s2041 + $0x30] sm:$0xf]
      %v2055 = vld [vmem:[%s2041 + $0x34] sm:$0xf]
      %v2056 = vld [vmem:[%s2041 + $0x38] sm:$0xf]
      %v2057 = vld [vmem:[%s2041 + $0x3c] sm:$0xf]
      %v2058 = vld [vmem:[%s6] sm:$0x1]
      %v2059 = vld [vmem:[%s7] sm:$0x1]
      %v2060 = vpack.c.bf16 %v1997, %v1996
      %v2061 = vpack.c.bf16 %v1999, %v1998
      %v2062 = vpack.c.bf16 %v2001, %v2000
      %vm2063 = vsmask.f32 256
      %v2065 = vshrl.u32 %v2060, 16
      %v2067 = vrot.slane %v2065, 7
      %v2068 = vshll.u32 %v2060, 16
      %v2070 = vor.u32 %v2067, %v2068
      %v2072 = vshrl.u32 %v2061, 16
      %v2074 = vrot.slane %v2072, 7
      %v2075 = vshll.u32 %v2061, 16
      %v2077 = vor.u32 %v2074, %v2075
      %v2078 = vsel %vm2063, %v2067, %v2077
      %v2080 = vshrl.u32 %v2062, 16
      %v2082 = vrot.slane %v2080, 7
      %v2083 = vshll.u32 %v2062, 16
      %v2085 = vor.u32 %v2082, %v2083
      %v2086 = vsel %vm2063, %v2074, %v2085
      %vm2090 = vcmask 1040384
      %vm2091 = vmand %vm2090, %vm2063
      %v2092 = vsel %vm2091, 0, %v2070
      %vm2093 = vsmask.f32 7424
      %v2094 = vrot.slane %v2068, 1
      %v2095 = vor.u32 %v2065, %v2094
      %v2096 = vrot.slane %v2075, 1
      %v2097 = vsel %vm2093, %v2095, %v2096
      %v2098 = vor.u32 %v2072, %v2096
      %v2099 = vrot.slane %v2083, 1
      %v2100 = vsel %vm2093, %v2098, %v2099
      %v2101 = vor.u32 %v2080, %v2099
      %vm2105 = vcmask 1047552
      %vm2106 = vmand %vm2105, %vm2093
      %v2107 = vsel %vm2106, %v2101, 0
      %v2124 = vunpack.c.l.b16 %v2025
      %v2125 = vunpack.c.l.b16 %v2026
      %v2126 = vunpack.c.l.b16 %v2027
      %v2127 = vunpack.c.l.b16 %v2028
      %v2128 = vunpack.c.l.b16 %v2029
      %v2129 = vunpack.c.l.b16 %v2030
      %v2130 = vunpack.c.l.b16 %v2031
      %v2131 = vunpack.c.l.b16 %v2032
      %v2132 = vunpack.c.l.b16 %v2033
      %v2133 = vunpack.c.l.b16 %v2034
      %v2134 = vunpack.c.l.b16 %v2035
      %v2135 = vunpack.c.l.b16 %v2036
      %v2136 = vunpack.c.l.b16 %v2037
      %v2137 = vunpack.c.l.b16 %v2038
      %v2138 = vunpack.c.l.b16 %v2039
      %v2139 = vunpack.c.l.b16 %v2040
      %v2140 = vpack.c.b16 %v2125, %v2124
      %v2141 = vpack.c.b16 %v2127, %v2126
      %v2142 = vpack.c.b16 %v2129, %v2128
      %v2143 = vpack.c.b16 %v2131, %v2130
      %v2144 = vpack.c.b16 %v2133, %v2132
      %v2145 = vpack.c.b16 %v2135, %v2134
      %v2146 = vpack.c.b16 %v2137, %v2136
      %v2147 = vpack.c.b16 %v2139, %v2138
      %2156 = vmatprep.subr.bf16.mxu0 0
      %2157 = vmatpush1.bf16.msra.mxu0 %v2147
      %2158 = vmatprep.subr.bf16.mxu0 0
      %2159 = vmatpush1.bf16.msra.mxu0 %v2146
      %2160 = vmatprep.subr.bf16.mxu0 0
      %2161 = vmatpush1.bf16.msra.mxu0 %v2145
      %2162 = vmatprep.subr.bf16.mxu0 0
      %2163 = vmatpush1.bf16.msra.mxu0 %v2144
      %2164 = vmatprep.subr.bf16.mxu0 0
      %2165 = vmatpush1.bf16.msra.mxu0 %v2143
      %2166 = vmatprep.subr.bf16.mxu0 0
      %2167 = vmatpush1.bf16.msra.mxu0 %v2142
      %2168 = vmatprep.subr.bf16.mxu0 0
      %2169 = vmatpush1.bf16.msra.mxu0 %v2141
      %2170 = vmatprep.subr.bf16.mxu0 0
      %2171 = vmatpush1.bf16.msra.mxu0 %v2140
      %2172 = vmatprep.subr.bf16.mxu0 0
      %2173 = vmatpush2.bf16.msra.mxu0 0
      %2174 = vmatprep.subr.bf16.mxu0 0
      %2175 = vmatpush2.bf16.msra.mxu0 0
      %2176 = vmatprep.subr.bf16.mxu0 0
      %2177 = vmatpush2.bf16.msra.mxu0 0
      %2178 = vmatprep.subr.bf16.mxu0 0
      %2179 = vmatpush2.bf16.msra.mxu0 0
      %2180 = vmatprep.subr.bf16.mxu0 0
      %2181 = vmatpush2.bf16.msra.mxu0 0
      %2182 = vmatprep.subr.bf16.mxu0 0
      %2183 = vmatpush2.bf16.msra.mxu0 0
      %2184 = vmatprep.subr.bf16.mxu0 0
      %2185 = vmatpush2.bf16.msra.mxu0 0
      %2186 = vmatprep.subr.bf16.mxu0 0
      %2187 = vmatpush2.bf16.msra.mxu0 0
      %2188 = vmatprep.mubr.bf16.mxu0 0
      %2189 = vmatmul.mubr.bf16.gmra.mxu0 %v2060
      %v2190 = vpop.f32.mrf.mxu0
      %v2191 = vadd.f32 0.0, %v2190
      %v2192 = vpop.f32.mrf.mxu0
      %v2193 = vpop.f32.mrf.mxu0
      %v2194 = vadd.f32 0.0, %v2193
      %v2195 = vpop.f32.mrf.mxu0
      %2196 = vmatprep.mubr.bf16.mxu0 0
      %2197 = vmatmul.mubr.bf16.gmra.mxu0 %v2061
      %v2198 = vpop.f32.mrf.mxu0
      %v2199 = vadd.f32 0.0, %v2198
      %v2200 = vpop.f32.mrf.mxu0
      %v2201 = vpop.f32.mrf.mxu0
      %v2202 = vadd.f32 0.0, %v2201
      %v2203 = vpop.f32.mrf.mxu0
      %2204 = vmatprep.mubr.bf16.mxu0 0
      %2205 = vmatmul.mubr.bf16.gmra.mxu0 %v2062
      %v2206 = vpop.f32.mrf.mxu0
      %v2207 = vadd.f32 0.0, %v2206
      %v2208 = vpop.f32.mrf.mxu0
      %v2209 = vpop.f32.mrf.mxu0
      %v2210 = vadd.f32 0.0, %v2209
      %v2211 = vpop.f32.mrf.mxu0
      %2212 = vdwg.mxu0
      %v2229 = vunpack.c.l.b16 %v2008
      %v2230 = vunpack.c.l.b16 %v2009
      %v2231 = vunpack.c.l.b16 %v2010
      %v2232 = vunpack.c.l.b16 %v2011
      %v2233 = vunpack.c.l.b16 %v2012
      %v2234 = vunpack.c.l.b16 %v2013
      %v2235 = vunpack.c.l.b16 %v2014
      %v2236 = vunpack.c.l.b16 %v2015
      %v2237 = vunpack.c.l.b16 %v2016
      %v2238 = vunpack.c.l.b16 %v2017
      %v2239 = vunpack.c.l.b16 %v2018
      %v2240 = vunpack.c.l.b16 %v2019
      %v2241 = vunpack.c.l.b16 %v2020
      %v2242 = vunpack.c.l.b16 %v2021
      %v2243 = vunpack.c.l.b16 %v2022
      %v2244 = vunpack.c.l.b16 %v2023
      %v2245 = vpack.c.b16 %v2230, %v2229
      %v2246 = vpack.c.b16 %v2232, %v2231
      %v2247 = vpack.c.b16 %v2234, %v2233
      %v2248 = vpack.c.b16 %v2236, %v2235
      %v2249 = vpack.c.b16 %v2238, %v2237
      %v2250 = vpack.c.b16 %v2240, %v2239
      %v2251 = vpack.c.b16 %v2242, %v2241
      %v2252 = vpack.c.b16 %v2244, %v2243
      %2261 = vmatprep.subr.bf16.mxu0 0
      %2262 = vmatpush1.bf16.msra.mxu0 %v2252
      %2263 = vmatprep.subr.bf16.mxu0 0
      %2264 = vmatpush1.bf16.msra.mxu0 %v2251
      %2265 = vmatprep.subr.bf16.mxu0 0
      %2266 = vmatpush1.bf16.msra.mxu0 %v2250
      %2267 = vmatprep.subr.bf16.mxu0 0
      %2268 = vmatpush1.bf16.msra.mxu0 %v2249
      %2269 = vmatprep.subr.bf16.mxu0 0
      %2270 = vmatpush1.bf16.msra.mxu0 %v2248
      %2271 = vmatprep.subr.bf16.mxu0 0
      %2272 = vmatpush1.bf16.msra.mxu0 %v2247
      %2273 = vmatprep.subr.bf16.mxu0 0
      %2274 = vmatpush1.bf16.msra.mxu0 %v2246
      %2275 = vmatprep.subr.bf16.mxu0 0
      %2276 = vmatpush1.bf16.msra.mxu0 %v2245
      %2277 = vmatprep.subr.bf16.mxu0 0
      %2278 = vmatpush2.bf16.msra.mxu0 0
      %2279 = vmatprep.subr.bf16.mxu0 0
      %2280 = vmatpush2.bf16.msra.mxu0 0
      %2281 = vmatprep.subr.bf16.mxu0 0
      %2282 = vmatpush2.bf16.msra.mxu0 0
      %2283 = vmatprep.subr.bf16.mxu0 0
      %2284 = vmatpush2.bf16.msra.mxu0 0
      %2285 = vmatprep.subr.bf16.mxu0 0
      %2286 = vmatpush2.bf16.msra.mxu0 0
      %2287 = vmatprep.subr.bf16.mxu0 0
      %2288 = vmatpush2.bf16.msra.mxu0 0
      %2289 = vmatprep.subr.bf16.mxu0 0
      %2290 = vmatpush2.bf16.msra.mxu0 0
      %2291 = vmatprep.subr.bf16.mxu0 0
      %2292 = vmatpush2.bf16.msra.mxu0 0
      %2293 = vmatprep.mubr.bf16.mxu0 0
      %2294 = vmatmul.mubr.bf16.gmra.mxu0 %v2092
      %v2295 = vpop.f32.mrf.mxu0
      %v2296 = vadd.f32 %v2191, %v2295
      %v2297 = vpop.f32.mrf.mxu0
      %v2298 = vpop.f32.mrf.mxu0
      %v2299 = vadd.f32 %v2194, %v2298
      %v2300 = vpop.f32.mrf.mxu0
      %2301 = vmatprep.mubr.bf16.mxu0 0
      %2302 = vmatmul.mubr.bf16.gmra.mxu0 %v2078
      %v2303 = vpop.f32.mrf.mxu0
      %v2304 = vadd.f32 %v2199, %v2303
      %v2305 = vpop.f32.mrf.mxu0
      %v2306 = vpop.f32.mrf.mxu0
      %v2307 = vadd.f32 %v2202, %v2306
      %v2308 = vpop.f32.mrf.mxu0
      %2309 = vmatprep.mubr.bf16.mxu0 0
      %2310 = vmatmul.mubr.bf16.gmra.mxu0 %v2086
      %v2311 = vpop.f32.mrf.mxu0
      %v2312 = vadd.f32 %v2207, %v2311
      %v2313 = vpop.f32.mrf.mxu0
      %v2314 = vpop.f32.mrf.mxu0
      %v2315 = vadd.f32 %v2210, %v2314
      %v2316 = vpop.f32.mrf.mxu0
      %2317 = vdwg.mxu0
      %v2334 = vunpack.c.l.b16 %v2042
      %v2335 = vunpack.c.l.b16 %v2043
      %v2336 = vunpack.c.l.b16 %v2044
      %v2337 = vunpack.c.l.b16 %v2045
      %v2338 = vunpack.c.l.b16 %v2046
      %v2339 = vunpack.c.l.b16 %v2047
      %v2340 = vunpack.c.l.b16 %v2048
      %v2341 = vunpack.c.l.b16 %v2049
      %v2342 = vunpack.c.l.b16 %v2050
      %v2343 = vunpack.c.l.b16 %v2051
      %v2344 = vunpack.c.l.b16 %v2052
      %v2345 = vunpack.c.l.b16 %v2053
      %v2346 = vunpack.c.l.b16 %v2054
      %v2347 = vunpack.c.l.b16 %v2055
      %v2348 = vunpack.c.l.b16 %v2056
      %v2349 = vunpack.c.l.b16 %v2057
      %v2350 = vpack.c.b16 %v2335, %v2334
      %v2351 = vpack.c.b16 %v2337, %v2336
      %v2352 = vpack.c.b16 %v2339, %v2338
      %v2353 = vpack.c.b16 %v2341, %v2340
      %v2354 = vpack.c.b16 %v2343, %v2342
      %v2355 = vpack.c.b16 %v2345, %v2344
      %v2356 = vpack.c.b16 %v2347, %v2346
      %v2357 = vpack.c.b16 %v2349, %v2348
      %2366 = vmatprep.subr.bf16.mxu0 0
      %2367 = vmatpush1.bf16.msra.mxu0 %v2357
      %2368 = vmatprep.subr.bf16.mxu0 0
      %2369 = vmatpush1.bf16.msra.mxu0 %v2356
      %2370 = vmatprep.subr.bf16.mxu0 0
      %2371 = vmatpush1.bf16.msra.mxu0 %v2355
      %2372 = vmatprep.subr.bf16.mxu0 0
      %2373 = vmatpush1.bf16.msra.mxu0 %v2354
      %2374 = vmatprep.subr.bf16.mxu0 0
      %2375 = vmatpush1.bf16.msra.mxu0 %v2353
      %2376 = vmatprep.subr.bf16.mxu0 0
      %2377 = vmatpush1.bf16.msra.mxu0 %v2352
      %2378 = vmatprep.subr.bf16.mxu0 0
      %2379 = vmatpush1.bf16.msra.mxu0 %v2351
      %2380 = vmatprep.subr.bf16.mxu0 0
      %2381 = vmatpush1.bf16.msra.mxu0 %v2350
      %2382 = vmatprep.subr.bf16.mxu0 0
      %2383 = vmatpush2.bf16.msra.mxu0 0
      %2384 = vmatprep.subr.bf16.mxu0 0
      %2385 = vmatpush2.bf16.msra.mxu0 0
      %2386 = vmatprep.subr.bf16.mxu0 0
      %2387 = vmatpush2.bf16.msra.mxu0 0
      %2388 = vmatprep.subr.bf16.mxu0 0
      %2389 = vmatpush2.bf16.msra.mxu0 0
      %2390 = vmatprep.subr.bf16.mxu0 0
      %2391 = vmatpush2.bf16.msra.mxu0 0
      %2392 = vmatprep.subr.bf16.mxu0 0
      %2393 = vmatpush2.bf16.msra.mxu0 0
      %2394 = vmatprep.subr.bf16.mxu0 0
      %2395 = vmatpush2.bf16.msra.mxu0 0
      %2396 = vmatprep.subr.bf16.mxu0 0
      %2397 = vmatpush2.bf16.msra.mxu0 0
      %2398 = vmatprep.mubr.bf16.mxu0 0
      %2399 = vmatmul.mubr.bf16.gmra.mxu0 %v2097
      %v2400 = vpop.f32.mrf.mxu0
      %v2401 = vadd.f32 0.0, %v2400
      %v2402 = vpop.f32.mrf.mxu0
      %v2403 = vpop.f32.mrf.mxu0
      %v2404 = vadd.f32 0.0, %v2403
      %v2405 = vpop.f32.mrf.mxu0
      %2406 = vmatprep.mubr.bf16.mxu0 0
      %2407 = vmatmul.mubr.bf16.gmra.mxu0 %v2100
      %v2408 = vpop.f32.mrf.mxu0
      %v2409 = vadd.f32 0.0, %v2408
      %v2410 = vpop.f32.mrf.mxu0
      %v2411 = vpop.f32.mrf.mxu0
      %v2412 = vadd.f32 0.0, %v2411
      %v2413 = vpop.f32.mrf.mxu0
      %2414 = vmatprep.mubr.bf16.mxu0 0
      %2415 = vmatmul.mubr.bf16.gmra.mxu0 %v2107
      %v2416 = vpop.f32.mrf.mxu0
      %v2417 = vadd.f32 0.0, %v2416
      %v2418 = vpop.f32.mrf.mxu0
      %v2419 = vpop.f32.mrf.mxu0
      %v2420 = vadd.f32 0.0, %v2419
      %v2421 = vpop.f32.mrf.mxu0
      %2422 = vdwg.mxu0
      %v2423 = vadd.f32 %v2296, %v2401
      %v2424 = vadd.f32 %v2299, %v2404
      %v2425 = vadd.f32 %v2304, %v2409
      %v2426 = vadd.f32 %v2307, %v2412
      %v2427 = vadd.f32 %v2312, %v2417
      %v2428 = vadd.f32 %v2315, %v2420
      %v2430 = vlaneseq
      %v2431 = vshrl.u32 %v2430, 7
      %v2432 = vsub.s32 0, %v2431
      %v2433 = vrot.slane %v2058, %v2432
      %v2435 = vmul.f32 %v2423, %v2433
      %v2436 = vmul.f32 %v2424, %v2433
      %v2437 = vmul.f32 %v2425, %v2433
      %v2438 = vmul.f32 %v2426, %v2433
      %v2439 = vmul.f32 %v2427, %v2433
      %v2440 = vmul.f32 %v2428, %v2433
      %v2442 = vlaneseq
      %v2443 = vshrl.u32 %v2442, 7
      %v2444 = vsub.s32 0, %v2443
      %v2445 = vrot.slane %v2059, %v2444
      %v2447 = vadd.f32 %v2435, %v2445
      %v2448 = vadd.f32 %v2436, %v2445
      %v2449 = vadd.f32 %v2437, %v2445
      %v2450 = vadd.f32 %v2438, %v2445
      %v2451 = vadd.f32 %v2439, %v2445
      %v2452 = vadd.f32 %v2440, %v2445
      %v2453 = vmax.f32 %v2447, 0.0
      %v2454 = vmax.f32 %v2448, 0.0
      %v2455 = vmax.f32 %v2449, 0.0
      %v2456 = vmax.f32 %v2450, 0.0
      %v2457 = vmax.f32 %v2451, 0.0
      %v2458 = vmax.f32 %v2452, 0.0
      %2460 = vset.pattern.permute.xlu0 0
      %2461 = vperm.xlu0 %2460, %v2002
      %v2462 = vpop.permute.xlu0 %2461
      %2465 = vset.pattern.permute.xlu0 0
      %2466 = vperm.xlu0 %2465, %v2003
      %v2467 = vpop.permute.xlu0 %2466
      %2470 = vset.pattern.permute.xlu0 0
      %2471 = vperm.xlu0 %2470, %v2004
      %v2472 = vpop.permute.xlu0 %2471
      %2475 = vset.pattern.permute.xlu0 0
      %2476 = vperm.xlu0 %2475, %v2005
      %v2477 = vpop.permute.xlu0 %2476
      %2480 = vset.pattern.permute.xlu0 0
      %2481 = vperm.xlu0 %2480, %v2006
      %v2482 = vpop.permute.xlu0 %2481
      %2485 = vset.pattern.permute.xlu0 0
      %2486 = vperm.xlu0 %2485, %v2007
      %v2487 = vpop.permute.xlu0 %2486
      %v2489 = vmul.f32 %v2453, %v2462
      %v2490 = vmul.f32 %v2454, %v2467
      %v2491 = vmul.f32 %v2455, %v2472
      %v2492 = vmul.f32 %v2456, %v2477
      %v2493 = vmul.f32 %v2457, %v2482
      %v2494 = vmul.f32 %v2458, %v2487
      %s2495 = scalar_lea.vmem %s5, 192
      %v2496 = vld [vmem:[%s2495] sm:$0xf]
      %v2497 = vld [vmem:[%s2495 + $0x4] sm:$0xf]
      %v2498 = vld [vmem:[%s2495 + $0x8] sm:$0xf]
      %v2499 = vld [vmem:[%s2495 + $0xc] sm:$0xf]
      %v2500 = vld [vmem:[%s2495 + $0x10] sm:$0xf]
      %v2501 = vld [vmem:[%s2495 + $0x14] sm:$0xf]
      %v2502 = vld [vmem:[%s2495 + $0x18] sm:$0xf]
      %v2503 = vld [vmem:[%s2495 + $0x1c] sm:$0xf]
      %v2504 = vld [vmem:[%s2495 + $0x20] sm:$0xf]
      %v2505 = vld [vmem:[%s2495 + $0x24] sm:$0xf]
      %v2506 = vld [vmem:[%s2495 + $0x28] sm:$0xf]
      %v2507 = vld [vmem:[%s2495 + $0x2c] sm:$0xf]
      %v2508 = vld [vmem:[%s2495 + $0x30] sm:$0xf]
      %v2509 = vld [vmem:[%s2495 + $0x34] sm:$0xf]
      %v2510 = vld [vmem:[%s2495 + $0x38] sm:$0xf]
      %v2511 = vld [vmem:[%s2495 + $0x3c] sm:$0xf]
      %s2512 = scalar_lea.vmem %s5, 256
      %v2513 = vld [vmem:[%s2512] sm:$0xf]
      %v2514 = vld [vmem:[%s2512 + $0x4] sm:$0xf]
      %v2515 = vld [vmem:[%s2512 + $0x8] sm:$0xf]
      %v2516 = vld [vmem:[%s2512 + $0xc] sm:$0xf]
      %v2517 = vld [vmem:[%s2512 + $0x10] sm:$0xf]
      %v2518 = vld [vmem:[%s2512 + $0x14] sm:$0xf]
      %v2519 = vld [vmem:[%s2512 + $0x18] sm:$0xf]
      %v2520 = vld [vmem:[%s2512 + $0x1c] sm:$0xf]
      %v2521 = vld [vmem:[%s2512 + $0x20] sm:$0xf]
      %v2522 = vld [vmem:[%s2512 + $0x24] sm:$0xf]
      %v2523 = vld [vmem:[%s2512 + $0x28] sm:$0xf]
      %v2524 = vld [vmem:[%s2512 + $0x2c] sm:$0xf]
      %v2525 = vld [vmem:[%s2512 + $0x30] sm:$0xf]
      %v2526 = vld [vmem:[%s2512 + $0x34] sm:$0xf]
      %v2527 = vld [vmem:[%s2512 + $0x38] sm:$0xf]
      %v2528 = vld [vmem:[%s2512 + $0x3c] sm:$0xf]
      %s2529 = scalar_lea.vmem %s5, 320
      %v2530 = vld [vmem:[%s2529] sm:$0xf]
      %v2531 = vld [vmem:[%s2529 + $0x4] sm:$0xf]
      %v2532 = vld [vmem:[%s2529 + $0x8] sm:$0xf]
      %v2533 = vld [vmem:[%s2529 + $0xc] sm:$0xf]
      %v2534 = vld [vmem:[%s2529 + $0x10] sm:$0xf]
      %v2535 = vld [vmem:[%s2529 + $0x14] sm:$0xf]
      %v2536 = vld [vmem:[%s2529 + $0x18] sm:$0xf]
      %v2537 = vld [vmem:[%s2529 + $0x1c] sm:$0xf]
      %v2538 = vld [vmem:[%s2529 + $0x20] sm:$0xf]
      %v2539 = vld [vmem:[%s2529 + $0x24] sm:$0xf]
      %v2540 = vld [vmem:[%s2529 + $0x28] sm:$0xf]
      %v2541 = vld [vmem:[%s2529 + $0x2c] sm:$0xf]
      %v2542 = vld [vmem:[%s2529 + $0x30] sm:$0xf]
      %v2543 = vld [vmem:[%s2529 + $0x34] sm:$0xf]
      %v2544 = vld [vmem:[%s2529 + $0x38] sm:$0xf]
      %v2545 = vld [vmem:[%s2529 + $0x3c] sm:$0xf]
      %s2546 = scalar_lea.vmem %s6, 1
      %v2547 = vld [vmem:[%s2546] sm:$0x1]
      %s2548 = scalar_lea.vmem %s7, 1
      %v2549 = vld [vmem:[%s2548] sm:$0x1]
      %v2550 = vpack.c.bf16 %v2490, %v2489
      %v2551 = vpack.c.bf16 %v2492, %v2491
      %v2552 = vpack.c.bf16 %v2494, %v2493
      %v2554 = vshrl.u32 %v2550, 16
      %v2556 = vrot.slane %v2554, 7
      %v2557 = vshll.u32 %v2550, 16
      %v2559 = vor.u32 %v2556, %v2557
      %v2561 = vshrl.u32 %v2551, 16
      %v2563 = vrot.slane %v2561, 7
      %v2564 = vshll.u32 %v2551, 16
      %v2566 = vor.u32 %v2563, %v2564
      %v2567 = vsel %vm2063, %v2556, %v2566
      %v2569 = vshrl.u32 %v2552, 16
      %v2571 = vrot.slane %v2569, 7
      %v2572 = vshll.u32 %v2552, 16
      %v2574 = vor.u32 %v2571, %v2572
      %v2575 = vsel %vm2063, %v2563, %v2574
      %v2579 = vsel %vm2091, 0, %v2559
      %v2580 = vrot.slane %v2557, 1
      %v2581 = vor.u32 %v2554, %v2580
      %v2582 = vrot.slane %v2564, 1
      %v2583 = vsel %vm2093, %v2581, %v2582
      %v2584 = vor.u32 %v2561, %v2582
      %v2585 = vrot.slane %v2572, 1
      %v2586 = vsel %vm2093, %v2584, %v2585
      %v2587 = vor.u32 %v2569, %v2585
      %v2591 = vsel %vm2106, %v2587, 0
      %v2608 = vunpack.c.l.b16 %v2513
      %v2609 = vunpack.c.l.b16 %v2514
      %v2610 = vunpack.c.l.b16 %v2515
      %v2611 = vunpack.c.l.b16 %v2516
      %v2612 = vunpack.c.l.b16 %v2517
      %v2613 = vunpack.c.l.b16 %v2518
      %v2614 = vunpack.c.l.b16 %v2519
      %v2615 = vunpack.c.l.b16 %v2520
      %v2616 = vunpack.c.l.b16 %v2521
      %v2617 = vunpack.c.l.b16 %v2522
      %v2618 = vunpack.c.l.b16 %v2523
      %v2619 = vunpack.c.l.b16 %v2524
      %v2620 = vunpack.c.l.b16 %v2525
      %v2621 = vunpack.c.l.b16 %v2526
      %v2622 = vunpack.c.l.b16 %v2527
      %v2623 = vunpack.c.l.b16 %v2528
      %v2624 = vpack.c.b16 %v2609, %v2608
      %v2625 = vpack.c.b16 %v2611, %v2610
      %v2626 = vpack.c.b16 %v2613, %v2612
      %v2627 = vpack.c.b16 %v2615, %v2614
      %v2628 = vpack.c.b16 %v2617, %v2616
      %v2629 = vpack.c.b16 %v2619, %v2618
      %v2630 = vpack.c.b16 %v2621, %v2620
      %v2631 = vpack.c.b16 %v2623, %v2622
      %2640 = vmatprep.subr.bf16.mxu0 0
      %2641 = vmatpush1.bf16.msra.mxu0 %v2631
      %2642 = vmatprep.subr.bf16.mxu0 0
      %2643 = vmatpush1.bf16.msra.mxu0 %v2630
      %2644 = vmatprep.subr.bf16.mxu0 0
      %2645 = vmatpush1.bf16.msra.mxu0 %v2629
      %2646 = vmatprep.subr.bf16.mxu0 0
      %2647 = vmatpush1.bf16.msra.mxu0 %v2628
      %2648 = vmatprep.subr.bf16.mxu0 0
      %2649 = vmatpush1.bf16.msra.mxu0 %v2627
      %2650 = vmatprep.subr.bf16.mxu0 0
      %2651 = vmatpush1.bf16.msra.mxu0 %v2626
      %2652 = vmatprep.subr.bf16.mxu0 0
      %2653 = vmatpush1.bf16.msra.mxu0 %v2625
      %2654 = vmatprep.subr.bf16.mxu0 0
      %2655 = vmatpush1.bf16.msra.mxu0 %v2624
      %2656 = vmatprep.subr.bf16.mxu0 0
      %2657 = vmatpush2.bf16.msra.mxu0 0
      %2658 = vmatprep.subr.bf16.mxu0 0
      %2659 = vmatpush2.bf16.msra.mxu0 0
      %2660 = vmatprep.subr.bf16.mxu0 0
      %2661 = vmatpush2.bf16.msra.mxu0 0
      %2662 = vmatprep.subr.bf16.mxu0 0
      %2663 = vmatpush2.bf16.msra.mxu0 0
      %2664 = vmatprep.subr.bf16.mxu0 0
      %2665 = vmatpush2.bf16.msra.mxu0 0
      %2666 = vmatprep.subr.bf16.mxu0 0
      %2667 = vmatpush2.bf16.msra.mxu0 0
      %2668 = vmatprep.subr.bf16.mxu0 0
      %2669 = vmatpush2.bf16.msra.mxu0 0
      %2670 = vmatprep.subr.bf16.mxu0 0
      %2671 = vmatpush2.bf16.msra.mxu0 0
      %2672 = vmatprep.mubr.bf16.mxu0 0
      %2673 = vmatmul.mubr.bf16.gmra.mxu0 %v2550
      %v2674 = vpop.f32.mrf.mxu0
      %v2675 = vadd.f32 0.0, %v2674
      %v2676 = vpop.f32.mrf.mxu0
      %v2677 = vpop.f32.mrf.mxu0
      %v2678 = vadd.f32 0.0, %v2677
      %v2679 = vpop.f32.mrf.mxu0
      %2680 = vmatprep.mubr.bf16.mxu0 0
      %2681 = vmatmul.mubr.bf16.gmra.mxu0 %v2551
      %v2682 = vpop.f32.mrf.mxu0
      %v2683 = vadd.f32 0.0, %v2682
      %v2684 = vpop.f32.mrf.mxu0
      %v2685 = vpop.f32.mrf.mxu0
      %v2686 = vadd.f32 0.0, %v2685
      %v2687 = vpop.f32.mrf.mxu0
      %2688 = vmatprep.mubr.bf16.mxu0 0
      %2689 = vmatmul.mubr.bf16.gmra.mxu0 %v2552
      %v2690 = vpop.f32.mrf.mxu0
      %v2691 = vadd.f32 0.0, %v2690
      %v2692 = vpop.f32.mrf.mxu0
      %v2693 = vpop.f32.mrf.mxu0
      %v2694 = vadd.f32 0.0, %v2693
      %v2695 = vpop.f32.mrf.mxu0
      %2696 = vdwg.mxu0
      %v2713 = vunpack.c.l.b16 %v2496
      %v2714 = vunpack.c.l.b16 %v2497
      %v2715 = vunpack.c.l.b16 %v2498
      %v2716 = vunpack.c.l.b16 %v2499
      %v2717 = vunpack.c.l.b16 %v2500
      %v2718 = vunpack.c.l.b16 %v2501
      %v2719 = vunpack.c.l.b16 %v2502
      %v2720 = vunpack.c.l.b16 %v2503
      %v2721 = vunpack.c.l.b16 %v2504
      %v2722 = vunpack.c.l.b16 %v2505
      %v2723 = vunpack.c.l.b16 %v2506
      %v2724 = vunpack.c.l.b16 %v2507
      %v2725 = vunpack.c.l.b16 %v2508
      %v2726 = vunpack.c.l.b16 %v2509
      %v2727 = vunpack.c.l.b16 %v2510
      %v2728 = vunpack.c.l.b16 %v2511
      %v2729 = vpack.c.b16 %v2714, %v2713
      %v2730 = vpack.c.b16 %v2716, %v2715
      %v2731 = vpack.c.b16 %v2718, %v2717
      %v2732 = vpack.c.b16 %v2720, %v2719
      %v2733 = vpack.c.b16 %v2722, %v2721
      %v2734 = vpack.c.b16 %v2724, %v2723
      %v2735 = vpack.c.b16 %v2726, %v2725
      %v2736 = vpack.c.b16 %v2728, %v2727
      %2745 = vmatprep.subr.bf16.mxu0 0
      %2746 = vmatpush1.bf16.msra.mxu0 %v2736
      %2747 = vmatprep.subr.bf16.mxu0 0
      %2748 = vmatpush1.bf16.msra.mxu0 %v2735
      %2749 = vmatprep.subr.bf16.mxu0 0
      %2750 = vmatpush1.bf16.msra.mxu0 %v2734
      %2751 = vmatprep.subr.bf16.mxu0 0
      %2752 = vmatpush1.bf16.msra.mxu0 %v2733
      %2753 = vmatprep.subr.bf16.mxu0 0
      %2754 = vmatpush1.bf16.msra.mxu0 %v2732
      %2755 = vmatprep.subr.bf16.mxu0 0
      %2756 = vmatpush1.bf16.msra.mxu0 %v2731
      %2757 = vmatprep.subr.bf16.mxu0 0
      %2758 = vmatpush1.bf16.msra.mxu0 %v2730
      %2759 = vmatprep.subr.bf16.mxu0 0
      %2760 = vmatpush1.bf16.msra.mxu0 %v2729
      %2761 = vmatprep.subr.bf16.mxu0 0
      %2762 = vmatpush2.bf16.msra.mxu0 0
      %2763 = vmatprep.subr.bf16.mxu0 0
      %2764 = vmatpush2.bf16.msra.mxu0 0
      %2765 = vmatprep.subr.bf16.mxu0 0
      %2766 = vmatpush2.bf16.msra.mxu0 0
      %2767 = vmatprep.subr.bf16.mxu0 0
      %2768 = vmatpush2.bf16.msra.mxu0 0
      %2769 = vmatprep.subr.bf16.mxu0 0
      %2770 = vmatpush2.bf16.msra.mxu0 0
      %2771 = vmatprep.subr.bf16.mxu0 0
      %2772 = vmatpush2.bf16.msra.mxu0 0
      %2773 = vmatprep.subr.bf16.mxu0 0
      %2774 = vmatpush2.bf16.msra.mxu0 0
      %2775 = vmatprep.subr.bf16.mxu0 0
      %2776 = vmatpush2.bf16.msra.mxu0 0
      %2777 = vmatprep.mubr.bf16.mxu0 0
      %2778 = vmatmul.mubr.bf16.gmra.mxu0 %v2579
      %v2779 = vpop.f32.mrf.mxu0
      %v2780 = vadd.f32 %v2675, %v2779
      %v2781 = vpop.f32.mrf.mxu0
      %v2782 = vpop.f32.mrf.mxu0
      %v2783 = vadd.f32 %v2678, %v2782
      %v2784 = vpop.f32.mrf.mxu0
      %2785 = vmatprep.mubr.bf16.mxu0 0
      %2786 = vmatmul.mubr.bf16.gmra.mxu0 %v2567
      %v2787 = vpop.f32.mrf.mxu0
      %v2788 = vadd.f32 %v2683, %v2787
      %v2789 = vpop.f32.mrf.mxu0
      %v2790 = vpop.f32.mrf.mxu0
      %v2791 = vadd.f32 %v2686, %v2790
      %v2792 = vpop.f32.mrf.mxu0
      %2793 = vmatprep.mubr.bf16.mxu0 0
      %2794 = vmatmul.mubr.bf16.gmra.mxu0 %v2575
      %v2795 = vpop.f32.mrf.mxu0
      %v2796 = vadd.f32 %v2691, %v2795
      %v2797 = vpop.f32.mrf.mxu0
      %v2798 = vpop.f32.mrf.mxu0
      %v2799 = vadd.f32 %v2694, %v2798
      %v2800 = vpop.f32.mrf.mxu0
      %2801 = vdwg.mxu0
      %v2818 = vunpack.c.l.b16 %v2530
      %v2819 = vunpack.c.l.b16 %v2531
      %v2820 = vunpack.c.l.b16 %v2532
      %v2821 = vunpack.c.l.b16 %v2533
      %v2822 = vunpack.c.l.b16 %v2534
      %v2823 = vunpack.c.l.b16 %v2535
      %v2824 = vunpack.c.l.b16 %v2536
      %v2825 = vunpack.c.l.b16 %v2537
      %v2826 = vunpack.c.l.b16 %v2538
      %v2827 = vunpack.c.l.b16 %v2539
      %v2828 = vunpack.c.l.b16 %v2540
      %v2829 = vunpack.c.l.b16 %v2541
      %v2830 = vunpack.c.l.b16 %v2542
      %v2831 = vunpack.c.l.b16 %v2543
      %v2832 = vunpack.c.l.b16 %v2544
      %v2833 = vunpack.c.l.b16 %v2545
      %v2834 = vpack.c.b16 %v2819, %v2818
      %v2835 = vpack.c.b16 %v2821, %v2820
      %v2836 = vpack.c.b16 %v2823, %v2822
      %v2837 = vpack.c.b16 %v2825, %v2824
      %v2838 = vpack.c.b16 %v2827, %v2826
      %v2839 = vpack.c.b16 %v2829, %v2828
      %v2840 = vpack.c.b16 %v2831, %v2830
      %v2841 = vpack.c.b16 %v2833, %v2832
      %2850 = vmatprep.subr.bf16.mxu0 0
      %2851 = vmatpush1.bf16.msra.mxu0 %v2841
      %2852 = vmatprep.subr.bf16.mxu0 0
      %2853 = vmatpush1.bf16.msra.mxu0 %v2840
      %2854 = vmatprep.subr.bf16.mxu0 0
      %2855 = vmatpush1.bf16.msra.mxu0 %v2839
      %2856 = vmatprep.subr.bf16.mxu0 0
      %2857 = vmatpush1.bf16.msra.mxu0 %v2838
      %2858 = vmatprep.subr.bf16.mxu0 0
      %2859 = vmatpush1.bf16.msra.mxu0 %v2837
      %2860 = vmatprep.subr.bf16.mxu0 0
      %2861 = vmatpush1.bf16.msra.mxu0 %v2836
      %2862 = vmatprep.subr.bf16.mxu0 0
      %2863 = vmatpush1.bf16.msra.mxu0 %v2835
      %2864 = vmatprep.subr.bf16.mxu0 0
      %2865 = vmatpush1.bf16.msra.mxu0 %v2834
      %2866 = vmatprep.subr.bf16.mxu0 0
      %2867 = vmatpush2.bf16.msra.mxu0 0
      %2868 = vmatprep.subr.bf16.mxu0 0
      %2869 = vmatpush2.bf16.msra.mxu0 0
      %2870 = vmatprep.subr.bf16.mxu0 0
      %2871 = vmatpush2.bf16.msra.mxu0 0
      %2872 = vmatprep.subr.bf16.mxu0 0
      %2873 = vmatpush2.bf16.msra.mxu0 0
      %2874 = vmatprep.subr.bf16.mxu0 0
      %2875 = vmatpush2.bf16.msra.mxu0 0
      %2876 = vmatprep.subr.bf16.mxu0 0
      %2877 = vmatpush2.bf16.msra.mxu0 0
      %2878 = vmatprep.subr.bf16.mxu0 0
      %2879 = vmatpush2.bf16.msra.mxu0 0
      %2880 = vmatprep.subr.bf16.mxu0 0
      %2881 = vmatpush2.bf16.msra.mxu0 0
      %2882 = vmatprep.mubr.bf16.mxu0 0
      %2883 = vmatmul.mubr.bf16.gmra.mxu0 %v2583
      %v2884 = vpop.f32.mrf.mxu0
      %v2885 = vadd.f32 0.0, %v2884
      %v2886 = vpop.f32.mrf.mxu0
      %v2887 = vpop.f32.mrf.mxu0
      %v2888 = vadd.f32 0.0, %v2887
      %v2889 = vpop.f32.mrf.mxu0
      %2890 = vmatprep.mubr.bf16.mxu0 0
      %2891 = vmatmul.mubr.bf16.gmra.mxu0 %v2586
      %v2892 = vpop.f32.mrf.mxu0
      %v2893 = vadd.f32 0.0, %v2892
      %v2894 = vpop.f32.mrf.mxu0
      %v2895 = vpop.f32.mrf.mxu0
      %v2896 = vadd.f32 0.0, %v2895
      %v2897 = vpop.f32.mrf.mxu0
      %2898 = vmatprep.mubr.bf16.mxu0 0
      %2899 = vmatmul.mubr.bf16.gmra.mxu0 %v2591
      %v2900 = vpop.f32.mrf.mxu0
      %v2901 = vadd.f32 0.0, %v2900
      %v2902 = vpop.f32.mrf.mxu0
      %v2903 = vpop.f32.mrf.mxu0
      %v2904 = vadd.f32 0.0, %v2903
      %v2905 = vpop.f32.mrf.mxu0
      %2906 = vdwg.mxu0
      %v2907 = vadd.f32 %v2780, %v2885
      %v2908 = vadd.f32 %v2783, %v2888
      %v2909 = vadd.f32 %v2788, %v2893
      %v2910 = vadd.f32 %v2791, %v2896
      %v2911 = vadd.f32 %v2796, %v2901
      %v2912 = vadd.f32 %v2799, %v2904
      %v2914 = vlaneseq
      %v2915 = vshrl.u32 %v2914, 7
      %v2916 = vsub.s32 0, %v2915
      %v2917 = vrot.slane %v2547, %v2916
      %v2919 = vmul.f32 %v2907, %v2917
      %v2920 = vmul.f32 %v2908, %v2917
      %v2921 = vmul.f32 %v2909, %v2917
      %v2922 = vmul.f32 %v2910, %v2917
      %v2923 = vmul.f32 %v2911, %v2917
      %v2924 = vmul.f32 %v2912, %v2917
      %v2926 = vlaneseq
      %v2927 = vshrl.u32 %v2926, 7
      %v2928 = vsub.s32 0, %v2927
      %v2929 = vrot.slane %v2549, %v2928
      %v2931 = vadd.f32 %v2919, %v2929
      %v2932 = vadd.f32 %v2920, %v2929
      %v2933 = vadd.f32 %v2921, %v2929
      %v2934 = vadd.f32 %v2922, %v2929
      %v2935 = vadd.f32 %v2923, %v2929
      %v2936 = vadd.f32 %v2924, %v2929
      %v2937 = vadd.f32 %v2931, %v1996
      %v2938 = vadd.f32 %v2932, %v1997
      %v2939 = vadd.f32 %v2933, %v1998
      %v2940 = vadd.f32 %v2934, %v1999
      %v2941 = vadd.f32 %v2935, %v2000
      %v2942 = vadd.f32 %v2936, %v2001
      %v2943 = vmul.f32 %v2937, %v2462
      %v2944 = vmul.f32 %v2938, %v2467
      %v2945 = vmul.f32 %v2939, %v2472
      %v2946 = vmul.f32 %v2940, %v2477
      %v2947 = vmul.f32 %v2941, %v2482
      %v2948 = vmul.f32 %v2942, %v2487
      %s2949 = scalar_lea.vmem %s5, 384
      %v2950 = vld [vmem:[%s2949] sm:$0xf]
      %v2951 = vld [vmem:[%s2949 + $0x4] sm:$0xf]
      %v2952 = vld [vmem:[%s2949 + $0x8] sm:$0xf]
      %v2953 = vld [vmem:[%s2949 + $0xc] sm:$0xf]
      %v2954 = vld [vmem:[%s2949 + $0x10] sm:$0xf]
      %v2955 = vld [vmem:[%s2949 + $0x14] sm:$0xf]
      %v2956 = vld [vmem:[%s2949 + $0x18] sm:$0xf]
      %v2957 = vld [vmem:[%s2949 + $0x1c] sm:$0xf]
      %v2958 = vld [vmem:[%s2949 + $0x20] sm:$0xf]
      %v2959 = vld [vmem:[%s2949 + $0x24] sm:$0xf]
      %v2960 = vld [vmem:[%s2949 + $0x28] sm:$0xf]
      %v2961 = vld [vmem:[%s2949 + $0x2c] sm:$0xf]
      %v2962 = vld [vmem:[%s2949 + $0x30] sm:$0xf]
      %v2963 = vld [vmem:[%s2949 + $0x34] sm:$0xf]
      %v2964 = vld [vmem:[%s2949 + $0x38] sm:$0xf]
      %v2965 = vld [vmem:[%s2949 + $0x3c] sm:$0xf]
      %s2966 = scalar_lea.vmem %s5, 448
      %v2967 = vld [vmem:[%s2966] sm:$0xf]
      %v2968 = vld [vmem:[%s2966 + $0x4] sm:$0xf]
      %v2969 = vld [vmem:[%s2966 + $0x8] sm:$0xf]
      %v2970 = vld [vmem:[%s2966 + $0xc] sm:$0xf]
      %v2971 = vld [vmem:[%s2966 + $0x10] sm:$0xf]
      %v2972 = vld [vmem:[%s2966 + $0x14] sm:$0xf]
      %v2973 = vld [vmem:[%s2966 + $0x18] sm:$0xf]
      %v2974 = vld [vmem:[%s2966 + $0x1c] sm:$0xf]
      %v2975 = vld [vmem:[%s2966 + $0x20] sm:$0xf]
      %v2976 = vld [vmem:[%s2966 + $0x24] sm:$0xf]
      %v2977 = vld [vmem:[%s2966 + $0x28] sm:$0xf]
      %v2978 = vld [vmem:[%s2966 + $0x2c] sm:$0xf]
      %v2979 = vld [vmem:[%s2966 + $0x30] sm:$0xf]
      %v2980 = vld [vmem:[%s2966 + $0x34] sm:$0xf]
      %v2981 = vld [vmem:[%s2966 + $0x38] sm:$0xf]
      %v2982 = vld [vmem:[%s2966 + $0x3c] sm:$0xf]
      %s2983 = scalar_lea.vmem %s5, 512
      %v2984 = vld [vmem:[%s2983] sm:$0xf]
      %v2985 = vld [vmem:[%s2983 + $0x4] sm:$0xf]
      %v2986 = vld [vmem:[%s2983 + $0x8] sm:$0xf]
      %v2987 = vld [vmem:[%s2983 + $0xc] sm:$0xf]
      %v2988 = vld [vmem:[%s2983 + $0x10] sm:$0xf]
      %v2989 = vld [vmem:[%s2983 + $0x14] sm:$0xf]
      %v2990 = vld [vmem:[%s2983 + $0x18] sm:$0xf]
      %v2991 = vld [vmem:[%s2983 + $0x1c] sm:$0xf]
      %v2992 = vld [vmem:[%s2983 + $0x20] sm:$0xf]
      %v2993 = vld [vmem:[%s2983 + $0x24] sm:$0xf]
      %v2994 = vld [vmem:[%s2983 + $0x28] sm:$0xf]
      %v2995 = vld [vmem:[%s2983 + $0x2c] sm:$0xf]
      %v2996 = vld [vmem:[%s2983 + $0x30] sm:$0xf]
      %v2997 = vld [vmem:[%s2983 + $0x34] sm:$0xf]
      %v2998 = vld [vmem:[%s2983 + $0x38] sm:$0xf]
      %v2999 = vld [vmem:[%s2983 + $0x3c] sm:$0xf]
      %s3000 = scalar_lea.vmem %s6, 2
      %v3001 = vld [vmem:[%s3000] sm:$0x1]
      %s3002 = scalar_lea.vmem %s7, 2
      %v3003 = vld [vmem:[%s3002] sm:$0x1]
      %v3004 = vpack.c.bf16 %v2944, %v2943
      %v3005 = vpack.c.bf16 %v2946, %v2945
      %v3006 = vpack.c.bf16 %v2948, %v2947
      %v3008 = vshrl.u32 %v3004, 16
      %v3010 = vrot.slane %v3008, 7
      %v3011 = vshll.u32 %v3004, 16
      %v3013 = vor.u32 %v3010, %v3011
      %v3015 = vshrl.u32 %v3005, 16
      %v3017 = vrot.slane %v3015, 7
      %v3018 = vshll.u32 %v3005, 16
      %v3020 = vor.u32 %v3017, %v3018
      %v3021 = vsel %vm2063, %v3010, %v3020
      %v3023 = vshrl.u32 %v3006, 16
      %v3025 = vrot.slane %v3023, 7
      %v3026 = vshll.u32 %v3006, 16
      %v3028 = vor.u32 %v3025, %v3026
      %v3029 = vsel %vm2063, %v3017, %v3028
      %v3033 = vsel %vm2091, 0, %v3013
      %v3034 = vrot.slane %v3011, 1
      %v3035 = vor.u32 %v3008, %v3034
      %v3036 = vrot.slane %v3018, 1
      %v3037 = vsel %vm2093, %v3035, %v3036
      %v3038 = vor.u32 %v3015, %v3036
      %v3039 = vrot.slane %v3026, 1
      %v3040 = vsel %vm2093, %v3038, %v3039
      %v3041 = vor.u32 %v3023, %v3039
      %v3045 = vsel %vm2106, %v3041, 0
      %v3062 = vunpack.c.l.b16 %v2967
      %v3063 = vunpack.c.l.b16 %v2968
      %v3064 = vunpack.c.l.b16 %v2969
      %v3065 = vunpack.c.l.b16 %v2970
      %v3066 = vunpack.c.l.b16 %v2971
      %v3067 = vunpack.c.l.b16 %v2972
      %v3068 = vunpack.c.l.b16 %v2973
      %v3069 = vunpack.c.l.b16 %v2974
      %v3070 = vunpack.c.l.b16 %v2975
      %v3071 = vunpack.c.l.b16 %v2976
      %v3072 = vunpack.c.l.b16 %v2977
      %v3073 = vunpack.c.l.b16 %v2978
      %v3074 = vunpack.c.l.b16 %v2979
      %v3075 = vunpack.c.l.b16 %v2980
      %v3076 = vunpack.c.l.b16 %v2981
      %v3077 = vunpack.c.l.b16 %v2982
      %v3078 = vpack.c.b16 %v3063, %v3062
      %v3079 = vpack.c.b16 %v3065, %v3064
      %v3080 = vpack.c.b16 %v3067, %v3066
      %v3081 = vpack.c.b16 %v3069, %v3068
      %v3082 = vpack.c.b16 %v3071, %v3070
      %v3083 = vpack.c.b16 %v3073, %v3072
      %v3084 = vpack.c.b16 %v3075, %v3074
      %v3085 = vpack.c.b16 %v3077, %v3076
      %3094 = vmatprep.subr.bf16.mxu0 0
      %3095 = vmatpush1.bf16.msra.mxu0 %v3085
      %3096 = vmatprep.subr.bf16.mxu0 0
      %3097 = vmatpush1.bf16.msra.mxu0 %v3084
      %3098 = vmatprep.subr.bf16.mxu0 0
      %3099 = vmatpush1.bf16.msra.mxu0 %v3083
      %3100 = vmatprep.subr.bf16.mxu0 0
      %3101 = vmatpush1.bf16.msra.mxu0 %v3082
      %3102 = vmatprep.subr.bf16.mxu0 0
      %3103 = vmatpush1.bf16.msra.mxu0 %v3081
      %3104 = vmatprep.subr.bf16.mxu0 0
      %3105 = vmatpush1.bf16.msra.mxu0 %v3080
      %3106 = vmatprep.subr.bf16.mxu0 0
      %3107 = vmatpush1.bf16.msra.mxu0 %v3079
      %3108 = vmatprep.subr.bf16.mxu0 0
      %3109 = vmatpush1.bf16.msra.mxu0 %v3078
      %3110 = vmatprep.subr.bf16.mxu0 0
      %3111 = vmatpush2.bf16.msra.mxu0 0
      %3112 = vmatprep.subr.bf16.mxu0 0
      %3113 = vmatpush2.bf16.msra.mxu0 0
      %3114 = vmatprep.subr.bf16.mxu0 0
      %3115 = vmatpush2.bf16.msra.mxu0 0
      %3116 = vmatprep.subr.bf16.mxu0 0
      %3117 = vmatpush2.bf16.msra.mxu0 0
      %3118 = vmatprep.subr.bf16.mxu0 0
      %3119 = vmatpush2.bf16.msra.mxu0 0
      %3120 = vmatprep.subr.bf16.mxu0 0
      %3121 = vmatpush2.bf16.msra.mxu0 0
      %3122 = vmatprep.subr.bf16.mxu0 0
      %3123 = vmatpush2.bf16.msra.mxu0 0
      %3124 = vmatprep.subr.bf16.mxu0 0
      %3125 = vmatpush2.bf16.msra.mxu0 0
      %3126 = vmatprep.mubr.bf16.mxu0 0
      %3127 = vmatmul.mubr.bf16.gmra.mxu0 %v3004
      %v3128 = vpop.f32.mrf.mxu0
      %v3129 = vadd.f32 0.0, %v3128
      %v3130 = vpop.f32.mrf.mxu0
      %v3131 = vpop.f32.mrf.mxu0
      %v3132 = vadd.f32 0.0, %v3131
      %v3133 = vpop.f32.mrf.mxu0
      %3134 = vmatprep.mubr.bf16.mxu0 0
      %3135 = vmatmul.mubr.bf16.gmra.mxu0 %v3005
      %v3136 = vpop.f32.mrf.mxu0
      %v3137 = vadd.f32 0.0, %v3136
      %v3138 = vpop.f32.mrf.mxu0
      %v3139 = vpop.f32.mrf.mxu0
      %v3140 = vadd.f32 0.0, %v3139
      %v3141 = vpop.f32.mrf.mxu0
      %3142 = vmatprep.mubr.bf16.mxu0 0
      %3143 = vmatmul.mubr.bf16.gmra.mxu0 %v3006
      %v3144 = vpop.f32.mrf.mxu0
      %v3145 = vadd.f32 0.0, %v3144
      %v3146 = vpop.f32.mrf.mxu0
      %v3147 = vpop.f32.mrf.mxu0
      %v3148 = vadd.f32 0.0, %v3147
      %v3149 = vpop.f32.mrf.mxu0
      %3150 = vdwg.mxu0
      %v3167 = vunpack.c.l.b16 %v2950
      %v3168 = vunpack.c.l.b16 %v2951
      %v3169 = vunpack.c.l.b16 %v2952
      %v3170 = vunpack.c.l.b16 %v2953
      %v3171 = vunpack.c.l.b16 %v2954
      %v3172 = vunpack.c.l.b16 %v2955
      %v3173 = vunpack.c.l.b16 %v2956
      %v3174 = vunpack.c.l.b16 %v2957
      %v3175 = vunpack.c.l.b16 %v2958
      %v3176 = vunpack.c.l.b16 %v2959
      %v3177 = vunpack.c.l.b16 %v2960
      %v3178 = vunpack.c.l.b16 %v2961
      %v3179 = vunpack.c.l.b16 %v2962
      %v3180 = vunpack.c.l.b16 %v2963
      %v3181 = vunpack.c.l.b16 %v2964
      %v3182 = vunpack.c.l.b16 %v2965
      %v3183 = vpack.c.b16 %v3168, %v3167
      %v3184 = vpack.c.b16 %v3170, %v3169
      %v3185 = vpack.c.b16 %v3172, %v3171
      %v3186 = vpack.c.b16 %v3174, %v3173
      %v3187 = vpack.c.b16 %v3176, %v3175
      %v3188 = vpack.c.b16 %v3178, %v3177
      %v3189 = vpack.c.b16 %v3180, %v3179
      %v3190 = vpack.c.b16 %v3182, %v3181
      %3199 = vmatprep.subr.bf16.mxu0 0
      %3200 = vmatpush1.bf16.msra.mxu0 %v3190
      %3201 = vmatprep.subr.bf16.mxu0 0
      %3202 = vmatpush1.bf16.msra.mxu0 %v3189
      %3203 = vmatprep.subr.bf16.mxu0 0
      %3204 = vmatpush1.bf16.msra.mxu0 %v3188
      %3205 = vmatprep.subr.bf16.mxu0 0
      %3206 = vmatpush1.bf16.msra.mxu0 %v3187
      %3207 = vmatprep.subr.bf16.mxu0 0
      %3208 = vmatpush1.bf16.msra.mxu0 %v3186
      %3209 = vmatprep.subr.bf16.mxu0 0
      %3210 = vmatpush1.bf16.msra.mxu0 %v3185
      %3211 = vmatprep.subr.bf16.mxu0 0
      %3212 = vmatpush1.bf16.msra.mxu0 %v3184
      %3213 = vmatprep.subr.bf16.mxu0 0
      %3214 = vmatpush1.bf16.msra.mxu0 %v3183
      %3215 = vmatprep.subr.bf16.mxu0 0
      %3216 = vmatpush2.bf16.msra.mxu0 0
      %3217 = vmatprep.subr.bf16.mxu0 0
      %3218 = vmatpush2.bf16.msra.mxu0 0
      %3219 = vmatprep.subr.bf16.mxu0 0
      %3220 = vmatpush2.bf16.msra.mxu0 0
      %3221 = vmatprep.subr.bf16.mxu0 0
      %3222 = vmatpush2.bf16.msra.mxu0 0
      %3223 = vmatprep.subr.bf16.mxu0 0
      %3224 = vmatpush2.bf16.msra.mxu0 0
      %3225 = vmatprep.subr.bf16.mxu0 0
      %3226 = vmatpush2.bf16.msra.mxu0 0
      %3227 = vmatprep.subr.bf16.mxu0 0
      %3228 = vmatpush2.bf16.msra.mxu0 0
      %3229 = vmatprep.subr.bf16.mxu0 0
      %3230 = vmatpush2.bf16.msra.mxu0 0
      %3231 = vmatprep.mubr.bf16.mxu0 0
      %3232 = vmatmul.mubr.bf16.gmra.mxu0 %v3033
      %v3233 = vpop.f32.mrf.mxu0
      %v3234 = vadd.f32 %v3129, %v3233
      %v3235 = vpop.f32.mrf.mxu0
      %v3236 = vpop.f32.mrf.mxu0
      %v3237 = vadd.f32 %v3132, %v3236
      %v3238 = vpop.f32.mrf.mxu0
      %3239 = vmatprep.mubr.bf16.mxu0 0
      %3240 = vmatmul.mubr.bf16.gmra.mxu0 %v3021
      %v3241 = vpop.f32.mrf.mxu0
      %v3242 = vadd.f32 %v3137, %v3241
      %v3243 = vpop.f32.mrf.mxu0
      %v3244 = vpop.f32.mrf.mxu0
      %v3245 = vadd.f32 %v3140, %v3244
      %v3246 = vpop.f32.mrf.mxu0
      %3247 = vmatprep.mubr.bf16.mxu0 0
      %3248 = vmatmul.mubr.bf16.gmra.mxu0 %v3029
      %v3249 = vpop.f32.mrf.mxu0
      %v3250 = vadd.f32 %v3145, %v3249
      %v3251 = vpop.f32.mrf.mxu0
      %v3252 = vpop.f32.mrf.mxu0
      %v3253 = vadd.f32 %v3148, %v3252
      %v3254 = vpop.f32.mrf.mxu0
      %3255 = vdwg.mxu0
      %v3272 = vunpack.c.l.b16 %v2984
      %v3273 = vunpack.c.l.b16 %v2985
      %v3274 = vunpack.c.l.b16 %v2986
      %v3275 = vunpack.c.l.b16 %v2987
      %v3276 = vunpack.c.l.b16 %v2988
      %v3277 = vunpack.c.l.b16 %v2989
      %v3278 = vunpack.c.l.b16 %v2990
      %v3279 = vunpack.c.l.b16 %v2991
      %v3280 = vunpack.c.l.b16 %v2992
      %v3281 = vunpack.c.l.b16 %v2993
      %v3282 = vunpack.c.l.b16 %v2994
      %v3283 = vunpack.c.l.b16 %v2995
      %v3284 = vunpack.c.l.b16 %v2996
      %v3285 = vunpack.c.l.b16 %v2997
      %v3286 = vunpack.c.l.b16 %v2998
      %v3287 = vunpack.c.l.b16 %v2999
      %v3288 = vpack.c.b16 %v3273, %v3272
      %v3289 = vpack.c.b16 %v3275, %v3274
      %v3290 = vpack.c.b16 %v3277, %v3276
      %v3291 = vpack.c.b16 %v3279, %v3278
      %v3292 = vpack.c.b16 %v3281, %v3280
      %v3293 = vpack.c.b16 %v3283, %v3282
      %v3294 = vpack.c.b16 %v3285, %v3284
      %v3295 = vpack.c.b16 %v3287, %v3286
      %3304 = vmatprep.subr.bf16.mxu0 0
      %3305 = vmatpush1.bf16.msra.mxu0 %v3295
      %3306 = vmatprep.subr.bf16.mxu0 0
      %3307 = vmatpush1.bf16.msra.mxu0 %v3294
      %3308 = vmatprep.subr.bf16.mxu0 0
      %3309 = vmatpush1.bf16.msra.mxu0 %v3293
      %3310 = vmatprep.subr.bf16.mxu0 0
      %3311 = vmatpush1.bf16.msra.mxu0 %v3292
      %3312 = vmatprep.subr.bf16.mxu0 0
      %3313 = vmatpush1.bf16.msra.mxu0 %v3291
      %3314 = vmatprep.subr.bf16.mxu0 0
      %3315 = vmatpush1.bf16.msra.mxu0 %v3290
      %3316 = vmatprep.subr.bf16.mxu0 0
      %3317 = vmatpush1.bf16.msra.mxu0 %v3289
      %3318 = vmatprep.subr.bf16.mxu0 0
      %3319 = vmatpush1.bf16.msra.mxu0 %v3288
      %3320 = vmatprep.subr.bf16.mxu0 0
      %3321 = vmatpush2.bf16.msra.mxu0 0
      %3322 = vmatprep.subr.bf16.mxu0 0
      %3323 = vmatpush2.bf16.msra.mxu0 0
      %3324 = vmatprep.subr.bf16.mxu0 0
      %3325 = vmatpush2.bf16.msra.mxu0 0
      %3326 = vmatprep.subr.bf16.mxu0 0
      %3327 = vmatpush2.bf16.msra.mxu0 0
      %3328 = vmatprep.subr.bf16.mxu0 0
      %3329 = vmatpush2.bf16.msra.mxu0 0
      %3330 = vmatprep.subr.bf16.mxu0 0
      %3331 = vmatpush2.bf16.msra.mxu0 0
      %3332 = vmatprep.subr.bf16.mxu0 0
      %3333 = vmatpush2.bf16.msra.mxu0 0
      %3334 = vmatprep.subr.bf16.mxu0 0
      %3335 = vmatpush2.bf16.msra.mxu0 0
      %3336 = vmatprep.mubr.bf16.mxu0 0
      %3337 = vmatmul.mubr.bf16.gmra.mxu0 %v3037
      %v3338 = vpop.f32.mrf.mxu0
      %v3339 = vadd.f32 0.0, %v3338
      %v3340 = vpop.f32.mrf.mxu0
      %v3341 = vpop.f32.mrf.mxu0
      %v3342 = vadd.f32 0.0, %v3341
      %v3343 = vpop.f32.mrf.mxu0
      %3344 = vmatprep.mubr.bf16.mxu0 0
      %3345 = vmatmul.mubr.bf16.gmra.mxu0 %v3040
      %v3346 = vpop.f32.mrf.mxu0
      %v3347 = vadd.f32 0.0, %v3346
      %v3348 = vpop.f32.mrf.mxu0
      %v3349 = vpop.f32.mrf.mxu0
      %v3350 = vadd.f32 0.0, %v3349
      %v3351 = vpop.f32.mrf.mxu0
      %3352 = vmatprep.mubr.bf16.mxu0 0
      %3353 = vmatmul.mubr.bf16.gmra.mxu0 %v3045
      %v3354 = vpop.f32.mrf.mxu0
      %v3355 = vadd.f32 0.0, %v3354
      %v3356 = vpop.f32.mrf.mxu0
      %v3357 = vpop.f32.mrf.mxu0
      %v3358 = vadd.f32 0.0, %v3357
      %v3359 = vpop.f32.mrf.mxu0
      %3360 = vdwg.mxu0
      %v3361 = vadd.f32 %v3234, %v3339
      %v3362 = vadd.f32 %v3237, %v3342
      %v3363 = vadd.f32 %v3242, %v3347
      %v3364 = vadd.f32 %v3245, %v3350
      %v3365 = vadd.f32 %v3250, %v3355
      %v3366 = vadd.f32 %v3253, %v3358
      %v3368 = vlaneseq
      %v3369 = vshrl.u32 %v3368, 7
      %v3370 = vsub.s32 0, %v3369
      %v3371 = vrot.slane %v3001, %v3370
      %v3373 = vmul.f32 %v3361, %v3371
      %v3374 = vmul.f32 %v3362, %v3371
      %v3375 = vmul.f32 %v3363, %v3371
      %v3376 = vmul.f32 %v3364, %v3371
      %v3377 = vmul.f32 %v3365, %v3371
      %v3378 = vmul.f32 %v3366, %v3371
      %v3380 = vlaneseq
      %v3381 = vshrl.u32 %v3380, 7
      %v3382 = vsub.s32 0, %v3381
      %v3383 = vrot.slane %v3003, %v3382
      %v3385 = vadd.f32 %v3373, %v3383
      %v3386 = vadd.f32 %v3374, %v3383
      %v3387 = vadd.f32 %v3375, %v3383
      %v3388 = vadd.f32 %v3376, %v3383
      %v3389 = vadd.f32 %v3377, %v3383
      %v3390 = vadd.f32 %v3378, %v3383
      %v3391 = vmax.f32 %v3385, 0.0
      %v3392 = vmax.f32 %v3386, 0.0
      %v3393 = vmax.f32 %v3387, 0.0
      %v3394 = vmax.f32 %v3388, 0.0
      %v3395 = vmax.f32 %v3389, 0.0
      %v3396 = vmax.f32 %v3390, 0.0
      %v3397 = vmul.f32 %v3391, %v2462
      %v3398 = vmul.f32 %v3392, %v2467
      %v3399 = vmul.f32 %v3393, %v2472
      %v3400 = vmul.f32 %v3394, %v2477
      %v3401 = vmul.f32 %v3395, %v2482
      %v3402 = vmul.f32 %v3396, %v2487
      %s3403 = scalar_lea.vmem %s5, 576
      %v3404 = vld [vmem:[%s3403] sm:$0xf]
      %v3405 = vld [vmem:[%s3403 + $0x4] sm:$0xf]
      %v3406 = vld [vmem:[%s3403 + $0x8] sm:$0xf]
      %v3407 = vld [vmem:[%s3403 + $0xc] sm:$0xf]
      %v3408 = vld [vmem:[%s3403 + $0x10] sm:$0xf]
      %v3409 = vld [vmem:[%s3403 + $0x14] sm:$0xf]
      %v3410 = vld [vmem:[%s3403 + $0x18] sm:$0xf]
      %v3411 = vld [vmem:[%s3403 + $0x1c] sm:$0xf]
      %v3412 = vld [vmem:[%s3403 + $0x20] sm:$0xf]
      %v3413 = vld [vmem:[%s3403 + $0x24] sm:$0xf]
      %v3414 = vld [vmem:[%s3403 + $0x28] sm:$0xf]
      %v3415 = vld [vmem:[%s3403 + $0x2c] sm:$0xf]
      %v3416 = vld [vmem:[%s3403 + $0x30] sm:$0xf]
      %v3417 = vld [vmem:[%s3403 + $0x34] sm:$0xf]
      %v3418 = vld [vmem:[%s3403 + $0x38] sm:$0xf]
      %v3419 = vld [vmem:[%s3403 + $0x3c] sm:$0xf]
      %s3420 = scalar_lea.vmem %s5, 640
      %v3421 = vld [vmem:[%s3420] sm:$0xf]
      %v3422 = vld [vmem:[%s3420 + $0x4] sm:$0xf]
      %v3423 = vld [vmem:[%s3420 + $0x8] sm:$0xf]
      %v3424 = vld [vmem:[%s3420 + $0xc] sm:$0xf]
      %v3425 = vld [vmem:[%s3420 + $0x10] sm:$0xf]
      %v3426 = vld [vmem:[%s3420 + $0x14] sm:$0xf]
      %v3427 = vld [vmem:[%s3420 + $0x18] sm:$0xf]
      %v3428 = vld [vmem:[%s3420 + $0x1c] sm:$0xf]
      %v3429 = vld [vmem:[%s3420 + $0x20] sm:$0xf]
      %v3430 = vld [vmem:[%s3420 + $0x24] sm:$0xf]
      %v3431 = vld [vmem:[%s3420 + $0x28] sm:$0xf]
      %v3432 = vld [vmem:[%s3420 + $0x2c] sm:$0xf]
      %v3433 = vld [vmem:[%s3420 + $0x30] sm:$0xf]
      %v3434 = vld [vmem:[%s3420 + $0x34] sm:$0xf]
      %v3435 = vld [vmem:[%s3420 + $0x38] sm:$0xf]
      %v3436 = vld [vmem:[%s3420 + $0x3c] sm:$0xf]
      %s3437 = scalar_lea.vmem %s5, 704
      %v3438 = vld [vmem:[%s3437] sm:$0xf]
      %v3439 = vld [vmem:[%s3437 + $0x4] sm:$0xf]
      %v3440 = vld [vmem:[%s3437 + $0x8] sm:$0xf]
      %v3441 = vld [vmem:[%s3437 + $0xc] sm:$0xf]
      %v3442 = vld [vmem:[%s3437 + $0x10] sm:$0xf]
      %v3443 = vld [vmem:[%s3437 + $0x14] sm:$0xf]
      %v3444 = vld [vmem:[%s3437 + $0x18] sm:$0xf]
      %v3445 = vld [vmem:[%s3437 + $0x1c] sm:$0xf]
      %v3446 = vld [vmem:[%s3437 + $0x20] sm:$0xf]
      %v3447 = vld [vmem:[%s3437 + $0x24] sm:$0xf]
      %v3448 = vld [vmem:[%s3437 + $0x28] sm:$0xf]
      %v3449 = vld [vmem:[%s3437 + $0x2c] sm:$0xf]
      %v3450 = vld [vmem:[%s3437 + $0x30] sm:$0xf]
      %v3451 = vld [vmem:[%s3437 + $0x34] sm:$0xf]
      %v3452 = vld [vmem:[%s3437 + $0x38] sm:$0xf]
      %v3453 = vld [vmem:[%s3437 + $0x3c] sm:$0xf]
      %s3454 = scalar_lea.vmem %s6, 3
      %v3455 = vld [vmem:[%s3454] sm:$0x1]
      %s3456 = scalar_lea.vmem %s7, 3
      %v3457 = vld [vmem:[%s3456] sm:$0x1]
      %v3458 = vpack.c.bf16 %v3398, %v3397
      %v3459 = vpack.c.bf16 %v3400, %v3399
      %v3460 = vpack.c.bf16 %v3402, %v3401
      %v3462 = vshrl.u32 %v3458, 16
      %v3464 = vrot.slane %v3462, 7
      %v3465 = vshll.u32 %v3458, 16
      %v3467 = vor.u32 %v3464, %v3465
      %v3469 = vshrl.u32 %v3459, 16
      %v3471 = vrot.slane %v3469, 7
      %v3472 = vshll.u32 %v3459, 16
      %v3474 = vor.u32 %v3471, %v3472
      %v3475 = vsel %vm2063, %v3464, %v3474
      %v3477 = vshrl.u32 %v3460, 16
      %v3479 = vrot.slane %v3477, 7
      %v3480 = vshll.u32 %v3460, 16
      %v3482 = vor.u32 %v3479, %v3480
      %v3483 = vsel %vm2063, %v3471, %v3482
      %v3487 = vsel %vm2091, 0, %v3467
      %v3488 = vrot.slane %v3465, 1
      %v3489 = vor.u32 %v3462, %v3488
      %v3490 = vrot.slane %v3472, 1
      %v3491 = vsel %vm2093, %v3489, %v3490
      %v3492 = vor.u32 %v3469, %v3490
      %v3493 = vrot.slane %v3480, 1
      %v3494 = vsel %vm2093, %v3492, %v3493
      %v3495 = vor.u32 %v3477, %v3493
      %v3499 = vsel %vm2106, %v3495, 0
      %v3516 = vunpack.c.l.b16 %v3421
      %v3517 = vunpack.c.l.b16 %v3422
      %v3518 = vunpack.c.l.b16 %v3423
      %v3519 = vunpack.c.l.b16 %v3424
      %v3520 = vunpack.c.l.b16 %v3425
      %v3521 = vunpack.c.l.b16 %v3426
      %v3522 = vunpack.c.l.b16 %v3427
      %v3523 = vunpack.c.l.b16 %v3428
      %v3524 = vunpack.c.l.b16 %v3429
      %v3525 = vunpack.c.l.b16 %v3430
      %v3526 = vunpack.c.l.b16 %v3431
      %v3527 = vunpack.c.l.b16 %v3432
      %v3528 = vunpack.c.l.b16 %v3433
      %v3529 = vunpack.c.l.b16 %v3434
      %v3530 = vunpack.c.l.b16 %v3435
      %v3531 = vunpack.c.l.b16 %v3436
      %v3532 = vpack.c.b16 %v3517, %v3516
      %v3533 = vpack.c.b16 %v3519, %v3518
      %v3534 = vpack.c.b16 %v3521, %v3520
      %v3535 = vpack.c.b16 %v3523, %v3522
      %v3536 = vpack.c.b16 %v3525, %v3524
      %v3537 = vpack.c.b16 %v3527, %v3526
      %v3538 = vpack.c.b16 %v3529, %v3528
      %v3539 = vpack.c.b16 %v3531, %v3530
      %3548 = vmatprep.subr.bf16.mxu0 0
      %3549 = vmatpush1.bf16.msra.mxu0 %v3539
      %3550 = vmatprep.subr.bf16.mxu0 0
      %3551 = vmatpush1.bf16.msra.mxu0 %v3538
      %3552 = vmatprep.subr.bf16.mxu0 0
      %3553 = vmatpush1.bf16.msra.mxu0 %v3537
      %3554 = vmatprep.subr.bf16.mxu0 0
      %3555 = vmatpush1.bf16.msra.mxu0 %v3536
      %3556 = vmatprep.subr.bf16.mxu0 0
      %3557 = vmatpush1.bf16.msra.mxu0 %v3535
      %3558 = vmatprep.subr.bf16.mxu0 0
      %3559 = vmatpush1.bf16.msra.mxu0 %v3534
      %3560 = vmatprep.subr.bf16.mxu0 0
      %3561 = vmatpush1.bf16.msra.mxu0 %v3533
      %3562 = vmatprep.subr.bf16.mxu0 0
      %3563 = vmatpush1.bf16.msra.mxu0 %v3532
      %3564 = vmatprep.subr.bf16.mxu0 0
      %3565 = vmatpush2.bf16.msra.mxu0 0
      %3566 = vmatprep.subr.bf16.mxu0 0
      %3567 = vmatpush2.bf16.msra.mxu0 0
      %3568 = vmatprep.subr.bf16.mxu0 0
      %3569 = vmatpush2.bf16.msra.mxu0 0
      %3570 = vmatprep.subr.bf16.mxu0 0
      %3571 = vmatpush2.bf16.msra.mxu0 0
      %3572 = vmatprep.subr.bf16.mxu0 0
      %3573 = vmatpush2.bf16.msra.mxu0 0
      %3574 = vmatprep.subr.bf16.mxu0 0
      %3575 = vmatpush2.bf16.msra.mxu0 0
      %3576 = vmatprep.subr.bf16.mxu0 0
      %3577 = vmatpush2.bf16.msra.mxu0 0
      %3578 = vmatprep.subr.bf16.mxu0 0
      %3579 = vmatpush2.bf16.msra.mxu0 0
      %3580 = vmatprep.mubr.bf16.mxu0 0
      %3581 = vmatmul.mubr.bf16.gmra.mxu0 %v3458
      %v3582 = vpop.f32.mrf.mxu0
      %v3583 = vadd.f32 0.0, %v3582
      %v3584 = vpop.f32.mrf.mxu0
      %v3585 = vpop.f32.mrf.mxu0
      %v3586 = vadd.f32 0.0, %v3585
      %v3587 = vpop.f32.mrf.mxu0
      %3588 = vmatprep.mubr.bf16.mxu0 0
      %3589 = vmatmul.mubr.bf16.gmra.mxu0 %v3459
      %v3590 = vpop.f32.mrf.mxu0
      %v3591 = vadd.f32 0.0, %v3590
      %v3592 = vpop.f32.mrf.mxu0
      %v3593 = vpop.f32.mrf.mxu0
      %v3594 = vadd.f32 0.0, %v3593
      %v3595 = vpop.f32.mrf.mxu0
      %3596 = vmatprep.mubr.bf16.mxu0 0
      %3597 = vmatmul.mubr.bf16.gmra.mxu0 %v3460
      %v3598 = vpop.f32.mrf.mxu0
      %v3599 = vadd.f32 0.0, %v3598
      %v3600 = vpop.f32.mrf.mxu0
      %v3601 = vpop.f32.mrf.mxu0
      %v3602 = vadd.f32 0.0, %v3601
      %v3603 = vpop.f32.mrf.mxu0
      %3604 = vdwg.mxu0
      %v3621 = vunpack.c.l.b16 %v3404
      %v3622 = vunpack.c.l.b16 %v3405
      %v3623 = vunpack.c.l.b16 %v3406
      %v3624 = vunpack.c.l.b16 %v3407
      %v3625 = vunpack.c.l.b16 %v3408
      %v3626 = vunpack.c.l.b16 %v3409
      %v3627 = vunpack.c.l.b16 %v3410
      %v3628 = vunpack.c.l.b16 %v3411
      %v3629 = vunpack.c.l.b16 %v3412
      %v3630 = vunpack.c.l.b16 %v3413
      %v3631 = vunpack.c.l.b16 %v3414
      %v3632 = vunpack.c.l.b16 %v3415
      %v3633 = vunpack.c.l.b16 %v3416
      %v3634 = vunpack.c.l.b16 %v3417
      %v3635 = vunpack.c.l.b16 %v3418
      %v3636 = vunpack.c.l.b16 %v3419
      %v3637 = vpack.c.b16 %v3622, %v3621
      %v3638 = vpack.c.b16 %v3624, %v3623
      %v3639 = vpack.c.b16 %v3626, %v3625
      %v3640 = vpack.c.b16 %v3628, %v3627
      %v3641 = vpack.c.b16 %v3630, %v3629
      %v3642 = vpack.c.b16 %v3632, %v3631
      %v3643 = vpack.c.b16 %v3634, %v3633
      %v3644 = vpack.c.b16 %v3636, %v3635
      %3653 = vmatprep.subr.bf16.mxu0 0
      %3654 = vmatpush1.bf16.msra.mxu0 %v3644
      %3655 = vmatprep.subr.bf16.mxu0 0
      %3656 = vmatpush1.bf16.msra.mxu0 %v3643
      %3657 = vmatprep.subr.bf16.mxu0 0
      %3658 = vmatpush1.bf16.msra.mxu0 %v3642
      %3659 = vmatprep.subr.bf16.mxu0 0
      %3660 = vmatpush1.bf16.msra.mxu0 %v3641
      %3661 = vmatprep.subr.bf16.mxu0 0
      %3662 = vmatpush1.bf16.msra.mxu0 %v3640
      %3663 = vmatprep.subr.bf16.mxu0 0
      %3664 = vmatpush1.bf16.msra.mxu0 %v3639
      %3665 = vmatprep.subr.bf16.mxu0 0
      %3666 = vmatpush1.bf16.msra.mxu0 %v3638
      %3667 = vmatprep.subr.bf16.mxu0 0
      %3668 = vmatpush1.bf16.msra.mxu0 %v3637
      %3669 = vmatprep.subr.bf16.mxu0 0
      %3670 = vmatpush2.bf16.msra.mxu0 0
      %3671 = vmatprep.subr.bf16.mxu0 0
      %3672 = vmatpush2.bf16.msra.mxu0 0
      %3673 = vmatprep.subr.bf16.mxu0 0
      %3674 = vmatpush2.bf16.msra.mxu0 0
      %3675 = vmatprep.subr.bf16.mxu0 0
      %3676 = vmatpush2.bf16.msra.mxu0 0
      %3677 = vmatprep.subr.bf16.mxu0 0
      %3678 = vmatpush2.bf16.msra.mxu0 0
      %3679 = vmatprep.subr.bf16.mxu0 0
      %3680 = vmatpush2.bf16.msra.mxu0 0
      %3681 = vmatprep.subr.bf16.mxu0 0
      %3682 = vmatpush2.bf16.msra.mxu0 0
      %3683 = vmatprep.subr.bf16.mxu0 0
      %3684 = vmatpush2.bf16.msra.mxu0 0
      %3685 = vmatprep.mubr.bf16.mxu0 0
      %3686 = vmatmul.mubr.bf16.gmra.mxu0 %v3487
      %v3687 = vpop.f32.mrf.mxu0
      %v3688 = vadd.f32 %v3583, %v3687
      %v3689 = vpop.f32.mrf.mxu0
      %v3690 = vpop.f32.mrf.mxu0
      %v3691 = vadd.f32 %v3586, %v3690
      %v3692 = vpop.f32.mrf.mxu0
      %3693 = vmatprep.mubr.bf16.mxu0 0
      %3694 = vmatmul.mubr.bf16.gmra.mxu0 %v3475
      %v3695 = vpop.f32.mrf.mxu0
      %v3696 = vadd.f32 %v3591, %v3695
      %v3697 = vpop.f32.mrf.mxu0
      %v3698 = vpop.f32.mrf.mxu0
      %v3699 = vadd.f32 %v3594, %v3698
      %v3700 = vpop.f32.mrf.mxu0
      %3701 = vmatprep.mubr.bf16.mxu0 0
      %3702 = vmatmul.mubr.bf16.gmra.mxu0 %v3483
      %v3703 = vpop.f32.mrf.mxu0
      %v3704 = vadd.f32 %v3599, %v3703
      %v3705 = vpop.f32.mrf.mxu0
      %v3706 = vpop.f32.mrf.mxu0
      %v3707 = vadd.f32 %v3602, %v3706
      %v3708 = vpop.f32.mrf.mxu0
      %3709 = vdwg.mxu0
      %v3726 = vunpack.c.l.b16 %v3438
      %v3727 = vunpack.c.l.b16 %v3439
      %v3728 = vunpack.c.l.b16 %v3440
      %v3729 = vunpack.c.l.b16 %v3441
      %v3730 = vunpack.c.l.b16 %v3442
      %v3731 = vunpack.c.l.b16 %v3443
      %v3732 = vunpack.c.l.b16 %v3444
      %v3733 = vunpack.c.l.b16 %v3445
      %v3734 = vunpack.c.l.b16 %v3446
      %v3735 = vunpack.c.l.b16 %v3447
      %v3736 = vunpack.c.l.b16 %v3448
      %v3737 = vunpack.c.l.b16 %v3449
      %v3738 = vunpack.c.l.b16 %v3450
      %v3739 = vunpack.c.l.b16 %v3451
      %v3740 = vunpack.c.l.b16 %v3452
      %v3741 = vunpack.c.l.b16 %v3453
      %v3742 = vpack.c.b16 %v3727, %v3726
      %v3743 = vpack.c.b16 %v3729, %v3728
      %v3744 = vpack.c.b16 %v3731, %v3730
      %v3745 = vpack.c.b16 %v3733, %v3732
      %v3746 = vpack.c.b16 %v3735, %v3734
      %v3747 = vpack.c.b16 %v3737, %v3736
      %v3748 = vpack.c.b16 %v3739, %v3738
      %v3749 = vpack.c.b16 %v3741, %v3740
      %3758 = vmatprep.subr.bf16.mxu0 0
      %3759 = vmatpush1.bf16.msra.mxu0 %v3749
      %3760 = vmatprep.subr.bf16.mxu0 0
      %3761 = vmatpush1.bf16.msra.mxu0 %v3748
      %3762 = vmatprep.subr.bf16.mxu0 0
      %3763 = vmatpush1.bf16.msra.mxu0 %v3747
      %3764 = vmatprep.subr.bf16.mxu0 0
      %3765 = vmatpush1.bf16.msra.mxu0 %v3746
      %3766 = vmatprep.subr.bf16.mxu0 0
      %3767 = vmatpush1.bf16.msra.mxu0 %v3745
      %3768 = vmatprep.subr.bf16.mxu0 0
      %3769 = vmatpush1.bf16.msra.mxu0 %v3744
      %3770 = vmatprep.subr.bf16.mxu0 0
      %3771 = vmatpush1.bf16.msra.mxu0 %v3743
      %3772 = vmatprep.subr.bf16.mxu0 0
      %3773 = vmatpush1.bf16.msra.mxu0 %v3742
      %3774 = vmatprep.subr.bf16.mxu0 0
      %3775 = vmatpush2.bf16.msra.mxu0 0
      %3776 = vmatprep.subr.bf16.mxu0 0
      %3777 = vmatpush2.bf16.msra.mxu0 0
      %3778 = vmatprep.subr.bf16.mxu0 0
      %3779 = vmatpush2.bf16.msra.mxu0 0
      %3780 = vmatprep.subr.bf16.mxu0 0
      %3781 = vmatpush2.bf16.msra.mxu0 0
      %3782 = vmatprep.subr.bf16.mxu0 0
      %3783 = vmatpush2.bf16.msra.mxu0 0
      %3784 = vmatprep.subr.bf16.mxu0 0
      %3785 = vmatpush2.bf16.msra.mxu0 0
      %3786 = vmatprep.subr.bf16.mxu0 0
      %3787 = vmatpush2.bf16.msra.mxu0 0
      %3788 = vmatprep.subr.bf16.mxu0 0
      %3789 = vmatpush2.bf16.msra.mxu0 0
      %3790 = vmatprep.mubr.bf16.mxu0 0
      %3791 = vmatmul.mubr.bf16.gmra.mxu0 %v3491
      %v3792 = vpop.f32.mrf.mxu0
      %v3793 = vadd.f32 0.0, %v3792
      %v3794 = vpop.f32.mrf.mxu0
      %v3795 = vpop.f32.mrf.mxu0
      %v3796 = vadd.f32 0.0, %v3795
      %v3797 = vpop.f32.mrf.mxu0
      %3798 = vmatprep.mubr.bf16.mxu0 0
      %3799 = vmatmul.mubr.bf16.gmra.mxu0 %v3494
      %v3800 = vpop.f32.mrf.mxu0
      %v3801 = vadd.f32 0.0, %v3800
      %v3802 = vpop.f32.mrf.mxu0
      %v3803 = vpop.f32.mrf.mxu0
      %v3804 = vadd.f32 0.0, %v3803
      %v3805 = vpop.f32.mrf.mxu0
      %3806 = vmatprep.mubr.bf16.mxu0 0
      %3807 = vmatmul.mubr.bf16.gmra.mxu0 %v3499
      %v3808 = vpop.f32.mrf.mxu0
      %v3809 = vadd.f32 0.0, %v3808
      %v3810 = vpop.f32.mrf.mxu0
      %v3811 = vpop.f32.mrf.mxu0
      %v3812 = vadd.f32 0.0, %v3811
      %v3813 = vpop.f32.mrf.mxu0
      %3814 = vdwg.mxu0
      %v3815 = vadd.f32 %v3688, %v3793
      %v3816 = vadd.f32 %v3691, %v3796
      %v3817 = vadd.f32 %v3696, %v3801
      %v3818 = vadd.f32 %v3699, %v3804
      %v3819 = vadd.f32 %v3704, %v3809
      %v3820 = vadd.f32 %v3707, %v3812
      %v3822 = vlaneseq
      %v3823 = vshrl.u32 %v3822, 7
      %v3824 = vsub.s32 0, %v3823
      %v3825 = vrot.slane %v3455, %v3824
      %v3827 = vmul.f32 %v3815, %v3825
      %v3828 = vmul.f32 %v3816, %v3825
      %v3829 = vmul.f32 %v3817, %v3825
      %v3830 = vmul.f32 %v3818, %v3825
      %v3831 = vmul.f32 %v3819, %v3825
      %v3832 = vmul.f32 %v3820, %v3825
      %v3834 = vlaneseq
      %v3835 = vshrl.u32 %v3834, 7
      %v3836 = vsub.s32 0, %v3835
      %v3837 = vrot.slane %v3457, %v3836
      %v3839 = vadd.f32 %v3827, %v3837
      %v3840 = vadd.f32 %v3828, %v3837
      %v3841 = vadd.f32 %v3829, %v3837
      %v3842 = vadd.f32 %v3830, %v3837
      %v3843 = vadd.f32 %v3831, %v3837
      %v3844 = vadd.f32 %v3832, %v3837
      %v3845 = vadd.f32 %v3839, %v2943
      %v3846 = vadd.f32 %v3840, %v2944
      %v3847 = vadd.f32 %v3841, %v2945
      %v3848 = vadd.f32 %v3842, %v2946
      %v3849 = vadd.f32 %v3843, %v2947
      %v3850 = vadd.f32 %v3844, %v2948
      %v3851 = vmul.f32 %v3845, %v2462
      %v3852 = vmul.f32 %v3846, %v2467
      %v3853 = vmul.f32 %v3847, %v2472
      %v3854 = vmul.f32 %v3848, %v2477
      %v3855 = vmul.f32 %v3849, %v2482
      %v3856 = vmul.f32 %v3850, %v2487
      %v3857 = vpack.c.bf16 %v3852, %v3851
      %v3858 = vpack.c.bf16 %v3854, %v3853
      %v3859 = vpack.c.bf16 %v3856, %v3855
      %v3863 = vunpack.c.l.b16 %v3857
      %v3864 = vunpack.c.h.b16 %v3857
      %v3865 = vunpack.c.l.b16 %v3858
      %v3866 = vunpack.c.h.b16 %v3858
      %v3867 = vunpack.c.l.b16 %v3859
      %v3868 = vunpack.c.h.b16 %v3859
      %v3869 = vpack.c.b16 %v3863, %v3863
      %v3870 = vpack.c.b16 %v3864, %v3864
      %v3871 = vpack.c.b16 %v3865, %v3865
      %v3872 = vpack.c.b16 %v3866, %v3866
      %v3873 = vpack.c.b16 %v3867, %v3867
      %v3874 = vpack.c.b16 %v3868, %v3868
      %3881 = vst [vmem:[%s332] sm:$0xf] %v3869
      %3882 = vst [vmem:[%s332 + $0x4] sm:$0xf] %v3870
      %3883 = vst [vmem:[%s332 + $0x8] sm:$0xf] %v3871
      %3884 = vst [vmem:[%s332 + $0xc] sm:$0xf] %v3872
      %3885 = vst [vmem:[%s332 + $0x10] sm:$0xf] %v3873
      %3886 = vst [vmem:[%s332 + $0x14] sm:$0xf] %v3874
      %s3887 = smul.u32 6, %s19
      %p3888 = scmp.lt.s32.totalorder %s3887, 11
      %s3889 = scalar_select %p3888, %s3887, 11
      %s3890 = smul.addr %s3889, 4
      %s3891 = scalar_lea.vmem %s8, %s3890
      // Predicated region
      $region53: #{model_forward.3} parent=51 // pred_check
        %p3892 = pneg %p215
      $region54: #{model_forward.3} parent=51 // pred_check_branch
        %3894 = sbr.rel (%p3892) target = $region56
      $region55: #{model_forward.3} parent=51 // pred_region
        %s3895 = smul.u32 6, %s19
      $region56: #{model_forward.3} parent=51 // pred_fallthru
        _
    $region52: #{model_forward.3} parent=5 // pred_fallthru
      _
    %p3896 = scmp.le.s32.totalorder 2, %s14
    // Predicated region
    $region57: #{model_forward.3} parent=5 // pred_check
      %p3897 = pneg %p3896
    $region58: #{model_forward.3} parent=5 // pred_check_branch
      %3899 = sbr.rel (%p3897) target = $region60
    $region59: #{model_forward.3} parent=5 // pred_region
      %s3900 = ssub.s32 %s14, 2
      // Predicated region
      $region61: #{model_forward.3} parent=59 // pred_check
        %p3901 = pneg %p221
      $region62: #{model_forward.3} parent=59 // pred_check_branch
        %3903 = sbr.rel (%p3901) target = $region64
      $region63: #{model_forward.3} parent=59 // pred_region
        %s3904 = smul.u32 6, %s20
        %p3905 = scmp.lt.s32.totalorder %s3904, 11
        %s3906 = scalar_select %p3905, %s3904, 11
        %s3907 = smul.addr %s3906, 4
        %s3908 = scalar_lea.vmem %s8, %s3907
      $region64: #{model_forward.3} parent=59 // pred_fallthru
        _
    $region60: #{model_forward.3} parent=5 // pred_fallthru
      _
  $region6: #{model_forward.3} parent=0 // loop_footer
    %s18 = sadd.s32 1, %s14
  $region7: #{model_forward.3} parent=0 // loop_footer_branch
    %13 = sbr.rel target = $region3
  $region8: #{model_forward.3} parent=0 // loop_exit
    _

// kernel: model_forward.4
$region0: #{model_forward.4}
  #allocation0 [shape = 'u32[]', space=smem, size = 0x4, offset = 0x4, fixed_abs, tag = 'smem constant byte address 0x4 - core index']
  #allocation1 [shape = 'u32[144,128]{1,0:T(1,128)}', space=vmem, size = 0x12000, scoped, tag = 'internal scratch']
  %s0 = inlined_call_operand.vmem [shape: bf16[48,128], index: 0, kind: input, shape index: {}]
  %s1 = inlined_call_operand.vmem [shape: bf16[48,128], index: 1, kind: input, shape index: {}]
  %s2 = inlined_call_operand.vmem [shape: f32[48,1], index: 2, kind: input, shape index: {}]
  %s3 = inlined_call_operand.vmem [shape: bf16[3,128,128], index: 3, kind: input, shape index: {}]
  %s4 = inlined_call_operand.vmem [shape: f32[1,128], index: 4, kind: input, shape index: {}]
  %s5 = inlined_call_operand.vmem [shape: f32[1,128], index: 5, kind: input, shape index: {}]
  %s6 = inlined_call_operand.vmem [shape: bf16[128,128], index: 6, kind: input, shape index: {}]
  %s7 = inlined_call_operand.vmem [shape: f32[1,128], index: 7, kind: input, shape index: {}]
  %s8 = inlined_call_operand.vmem [shape: f32[1,128], index: 8, kind: input, shape index: {}]
  %s9 = inlined_call_operand.vmem [shape: bf16[3,3,128,128], index: 9, kind: input, shape index: {}]
  %s10 = inlined_call_operand.vmem [shape: f32[3,1,128], index: 10, kind: input, shape index: {}]
  %s11 = inlined_call_operand.vmem [shape: f32[3,1,128], index: 11, kind: input, shape index: {}]
  %s12 = inlined_call_operand.vmem [shape: f32[128,32], index: 12, kind: input, shape index: {}]
  %s13 = inlined_call_operand.vmem [shape: f32[2,3,32], index: 13, kind: output, shape index: {}]
  %s14 = sld [smem:[#allocation0]]
  $region85: #{model_forward.4} parent=0
    _
  %s16 = ssub.s32 1, %s14
  %s17 = scalar_select 0, %s16, %s14
  loop: start=0, step=1, limit=4
  $region2: #{model_forward.4} parent=0 // loop_pre_header
    _
  $region3: #{model_forward.4} parent=0 // loop_header
    %s19 = sphi 0, %s23
    %p20 = scmp.ge.s32.totalorder %s19, 4
    %s29 = sphi 0, %s31
    %s32 = sphi 0, %s29
    %s33 = sphi 0, %s32
    %s49 = sphi 0, %s33
    %s55 = sphi 0, %s57
    %s58 = sphi 0, %s55
    %s59 = sphi 0, %s58
    %s75 = sphi 0, %s59
    %s81 = sphi 0, %s83
    %s84 = sphi 0, %s81
    %s85 = sphi 0, %s84
    %s101 = sphi 0, %s85
    %s105 = sphi 0, %s105
    %s107 = sphi 0, %s105
    %s108 = sphi 0, %s107
    %s122 = sphi 0, %s108
    %s126 = sphi 0, %s126
    %s128 = sphi 0, %s126
    %s129 = sphi 0, %s128
    %s143 = sphi 0, %s129
    %s147 = sphi 0, %s147
    %s149 = sphi 0, %s147
    %s150 = sphi 0, %s149
    %s164 = sphi 0, %s150
    %s168 = sphi 0, %s168
    %s170 = sphi 0, %s168
    %s171 = sphi 0, %s170
    %s185 = sphi 0, %s171
    %s189 = sphi 0, %s189
    %s191 = sphi 0, %s189
    %s192 = sphi 0, %s191
    %s206 = sphi 0, %s192
    %s210 = sphi 0, %s210
    %s212 = sphi 0, %s210
    %s213 = sphi 0, %s212
    %s227 = sphi 0, %s213
    %s231 = sphi 0, %s231
    %s233 = sphi 0, %s231
    %s234 = sphi 0, %s233
    %s248 = sphi 0, %s234
    %s252 = sphi 0, %s252
    %s254 = sphi 0, %s252
    %s255 = sphi 0, %s254
    %s269 = sphi 0, %s255
    %s273 = sphi 0, %s273
    %s275 = sphi 0, %s273
    %s276 = sphi 0, %s275
    %s290 = sphi 0, %s276
    %s294 = sphi 0, %s294
    %s296 = sphi 0, %s294
    %s297 = sphi 0, %s296
    %s311 = sphi 0, %s297
    %s317 = sphi 0, %s319
    %s320 = sphi 0, %s317
    %s321 = sphi 0, %s320
    %s337 = sphi 0, %s321
  $region4: #{model_forward.4} parent=0 // loop_header_branch
    %22 = sbr.rel (%p20) target = $region8
  $region5: #{model_forward.4} parent=0 // loop_body
    %s24 = ssub.s32 %s19, 1
    %s25 = ssub.s32 %s19, 2
    %s26 = sadd.s32 %s19, 1
    %s27 = ssub.s32 %s19, %s26
    %p28 = scmp.eq.s32.totalorder %s27, 0
    %s30 = sadd.s32 %s29, 1
    %s31 = scalar_select %p28, %s29, %s30
    %p34 = pneg %p28
    %p35 = scmp.eq.s32.totalorder %s19, 1
    %p36 = por %p34, %p35
    %p37 = scmp.ne.s32.totalorder %s29, %s32
    %p38 = scmp.eq.s32.totalorder %s19, 0
    %p39 = por %p37, %p38
    %p40 = scmp.ne.s32.totalorder %s29, %s32
    %p41 = scmp.eq.s32.totalorder %s24, 1
    %p42 = por %p40, %p41
    %p43 = scmp.ne.s32.totalorder %s32, %s33
    %p44 = scmp.eq.s32.totalorder %s24, 0
    %p45 = por %p43, %p44
    %p46 = scmp.ne.s32.totalorder %s32, %s33
    %p47 = scmp.eq.s32.totalorder %s25, 1
    %p48 = por %p46, %p47
    %p50 = scmp.ne.s32.totalorder %s33, %s49
    %p51 = scmp.eq.s32.totalorder %s25, 0
    %p52 = por %p50, %p51
    %s53 = ssub.s32 %s19, %s26
    %p54 = scmp.eq.s32.totalorder %s53, 0
    %s56 = sadd.s32 %s55, 1
    %s57 = scalar_select %p54, %s55, %s56
    %p60 = pneg %p54
    %p61 = scmp.eq.s32.totalorder %s19, 1
    %p62 = por %p60, %p61
    %p63 = scmp.ne.s32.totalorder %s55, %s58
    %p64 = scmp.eq.s32.totalorder %s19, 0
    %p65 = por %p63, %p64
    %p66 = scmp.ne.s32.totalorder %s55, %s58
    %p67 = scmp.eq.s32.totalorder %s24, 1
    %p68 = por %p66, %p67
    %p69 = scmp.ne.s32.totalorder %s58, %s59
    %p70 = scmp.eq.s32.totalorder %s24, 0
    %p71 = por %p69, %p70
    %p72 = scmp.ne.s32.totalorder %s58, %s59
    %p73 = scmp.eq.s32.totalorder %s25, 1
    %p74 = por %p72, %p73
    %p76 = scmp.ne.s32.totalorder %s59, %s75
    %p77 = scmp.eq.s32.totalorder %s25, 0
    %p78 = por %p76, %p77
    %s79 = ssub.s32 %s19, %s26
    %p80 = scmp.eq.s32.totalorder %s79, 0
    %s82 = sadd.s32 %s81, 1
    %s83 = scalar_select %p80, %s81, %s82
    %p86 = pneg %p80
    %p87 = scmp.eq.s32.totalorder %s19, 1
    %p88 = por %p86, %p87
    %p89 = scmp.ne.s32.totalorder %s81, %s84
    %p90 = scmp.eq.s32.totalorder %s19, 0
    %p91 = por %p89, %p90
    %p92 = scmp.ne.s32.totalorder %s81, %s84
    %p93 = scmp.eq.s32.totalorder %s24, 1
    %p94 = por %p92, %p93
    %p95 = scmp.ne.s32.totalorder %s84, %s85
    %p96 = scmp.eq.s32.totalorder %s24, 0
    %p97 = por %p95, %p96
    %p98 = scmp.ne.s32.totalorder %s84, %s85
    %p99 = scmp.eq.s32.totalorder %s25, 1
    %p100 = por %p98, %p99
    %p102 = scmp.ne.s32.totalorder %s85, %s101
    %p103 = scmp.eq.s32.totalorder %s25, 0
    %p104 = por %p102, %p103
    %s106 = sadd.s32 %s105, 1
    %p109 = scmp.eq.s32.totalorder %s19, 1
    %p110 = scmp.ne.s32.totalorder %s105, %s107
    %p111 = scmp.eq.s32.totalorder %s19, 0
    %p112 = por %p110, %p111
    %p113 = scmp.ne.s32.totalorder %s105, %s107
    %p114 = scmp.eq.s32.totalorder %s24, 1
    %p115 = por %p113, %p114
    %p116 = scmp.ne.s32.totalorder %s107, %s108
    %p117 = scmp.eq.s32.totalorder %s24, 0
    %p118 = por %p116, %p117
    %p119 = scmp.ne.s32.totalorder %s107, %s108
    %p120 = scmp.eq.s32.totalorder %s25, 1
    %p121 = por %p119, %p120
    %p123 = scmp.ne.s32.totalorder %s108, %s122
    %p124 = scmp.eq.s32.totalorder %s25, 0
    %p125 = por %p123, %p124
    %s127 = sadd.s32 %s126, 1
    %p130 = scmp.eq.s32.totalorder %s19, 1
    %p131 = scmp.ne.s32.totalorder %s126, %s128
    %p132 = scmp.eq.s32.totalorder %s19, 0
    %p133 = por %p131, %p132
    %p134 = scmp.ne.s32.totalorder %s126, %s128
    %p135 = scmp.eq.s32.totalorder %s24, 1
    %p136 = por %p134, %p135
    %p137 = scmp.ne.s32.totalorder %s128, %s129
    %p138 = scmp.eq.s32.totalorder %s24, 0
    %p139 = por %p137, %p138
    %p140 = scmp.ne.s32.totalorder %s128, %s129
    %p141 = scmp.eq.s32.totalorder %s25, 1
    %p142 = por %p140, %p141
    %p144 = scmp.ne.s32.totalorder %s129, %s143
    %p145 = scmp.eq.s32.totalorder %s25, 0
    %p146 = por %p144, %p145
    %s148 = sadd.s32 %s147, 1
    %p151 = scmp.eq.s32.totalorder %s19, 1
    %p152 = scmp.ne.s32.totalorder %s147, %s149
    %p153 = scmp.eq.s32.totalorder %s19, 0
    %p154 = por %p152, %p153
    %p155 = scmp.ne.s32.totalorder %s147, %s149
    %p156 = scmp.eq.s32.totalorder %s24, 1
    %p157 = por %p155, %p156
    %p158 = scmp.ne.s32.totalorder %s149, %s150
    %p159 = scmp.eq.s32.totalorder %s24, 0
    %p160 = por %p158, %p159
    %p161 = scmp.ne.s32.totalorder %s149, %s150
    %p162 = scmp.eq.s32.totalorder %s25, 1
    %p163 = por %p161, %p162
    %p165 = scmp.ne.s32.totalorder %s150, %s164
    %p166 = scmp.eq.s32.totalorder %s25, 0
    %p167 = por %p165, %p166
    %s169 = sadd.s32 %s168, 1
    %p172 = scmp.eq.s32.totalorder %s19, 1
    %p173 = scmp.ne.s32.totalorder %s168, %s170
    %p174 = scmp.eq.s32.totalorder %s19, 0
    %p175 = por %p173, %p174
    %p176 = scmp.ne.s32.totalorder %s168, %s170
    %p177 = scmp.eq.s32.totalorder %s24, 1
    %p178 = por %p176, %p177
    %p179 = scmp.ne.s32.totalorder %s170, %s171
    %p180 = scmp.eq.s32.totalorder %s24, 0
    %p181 = por %p179, %p180
    %p182 = scmp.ne.s32.totalorder %s170, %s171
    %p183 = scmp.eq.s32.totalorder %s25, 1
    %p184 = por %p182, %p183
    %p186 = scmp.ne.s32.totalorder %s171, %s185
    %p187 = scmp.eq.s32.totalorder %s25, 0
    %p188 = por %p186, %p187
    %s190 = sadd.s32 %s189, 1
    %p193 = scmp.eq.s32.totalorder %s19, 1
    %p194 = scmp.ne.s32.totalorder %s189, %s191
    %p195 = scmp.eq.s32.totalorder %s19, 0
    %p196 = por %p194, %p195
    %p197 = scmp.ne.s32.totalorder %s189, %s191
    %p198 = scmp.eq.s32.totalorder %s24, 1
    %p199 = por %p197, %p198
    %p200 = scmp.ne.s32.totalorder %s191, %s192
    %p201 = scmp.eq.s32.totalorder %s24, 0
    %p202 = por %p200, %p201
    %p203 = scmp.ne.s32.totalorder %s191, %s192
    %p204 = scmp.eq.s32.totalorder %s25, 1
    %p205 = por %p203, %p204
    %p207 = scmp.ne.s32.totalorder %s192, %s206
    %p208 = scmp.eq.s32.totalorder %s25, 0
    %p209 = por %p207, %p208
    %s211 = sadd.s32 %s210, 1
    %p214 = scmp.eq.s32.totalorder %s19, 1
    %p215 = scmp.ne.s32.totalorder %s210, %s212
    %p216 = scmp.eq.s32.totalorder %s19, 0
    %p217 = por %p215, %p216
    %p218 = scmp.ne.s32.totalorder %s210, %s212
    %p219 = scmp.eq.s32.totalorder %s24, 1
    %p220 = por %p218, %p219
    %p221 = scmp.ne.s32.totalorder %s212, %s213
    %p222 = scmp.eq.s32.totalorder %s24, 0
    %p223 = por %p221, %p222
    %p224 = scmp.ne.s32.totalorder %s212, %s213
    %p225 = scmp.eq.s32.totalorder %s25, 1
    %p226 = por %p224, %p225
    %p228 = scmp.ne.s32.totalorder %s213, %s227
    %p229 = scmp.eq.s32.totalorder %s25, 0
    %p230 = por %p228, %p229
    %s232 = sadd.s32 %s231, 1
    %p235 = scmp.eq.s32.totalorder %s19, 1
    %p236 = scmp.ne.s32.totalorder %s231, %s233
    %p237 = scmp.eq.s32.totalorder %s19, 0
    %p238 = por %p236, %p237
    %p239 = scmp.ne.s32.totalorder %s231, %s233
    %p240 = scmp.eq.s32.totalorder %s24, 1
    %p241 = por %p239, %p240
    %p242 = scmp.ne.s32.totalorder %s233, %s234
    %p243 = scmp.eq.s32.totalorder %s24, 0
    %p244 = por %p242, %p243
    %p245 = scmp.ne.s32.totalorder %s233, %s234
    %p246 = scmp.eq.s32.totalorder %s25, 1
    %p247 = por %p245, %p246
    %p249 = scmp.ne.s32.totalorder %s234, %s248
    %p250 = scmp.eq.s32.totalorder %s25, 0
    %p251 = por %p249, %p250
    %s253 = sadd.s32 %s252, 1
    %p256 = scmp.eq.s32.totalorder %s19, 1
    %p257 = scmp.ne.s32.totalorder %s252, %s254
    %p258 = scmp.eq.s32.totalorder %s19, 0
    %p259 = por %p257, %p258
    %p260 = scmp.ne.s32.totalorder %s252, %s254
    %p261 = scmp.eq.s32.totalorder %s24, 1
    %p262 = por %p260, %p261
    %p263 = scmp.ne.s32.totalorder %s254, %s255
    %p264 = scmp.eq.s32.totalorder %s24, 0
    %p265 = por %p263, %p264
    %p266 = scmp.ne.s32.totalorder %s254, %s255
    %p267 = scmp.eq.s32.totalorder %s25, 1
    %p268 = por %p266, %p267
    %p270 = scmp.ne.s32.totalorder %s255, %s269
    %p271 = scmp.eq.s32.totalorder %s25, 0
    %p272 = por %p270, %p271
    %s274 = sadd.s32 %s273, 1
    %p277 = scmp.eq.s32.totalorder %s19, 1
    %p278 = scmp.ne.s32.totalorder %s273, %s275
    %p279 = scmp.eq.s32.totalorder %s19, 0
    %p280 = por %p278, %p279
    %p281 = scmp.ne.s32.totalorder %s273, %s275
    %p282 = scmp.eq.s32.totalorder %s24, 1
    %p283 = por %p281, %p282
    %p284 = scmp.ne.s32.totalorder %s275, %s276
    %p285 = scmp.eq.s32.totalorder %s24, 0
    %p286 = por %p284, %p285
    %p287 = scmp.ne.s32.totalorder %s275, %s276
    %p288 = scmp.eq.s32.totalorder %s25, 1
    %p289 = por %p287, %p288
    %p291 = scmp.ne.s32.totalorder %s276, %s290
    %p292 = scmp.eq.s32.totalorder %s25, 0
    %p293 = por %p291, %p292
    %s295 = sadd.s32 %s294, 1
    %p298 = scmp.eq.s32.totalorder %s19, 1
    %p299 = scmp.ne.s32.totalorder %s294, %s296
    %p300 = scmp.eq.s32.totalorder %s19, 0
    %p301 = por %p299, %p300
    %p302 = scmp.ne.s32.totalorder %s294, %s296
    %p303 = scmp.eq.s32.totalorder %s24, 1
    %p304 = por %p302, %p303
    %p305 = scmp.ne.s32.totalorder %s296, %s297
    %p306 = scmp.eq.s32.totalorder %s24, 0
    %p307 = por %p305, %p306
    %p308 = scmp.ne.s32.totalorder %s296, %s297
    %p309 = scmp.eq.s32.totalorder %s25, 1
    %p310 = por %p308, %p309
    %p312 = scmp.ne.s32.totalorder %s297, %s311
    %p313 = scmp.eq.s32.totalorder %s25, 0
    %p314 = por %p312, %p313
    %s315 = ssub.s32 %s19, %s26
    %p316 = scmp.eq.s32.totalorder %s315, 0
    %s318 = sadd.s32 %s317, 1
    %s319 = scalar_select %p316, %s317, %s318
    %p322 = pneg %p316
    %p323 = scmp.eq.s32.totalorder %s19, 1
    %p324 = por %p322, %p323
    %p325 = scmp.ne.s32.totalorder %s317, %s320
    %p326 = scmp.eq.s32.totalorder %s19, 0
    %p327 = por %p325, %p326
    %p328 = scmp.ne.s32.totalorder %s317, %s320
    %p329 = scmp.eq.s32.totalorder %s24, 1
    %p330 = por %p328, %p329
    %p331 = scmp.ne.s32.totalorder %s320, %s321
    %p332 = scmp.eq.s32.totalorder %s24, 0
    %p333 = por %p331, %p332
    %p334 = scmp.ne.s32.totalorder %s320, %s321
    %p335 = scmp.eq.s32.totalorder %s25, 1
    %p336 = por %p334, %p335
    %p338 = scmp.ne.s32.totalorder %s321, %s337
    %p339 = scmp.eq.s32.totalorder %s25, 0
    %p340 = por %p338, %p339
    %p341 = scmp.le.s32.totalorder 1, %s19
    %p342 = scmp.lt.s32.totalorder %s19, 3
    %p343 = pnand %p341, %p342
    %p344 = pneg %p343
    // Predicated region
    $region9: #{model_forward.4} parent=5 // pred_check
      _
    $region10: #{model_forward.4} parent=5 // pred_check_branch
      %346 = sbr.rel (%p343) target = $region12
    $region11: #{model_forward.4} parent=5 // pred_region
      %s347 = ssub.s32 %s19, 1
      // Predicated region
      $region13: #{model_forward.4} parent=11 // pred_check
        %p348 = pneg %p118
      $region14: #{model_forward.4} parent=11 // pred_check_branch
        %350 = sbr.rel (%p348) target = $region16
      $region15: #{model_forward.4} parent=11 // pred_region
        _
      $region16: #{model_forward.4} parent=11 // pred_fallthru
        _
      // Predicated region
      $region17: #{model_forward.4} parent=11 // pred_check
        %p351 = pneg %p139
      $region18: #{model_forward.4} parent=11 // pred_check_branch
        %353 = sbr.rel (%p351) target = $region20
      $region19: #{model_forward.4} parent=11 // pred_region
        _
      $region20: #{model_forward.4} parent=11 // pred_fallthru
        _
      // Predicated region
      $region21: #{model_forward.4} parent=11 // pred_check
        %p354 = pneg %p160
      $region22: #{model_forward.4} parent=11 // pred_check_branch
        %356 = sbr.rel (%p354) target = $region24
      $region23: #{model_forward.4} parent=11 // pred_region
        _
      $region24: #{model_forward.4} parent=11 // pred_fallthru
        _
      // Predicated region
      $region25: #{model_forward.4} parent=11 // pred_check
        %p357 = pneg %p181
      $region26: #{model_forward.4} parent=11 // pred_check_branch
        %359 = sbr.rel (%p357) target = $region28
      $region27: #{model_forward.4} parent=11 // pred_region
        _
      $region28: #{model_forward.4} parent=11 // pred_fallthru
        _
      // Predicated region
      $region29: #{model_forward.4} parent=11 // pred_check
        %p360 = pneg %p202
      $region30: #{model_forward.4} parent=11 // pred_check_branch
        %362 = sbr.rel (%p360) target = $region32
      $region31: #{model_forward.4} parent=11 // pred_region
        _
      $region32: #{model_forward.4} parent=11 // pred_fallthru
        _
      // Predicated region
      $region33: #{model_forward.4} parent=11 // pred_check
        %p363 = pneg %p223
      $region34: #{model_forward.4} parent=11 // pred_check_branch
        %365 = sbr.rel (%p363) target = $region36
      $region35: #{model_forward.4} parent=11 // pred_region
        _
      $region36: #{model_forward.4} parent=11 // pred_fallthru
        _
      // Predicated region
      $region37: #{model_forward.4} parent=11 // pred_check
        %p366 = pneg %p244
      $region38: #{model_forward.4} parent=11 // pred_check_branch
        %368 = sbr.rel (%p366) target = $region40
      $region39: #{model_forward.4} parent=11 // pred_region
        _
      $region40: #{model_forward.4} parent=11 // pred_fallthru
        _
      // Predicated region
      $region41: #{model_forward.4} parent=11 // pred_check
        %p369 = pneg %p265
      $region42: #{model_forward.4} parent=11 // pred_check_branch
        %371 = sbr.rel (%p369) target = $region44
      $region43: #{model_forward.4} parent=11 // pred_region
        _
      $region44: #{model_forward.4} parent=11 // pred_fallthru
        _
      // Predicated region
      $region45: #{model_forward.4} parent=11 // pred_check
        %p372 = pneg %p286
      $region46: #{model_forward.4} parent=11 // pred_check_branch
        %374 = sbr.rel (%p372) target = $region48
      $region47: #{model_forward.4} parent=11 // pred_region
        _
      $region48: #{model_forward.4} parent=11 // pred_fallthru
        _
      // Predicated region
      $region49: #{model_forward.4} parent=11 // pred_check
        %p375 = pneg %p307
      $region50: #{model_forward.4} parent=11 // pred_check_branch
        %377 = sbr.rel (%p375) target = $region52
      $region51: #{model_forward.4} parent=11 // pred_region
        _
      $region52: #{model_forward.4} parent=11 // pred_fallthru
        _
    $region12: #{model_forward.4} parent=5 // pred_fallthru
      _
    %p378 = scmp.lt.s32.totalorder %s19, 2
    // Predicated region
    $region53: #{model_forward.4} parent=5 // pred_check
      %p379 = pneg %p378
    $region54: #{model_forward.4} parent=5 // pred_check_branch
      %381 = sbr.rel (%p379) target = $region56
    $region55: #{model_forward.4} parent=5 // pred_region
      // Predicated region
      $region57: #{model_forward.4} parent=55 // pred_check
        %p382 = pneg %p39
      $region58: #{model_forward.4} parent=55 // pred_check_branch
        %384 = sbr.rel (%p382) target = $region60
      $region59: #{model_forward.4} parent=55 // pred_region
        %s385 = smul.u32 3, %s19
        %p386 = scmp.lt.s32.totalorder %s385, 5
        %s387 = scalar_select %p386, %s385, 5
        %s388 = smul.addr %s387, 4
        %s389 = scalar_lea.vmem %s0, %s388
        %s390 = smul.u32 3, %s19
      $region60: #{model_forward.4} parent=55 // pred_fallthru
        _
      // Predicated region
      $region61: #{model_forward.4} parent=55 // pred_check
        %p391 = pneg %p65
      $region62: #{model_forward.4} parent=55 // pred_check_branch
        %393 = sbr.rel (%p391) target = $region64
      $region63: #{model_forward.4} parent=55 // pred_region
        %s394 = smul.u32 3, %s19
        %p395 = scmp.lt.s32.totalorder %s394, 5
        %s396 = scalar_select %p395, %s394, 5
        %s397 = smul.addr %s396, 4
        %s398 = scalar_lea.vmem %s1, %s397
        %s399 = smul.u32 3, %s19
      $region64: #{model_forward.4} parent=55 // pred_fallthru
        _
      // Predicated region
      $region65: #{model_forward.4} parent=55 // pred_check
        %p400 = pneg %p91
      $region66: #{model_forward.4} parent=55 // pred_check_branch
        %402 = sbr.rel (%p400) target = $region68
      $region67: #{model_forward.4} parent=55 // pred_region
        %s403 = smul.u32 3, %s19
        %p404 = scmp.lt.s32.totalorder %s403, 5
        %s405 = scalar_select %p404, %s403, 5
        %s406 = smul.addr %s405, 8
        %s407 = scalar_lea.vmem %s2, %s406
        %s408 = smul.u32 3, %s19
      $region68: #{model_forward.4} parent=55 // pred_fallthru
        _
    $region56: #{model_forward.4} parent=5 // pred_fallthru
      _
    %p409 = scmp.le.s32.totalorder 1, %s19
    %p410 = scmp.lt.s32.totalorder %s19, 3
    %p411 = pnand %p409, %p410
    %p412 = pneg %p411
    // Predicated region
    $region69: #{model_forward.4} parent=5 // pred_check
      _
    $region70: #{model_forward.4} parent=5 // pred_check_branch
      %414 = sbr.rel (%p411) target = $region72
    $region71: #{model_forward.4} parent=5 // pred_region
      %s415 = ssub.s32 %s19, 1
      %s416 = smul.u32 3, %s24
      %p417 = scmp.lt.s32.totalorder %s416, 5
      %s418 = scalar_select %p417, %s416, 5
      %s419 = smul.addr %s418, 4
      %s420 = scalar_lea.vmem %s0, %s419
      %p421 = pneg %p45
      %p422 = pneg %p42
      %s423 = smul.u32 3, %s24
      %p424 = scmp.lt.s32.totalorder %s423, 5
      %s425 = scalar_select %p424, %s423, 5
      %s426 = smul.addr %s425, 4
      %s427 = scalar_lea.vmem %s1, %s426
      %p428 = pneg %p71
      %p429 = pneg %p68
      %s430 = smul.u32 3, %s24
      %p431 = scmp.lt.s32.totalorder %s430, 5
      %s432 = scalar_select %p431, %s430, 5
      %s433 = smul.addr %s432, 8
      %s434 = scalar_lea.vmem %s2, %s433
      %p435 = pneg %p97
      %p436 = pneg %p94
      %p437 = pneg %p118
      %p438 = pneg %p115
      %p439 = pneg %p139
      %p440 = pneg %p136
      %p441 = pneg %p160
      %p442 = pneg %p157
      %p443 = pneg %p181
      %p444 = pneg %p178
      %p445 = pneg %p202
      %p446 = pneg %p199
      %p447 = pneg %p223
      %p448 = pneg %p220
      %p449 = pneg %p244
      %p450 = pneg %p241
      %p451 = pneg %p265
      %p452 = pneg %p262
      %p453 = pneg %p286
      %p454 = pneg %p283
      %p455 = pneg %p307
      %p456 = pneg %p304
      %p457 = pneg %p333
      %p458 = pneg %p330
      %p459 = scmp.lt.s32.totalorder %s24, 1
      %s460 = scalar_select %p459, %s24, 1
      %s461 = smul.addr %s460, 4
      %s462 = scalar_lea.vmem %s13, %s461
      %s463 = smul.u32 3, %s24
      %p464 = scmp.lt.s32.totalorder %s463, 5
      %s465 = scalar_select %p464, %s463, 5
      %s466 = smul.addr %s465, 4
      %s467 = scalar_lea.vmem %s0, %s466
      %s468 = smul.u32 3, %s24
      %s469 = smul.u32 3, %s24
      %p470 = scmp.lt.s32.totalorder %s469, 5
      %s471 = scalar_select %p470, %s469, 5
      %s472 = smul.addr %s471, 4
      %s473 = scalar_lea.vmem %s1, %s472
      %s474 = smul.u32 3, %s24
      %s475 = smul.u32 3, %s24
      %p476 = scmp.lt.s32.totalorder %s475, 5
      %s477 = scalar_select %p476, %s475, 5
      %s478 = smul.addr %s477, 8
      %s479 = scalar_lea.vmem %s2, %s478
      %s480 = smul.u32 3, %s24
      %p481 = scmp.lt.s32.totalorder %s24, 1
      %s482 = scalar_select %p481, %s24, 1
      %s483 = smul.addr %s482, 4
      %s484 = scalar_lea.vmem %s13, %s483
      %v486 = vld [vmem:[%s479] sm:$0xff]
      %v487 = vld [vmem:[%s479 + $0x8] sm:$0xff]
      %v488 = vld [vmem:[%s479 + $0x10] sm:$0xff]
      %v489 = vld [vmem:[%s467] sm:$0xf]
      %v490 = vld [vmem:[%s467 + $0x4] sm:$0xf]
      %v491 = vld [vmem:[%s467 + $0x8] sm:$0xf]
      %v492 = vld [vmem:[%s473] sm:$0xf]
      %v493 = vld [vmem:[%s473 + $0x4] sm:$0xf]
      %v494 = vld [vmem:[%s473 + $0x8] sm:$0xf]
      %v498 = vunpack.c.l.b16 %v492
      %v499 = vunpack.c.l.b16 %v493
      %v500 = vunpack.c.l.b16 %v494
      %v501 = vpack.c.b16 %v499, %v498
      %v502 = vpack.c.b16 %v500, %v500
      %vm503 = vsmask.f32 256
      %v505 = vshrl.u32 %v501, 16
      %v507 = vrot.slane %v505, 7
      %v508 = vshll.u32 %v501, 16
      %v510 = vor.u32 %v507, %v508
      %v512 = vshrl.u32 %v502, 16
      %v514 = vrot.slane %v512, 7
      %v515 = vshll.u32 %v502, 16
      %v517 = vor.u32 %v514, %v515
      %v518 = vsel %vm503, %v507, %v517
      %vm521 = vcmask 1040384
      %vm522 = vmand %vm521, %vm503
      %v523 = vsel %vm522, 0, %v510
      %v524 = vld [vmem:[%s3] sm:$0xf]
      %v525 = vld [vmem:[%s3 + $0x4] sm:$0xf]
      %v526 = vld [vmem:[%s3 + $0x8] sm:$0xf]
      %v527 = vld [vmem:[%s3 + $0xc] sm:$0xf]
      %v528 = vld [vmem:[%s3 + $0x10] sm:$0xf]
      %v529 = vld [vmem:[%s3 + $0x14] sm:$0xf]
      %v530 = vld [vmem:[%s3 + $0x18] sm:$0xf]
      %v531 = vld [vmem:[%s3 + $0x1c] sm:$0xf]
      %v532 = vld [vmem:[%s3 + $0x20] sm:$0xf]
      %v533 = vld [vmem:[%s3 + $0x24] sm:$0xf]
      %v534 = vld [vmem:[%s3 + $0x28] sm:$0xf]
      %v535 = vld [vmem:[%s3 + $0x2c] sm:$0xf]
      %v536 = vld [vmem:[%s3 + $0x30] sm:$0xf]
      %v537 = vld [vmem:[%s3 + $0x34] sm:$0xf]
      %v538 = vld [vmem:[%s3 + $0x38] sm:$0xf]
      %v539 = vld [vmem:[%s3 + $0x3c] sm:$0xf]
      %s540 = scalar_lea.vmem %s3, 64
      %v541 = vld [vmem:[%s540] sm:$0xf]
      %v542 = vld [vmem:[%s540 + $0x4] sm:$0xf]
      %v543 = vld [vmem:[%s540 + $0x8] sm:$0xf]
      %v544 = vld [vmem:[%s540 + $0xc] sm:$0xf]
      %v545 = vld [vmem:[%s540 + $0x10] sm:$0xf]
      %v546 = vld [vmem:[%s540 + $0x14] sm:$0xf]
      %v547 = vld [vmem:[%s540 + $0x18] sm:$0xf]
      %v548 = vld [vmem:[%s540 + $0x1c] sm:$0xf]
      %v549 = vld [vmem:[%s540 + $0x20] sm:$0xf]
      %v550 = vld [vmem:[%s540 + $0x24] sm:$0xf]
      %v551 = vld [vmem:[%s540 + $0x28] sm:$0xf]
      %v552 = vld [vmem:[%s540 + $0x2c] sm:$0xf]
      %v553 = vld [vmem:[%s540 + $0x30] sm:$0xf]
      %v554 = vld [vmem:[%s540 + $0x34] sm:$0xf]
      %v555 = vld [vmem:[%s540 + $0x38] sm:$0xf]
      %v556 = vld [vmem:[%s540 + $0x3c] sm:$0xf]
      %v560 = vunpack.c.l.b16 %v489
      %v561 = vunpack.c.l.b16 %v490
      %v562 = vunpack.c.l.b16 %v491
      %v563 = vpack.c.b16 %v561, %v560
      %v564 = vpack.c.b16 %v562, %v562
      %v583 = vunpack.c.l.b16 %v541
      %v584 = vunpack.c.l.b16 %v542
      %v585 = vunpack.c.l.b16 %v543
      %v586 = vunpack.c.l.b16 %v544
      %v587 = vunpack.c.l.b16 %v545
      %v588 = vunpack.c.l.b16 %v546
      %v589 = vunpack.c.l.b16 %v547
      %v590 = vunpack.c.l.b16 %v548
      %v591 = vunpack.c.l.b16 %v549
      %v592 = vunpack.c.l.b16 %v550
      %v593 = vunpack.c.l.b16 %v551
      %v594 = vunpack.c.l.b16 %v552
      %v595 = vunpack.c.l.b16 %v553
      %v596 = vunpack.c.l.b16 %v554
      %v597 = vunpack.c.l.b16 %v555
      %v598 = vunpack.c.l.b16 %v556
      %v599 = vpack.c.b16 %v584, %v583
      %v600 = vpack.c.b16 %v586, %v585
      %v601 = vpack.c.b16 %v588, %v587
      %v602 = vpack.c.b16 %v590, %v589
      %v603 = vpack.c.b16 %v592, %v591
      %v604 = vpack.c.b16 %v594, %v593
      %v605 = vpack.c.b16 %v596, %v595
      %v606 = vpack.c.b16 %v598, %v597
      %615 = vmatprep.subr.bf16.mxu0 0
      %616 = vmatpush1.bf16.msra.mxu0 %v606
      %617 = vmatprep.subr.bf16.mxu0 0
      %618 = vmatpush1.bf16.msra.mxu0 %v605
      %619 = vmatprep.subr.bf16.mxu0 0
      %620 = vmatpush1.bf16.msra.mxu0 %v604
      %621 = vmatprep.subr.bf16.mxu0 0
      %622 = vmatpush1.bf16.msra.mxu0 %v603
      %623 = vmatprep.subr.bf16.mxu0 0
      %624 = vmatpush1.bf16.msra.mxu0 %v602
      %625 = vmatprep.subr.bf16.mxu0 0
      %626 = vmatpush1.bf16.msra.mxu0 %v601
      %627 = vmatprep.subr.bf16.mxu0 0
      %628 = vmatpush1.bf16.msra.mxu0 %v600
      %629 = vmatprep.subr.bf16.mxu0 0
      %630 = vmatpush1.bf16.msra.mxu0 %v599
      %631 = vmatprep.subr.bf16.mxu0 0
      %632 = vmatpush2.bf16.msra.mxu0 0
      %633 = vmatprep.subr.bf16.mxu0 0
      %634 = vmatpush2.bf16.msra.mxu0 0
      %635 = vmatprep.subr.bf16.mxu0 0
      %636 = vmatpush2.bf16.msra.mxu0 0
      %637 = vmatprep.subr.bf16.mxu0 0
      %638 = vmatpush2.bf16.msra.mxu0 0
      %639 = vmatprep.subr.bf16.mxu0 0
      %640 = vmatpush2.bf16.msra.mxu0 0
      %641 = vmatprep.subr.bf16.mxu0 0
      %642 = vmatpush2.bf16.msra.mxu0 0
      %643 = vmatprep.subr.bf16.mxu0 0
      %644 = vmatpush2.bf16.msra.mxu0 0
      %645 = vmatprep.subr.bf16.mxu0 0
      %646 = vmatpush2.bf16.msra.mxu0 0
      %647 = vmatprep.mubr.bf16.mxu0 0
      %648 = vmatmul.mubr.bf16.gmra.mxu0 %v563
      %v649 = vpop.f32.mrf.mxu0
      %v650 = vadd.f32 0.0, %v649
      %v651 = vpop.f32.mrf.mxu0
      %v652 = vpop.f32.mrf.mxu0
      %v653 = vadd.f32 0.0, %v652
      %v654 = vpop.f32.mrf.mxu0
      %655 = vmatprep.mubr.bf16.mxu0 0
      %656 = vmatmul.mubr.bf16.gmra.mxu0 %v564
      %v657 = vpop.f32.mrf.mxu0
      %v658 = vadd.f32 0.0, %v657
      %v659 = vpop.f32.mrf.mxu0
      %v660 = vpop.f32.mrf.mxu0
      %v661 = vpop.f32.mrf.mxu0
      %662 = vdwg.mxu0
      %v679 = vunpack.c.l.b16 %v524
      %v680 = vunpack.c.l.b16 %v525
      %v681 = vunpack.c.l.b16 %v526
      %v682 = vunpack.c.l.b16 %v527
      %v683 = vunpack.c.l.b16 %v528
      %v684 = vunpack.c.l.b16 %v529
      %v685 = vunpack.c.l.b16 %v530
      %v686 = vunpack.c.l.b16 %v531
      %v687 = vunpack.c.l.b16 %v532
      %v688 = vunpack.c.l.b16 %v533
      %v689 = vunpack.c.l.b16 %v534
      %v690 = vunpack.c.l.b16 %v535
      %v691 = vunpack.c.l.b16 %v536
      %v692 = vunpack.c.l.b16 %v537
      %v693 = vunpack.c.l.b16 %v538
      %v694 = vunpack.c.l.b16 %v539
      %v695 = vpack.c.b16 %v680, %v679
      %v696 = vpack.c.b16 %v682, %v681
      %v697 = vpack.c.b16 %v684, %v683
      %v698 = vpack.c.b16 %v686, %v685
      %v699 = vpack.c.b16 %v688, %v687
      %v700 = vpack.c.b16 %v690, %v689
      %v701 = vpack.c.b16 %v692, %v691
      %v702 = vpack.c.b16 %v694, %v693
      %711 = vmatprep.subr.bf16.mxu0 0
      %712 = vmatpush1.bf16.msra.mxu0 %v702
      %713 = vmatprep.subr.bf16.mxu0 0
      %714 = vmatpush1.bf16.msra.mxu0 %v701
      %715 = vmatprep.subr.bf16.mxu0 0
      %716 = vmatpush1.bf16.msra.mxu0 %v700
      %717 = vmatprep.subr.bf16.mxu0 0
      %718 = vmatpush1.bf16.msra.mxu0 %v699
      %719 = vmatprep.subr.bf16.mxu0 0
      %720 = vmatpush1.bf16.msra.mxu0 %v698
      %721 = vmatprep.subr.bf16.mxu0 0
      %722 = vmatpush1.bf16.msra.mxu0 %v697
      %723 = vmatprep.subr.bf16.mxu0 0
      %724 = vmatpush1.bf16.msra.mxu0 %v696
      %725 = vmatprep.subr.bf16.mxu0 0
      %726 = vmatpush1.bf16.msra.mxu0 %v695
      %727 = vmatprep.subr.bf16.mxu0 0
      %728 = vmatpush2.bf16.msra.mxu0 0
      %729 = vmatprep.subr.bf16.mxu0 0
      %730 = vmatpush2.bf16.msra.mxu0 0
      %731 = vmatprep.subr.bf16.mxu0 0
      %732 = vmatpush2.bf16.msra.mxu0 0
      %733 = vmatprep.subr.bf16.mxu0 0
      %734 = vmatpush2.bf16.msra.mxu0 0
      %735 = vmatprep.subr.bf16.mxu0 0
      %736 = vmatpush2.bf16.msra.mxu0 0
      %737 = vmatprep.subr.bf16.mxu0 0
      %738 = vmatpush2.bf16.msra.mxu0 0
      %739 = vmatprep.subr.bf16.mxu0 0
      %740 = vmatpush2.bf16.msra.mxu0 0
      %741 = vmatprep.subr.bf16.mxu0 0
      %742 = vmatpush2.bf16.msra.mxu0 0
      %743 = vmatprep.mubr.bf16.mxu0 0
      %744 = vmatmul.mubr.bf16.gmra.mxu0 %v523
      %v745 = vpop.f32.mrf.mxu0
      %v746 = vadd.f32 %v650, %v745
      %v747 = vpop.f32.mrf.mxu0
      %v748 = vpop.f32.mrf.mxu0
      %v749 = vadd.f32 %v653, %v748
      %v750 = vpop.f32.mrf.mxu0
      %751 = vmatprep.mubr.bf16.mxu0 0
      %752 = vmatmul.mubr.bf16.gmra.mxu0 %v518
      %v753 = vpop.f32.mrf.mxu0
      %v754 = vadd.f32 %v658, %v753
      %v755 = vpop.f32.mrf.mxu0
      %v756 = vpop.f32.mrf.mxu0
      %v757 = vpop.f32.mrf.mxu0
      %758 = vdwg.mxu0
      %s759 = scalar_lea.vmem %s3, 128
      %v760 = vld [vmem:[%s759] sm:$0xf]
      %v761 = vld [vmem:[%s759 + $0x4] sm:$0xf]
      %v762 = vld [vmem:[%s759 + $0x8] sm:$0xf]
      %v763 = vld [vmem:[%s759 + $0xc] sm:$0xf]
      %v764 = vld [vmem:[%s759 + $0x10] sm:$0xf]
      %v765 = vld [vmem:[%s759 + $0x14] sm:$0xf]
      %v766 = vld [vmem:[%s759 + $0x18] sm:$0xf]
      %v767 = vld [vmem:[%s759 + $0x1c] sm:$0xf]
      %v768 = vld [vmem:[%s759 + $0x20] sm:$0xf]
      %v769 = vld [vmem:[%s759 + $0x24] sm:$0xf]
      %v770 = vld [vmem:[%s759 + $0x28] sm:$0xf]
      %v771 = vld [vmem:[%s759 + $0x2c] sm:$0xf]
      %v772 = vld [vmem:[%s759 + $0x30] sm:$0xf]
      %v773 = vld [vmem:[%s759 + $0x34] sm:$0xf]
      %v774 = vld [vmem:[%s759 + $0x38] sm:$0xf]
      %v775 = vld [vmem:[%s759 + $0x3c] sm:$0xf]
      %v794 = vunpack.c.l.b16 %v760
      %v795 = vunpack.c.l.b16 %v761
      %v796 = vunpack.c.l.b16 %v762
      %v797 = vunpack.c.l.b16 %v763
      %v798 = vunpack.c.l.b16 %v764
      %v799 = vunpack.c.l.b16 %v765
      %v800 = vunpack.c.l.b16 %v766
      %v801 = vunpack.c.l.b16 %v767
      %v802 = vunpack.c.l.b16 %v768
      %v803 = vunpack.c.l.b16 %v769
      %v804 = vunpack.c.l.b16 %v770
      %v805 = vunpack.c.l.b16 %v771
      %v806 = vunpack.c.l.b16 %v772
      %v807 = vunpack.c.l.b16 %v773
      %v808 = vunpack.c.l.b16 %v774
      %v809 = vunpack.c.l.b16 %v775
      %v810 = vpack.c.b16 %v795, %v794
      %v811 = vpack.c.b16 %v797, %v796
      %v812 = vpack.c.b16 %v799, %v798
      %v813 = vpack.c.b16 %v801, %v800
      %v814 = vpack.c.b16 %v803, %v802
      %v815 = vpack.c.b16 %v805, %v804
      %v816 = vpack.c.b16 %v807, %v806
      %v817 = vpack.c.b16 %v809, %v808
      %826 = vmatprep.subr.bf16.mxu0 0
      %827 = vmatpush1.bf16.msra.mxu0 %v817
      %828 = vmatprep.subr.bf16.mxu0 0
      %829 = vmatpush1.bf16.msra.mxu0 %v816
      %830 = vmatprep.subr.bf16.mxu0 0
      %831 = vmatpush1.bf16.msra.mxu0 %v815
      %832 = vmatprep.subr.bf16.mxu0 0
      %833 = vmatpush1.bf16.msra.mxu0 %v814
      %834 = vmatprep.subr.bf16.mxu0 0
      %835 = vmatpush1.bf16.msra.mxu0 %v813
      %836 = vmatprep.subr.bf16.mxu0 0
      %837 = vmatpush1.bf16.msra.mxu0 %v812
      %838 = vmatprep.subr.bf16.mxu0 0
      %839 = vmatpush1.bf16.msra.mxu0 %v811
      %840 = vmatprep.subr.bf16.mxu0 0
      %841 = vmatpush1.bf16.msra.mxu0 %v810
      %842 = vmatprep.subr.bf16.mxu0 0
      %843 = vmatpush2.bf16.msra.mxu0 0
      %844 = vmatprep.subr.bf16.mxu0 0
      %845 = vmatpush2.bf16.msra.mxu0 0
      %846 = vmatprep.subr.bf16.mxu0 0
      %847 = vmatpush2.bf16.msra.mxu0 0
      %848 = vmatprep.subr.bf16.mxu0 0
      %849 = vmatpush2.bf16.msra.mxu0 0
      %850 = vmatprep.subr.bf16.mxu0 0
      %851 = vmatpush2.bf16.msra.mxu0 0
      %852 = vmatprep.subr.bf16.mxu0 0
      %853 = vmatpush2.bf16.msra.mxu0 0
      %854 = vmatprep.subr.bf16.mxu0 0
      %855 = vmatpush2.bf16.msra.mxu0 0
      %856 = vmatprep.subr.bf16.mxu0 0
      %857 = vmatpush2.bf16.msra.mxu0 0
      %858 = vmatprep.mubr.bf16.mxu0 0
      %859 = vmatmul.mubr.bf16.gmra.mxu0 %v501
      %v860 = vpop.f32.mrf.mxu0
      %v861 = vadd.f32 0.0, %v860
      %v862 = vpop.f32.mrf.mxu0
      %v863 = vpop.f32.mrf.mxu0
      %v864 = vadd.f32 0.0, %v863
      %v865 = vpop.f32.mrf.mxu0
      %866 = vmatprep.mubr.bf16.mxu0 0
      %867 = vmatmul.mubr.bf16.gmra.mxu0 %v502
      %v868 = vpop.f32.mrf.mxu0
      %v869 = vadd.f32 0.0, %v868
      %v870 = vpop.f32.mrf.mxu0
      %v871 = vpop.f32.mrf.mxu0
      %v872 = vpop.f32.mrf.mxu0
      %873 = vdwg.mxu0
      %v874 = vadd.f32 %v746, %v861
      %v875 = vadd.f32 %v749, %v864
      %v876 = vadd.f32 %v754, %v869
      %v877 = vld [vmem:[%s4] sm:$0x1]
      %v879 = vlaneseq
      %v880 = vshrl.u32 %v879, 7
      %v881 = vsub.s32 0, %v880
      %v882 = vrot.slane %v877, %v881
      %v884 = vmul.f32 %v874, %v882
      %v885 = vmul.f32 %v875, %v882
      %v886 = vmul.f32 %v876, %v882
      %v887 = vld [vmem:[%s5] sm:$0x1]
      %v889 = vlaneseq
      %v890 = vshrl.u32 %v889, 7
      %v891 = vsub.s32 0, %v890
      %v892 = vrot.slane %v887, %v891
      %v894 = vadd.f32 %v884, %v892
      %v895 = vadd.f32 %v885, %v892
      %v896 = vadd.f32 %v886, %v892
      %v897 = vmax.f32 %v894, 0.0
      %v898 = vmax.f32 %v895, 0.0
      %v899 = vmax.f32 %v896, 0.0
      %901 = vset.pattern.permute.xlu0 0
      %902 = vperm.xlu0 %901, %v486
      %v903 = vpop.permute.xlu0 %902
      %906 = vset.pattern.permute.xlu0 0
      %907 = vperm.xlu0 %906, %v487
      %v908 = vpop.permute.xlu0 %907
      %911 = vset.pattern.permute.xlu0 0
      %912 = vperm.xlu0 %911, %v488
      %v913 = vpop.permute.xlu0 %912
      %v915 = vmul.f32 %v897, %v903
      %v916 = vmul.f32 %v898, %v908
      %v917 = vmul.f32 %v899, %v913
      %v918 = vld [vmem:[%s6] sm:$0xf]
      %v919 = vld [vmem:[%s6 + $0x4] sm:$0xf]
      %v920 = vld [vmem:[%s6 + $0x8] sm:$0xf]
      %v921 = vld [vmem:[%s6 + $0xc] sm:$0xf]
      %v922 = vld [vmem:[%s6 + $0x10] sm:$0xf]
      %v923 = vld [vmem:[%s6 + $0x14] sm:$0xf]
      %v924 = vld [vmem:[%s6 + $0x18] sm:$0xf]
      %v925 = vld [vmem:[%s6 + $0x1c] sm:$0xf]
      %v926 = vld [vmem:[%s6 + $0x20] sm:$0xf]
      %v927 = vld [vmem:[%s6 + $0x24] sm:$0xf]
      %v928 = vld [vmem:[%s6 + $0x28] sm:$0xf]
      %v929 = vld [vmem:[%s6 + $0x2c] sm:$0xf]
      %v930 = vld [vmem:[%s6 + $0x30] sm:$0xf]
      %v931 = vld [vmem:[%s6 + $0x34] sm:$0xf]
      %v932 = vld [vmem:[%s6 + $0x38] sm:$0xf]
      %v933 = vld [vmem:[%s6 + $0x3c] sm:$0xf]
      %v950 = vunpack.c.l.b16 %v918
      %v951 = vunpack.c.l.b16 %v919
      %v952 = vunpack.c.l.b16 %v920
      %v953 = vunpack.c.l.b16 %v921
      %v954 = vunpack.c.l.b16 %v922
      %v955 = vunpack.c.l.b16 %v923
      %v956 = vunpack.c.l.b16 %v924
      %v957 = vunpack.c.l.b16 %v925
      %v958 = vunpack.c.l.b16 %v926
      %v959 = vunpack.c.l.b16 %v927
      %v960 = vunpack.c.l.b16 %v928
      %v961 = vunpack.c.l.b16 %v929
      %v962 = vunpack.c.l.b16 %v930
      %v963 = vunpack.c.l.b16 %v931
      %v964 = vunpack.c.l.b16 %v932
      %v965 = vunpack.c.l.b16 %v933
      %v966 = vpack.c.b16 %v951, %v950
      %v967 = vpack.c.b16 %v953, %v952
      %v968 = vpack.c.b16 %v955, %v954
      %v969 = vpack.c.b16 %v957, %v956
      %v970 = vpack.c.b16 %v959, %v958
      %v971 = vpack.c.b16 %v961, %v960
      %v972 = vpack.c.b16 %v963, %v962
      %v973 = vpack.c.b16 %v965, %v964
      %982 = vmatprep.subr.bf16.mxu0 0
      %983 = vmatpush1.bf16.msra.mxu0 %v973
      %984 = vmatprep.subr.bf16.mxu0 0
      %985 = vmatpush1.bf16.msra.mxu0 %v972
      %986 = vmatprep.subr.bf16.mxu0 0
      %987 = vmatpush1.bf16.msra.mxu0 %v971
      %988 = vmatprep.subr.bf16.mxu0 0
      %989 = vmatpush1.bf16.msra.mxu0 %v970
      %990 = vmatprep.subr.bf16.mxu0 0
      %991 = vmatpush1.bf16.msra.mxu0 %v969
      %992 = vmatprep.subr.bf16.mxu0 0
      %993 = vmatpush1.bf16.msra.mxu0 %v968
      %994 = vmatprep.subr.bf16.mxu0 0
      %995 = vmatpush1.bf16.msra.mxu0 %v967
      %996 = vmatprep.subr.bf16.mxu0 0
      %997 = vmatpush1.bf16.msra.mxu0 %v966
      %998 = vmatprep.subr.bf16.mxu0 0
      %999 = vmatpush2.bf16.msra.mxu0 0
      %1000 = vmatprep.subr.bf16.mxu0 0
      %1001 = vmatpush2.bf16.msra.mxu0 0
      %1002 = vmatprep.subr.bf16.mxu0 0
      %1003 = vmatpush2.bf16.msra.mxu0 0
      %1004 = vmatprep.subr.bf16.mxu0 0
      %1005 = vmatpush2.bf16.msra.mxu0 0
      %1006 = vmatprep.subr.bf16.mxu0 0
      %1007 = vmatpush2.bf16.msra.mxu0 0
      %1008 = vmatprep.subr.bf16.mxu0 0
      %1009 = vmatpush2.bf16.msra.mxu0 0
      %1010 = vmatprep.subr.bf16.mxu0 0
      %1011 = vmatpush2.bf16.msra.mxu0 0
      %1012 = vmatprep.subr.bf16.mxu0 0
      %1013 = vmatpush2.bf16.msra.mxu0 0
      %1014 = vmatprep.mubr.bf16.mxu0 0
      %1015 = vmatmul.mubr.bf16.gmra.mxu0 %v563
      %v1016 = vpop.f32.mrf.mxu0
      %v1017 = vadd.f32 0.0, %v1016
      %v1018 = vpop.f32.mrf.mxu0
      %v1019 = vpop.f32.mrf.mxu0
      %v1020 = vadd.f32 0.0, %v1019
      %v1021 = vpop.f32.mrf.mxu0
      %1022 = vmatprep.mubr.bf16.mxu0 0
      %1023 = vmatmul.mubr.bf16.gmra.mxu0 %v564
      %v1024 = vpop.f32.mrf.mxu0
      %v1025 = vadd.f32 0.0, %v1024
      %v1026 = vpop.f32.mrf.mxu0
      %v1027 = vpop.f32.mrf.mxu0
      %v1028 = vpop.f32.mrf.mxu0
      %1029 = vdwg.mxu0
      %v1030 = vld [vmem:[%s7] sm:$0x1]
      %v1032 = vlaneseq
      %v1033 = vshrl.u32 %v1032, 7
      %v1034 = vsub.s32 0, %v1033
      %v1035 = vrot.slane %v1030, %v1034
      %v1037 = vmul.f32 %v1017, %v1035
      %v1038 = vmul.f32 %v1020, %v1035
      %v1039 = vmul.f32 %v1025, %v1035
      %v1040 = vld [vmem:[%s8] sm:$0x1]
      %v1042 = vlaneseq
      %v1043 = vshrl.u32 %v1042, 7
      %v1044 = vsub.s32 0, %v1043
      %v1045 = vrot.slane %v1040, %v1044
      %v1047 = vadd.f32 %v1037, %v1045
      %v1048 = vadd.f32 %v1038, %v1045
      %v1049 = vadd.f32 %v1039, %v1045
      %v1050 = vmul.f32 %v1047, %v903
      %v1051 = vmul.f32 %v1048, %v908
      %v1052 = vmul.f32 %v1049, %v913
      %v1053 = vld [vmem:[%s9] sm:$0xf]
      %v1054 = vld [vmem:[%s9 + $0x4] sm:$0xf]
      %v1055 = vld [vmem:[%s9 + $0x8] sm:$0xf]
      %v1056 = vld [vmem:[%s9 + $0xc] sm:$0xf]
      %v1057 = vld [vmem:[%s9 + $0x10] sm:$0xf]
      %v1058 = vld [vmem:[%s9 + $0x14] sm:$0xf]
      %v1059 = vld [vmem:[%s9 + $0x18] sm:$0xf]
      %v1060 = vld [vmem:[%s9 + $0x1c] sm:$0xf]
      %v1061 = vld [vmem:[%s9 + $0x20] sm:$0xf]
      %v1062 = vld [vmem:[%s9 + $0x24] sm:$0xf]
      %v1063 = vld [vmem:[%s9 + $0x28] sm:$0xf]
      %v1064 = vld [vmem:[%s9 + $0x2c] sm:$0xf]
      %v1065 = vld [vmem:[%s9 + $0x30] sm:$0xf]
      %v1066 = vld [vmem:[%s9 + $0x34] sm:$0xf]
      %v1067 = vld [vmem:[%s9 + $0x38] sm:$0xf]
      %v1068 = vld [vmem:[%s9 + $0x3c] sm:$0xf]
      %s1069 = scalar_lea.vmem %s9, 64
      %v1070 = vld [vmem:[%s1069] sm:$0xf]
      %v1071 = vld [vmem:[%s1069 + $0x4] sm:$0xf]
      %v1072 = vld [vmem:[%s1069 + $0x8] sm:$0xf]
      %v1073 = vld [vmem:[%s1069 + $0xc] sm:$0xf]
      %v1074 = vld [vmem:[%s1069 + $0x10] sm:$0xf]
      %v1075 = vld [vmem:[%s1069 + $0x14] sm:$0xf]
      %v1076 = vld [vmem:[%s1069 + $0x18] sm:$0xf]
      %v1077 = vld [vmem:[%s1069 + $0x1c] sm:$0xf]
      %v1078 = vld [vmem:[%s1069 + $0x20] sm:$0xf]
      %v1079 = vld [vmem:[%s1069 + $0x24] sm:$0xf]
      %v1080 = vld [vmem:[%s1069 + $0x28] sm:$0xf]
      %v1081 = vld [vmem:[%s1069 + $0x2c] sm:$0xf]
      %v1082 = vld [vmem:[%s1069 + $0x30] sm:$0xf]
      %v1083 = vld [vmem:[%s1069 + $0x34] sm:$0xf]
      %v1084 = vld [vmem:[%s1069 + $0x38] sm:$0xf]
      %v1085 = vld [vmem:[%s1069 + $0x3c] sm:$0xf]
      %s1086 = scalar_lea.vmem %s9, 128
      %v1087 = vld [vmem:[%s1086] sm:$0xf]
      %v1088 = vld [vmem:[%s1086 + $0x4] sm:$0xf]
      %v1089 = vld [vmem:[%s1086 + $0x8] sm:$0xf]
      %v1090 = vld [vmem:[%s1086 + $0xc] sm:$0xf]
      %v1091 = vld [vmem:[%s1086 + $0x10] sm:$0xf]
      %v1092 = vld [vmem:[%s1086 + $0x14] sm:$0xf]
      %v1093 = vld [vmem:[%s1086 + $0x18] sm:$0xf]
      %v1094 = vld [vmem:[%s1086 + $0x1c] sm:$0xf]
      %v1095 = vld [vmem:[%s1086 + $0x20] sm:$0xf]
      %v1096 = vld [vmem:[%s1086 + $0x24] sm:$0xf]
      %v1097 = vld [vmem:[%s1086 + $0x28] sm:$0xf]
      %v1098 = vld [vmem:[%s1086 + $0x2c] sm:$0xf]
      %v1099 = vld [vmem:[%s1086 + $0x30] sm:$0xf]
      %v1100 = vld [vmem:[%s1086 + $0x34] sm:$0xf]
      %v1101 = vld [vmem:[%s1086 + $0x38] sm:$0xf]
      %v1102 = vld [vmem:[%s1086 + $0x3c] sm:$0xf]
      %v1103 = vld [vmem:[%s10] sm:$0x1]
      %v1104 = vld [vmem:[%s11] sm:$0x1]
      %v1105 = vpack.c.bf16 %v916, %v915
      %v1106 = vpack.c.bf16 %v917, %v917
      %v1108 = vshrl.u32 %v1105, 16
      %v1110 = vrot.slane %v1108, 7
      %v1111 = vshll.u32 %v1105, 16
      %v1113 = vor.u32 %v1110, %v1111
      %v1115 = vshrl.u32 %v1106, 16
      %v1117 = vrot.slane %v1115, 7
      %v1118 = vshll.u32 %v1106, 16
      %v1120 = vor.u32 %v1117, %v1118
      %v1121 = vsel %vm503, %v1110, %v1120
      %v1124 = vsel %vm522, 0, %v1113
      %vm1125 = vsmask.f32 7424
      %v1126 = vrot.slane %v1111, 1
      %v1127 = vor.u32 %v1108, %v1126
      %v1128 = vrot.slane %v1118, 1
      %v1129 = vsel %vm1125, %v1127, %v1128
      %v1130 = vor.u32 %v1115, %v1128
      %vm1133 = vcmask 1043456
      %vm1134 = vsmask.f32 3328
      %vm1135 = vmand %vm1133, %vm1134
      %v1136 = vsel %vm1135, %v1130, 0
      %v1153 = vunpack.c.l.b16 %v1070
      %v1154 = vunpack.c.l.b16 %v1071
      %v1155 = vunpack.c.l.b16 %v1072
      %v1156 = vunpack.c.l.b16 %v1073
      %v1157 = vunpack.c.l.b16 %v1074
      %v1158 = vunpack.c.l.b16 %v1075
      %v1159 = vunpack.c.l.b16 %v1076
      %v1160 = vunpack.c.l.b16 %v1077
      %v1161 = vunpack.c.l.b16 %v1078
      %v1162 = vunpack.c.l.b16 %v1079
      %v1163 = vunpack.c.l.b16 %v1080
      %v1164 = vunpack.c.l.b16 %v1081
      %v1165 = vunpack.c.l.b16 %v1082
      %v1166 = vunpack.c.l.b16 %v1083
      %v1167 = vunpack.c.l.b16 %v1084
      %v1168 = vunpack.c.l.b16 %v1085
      %v1169 = vpack.c.b16 %v1154, %v1153
      %v1170 = vpack.c.b16 %v1156, %v1155
      %v1171 = vpack.c.b16 %v1158, %v1157
      %v1172 = vpack.c.b16 %v1160, %v1159
      %v1173 = vpack.c.b16 %v1162, %v1161
      %v1174 = vpack.c.b16 %v1164, %v1163
      %v1175 = vpack.c.b16 %v1166, %v1165
      %v1176 = vpack.c.b16 %v1168, %v1167
      %1185 = vmatprep.subr.bf16.mxu0 0
      %1186 = vmatpush1.bf16.msra.mxu0 %v1176
      %1187 = vmatprep.subr.bf16.mxu0 0
      %1188 = vmatpush1.bf16.msra.mxu0 %v1175
      %1189 = vmatprep.subr.bf16.mxu0 0
      %1190 = vmatpush1.bf16.msra.mxu0 %v1174
      %1191 = vmatprep.subr.bf16.mxu0 0
      %1192 = vmatpush1.bf16.msra.mxu0 %v1173
      %1193 = vmatprep.subr.bf16.mxu0 0
      %1194 = vmatpush1.bf16.msra.mxu0 %v1172
      %1195 = vmatprep.subr.bf16.mxu0 0
      %1196 = vmatpush1.bf16.msra.mxu0 %v1171
      %1197 = vmatprep.subr.bf16.mxu0 0
      %1198 = vmatpush1.bf16.msra.mxu0 %v1170
      %1199 = vmatprep.subr.bf16.mxu0 0
      %1200 = vmatpush1.bf16.msra.mxu0 %v1169
      %1201 = vmatprep.subr.bf16.mxu0 0
      %1202 = vmatpush2.bf16.msra.mxu0 0
      %1203 = vmatprep.subr.bf16.mxu0 0
      %1204 = vmatpush2.bf16.msra.mxu0 0
      %1205 = vmatprep.subr.bf16.mxu0 0
      %1206 = vmatpush2.bf16.msra.mxu0 0
      %1207 = vmatprep.subr.bf16.mxu0 0
      %1208 = vmatpush2.bf16.msra.mxu0 0
      %1209 = vmatprep.subr.bf16.mxu0 0
      %1210 = vmatpush2.bf16.msra.mxu0 0
      %1211 = vmatprep.subr.bf16.mxu0 0
      %1212 = vmatpush2.bf16.msra.mxu0 0
      %1213 = vmatprep.subr.bf16.mxu0 0
      %1214 = vmatpush2.bf16.msra.mxu0 0
      %1215 = vmatprep.subr.bf16.mxu0 0
      %1216 = vmatpush2.bf16.msra.mxu0 0
      %1217 = vmatprep.mubr.bf16.mxu0 0
      %1218 = vmatmul.mubr.bf16.gmra.mxu0 %v1105
      %v1219 = vpop.f32.mrf.mxu0
      %v1220 = vadd.f32 0.0, %v1219
      %v1221 = vpop.f32.mrf.mxu0
      %v1222 = vpop.f32.mrf.mxu0
      %v1223 = vadd.f32 0.0, %v1222
      %v1224 = vpop.f32.mrf.mxu0
      %1225 = vmatprep.mubr.bf16.mxu0 0
      %1226 = vmatmul.mubr.bf16.gmra.mxu0 %v1106
      %v1227 = vpop.f32.mrf.mxu0
      %v1228 = vadd.f32 0.0, %v1227
      %v1229 = vpop.f32.mrf.mxu0
      %v1230 = vpop.f32.mrf.mxu0
      %v1231 = vpop.f32.mrf.mxu0
      %1232 = vdwg.mxu0
      %v1249 = vunpack.c.l.b16 %v1053
      %v1250 = vunpack.c.l.b16 %v1054
      %v1251 = vunpack.c.l.b16 %v1055
      %v1252 = vunpack.c.l.b16 %v1056
      %v1253 = vunpack.c.l.b16 %v1057
      %v1254 = vunpack.c.l.b16 %v1058
      %v1255 = vunpack.c.l.b16 %v1059
      %v1256 = vunpack.c.l.b16 %v1060
      %v1257 = vunpack.c.l.b16 %v1061
      %v1258 = vunpack.c.l.b16 %v1062
      %v1259 = vunpack.c.l.b16 %v1063
      %v1260 = vunpack.c.l.b16 %v1064
      %v1261 = vunpack.c.l.b16 %v1065
      %v1262 = vunpack.c.l.b16 %v1066
      %v1263 = vunpack.c.l.b16 %v1067
      %v1264 = vunpack.c.l.b16 %v1068
      %v1265 = vpack.c.b16 %v1250, %v1249
      %v1266 = vpack.c.b16 %v1252, %v1251
      %v1267 = vpack.c.b16 %v1254, %v1253
      %v1268 = vpack.c.b16 %v1256, %v1255
      %v1269 = vpack.c.b16 %v1258, %v1257
      %v1270 = vpack.c.b16 %v1260, %v1259
      %v1271 = vpack.c.b16 %v1262, %v1261
      %v1272 = vpack.c.b16 %v1264, %v1263
      %1281 = vmatprep.subr.bf16.mxu0 0
      %1282 = vmatpush1.bf16.msra.mxu0 %v1272
      %1283 = vmatprep.subr.bf16.mxu0 0
      %1284 = vmatpush1.bf16.msra.mxu0 %v1271
      %1285 = vmatprep.subr.bf16.mxu0 0
      %1286 = vmatpush1.bf16.msra.mxu0 %v1270
      %1287 = vmatprep.subr.bf16.mxu0 0
      %1288 = vmatpush1.bf16.msra.mxu0 %v1269
      %1289 = vmatprep.subr.bf16.mxu0 0
      %1290 = vmatpush1.bf16.msra.mxu0 %v1268
      %1291 = vmatprep.subr.bf16.mxu0 0
      %1292 = vmatpush1.bf16.msra.mxu0 %v1267
      %1293 = vmatprep.subr.bf16.mxu0 0
      %1294 = vmatpush1.bf16.msra.mxu0 %v1266
      %1295 = vmatprep.subr.bf16.mxu0 0
      %1296 = vmatpush1.bf16.msra.mxu0 %v1265
      %1297 = vmatprep.subr.bf16.mxu0 0
      %1298 = vmatpush2.bf16.msra.mxu0 0
      %1299 = vmatprep.subr.bf16.mxu0 0
      %1300 = vmatpush2.bf16.msra.mxu0 0
      %1301 = vmatprep.subr.bf16.mxu0 0
      %1302 = vmatpush2.bf16.msra.mxu0 0
      %1303 = vmatprep.subr.bf16.mxu0 0
      %1304 = vmatpush2.bf16.msra.mxu0 0
      %1305 = vmatprep.subr.bf16.mxu0 0
      %1306 = vmatpush2.bf16.msra.mxu0 0
      %1307 = vmatprep.subr.bf16.mxu0 0
      %1308 = vmatpush2.bf16.msra.mxu0 0
      %1309 = vmatprep.subr.bf16.mxu0 0
      %1310 = vmatpush2.bf16.msra.mxu0 0
      %1311 = vmatprep.subr.bf16.mxu0 0
      %1312 = vmatpush2.bf16.msra.mxu0 0
      %1313 = vmatprep.mubr.bf16.mxu0 0
      %1314 = vmatmul.mubr.bf16.gmra.mxu0 %v1124
      %v1315 = vpop.f32.mrf.mxu0
      %v1316 = vadd.f32 %v1220, %v1315
      %v1317 = vpop.f32.mrf.mxu0
      %v1318 = vpop.f32.mrf.mxu0
      %v1319 = vadd.f32 %v1223, %v1318
      %v1320 = vpop.f32.mrf.mxu0
      %1321 = vmatprep.mubr.bf16.mxu0 0
      %1322 = vmatmul.mubr.bf16.gmra.mxu0 %v1121
      %v1323 = vpop.f32.mrf.mxu0
      %v1324 = vadd.f32 %v1228, %v1323
      %v1325 = vpop.f32.mrf.mxu0
      %v1326 = vpop.f32.mrf.mxu0
      %v1327 = vpop.f32.mrf.mxu0
      %1328 = vdwg.mxu0
      %v1345 = vunpack.c.l.b16 %v1087
      %v1346 = vunpack.c.l.b16 %v1088
      %v1347 = vunpack.c.l.b16 %v1089
      %v1348 = vunpack.c.l.b16 %v1090
      %v1349 = vunpack.c.l.b16 %v1091
      %v1350 = vunpack.c.l.b16 %v1092
      %v1351 = vunpack.c.l.b16 %v1093
      %v1352 = vunpack.c.l.b16 %v1094
      %v1353 = vunpack.c.l.b16 %v1095
      %v1354 = vunpack.c.l.b16 %v1096
      %v1355 = vunpack.c.l.b16 %v1097
      %v1356 = vunpack.c.l.b16 %v1098
      %v1357 = vunpack.c.l.b16 %v1099
      %v1358 = vunpack.c.l.b16 %v1100
      %v1359 = vunpack.c.l.b16 %v1101
      %v1360 = vunpack.c.l.b16 %v1102
      %v1361 = vpack.c.b16 %v1346, %v1345
      %v1362 = vpack.c.b16 %v1348, %v1347
      %v1363 = vpack.c.b16 %v1350, %v1349
      %v1364 = vpack.c.b16 %v1352, %v1351
      %v1365 = vpack.c.b16 %v1354, %v1353
      %v1366 = vpack.c.b16 %v1356, %v1355
      %v1367 = vpack.c.b16 %v1358, %v1357
      %v1368 = vpack.c.b16 %v1360, %v1359
      %1377 = vmatprep.subr.bf16.mxu0 0
      %1378 = vmatpush1.bf16.msra.mxu0 %v1368
      %1379 = vmatprep.subr.bf16.mxu0 0
      %1380 = vmatpush1.bf16.msra.mxu0 %v1367
      %1381 = vmatprep.subr.bf16.mxu0 0
      %1382 = vmatpush1.bf16.msra.mxu0 %v1366
      %1383 = vmatprep.subr.bf16.mxu0 0
      %1384 = vmatpush1.bf16.msra.mxu0 %v1365
      %1385 = vmatprep.subr.bf16.mxu0 0
      %1386 = vmatpush1.bf16.msra.mxu0 %v1364
      %1387 = vmatprep.subr.bf16.mxu0 0
      %1388 = vmatpush1.bf16.msra.mxu0 %v1363
      %1389 = vmatprep.subr.bf16.mxu0 0
      %1390 = vmatpush1.bf16.msra.mxu0 %v1362
      %1391 = vmatprep.subr.bf16.mxu0 0
      %1392 = vmatpush1.bf16.msra.mxu0 %v1361
      %1393 = vmatprep.subr.bf16.mxu0 0
      %1394 = vmatpush2.bf16.msra.mxu0 0
      %1395 = vmatprep.subr.bf16.mxu0 0
      %1396 = vmatpush2.bf16.msra.mxu0 0
      %1397 = vmatprep.subr.bf16.mxu0 0
      %1398 = vmatpush2.bf16.msra.mxu0 0
      %1399 = vmatprep.subr.bf16.mxu0 0
      %1400 = vmatpush2.bf16.msra.mxu0 0
      %1401 = vmatprep.subr.bf16.mxu0 0
      %1402 = vmatpush2.bf16.msra.mxu0 0
      %1403 = vmatprep.subr.bf16.mxu0 0
      %1404 = vmatpush2.bf16.msra.mxu0 0
      %1405 = vmatprep.subr.bf16.mxu0 0
      %1406 = vmatpush2.bf16.msra.mxu0 0
      %1407 = vmatprep.subr.bf16.mxu0 0
      %1408 = vmatpush2.bf16.msra.mxu0 0
      %1409 = vmatprep.mubr.bf16.mxu0 0
      %1410 = vmatmul.mubr.bf16.gmra.mxu0 %v1129
      %v1411 = vpop.f32.mrf.mxu0
      %v1412 = vadd.f32 0.0, %v1411
      %v1413 = vpop.f32.mrf.mxu0
      %v1414 = vpop.f32.mrf.mxu0
      %v1415 = vadd.f32 0.0, %v1414
      %v1416 = vpop.f32.mrf.mxu0
      %1417 = vmatprep.mubr.bf16.mxu0 0
      %1418 = vmatmul.mubr.bf16.gmra.mxu0 %v1136
      %v1419 = vpop.f32.mrf.mxu0
      %v1420 = vadd.f32 0.0, %v1419
      %v1421 = vpop.f32.mrf.mxu0
      %v1422 = vpop.f32.mrf.mxu0
      %v1423 = vpop.f32.mrf.mxu0
      %1424 = vdwg.mxu0
      %v1425 = vadd.f32 %v1316, %v1412
      %v1426 = vadd.f32 %v1319, %v1415
      %v1427 = vadd.f32 %v1324, %v1420
      %v1429 = vlaneseq
      %v1430 = vshrl.u32 %v1429, 7
      %v1431 = vsub.s32 0, %v1430
      %v1432 = vrot.slane %v1103, %v1431
      %v1434 = vmul.f32 %v1425, %v1432
      %v1435 = vmul.f32 %v1426, %v1432
      %v1436 = vmul.f32 %v1427, %v1432
      %v1438 = vlaneseq
      %v1439 = vshrl.u32 %v1438, 7
      %v1440 = vsub.s32 0, %v1439
      %v1441 = vrot.slane %v1104, %v1440
      %v1443 = vadd.f32 %v1434, %v1441
      %v1444 = vadd.f32 %v1435, %v1441
      %v1445 = vadd.f32 %v1436, %v1441
      %v1446 = vadd.f32 %v1443, %v1050
      %v1447 = vadd.f32 %v1444, %v1051
      %v1448 = vadd.f32 %v1445, %v1052
      %v1449 = vmul.f32 %v1446, %v903
      %v1450 = vmul.f32 %v1447, %v908
      %v1451 = vmul.f32 %v1448, %v913
      %s1452 = scalar_lea.vmem %s9, 192
      %v1453 = vld [vmem:[%s1452] sm:$0xf]
      %v1454 = vld [vmem:[%s1452 + $0x4] sm:$0xf]
      %v1455 = vld [vmem:[%s1452 + $0x8] sm:$0xf]
      %v1456 = vld [vmem:[%s1452 + $0xc] sm:$0xf]
      %v1457 = vld [vmem:[%s1452 + $0x10] sm:$0xf]
      %v1458 = vld [vmem:[%s1452 + $0x14] sm:$0xf]
      %v1459 = vld [vmem:[%s1452 + $0x18] sm:$0xf]
      %v1460 = vld [vmem:[%s1452 + $0x1c] sm:$0xf]
      %v1461 = vld [vmem:[%s1452 + $0x20] sm:$0xf]
      %v1462 = vld [vmem:[%s1452 + $0x24] sm:$0xf]
      %v1463 = vld [vmem:[%s1452 + $0x28] sm:$0xf]
      %v1464 = vld [vmem:[%s1452 + $0x2c] sm:$0xf]
      %v1465 = vld [vmem:[%s1452 + $0x30] sm:$0xf]
      %v1466 = vld [vmem:[%s1452 + $0x34] sm:$0xf]
      %v1467 = vld [vmem:[%s1452 + $0x38] sm:$0xf]
      %v1468 = vld [vmem:[%s1452 + $0x3c] sm:$0xf]
      %s1469 = scalar_lea.vmem %s9, 256
      %v1470 = vld [vmem:[%s1469] sm:$0xf]
      %v1471 = vld [vmem:[%s1469 + $0x4] sm:$0xf]
      %v1472 = vld [vmem:[%s1469 + $0x8] sm:$0xf]
      %v1473 = vld [vmem:[%s1469 + $0xc] sm:$0xf]
      %v1474 = vld [vmem:[%s1469 + $0x10] sm:$0xf]
      %v1475 = vld [vmem:[%s1469 + $0x14] sm:$0xf]
      %v1476 = vld [vmem:[%s1469 + $0x18] sm:$0xf]
      %v1477 = vld [vmem:[%s1469 + $0x1c] sm:$0xf]
      %v1478 = vld [vmem:[%s1469 + $0x20] sm:$0xf]
      %v1479 = vld [vmem:[%s1469 + $0x24] sm:$0xf]
      %v1480 = vld [vmem:[%s1469 + $0x28] sm:$0xf]
      %v1481 = vld [vmem:[%s1469 + $0x2c] sm:$0xf]
      %v1482 = vld [vmem:[%s1469 + $0x30] sm:$0xf]
      %v1483 = vld [vmem:[%s1469 + $0x34] sm:$0xf]
      %v1484 = vld [vmem:[%s1469 + $0x38] sm:$0xf]
      %v1485 = vld [vmem:[%s1469 + $0x3c] sm:$0xf]
      %s1486 = scalar_lea.vmem %s9, 320
      %v1487 = vld [vmem:[%s1486] sm:$0xf]
      %v1488 = vld [vmem:[%s1486 + $0x4] sm:$0xf]
      %v1489 = vld [vmem:[%s1486 + $0x8] sm:$0xf]
      %v1490 = vld [vmem:[%s1486 + $0xc] sm:$0xf]
      %v1491 = vld [vmem:[%s1486 + $0x10] sm:$0xf]
      %v1492 = vld [vmem:[%s1486 + $0x14] sm:$0xf]
      %v1493 = vld [vmem:[%s1486 + $0x18] sm:$0xf]
      %v1494 = vld [vmem:[%s1486 + $0x1c] sm:$0xf]
      %v1495 = vld [vmem:[%s1486 + $0x20] sm:$0xf]
      %v1496 = vld [vmem:[%s1486 + $0x24] sm:$0xf]
      %v1497 = vld [vmem:[%s1486 + $0x28] sm:$0xf]
      %v1498 = vld [vmem:[%s1486 + $0x2c] sm:$0xf]
      %v1499 = vld [vmem:[%s1486 + $0x30] sm:$0xf]
      %v1500 = vld [vmem:[%s1486 + $0x34] sm:$0xf]
      %v1501 = vld [vmem:[%s1486 + $0x38] sm:$0xf]
      %v1502 = vld [vmem:[%s1486 + $0x3c] sm:$0xf]
      %s1503 = scalar_lea.vmem %s10, 1
      %v1504 = vld [vmem:[%s1503] sm:$0x1]
      %s1505 = scalar_lea.vmem %s11, 1
      %v1506 = vld [vmem:[%s1505] sm:$0x1]
      %v1507 = vpack.c.bf16 %v1450, %v1449
      %v1508 = vpack.c.bf16 %v1451, %v1451
      %v1510 = vshrl.u32 %v1507, 16
      %v1512 = vrot.slane %v1510, 7
      %v1513 = vshll.u32 %v1507, 16
      %v1515 = vor.u32 %v1512, %v1513
      %v1517 = vshrl.u32 %v1508, 16
      %v1519 = vrot.slane %v1517, 7
      %v1520 = vshll.u32 %v1508, 16
      %v1522 = vor.u32 %v1519, %v1520
      %v1523 = vsel %vm503, %v1512, %v1522
      %v1526 = vsel %vm522, 0, %v1515
      %v1527 = vrot.slane %v1513, 1
      %v1528 = vor.u32 %v1510, %v1527
      %v1529 = vrot.slane %v1520, 1
      %v1530 = vsel %vm1125, %v1528, %v1529
      %v1531 = vor.u32 %v1517, %v1529
      %v1534 = vsel %vm1135, %v1531, 0
      %v1551 = vunpack.c.l.b16 %v1470
      %v1552 = vunpack.c.l.b16 %v1471
      %v1553 = vunpack.c.l.b16 %v1472
      %v1554 = vunpack.c.l.b16 %v1473
      %v1555 = vunpack.c.l.b16 %v1474
      %v1556 = vunpack.c.l.b16 %v1475
      %v1557 = vunpack.c.l.b16 %v1476
      %v1558 = vunpack.c.l.b16 %v1477
      %v1559 = vunpack.c.l.b16 %v1478
      %v1560 = vunpack.c.l.b16 %v1479
      %v1561 = vunpack.c.l.b16 %v1480
      %v1562 = vunpack.c.l.b16 %v1481
      %v1563 = vunpack.c.l.b16 %v1482
      %v1564 = vunpack.c.l.b16 %v1483
      %v1565 = vunpack.c.l.b16 %v1484
      %v1566 = vunpack.c.l.b16 %v1485
      %v1567 = vpack.c.b16 %v1552, %v1551
      %v1568 = vpack.c.b16 %v1554, %v1553
      %v1569 = vpack.c.b16 %v1556, %v1555
      %v1570 = vpack.c.b16 %v1558, %v1557
      %v1571 = vpack.c.b16 %v1560, %v1559
      %v1572 = vpack.c.b16 %v1562, %v1561
      %v1573 = vpack.c.b16 %v1564, %v1563
      %v1574 = vpack.c.b16 %v1566, %v1565
      %1583 = vmatprep.subr.bf16.mxu0 0
      %1584 = vmatpush1.bf16.msra.mxu0 %v1574
      %1585 = vmatprep.subr.bf16.mxu0 0
      %1586 = vmatpush1.bf16.msra.mxu0 %v1573
      %1587 = vmatprep.subr.bf16.mxu0 0
      %1588 = vmatpush1.bf16.msra.mxu0 %v1572
      %1589 = vmatprep.subr.bf16.mxu0 0
      %1590 = vmatpush1.bf16.msra.mxu0 %v1571
      %1591 = vmatprep.subr.bf16.mxu0 0
      %1592 = vmatpush1.bf16.msra.mxu0 %v1570
      %1593 = vmatprep.subr.bf16.mxu0 0
      %1594 = vmatpush1.bf16.msra.mxu0 %v1569
      %1595 = vmatprep.subr.bf16.mxu0 0
      %1596 = vmatpush1.bf16.msra.mxu0 %v1568
      %1597 = vmatprep.subr.bf16.mxu0 0
      %1598 = vmatpush1.bf16.msra.mxu0 %v1567
      %1599 = vmatprep.subr.bf16.mxu0 0
      %1600 = vmatpush2.bf16.msra.mxu0 0
      %1601 = vmatprep.subr.bf16.mxu0 0
      %1602 = vmatpush2.bf16.msra.mxu0 0
      %1603 = vmatprep.subr.bf16.mxu0 0
      %1604 = vmatpush2.bf16.msra.mxu0 0
      %1605 = vmatprep.subr.bf16.mxu0 0
      %1606 = vmatpush2.bf16.msra.mxu0 0
      %1607 = vmatprep.subr.bf16.mxu0 0
      %1608 = vmatpush2.bf16.msra.mxu0 0
      %1609 = vmatprep.subr.bf16.mxu0 0
      %1610 = vmatpush2.bf16.msra.mxu0 0
      %1611 = vmatprep.subr.bf16.mxu0 0
      %1612 = vmatpush2.bf16.msra.mxu0 0
      %1613 = vmatprep.subr.bf16.mxu0 0
      %1614 = vmatpush2.bf16.msra.mxu0 0
      %1615 = vmatprep.mubr.bf16.mxu0 0
      %1616 = vmatmul.mubr.bf16.gmra.mxu0 %v1507
      %v1617 = vpop.f32.mrf.mxu0
      %v1618 = vadd.f32 0.0, %v1617
      %v1619 = vpop.f32.mrf.mxu0
      %v1620 = vpop.f32.mrf.mxu0
      %v1621 = vadd.f32 0.0, %v1620
      %v1622 = vpop.f32.mrf.mxu0
      %1623 = vmatprep.mubr.bf16.mxu0 0
      %1624 = vmatmul.mubr.bf16.gmra.mxu0 %v1508
      %v1625 = vpop.f32.mrf.mxu0
      %v1626 = vadd.f32 0.0, %v1625
      %v1627 = vpop.f32.mrf.mxu0
      %v1628 = vpop.f32.mrf.mxu0
      %v1629 = vpop.f32.mrf.mxu0
      %1630 = vdwg.mxu0
      %v1647 = vunpack.c.l.b16 %v1453
      %v1648 = vunpack.c.l.b16 %v1454
      %v1649 = vunpack.c.l.b16 %v1455
      %v1650 = vunpack.c.l.b16 %v1456
      %v1651 = vunpack.c.l.b16 %v1457
      %v1652 = vunpack.c.l.b16 %v1458
      %v1653 = vunpack.c.l.b16 %v1459
      %v1654 = vunpack.c.l.b16 %v1460
      %v1655 = vunpack.c.l.b16 %v1461
      %v1656 = vunpack.c.l.b16 %v1462
      %v1657 = vunpack.c.l.b16 %v1463
      %v1658 = vunpack.c.l.b16 %v1464
      %v1659 = vunpack.c.l.b16 %v1465
      %v1660 = vunpack.c.l.b16 %v1466
      %v1661 = vunpack.c.l.b16 %v1467
      %v1662 = vunpack.c.l.b16 %v1468
      %v1663 = vpack.c.b16 %v1648, %v1647
      %v1664 = vpack.c.b16 %v1650, %v1649
      %v1665 = vpack.c.b16 %v1652, %v1651
      %v1666 = vpack.c.b16 %v1654, %v1653
      %v1667 = vpack.c.b16 %v1656, %v1655
      %v1668 = vpack.c.b16 %v1658, %v1657
      %v1669 = vpack.c.b16 %v1660, %v1659
      %v1670 = vpack.c.b16 %v1662, %v1661
      %1679 = vmatprep.subr.bf16.mxu0 0
      %1680 = vmatpush1.bf16.msra.mxu0 %v1670
      %1681 = vmatprep.subr.bf16.mxu0 0
      %1682 = vmatpush1.bf16.msra.mxu0 %v1669
      %1683 = vmatprep.subr.bf16.mxu0 0
      %1684 = vmatpush1.bf16.msra.mxu0 %v1668
      %1685 = vmatprep.subr.bf16.mxu0 0
      %1686 = vmatpush1.bf16.msra.mxu0 %v1667
      %1687 = vmatprep.subr.bf16.mxu0 0
      %1688 = vmatpush1.bf16.msra.mxu0 %v1666
      %1689 = vmatprep.subr.bf16.mxu0 0
      %1690 = vmatpush1.bf16.msra.mxu0 %v1665
      %1691 = vmatprep.subr.bf16.mxu0 0
      %1692 = vmatpush1.bf16.msra.mxu0 %v1664
      %1693 = vmatprep.subr.bf16.mxu0 0
      %1694 = vmatpush1.bf16.msra.mxu0 %v1663
      %1695 = vmatprep.subr.bf16.mxu0 0
      %1696 = vmatpush2.bf16.msra.mxu0 0
      %1697 = vmatprep.subr.bf16.mxu0 0
      %1698 = vmatpush2.bf16.msra.mxu0 0
      %1699 = vmatprep.subr.bf16.mxu0 0
      %1700 = vmatpush2.bf16.msra.mxu0 0
      %1701 = vmatprep.subr.bf16.mxu0 0
      %1702 = vmatpush2.bf16.msra.mxu0 0
      %1703 = vmatprep.subr.bf16.mxu0 0
      %1704 = vmatpush2.bf16.msra.mxu0 0
      %1705 = vmatprep.subr.bf16.mxu0 0
      %1706 = vmatpush2.bf16.msra.mxu0 0
      %1707 = vmatprep.subr.bf16.mxu0 0
      %1708 = vmatpush2.bf16.msra.mxu0 0
      %1709 = vmatprep.subr.bf16.mxu0 0
      %1710 = vmatpush2.bf16.msra.mxu0 0
      %1711 = vmatprep.mubr.bf16.mxu0 0
      %1712 = vmatmul.mubr.bf16.gmra.mxu0 %v1526
      %v1713 = vpop.f32.mrf.mxu0
      %v1714 = vadd.f32 %v1618, %v1713
      %v1715 = vpop.f32.mrf.mxu0
      %v1716 = vpop.f32.mrf.mxu0
      %v1717 = vadd.f32 %v1621, %v1716
      %v1718 = vpop.f32.mrf.mxu0
      %1719 = vmatprep.mubr.bf16.mxu0 0
      %1720 = vmatmul.mubr.bf16.gmra.mxu0 %v1523
      %v1721 = vpop.f32.mrf.mxu0
      %v1722 = vadd.f32 %v1626, %v1721
      %v1723 = vpop.f32.mrf.mxu0
      %v1724 = vpop.f32.mrf.mxu0
      %v1725 = vpop.f32.mrf.mxu0
      %1726 = vdwg.mxu0
      %v1743 = vunpack.c.l.b16 %v1487
      %v1744 = vunpack.c.l.b16 %v1488
      %v1745 = vunpack.c.l.b16 %v1489
      %v1746 = vunpack.c.l.b16 %v1490
      %v1747 = vunpack.c.l.b16 %v1491
      %v1748 = vunpack.c.l.b16 %v1492
      %v1749 = vunpack.c.l.b16 %v1493
      %v1750 = vunpack.c.l.b16 %v1494
      %v1751 = vunpack.c.l.b16 %v1495
      %v1752 = vunpack.c.l.b16 %v1496
      %v1753 = vunpack.c.l.b16 %v1497
      %v1754 = vunpack.c.l.b16 %v1498
      %v1755 = vunpack.c.l.b16 %v1499
      %v1756 = vunpack.c.l.b16 %v1500
      %v1757 = vunpack.c.l.b16 %v1501
      %v1758 = vunpack.c.l.b16 %v1502
      %v1759 = vpack.c.b16 %v1744, %v1743
      %v1760 = vpack.c.b16 %v1746, %v1745
      %v1761 = vpack.c.b16 %v1748, %v1747
      %v1762 = vpack.c.b16 %v1750, %v1749
      %v1763 = vpack.c.b16 %v1752, %v1751
      %v1764 = vpack.c.b16 %v1754, %v1753
      %v1765 = vpack.c.b16 %v1756, %v1755
      %v1766 = vpack.c.b16 %v1758, %v1757
      %1775 = vmatprep.subr.bf16.mxu0 0
      %1776 = vmatpush1.bf16.msra.mxu0 %v1766
      %1777 = vmatprep.subr.bf16.mxu0 0
      %1778 = vmatpush1.bf16.msra.mxu0 %v1765
      %1779 = vmatprep.subr.bf16.mxu0 0
      %1780 = vmatpush1.bf16.msra.mxu0 %v1764
      %1781 = vmatprep.subr.bf16.mxu0 0
      %1782 = vmatpush1.bf16.msra.mxu0 %v1763
      %1783 = vmatprep.subr.bf16.mxu0 0
      %1784 = vmatpush1.bf16.msra.mxu0 %v1762
      %1785 = vmatprep.subr.bf16.mxu0 0
      %1786 = vmatpush1.bf16.msra.mxu0 %v1761
      %1787 = vmatprep.subr.bf16.mxu0 0
      %1788 = vmatpush1.bf16.msra.mxu0 %v1760
      %1789 = vmatprep.subr.bf16.mxu0 0
      %1790 = vmatpush1.bf16.msra.mxu0 %v1759
      %1791 = vmatprep.subr.bf16.mxu0 0
      %1792 = vmatpush2.bf16.msra.mxu0 0
      %1793 = vmatprep.subr.bf16.mxu0 0
      %1794 = vmatpush2.bf16.msra.mxu0 0
      %1795 = vmatprep.subr.bf16.mxu0 0
      %1796 = vmatpush2.bf16.msra.mxu0 0
      %1797 = vmatprep.subr.bf16.mxu0 0
      %1798 = vmatpush2.bf16.msra.mxu0 0
      %1799 = vmatprep.subr.bf16.mxu0 0
      %1800 = vmatpush2.bf16.msra.mxu0 0
      %1801 = vmatprep.subr.bf16.mxu0 0
      %1802 = vmatpush2.bf16.msra.mxu0 0
      %1803 = vmatprep.subr.bf16.mxu0 0
      %1804 = vmatpush2.bf16.msra.mxu0 0
      %1805 = vmatprep.subr.bf16.mxu0 0
      %1806 = vmatpush2.bf16.msra.mxu0 0
      %1807 = vmatprep.mubr.bf16.mxu0 0
      %1808 = vmatmul.mubr.bf16.gmra.mxu0 %v1530
      %v1809 = vpop.f32.mrf.mxu0
      %v1810 = vadd.f32 0.0, %v1809
      %v1811 = vpop.f32.mrf.mxu0
      %v1812 = vpop.f32.mrf.mxu0
      %v1813 = vadd.f32 0.0, %v1812
      %v1814 = vpop.f32.mrf.mxu0
      %1815 = vmatprep.mubr.bf16.mxu0 0
      %1816 = vmatmul.mubr.bf16.gmra.mxu0 %v1534
      %v1817 = vpop.f32.mrf.mxu0
      %v1818 = vadd.f32 0.0, %v1817
      %v1819 = vpop.f32.mrf.mxu0
      %v1820 = vpop.f32.mrf.mxu0
      %v1821 = vpop.f32.mrf.mxu0
      %1822 = vdwg.mxu0
      %v1823 = vadd.f32 %v1714, %v1810
      %v1824 = vadd.f32 %v1717, %v1813
      %v1825 = vadd.f32 %v1722, %v1818
      %v1827 = vlaneseq
      %v1828 = vshrl.u32 %v1827, 7
      %v1829 = vsub.s32 0, %v1828
      %v1830 = vrot.slane %v1504, %v1829
      %v1832 = vmul.f32 %v1823, %v1830
      %v1833 = vmul.f32 %v1824, %v1830
      %v1834 = vmul.f32 %v1825, %v1830
      %v1836 = vlaneseq
      %v1837 = vshrl.u32 %v1836, 7
      %v1838 = vsub.s32 0, %v1837
      %v1839 = vrot.slane %v1506, %v1838
      %v1841 = vadd.f32 %v1832, %v1839
      %v1842 = vadd.f32 %v1833, %v1839
      %v1843 = vadd.f32 %v1834, %v1839
      %v1844 = vmax.f32 %v1841, 0.0
      %v1845 = vmax.f32 %v1842, 0.0
      %v1846 = vmax.f32 %v1843, 0.0
      %v1847 = vmul.f32 %v1844, %v903
      %v1848 = vmul.f32 %v1845, %v908
      %v1849 = vmul.f32 %v1846, %v913
      %s1850 = scalar_lea.vmem %s9, 384
      %v1851 = vld [vmem:[%s1850] sm:$0xf]
      %v1852 = vld [vmem:[%s1850 + $0x4] sm:$0xf]
      %v1853 = vld [vmem:[%s1850 + $0x8] sm:$0xf]
      %v1854 = vld [vmem:[%s1850 + $0xc] sm:$0xf]
      %v1855 = vld [vmem:[%s1850 + $0x10] sm:$0xf]
      %v1856 = vld [vmem:[%s1850 + $0x14] sm:$0xf]
      %v1857 = vld [vmem:[%s1850 + $0x18] sm:$0xf]
      %v1858 = vld [vmem:[%s1850 + $0x1c] sm:$0xf]
      %v1859 = vld [vmem:[%s1850 + $0x20] sm:$0xf]
      %v1860 = vld [vmem:[%s1850 + $0x24] sm:$0xf]
      %v1861 = vld [vmem:[%s1850 + $0x28] sm:$0xf]
      %v1862 = vld [vmem:[%s1850 + $0x2c] sm:$0xf]
      %v1863 = vld [vmem:[%s1850 + $0x30] sm:$0xf]
      %v1864 = vld [vmem:[%s1850 + $0x34] sm:$0xf]
      %v1865 = vld [vmem:[%s1850 + $0x38] sm:$0xf]
      %v1866 = vld [vmem:[%s1850 + $0x3c] sm:$0xf]
      %s1867 = scalar_lea.vmem %s9, 448
      %v1868 = vld [vmem:[%s1867] sm:$0xf]
      %v1869 = vld [vmem:[%s1867 + $0x4] sm:$0xf]
      %v1870 = vld [vmem:[%s1867 + $0x8] sm:$0xf]
      %v1871 = vld [vmem:[%s1867 + $0xc] sm:$0xf]
      %v1872 = vld [vmem:[%s1867 + $0x10] sm:$0xf]
      %v1873 = vld [vmem:[%s1867 + $0x14] sm:$0xf]
      %v1874 = vld [vmem:[%s1867 + $0x18] sm:$0xf]
      %v1875 = vld [vmem:[%s1867 + $0x1c] sm:$0xf]
      %v1876 = vld [vmem:[%s1867 + $0x20] sm:$0xf]
      %v1877 = vld [vmem:[%s1867 + $0x24] sm:$0xf]
      %v1878 = vld [vmem:[%s1867 + $0x28] sm:$0xf]
      %v1879 = vld [vmem:[%s1867 + $0x2c] sm:$0xf]
      %v1880 = vld [vmem:[%s1867 + $0x30] sm:$0xf]
      %v1881 = vld [vmem:[%s1867 + $0x34] sm:$0xf]
      %v1882 = vld [vmem:[%s1867 + $0x38] sm:$0xf]
      %v1883 = vld [vmem:[%s1867 + $0x3c] sm:$0xf]
      %s1884 = scalar_lea.vmem %s9, 512
      %v1885 = vld [vmem:[%s1884] sm:$0xf]
      %v1886 = vld [vmem:[%s1884 + $0x4] sm:$0xf]
      %v1887 = vld [vmem:[%s1884 + $0x8] sm:$0xf]
      %v1888 = vld [vmem:[%s1884 + $0xc] sm:$0xf]
      %v1889 = vld [vmem:[%s1884 + $0x10] sm:$0xf]
      %v1890 = vld [vmem:[%s1884 + $0x14] sm:$0xf]
      %v1891 = vld [vmem:[%s1884 + $0x18] sm:$0xf]
      %v1892 = vld [vmem:[%s1884 + $0x1c] sm:$0xf]
      %v1893 = vld [vmem:[%s1884 + $0x20] sm:$0xf]
      %v1894 = vld [vmem:[%s1884 + $0x24] sm:$0xf]
      %v1895 = vld [vmem:[%s1884 + $0x28] sm:$0xf]
      %v1896 = vld [vmem:[%s1884 + $0x2c] sm:$0xf]
      %v1897 = vld [vmem:[%s1884 + $0x30] sm:$0xf]
      %v1898 = vld [vmem:[%s1884 + $0x34] sm:$0xf]
      %v1899 = vld [vmem:[%s1884 + $0x38] sm:$0xf]
      %v1900 = vld [vmem:[%s1884 + $0x3c] sm:$0xf]
      %s1901 = scalar_lea.vmem %s10, 2
      %v1902 = vld [vmem:[%s1901] sm:$0x1]
      %s1903 = scalar_lea.vmem %s11, 2
      %v1904 = vld [vmem:[%s1903] sm:$0x1]
      %v1905 = vpack.c.bf16 %v1848, %v1847
      %v1906 = vpack.c.bf16 %v1849, %v1849
      %v1908 = vshrl.u32 %v1905, 16
      %v1910 = vrot.slane %v1908, 7
      %v1911 = vshll.u32 %v1905, 16
      %v1913 = vor.u32 %v1910, %v1911
      %v1915 = vshrl.u32 %v1906, 16
      %v1917 = vrot.slane %v1915, 7
      %v1918 = vshll.u32 %v1906, 16
      %v1920 = vor.u32 %v1917, %v1918
      %v1921 = vsel %vm503, %v1910, %v1920
      %v1924 = vsel %vm522, 0, %v1913
      %v1925 = vrot.slane %v1911, 1
      %v1926 = vor.u32 %v1908, %v1925
      %v1927 = vrot.slane %v1918, 1
      %v1928 = vsel %vm1125, %v1926, %v1927
      %v1929 = vor.u32 %v1915, %v1927
      %v1932 = vsel %vm1135, %v1929, 0
      %v1949 = vunpack.c.l.b16 %v1868
      %v1950 = vunpack.c.l.b16 %v1869
      %v1951 = vunpack.c.l.b16 %v1870
      %v1952 = vunpack.c.l.b16 %v1871
      %v1953 = vunpack.c.l.b16 %v1872
      %v1954 = vunpack.c.l.b16 %v1873
      %v1955 = vunpack.c.l.b16 %v1874
      %v1956 = vunpack.c.l.b16 %v1875
      %v1957 = vunpack.c.l.b16 %v1876
      %v1958 = vunpack.c.l.b16 %v1877
      %v1959 = vunpack.c.l.b16 %v1878
      %v1960 = vunpack.c.l.b16 %v1879
      %v1961 = vunpack.c.l.b16 %v1880
      %v1962 = vunpack.c.l.b16 %v1881
      %v1963 = vunpack.c.l.b16 %v1882
      %v1964 = vunpack.c.l.b16 %v1883
      %v1965 = vpack.c.b16 %v1950, %v1949
      %v1966 = vpack.c.b16 %v1952, %v1951
      %v1967 = vpack.c.b16 %v1954, %v1953
      %v1968 = vpack.c.b16 %v1956, %v1955
      %v1969 = vpack.c.b16 %v1958, %v1957
      %v1970 = vpack.c.b16 %v1960, %v1959
      %v1971 = vpack.c.b16 %v1962, %v1961
      %v1972 = vpack.c.b16 %v1964, %v1963
      %1981 = vmatprep.subr.bf16.mxu0 0
      %1982 = vmatpush1.bf16.msra.mxu0 %v1972
      %1983 = vmatprep.subr.bf16.mxu0 0
      %1984 = vmatpush1.bf16.msra.mxu0 %v1971
      %1985 = vmatprep.subr.bf16.mxu0 0
      %1986 = vmatpush1.bf16.msra.mxu0 %v1970
      %1987 = vmatprep.subr.bf16.mxu0 0
      %1988 = vmatpush1.bf16.msra.mxu0 %v1969
      %1989 = vmatprep.subr.bf16.mxu0 0
      %1990 = vmatpush1.bf16.msra.mxu0 %v1968
      %1991 = vmatprep.subr.bf16.mxu0 0
      %1992 = vmatpush1.bf16.msra.mxu0 %v1967
      %1993 = vmatprep.subr.bf16.mxu0 0
      %1994 = vmatpush1.bf16.msra.mxu0 %v1966
      %1995 = vmatprep.subr.bf16.mxu0 0
      %1996 = vmatpush1.bf16.msra.mxu0 %v1965
      %1997 = vmatprep.subr.bf16.mxu0 0
      %1998 = vmatpush2.bf16.msra.mxu0 0
      %1999 = vmatprep.subr.bf16.mxu0 0
      %2000 = vmatpush2.bf16.msra.mxu0 0
      %2001 = vmatprep.subr.bf16.mxu0 0
      %2002 = vmatpush2.bf16.msra.mxu0 0
      %2003 = vmatprep.subr.bf16.mxu0 0
      %2004 = vmatpush2.bf16.msra.mxu0 0
      %2005 = vmatprep.subr.bf16.mxu0 0
      %2006 = vmatpush2.bf16.msra.mxu0 0
      %2007 = vmatprep.subr.bf16.mxu0 0
      %2008 = vmatpush2.bf16.msra.mxu0 0
      %2009 = vmatprep.subr.bf16.mxu0 0
      %2010 = vmatpush2.bf16.msra.mxu0 0
      %2011 = vmatprep.subr.bf16.mxu0 0
      %2012 = vmatpush2.bf16.msra.mxu0 0
      %2013 = vmatprep.mubr.bf16.mxu0 0
      %2014 = vmatmul.mubr.bf16.gmra.mxu0 %v1905
      %v2015 = vpop.f32.mrf.mxu0
      %v2016 = vadd.f32 0.0, %v2015
      %v2017 = vpop.f32.mrf.mxu0
      %v2018 = vpop.f32.mrf.mxu0
      %v2019 = vadd.f32 0.0, %v2018
      %v2020 = vpop.f32.mrf.mxu0
      %2021 = vmatprep.mubr.bf16.mxu0 0
      %2022 = vmatmul.mubr.bf16.gmra.mxu0 %v1906
      %v2023 = vpop.f32.mrf.mxu0
      %v2024 = vadd.f32 0.0, %v2023
      %v2025 = vpop.f32.mrf.mxu0
      %v2026 = vpop.f32.mrf.mxu0
      %v2027 = vpop.f32.mrf.mxu0
      %2028 = vdwg.mxu0
      %v2045 = vunpack.c.l.b16 %v1851
      %v2046 = vunpack.c.l.b16 %v1852
      %v2047 = vunpack.c.l.b16 %v1853
      %v2048 = vunpack.c.l.b16 %v1854
      %v2049 = vunpack.c.l.b16 %v1855
      %v2050 = vunpack.c.l.b16 %v1856
      %v2051 = vunpack.c.l.b16 %v1857
      %v2052 = vunpack.c.l.b16 %v1858
      %v2053 = vunpack.c.l.b16 %v1859
      %v2054 = vunpack.c.l.b16 %v1860
      %v2055 = vunpack.c.l.b16 %v1861
      %v2056 = vunpack.c.l.b16 %v1862
      %v2057 = vunpack.c.l.b16 %v1863
      %v2058 = vunpack.c.l.b16 %v1864
      %v2059 = vunpack.c.l.b16 %v1865
      %v2060 = vunpack.c.l.b16 %v1866
      %v2061 = vpack.c.b16 %v2046, %v2045
      %v2062 = vpack.c.b16 %v2048, %v2047
      %v2063 = vpack.c.b16 %v2050, %v2049
      %v2064 = vpack.c.b16 %v2052, %v2051
      %v2065 = vpack.c.b16 %v2054, %v2053
      %v2066 = vpack.c.b16 %v2056, %v2055
      %v2067 = vpack.c.b16 %v2058, %v2057
      %v2068 = vpack.c.b16 %v2060, %v2059
      %2077 = vmatprep.subr.bf16.mxu0 0
      %2078 = vmatpush1.bf16.msra.mxu0 %v2068
      %2079 = vmatprep.subr.bf16.mxu0 0
      %2080 = vmatpush1.bf16.msra.mxu0 %v2067
      %2081 = vmatprep.subr.bf16.mxu0 0
      %2082 = vmatpush1.bf16.msra.mxu0 %v2066
      %2083 = vmatprep.subr.bf16.mxu0 0
      %2084 = vmatpush1.bf16.msra.mxu0 %v2065
      %2085 = vmatprep.subr.bf16.mxu0 0
      %2086 = vmatpush1.bf16.msra.mxu0 %v2064
      %2087 = vmatprep.subr.bf16.mxu0 0
      %2088 = vmatpush1.bf16.msra.mxu0 %v2063
      %2089 = vmatprep.subr.bf16.mxu0 0
      %2090 = vmatpush1.bf16.msra.mxu0 %v2062
      %2091 = vmatprep.subr.bf16.mxu0 0
      %2092 = vmatpush1.bf16.msra.mxu0 %v2061
      %2093 = vmatprep.subr.bf16.mxu0 0
      %2094 = vmatpush2.bf16.msra.mxu0 0
      %2095 = vmatprep.subr.bf16.mxu0 0
      %2096 = vmatpush2.bf16.msra.mxu0 0
      %2097 = vmatprep.subr.bf16.mxu0 0
      %2098 = vmatpush2.bf16.msra.mxu0 0
      %2099 = vmatprep.subr.bf16.mxu0 0
      %2100 = vmatpush2.bf16.msra.mxu0 0
      %2101 = vmatprep.subr.bf16.mxu0 0
      %2102 = vmatpush2.bf16.msra.mxu0 0
      %2103 = vmatprep.subr.bf16.mxu0 0
      %2104 = vmatpush2.bf16.msra.mxu0 0
      %2105 = vmatprep.subr.bf16.mxu0 0
      %2106 = vmatpush2.bf16.msra.mxu0 0
      %2107 = vmatprep.subr.bf16.mxu0 0
      %2108 = vmatpush2.bf16.msra.mxu0 0
      %2109 = vmatprep.mubr.bf16.mxu0 0
      %2110 = vmatmul.mubr.bf16.gmra.mxu0 %v1924
      %v2111 = vpop.f32.mrf.mxu0
      %v2112 = vadd.f32 %v2016, %v2111
      %v2113 = vpop.f32.mrf.mxu0
      %v2114 = vpop.f32.mrf.mxu0
      %v2115 = vadd.f32 %v2019, %v2114
      %v2116 = vpop.f32.mrf.mxu0
      %2117 = vmatprep.mubr.bf16.mxu0 0
      %2118 = vmatmul.mubr.bf16.gmra.mxu0 %v1921
      %v2119 = vpop.f32.mrf.mxu0
      %v2120 = vadd.f32 %v2024, %v2119
      %v2121 = vpop.f32.mrf.mxu0
      %v2122 = vpop.f32.mrf.mxu0
      %v2123 = vpop.f32.mrf.mxu0
      %2124 = vdwg.mxu0
      %v2141 = vunpack.c.l.b16 %v1885
      %v2142 = vunpack.c.l.b16 %v1886
      %v2143 = vunpack.c.l.b16 %v1887
      %v2144 = vunpack.c.l.b16 %v1888
      %v2145 = vunpack.c.l.b16 %v1889
      %v2146 = vunpack.c.l.b16 %v1890
      %v2147 = vunpack.c.l.b16 %v1891
      %v2148 = vunpack.c.l.b16 %v1892
      %v2149 = vunpack.c.l.b16 %v1893
      %v2150 = vunpack.c.l.b16 %v1894
      %v2151 = vunpack.c.l.b16 %v1895
      %v2152 = vunpack.c.l.b16 %v1896
      %v2153 = vunpack.c.l.b16 %v1897
      %v2154 = vunpack.c.l.b16 %v1898
      %v2155 = vunpack.c.l.b16 %v1899
      %v2156 = vunpack.c.l.b16 %v1900
      %v2157 = vpack.c.b16 %v2142, %v2141
      %v2158 = vpack.c.b16 %v2144, %v2143
      %v2159 = vpack.c.b16 %v2146, %v2145
      %v2160 = vpack.c.b16 %v2148, %v2147
      %v2161 = vpack.c.b16 %v2150, %v2149
      %v2162 = vpack.c.b16 %v2152, %v2151
      %v2163 = vpack.c.b16 %v2154, %v2153
      %v2164 = vpack.c.b16 %v2156, %v2155
      %2173 = vmatprep.subr.bf16.mxu0 0
      %2174 = vmatpush1.bf16.msra.mxu0 %v2164
      %2175 = vmatprep.subr.bf16.mxu0 0
      %2176 = vmatpush1.bf16.msra.mxu0 %v2163
      %2177 = vmatprep.subr.bf16.mxu0 0
      %2178 = vmatpush1.bf16.msra.mxu0 %v2162
      %2179 = vmatprep.subr.bf16.mxu0 0
      %2180 = vmatpush1.bf16.msra.mxu0 %v2161
      %2181 = vmatprep.subr.bf16.mxu0 0
      %2182 = vmatpush1.bf16.msra.mxu0 %v2160
      %2183 = vmatprep.subr.bf16.mxu0 0
      %2184 = vmatpush1.bf16.msra.mxu0 %v2159
      %2185 = vmatprep.subr.bf16.mxu0 0
      %2186 = vmatpush1.bf16.msra.mxu0 %v2158
      %2187 = vmatprep.subr.bf16.mxu0 0
      %2188 = vmatpush1.bf16.msra.mxu0 %v2157
      %2189 = vmatprep.subr.bf16.mxu0 0
      %2190 = vmatpush2.bf16.msra.mxu0 0
      %2191 = vmatprep.subr.bf16.mxu0 0
      %2192 = vmatpush2.bf16.msra.mxu0 0
      %2193 = vmatprep.subr.bf16.mxu0 0
      %2194 = vmatpush2.bf16.msra.mxu0 0
      %2195 = vmatprep.subr.bf16.mxu0 0
      %2196 = vmatpush2.bf16.msra.mxu0 0
      %2197 = vmatprep.subr.bf16.mxu0 0
      %2198 = vmatpush2.bf16.msra.mxu0 0
      %2199 = vmatprep.subr.bf16.mxu0 0
      %2200 = vmatpush2.bf16.msra.mxu0 0
      %2201 = vmatprep.subr.bf16.mxu0 0
      %2202 = vmatpush2.bf16.msra.mxu0 0
      %2203 = vmatprep.subr.bf16.mxu0 0
      %2204 = vmatpush2.bf16.msra.mxu0 0
      %2205 = vmatprep.mubr.bf16.mxu0 0
      %2206 = vmatmul.mubr.bf16.gmra.mxu0 %v1928
      %v2207 = vpop.f32.mrf.mxu0
      %v2208 = vadd.f32 0.0, %v2207
      %v2209 = vpop.f32.mrf.mxu0
      %v2210 = vpop.f32.mrf.mxu0
      %v2211 = vadd.f32 0.0, %v2210
      %v2212 = vpop.f32.mrf.mxu0
      %2213 = vmatprep.mubr.bf16.mxu0 0
      %2214 = vmatmul.mubr.bf16.gmra.mxu0 %v1932
      %v2215 = vpop.f32.mrf.mxu0
      %v2216 = vadd.f32 0.0, %v2215
      %v2217 = vpop.f32.mrf.mxu0
      %v2218 = vpop.f32.mrf.mxu0
      %v2219 = vpop.f32.mrf.mxu0
      %2220 = vdwg.mxu0
      %v2221 = vadd.f32 %v2112, %v2208
      %v2222 = vadd.f32 %v2115, %v2211
      %v2223 = vadd.f32 %v2120, %v2216
      %v2225 = vlaneseq
      %v2226 = vshrl.u32 %v2225, 7
      %v2227 = vsub.s32 0, %v2226
      %v2228 = vrot.slane %v1902, %v2227
      %v2230 = vmul.f32 %v2221, %v2228
      %v2231 = vmul.f32 %v2222, %v2228
      %v2232 = vmul.f32 %v2223, %v2228
      %v2234 = vlaneseq
      %v2235 = vshrl.u32 %v2234, 7
      %v2236 = vsub.s32 0, %v2235
      %v2237 = vrot.slane %v1904, %v2236
      %v2239 = vadd.f32 %v2230, %v2237
      %v2240 = vadd.f32 %v2231, %v2237
      %v2241 = vadd.f32 %v2232, %v2237
      %v2242 = vadd.f32 %v2239, %v1449
      %v2243 = vadd.f32 %v2240, %v1450
      %v2244 = vadd.f32 %v2241, %v1451
      %v2245 = vmul.f32 %v2242, %v903
      %v2246 = vmul.f32 %v2243, %v908
      %v2247 = vmul.f32 %v2244, %v913
      %v2248 = vrot.slane %v2245, 4
      %v2249 = vadd.f32 %v2245, %v2248
      %v2250 = vrot.slane %v2249, 2
      %v2251 = vadd.f32 %v2249, %v2250
      %v2252 = vrot.slane %v2251, 1
      %v2253 = vadd.f32 %v2251, %v2252
      %v2254 = vrot.slane %v2246, 4
      %v2255 = vadd.f32 %v2246, %v2254
      %v2256 = vrot.slane %v2255, 2
      %v2257 = vadd.f32 %v2255, %v2256
      %v2258 = vrot.slane %v2257, 1
      %v2259 = vadd.f32 %v2257, %v2258
      %v2260 = vrot.slane %v2247, 4
      %v2261 = vadd.f32 %v2247, %v2260
      %v2262 = vrot.slane %v2261, 2
      %v2263 = vadd.f32 %v2261, %v2262
      %v2264 = vrot.slane %v2263, 1
      %v2265 = vadd.f32 %v2263, %v2264
      %vm2266 = vcmask 1040384
      %v2267 = vsel %vm2266, %v2253, %v2259
      %vm2268 = vcmask 1041408
      %v2269 = vsel %vm2268, %v2267, %v2265
      %v2270 = vld [vmem:[%s12] sm:$0xff]
      %v2271 = vld [vmem:[%s12 + $0x8] sm:$0xff]
      %v2272 = vld [vmem:[%s12 + $0x10] sm:$0xff]
      %v2273 = vld [vmem:[%s12 + $0x18] sm:$0xff]
      %v2274 = vld [vmem:[%s12 + $0x20] sm:$0xff]
      %v2275 = vld [vmem:[%s12 + $0x28] sm:$0xff]
      %v2276 = vld [vmem:[%s12 + $0x30] sm:$0xff]
      %v2277 = vld [vmem:[%s12 + $0x38] sm:$0xff]
      %v2278 = vld [vmem:[%s12 + $0x40] sm:$0xff]
      %v2279 = vld [vmem:[%s12 + $0x48] sm:$0xff]
      %v2280 = vld [vmem:[%s12 + $0x50] sm:$0xff]
      %v2281 = vld [vmem:[%s12 + $0x58] sm:$0xff]
      %v2282 = vld [vmem:[%s12 + $0x60] sm:$0xff]
      %v2283 = vld [vmem:[%s12 + $0x68] sm:$0xff]
      %v2284 = vld [vmem:[%s12 + $0x70] sm:$0xff]
      %v2285 = vld [vmem:[%s12 + $0x78] sm:$0xff]
      %2286 = vmatprep.subr.mxu0 0.0
      %2287 = vmatpush1.msra.mxu0 %v2285
      %2288 = vmatprep.subr.mxu0 0.0
      %2289 = vmatpush1.msra.mxu0 %v2284
      %2290 = vmatprep.subr.mxu0 0.0
      %2291 = vmatpush1.msra.mxu0 %v2283
      %2292 = vmatprep.subr.mxu0 0.0
      %2293 = vmatpush1.msra.mxu0 %v2282
      %2294 = vmatprep.subr.mxu0 0.0
      %2295 = vmatpush1.msra.mxu0 %v2281
      %2296 = vmatprep.subr.mxu0 0.0
      %2297 = vmatpush1.msra.mxu0 %v2280
      %2298 = vmatprep.subr.mxu0 0.0
      %2299 = vmatpush1.msra.mxu0 %v2279
      %2300 = vmatprep.subr.mxu0 0.0
      %2301 = vmatpush1.msra.mxu0 %v2278
      %2302 = vmatprep.subr.mxu0 0.0
      %2303 = vmatpush1.msra.mxu0 %v2277
      %2304 = vmatprep.subr.mxu0 0.0
      %2305 = vmatpush1.msra.mxu0 %v2276
      %2306 = vmatprep.subr.mxu0 0.0
      %2307 = vmatpush1.msra.mxu0 %v2275
      %2308 = vmatprep.subr.mxu0 0.0
      %2309 = vmatpush1.msra.mxu0 %v2274
      %2310 = vmatprep.subr.mxu0 0.0
      %2311 = vmatpush1.msra.mxu0 %v2273
      %2312 = vmatprep.subr.mxu0 0.0
      %2313 = vmatpush1.msra.mxu0 %v2272
      %2314 = vmatprep.subr.mxu0 0.0
      %2315 = vmatpush1.msra.mxu0 %v2271
      %2316 = vmatprep.subr.mxu0 0.0
      %2317 = vmatpush1.msra.mxu0 %v2270
      %2318 = vmatprep.subr.mxu0 0.0
      %2319 = vmatpush2.msra.mxu0 0.0
      %2320 = vmatprep.subr.mxu0 0.0
      %2321 = vmatpush2.msra.mxu0 0.0
      %2322 = vmatprep.subr.mxu0 0.0
      %2323 = vmatpush2.msra.mxu0 0.0
      %2324 = vmatprep.subr.mxu0 0.0
      %2325 = vmatpush2.msra.mxu0 0.0
      %2326 = vmatprep.subr.mxu0 0.0
      %2327 = vmatpush2.msra.mxu0 0.0
      %2328 = vmatprep.subr.mxu0 0.0
      %2329 = vmatpush2.msra.mxu0 0.0
      %2330 = vmatprep.subr.mxu0 0.0
      %2331 = vmatpush2.msra.mxu0 0.0
      %2332 = vmatprep.subr.mxu0 0.0
      %2333 = vmatpush2.msra.mxu0 0.0
      %2334 = vmatprep.subr.mxu0 0.0
      %2335 = vmatpush2.msra.mxu0 0.0
      %2336 = vmatprep.subr.mxu0 0.0
      %2337 = vmatpush2.msra.mxu0 0.0
      %2338 = vmatprep.subr.mxu0 0.0
      %2339 = vmatpush2.msra.mxu0 0.0
      %2340 = vmatprep.subr.mxu0 0.0
      %2341 = vmatpush2.msra.mxu0 0.0
      %2342 = vmatprep.subr.mxu0 0.0
      %2343 = vmatpush2.msra.mxu0 0.0
      %2344 = vmatprep.subr.mxu0 0.0
      %2345 = vmatpush2.msra.mxu0 0.0
      %2346 = vmatprep.subr.mxu0 0.0
      %2347 = vmatpush2.msra.mxu0 0.0
      %2348 = vmatprep.subr.mxu0 0.0
      %2349 = vmatpush2.msra.mxu0 0.0
      %2350 = vmatprep.mubr.f32.mxu0 0.0
      %2351 = vmatmul.mubr.f32.gmra.mxu0 %v2269
      %v2352 = vpop.f32.mrf.mxu0
      %v2353 = vadd.f32 0.0, %v2352
      %v2354 = vpop.f32.mrf.mxu0
      %2355 = vdwg.mxu0
      %vm2356 = vcmask 256000
      %2357 = vst.msk [vmem:[%s484] sm:$0x7] %vm2356, %v2353
      %p2358 = scmp.lt.s32.totalorder %s24, 1
      %s2359 = scalar_select %p2358, %s24, 1
      %s2360 = smul.addr %s2359, 4
      %s2361 = scalar_lea.vmem %s13, %s2360
      // Predicated region
      $region73: #{model_forward.4} parent=71 // pred_check
        %p2362 = pneg %p330
      $region74: #{model_forward.4} parent=71 // pred_check_branch
        %2364 = sbr.rel (%p2362) target = $region76
      $region75: #{model_forward.4} parent=71 // pred_region
        _
      $region76: #{model_forward.4} parent=71 // pred_fallthru
        _
    $region72: #{model_forward.4} parent=5 // pred_fallthru
      _
    %p2365 = scmp.le.s32.totalorder 2, %s19
    // Predicated region
    $region77: #{model_forward.4} parent=5 // pred_check
      %p2366 = pneg %p2365
    $region78: #{model_forward.4} parent=5 // pred_check_branch
      %2368 = sbr.rel (%p2366) target = $region80
    $region79: #{model_forward.4} parent=5 // pred_region
      %s2369 = ssub.s32 %s19, 2
      // Predicated region
      $region81: #{model_forward.4} parent=79 // pred_check
        %p2370 = pneg %p336
      $region82: #{model_forward.4} parent=79 // pred_check_branch
        %2372 = sbr.rel (%p2370) target = $region84
      $region83: #{model_forward.4} parent=79 // pred_region
        %p2373 = scmp.lt.s32.totalorder %s25, 1
        %s2374 = scalar_select %p2373, %s25, 1
        %s2375 = smul.addr %s2374, 4
        %s2376 = scalar_lea.vmem %s13, %s2375
      $region84: #{model_forward.4} parent=79 // pred_fallthru
        _
    $region80: #{model_forward.4} parent=5 // pred_fallthru
      _
  $region6: #{model_forward.4} parent=0 // loop_footer
    %s23 = sadd.s32 1, %s19
  $region7: #{model_forward.4} parent=0 // loop_footer_branch
    %18 = sbr.rel target = $region3
  $region8: #{model_forward.4} parent=0 // loop_exit
    _

// kernel: model_forward.5
$region0: #{model_forward.5}
  #allocation0 [shape = 'u32[]', space=smem, size = 0x4, offset = 0x4, fixed_abs, tag = 'smem constant byte address 0x4 - core index']
  #allocation1 [shape = 'u32[144,128]{1,0:T(1,128)}', space=vmem, size = 0x12000, scoped, tag = 'internal scratch']
  #allocation2 [shape = 'f32[1,1]{1,0:T(1,128)S(1)}', space=vmem, size = 0x200, scoped, tag = 'scoped memory for model_forward.5']
  %s0 = inlined_call_operand.vmem [shape: f32[6,44], index: 0, kind: input, shape index: {}]
  %s1 = inlined_call_operand.vmem [shape: f32[44,1024], index: 1, kind: input, shape index: {}]
  %s2 = inlined_call_operand.vmem [shape: f32[1,1024], index: 2, kind: input, shape index: {}]
  %s3 = inlined_call_operand.vmem [shape: f32[2,6], index: 3, kind: input, shape index: {}]
  %s4 = inlined_call_operand.vmem [shape: f32[1024,1], index: 4, kind: input, shape index: {}]
  %s5 = inlined_call_operand.<no memory space> [shape: f32[1,1], index: 5, kind: input, shape index: {}]
  %s6 = inlined_call_operand.vmem [shape: f32[2,1], index: 6, kind: output, shape index: {}]
  %s7 = sld [smem:[#allocation0]]
  $region34: #{model_forward.5} parent=0
    _
  %s9 = ssub.s32 1, %s7
  %s10 = scalar_select 0, %s9, %s7
  %v11 = vstv %s5
  %12 = vst [vmem:[#allocation2] sm:$0x1] %v11
  // Predicated region
  $region2: #{model_forward.5} parent=0 // pred_check
    _
  $region3: #{model_forward.5} parent=0 // pred_check_branch
    %14 = sbr.rel (0) target = $region5
  $region4: #{model_forward.5} parent=0 // pred_region
    _
  $region5: #{model_forward.5} parent=0 // pred_fallthru
    _
  // Predicated region
  $region6: #{model_forward.5} parent=0 // pred_check
    _
  $region7: #{model_forward.5} parent=0 // pred_check_branch
    %16 = sbr.rel (0) target = $region9
  $region8: #{model_forward.5} parent=0 // pred_region
    _
  $region9: #{model_forward.5} parent=0 // pred_fallthru
    _
  // Predicated region
  $region10: #{model_forward.5} parent=0 // pred_check
    _
  $region11: #{model_forward.5} parent=0 // pred_check_branch
    %18 = sbr.rel (0) target = $region13
  $region12: #{model_forward.5} parent=0 // pred_region
    _
  $region13: #{model_forward.5} parent=0 // pred_fallthru
    _
  // Predicated region
  $region14: #{model_forward.5} parent=0 // pred_check
    _
  $region15: #{model_forward.5} parent=0 // pred_check_branch
    %20 = sbr.rel (0) target = $region17
  $region16: #{model_forward.5} parent=0 // pred_region
    _
  $region17: #{model_forward.5} parent=0 // pred_fallthru
    _
  // Predicated region
  $region18: #{model_forward.5} parent=0 // pred_check
    _
  $region19: #{model_forward.5} parent=0 // pred_check_branch
    %22 = sbr.rel (0) target = $region21
  $region20: #{model_forward.5} parent=0 // pred_region
    _
  $region21: #{model_forward.5} parent=0 // pred_fallthru
    _
  // Predicated region
  $region22: #{model_forward.5} parent=0 // pred_check
    _
  $region23: #{model_forward.5} parent=0 // pred_check_branch
    %24 = sbr.rel (0) target = $region25
  $region24: #{model_forward.5} parent=0 // pred_region
    _
  $region25: #{model_forward.5} parent=0 // pred_fallthru
    _
  %v25 = vld [vmem:[%s0] sm:$0x3f]
  %v26 = vld [vmem:[%s1] sm:$0xff]
  %v27 = vld [vmem:[%s1 + $0x8] sm:$0xff]
  %v28 = vld [vmem:[%s1 + $0x10] sm:$0xff]
  %v29 = vld [vmem:[%s1 + $0x18] sm:$0xff]
  %v30 = vld [vmem:[%s1 + $0x20] sm:$0xff]
  %v31 = vld [vmem:[%s1 + $0x28] sm:$0xff]
  %v32 = vld [vmem:[%s1 + $0x30] sm:$0xff]
  %v33 = vld [vmem:[%s1 + $0x38] sm:$0xff]
  %v34 = vld [vmem:[%s1 + $0x40] sm:$0xff]
  %v35 = vld [vmem:[%s1 + $0x48] sm:$0xff]
  %v36 = vld [vmem:[%s1 + $0x50] sm:$0xff]
  %v37 = vld [vmem:[%s1 + $0x58] sm:$0xff]
  %v38 = vld [vmem:[%s1 + $0x60] sm:$0xff]
  %v39 = vld [vmem:[%s1 + $0x68] sm:$0xff]
  %v40 = vld [vmem:[%s1 + $0x70] sm:$0xff]
  %v41 = vld [vmem:[%s1 + $0x78] sm:$0xff]
  %v42 = vld [vmem:[%s1 + $0x80] sm:$0xff]
  %v43 = vld [vmem:[%s1 + $0x88] sm:$0xff]
  %v44 = vld [vmem:[%s1 + $0x90] sm:$0xff]
  %v45 = vld [vmem:[%s1 + $0x98] sm:$0xff]
  %v46 = vld [vmem:[%s1 + $0xa0] sm:$0xff]
  %v47 = vld [vmem:[%s1 + $0xa8] sm:$0xff]
  %v48 = vld [vmem:[%s1 + $0xb0] sm:$0xff]
  %v49 = vld [vmem:[%s1 + $0xb8] sm:$0xff]
  %v50 = vld [vmem:[%s1 + $0xc0] sm:$0xff]
  %v51 = vld [vmem:[%s1 + $0xc8] sm:$0xff]
  %v52 = vld [vmem:[%s1 + $0xd0] sm:$0xff]
  %v53 = vld [vmem:[%s1 + $0xd8] sm:$0xff]
  %v54 = vld [vmem:[%s1 + $0xe0] sm:$0xff]
  %v55 = vld [vmem:[%s1 + $0xe8] sm:$0xff]
  %v56 = vld [vmem:[%s1 + $0xf0] sm:$0xff]
  %v57 = vld [vmem:[%s1 + $0xf8] sm:$0xff]
  %v58 = vld [vmem:[%s1 + $0x100] sm:$0xff]
  %v59 = vld [vmem:[%s1 + $0x108] sm:$0xff]
  %v60 = vld [vmem:[%s1 + $0x110] sm:$0xff]
  %v61 = vld [vmem:[%s1 + $0x118] sm:$0xff]
  %v62 = vld [vmem:[%s1 + $0x120] sm:$0xff]
  %v63 = vld [vmem:[%s1 + $0x128] sm:$0xff]
  %v64 = vld [vmem:[%s1 + $0x130] sm:$0xff]
  %v65 = vld [vmem:[%s1 + $0x138] sm:$0xff]
  %v66 = vld [vmem:[%s1 + $0x140] sm:$0xf]
  %v67 = vld [vmem:[%s1 + $0x148] sm:$0xf]
  %v68 = vld [vmem:[%s1 + $0x150] sm:$0xf]
  %v69 = vld [vmem:[%s1 + $0x158] sm:$0xf]
  %v70 = vld [vmem:[%s1 + $0x160] sm:$0xf]
  %v71 = vld [vmem:[%s1 + $0x168] sm:$0xf]
  %v72 = vld [vmem:[%s1 + $0x170] sm:$0xf]
  %v73 = vld [vmem:[%s1 + $0x178] sm:$0xf]
  %v74 = vld [vmem:[%s2] sm:$0xff]
  %v76 = vlaneseq
  %v77 = vshrl.u32 %v76, 7
  %v78 = vsub.s32 0, %v77
  %v79 = vrot.slane %v74, %v78
  %v80 = vlaneseq
  %v81 = vshrl.u32 %v80, 7
  %v82 = vsub.s32 1, %v81
  %v83 = vrot.slane %v74, %v82
  %v84 = vlaneseq
  %v85 = vshrl.u32 %v84, 7
  %v86 = vsub.s32 2, %v85
  %v87 = vrot.slane %v74, %v86
  %v88 = vlaneseq
  %v89 = vshrl.u32 %v88, 7
  %v90 = vsub.s32 3, %v89
  %v91 = vrot.slane %v74, %v90
  %v92 = vlaneseq
  %v93 = vshrl.u32 %v92, 7
  %v94 = vsub.s32 4, %v93
  %v95 = vrot.slane %v74, %v94
  %v96 = vlaneseq
  %v97 = vshrl.u32 %v96, 7
  %v98 = vsub.s32 5, %v97
  %v99 = vrot.slane %v74, %v98
  %v100 = vlaneseq
  %v101 = vshrl.u32 %v100, 7
  %v102 = vsub.s32 6, %v101
  %v103 = vrot.slane %v74, %v102
  %v104 = vlaneseq
  %v105 = vshrl.u32 %v104, 7
  %v106 = vsub.s32 7, %v105
  %v107 = vrot.slane %v74, %v106
  %vm116 = vcmask 359424
  %v118 = vsel %vm116, %v25, 0
  %vm120 = vcmask 1043456
  %v122 = vsel %vm120, %v66, 0
  %v125 = vsel %vm120, %v67, 0
  %v128 = vsel %vm120, %v68, 0
  %v131 = vsel %vm120, %v69, 0
  %v134 = vsel %vm120, %v70, 0
  %v137 = vsel %vm120, %v71, 0
  %v140 = vsel %vm120, %v72, 0
  %v143 = vsel %vm120, %v73, 0
  %145 = vmatprep.subr.mxu0 0.0
  %146 = vmatpush1.msra.mxu0 0.0
  %147 = vmatprep.subr.mxu0 0.0
  %148 = vmatpush1.msra.mxu0 0.0
  %149 = vmatprep.subr.mxu0 0.0
  %150 = vmatpush1.msra.mxu0 0.0
  %151 = vmatprep.subr.mxu0 0.0
  %152 = vmatpush1.msra.mxu0 0.0
  %153 = vmatprep.subr.mxu0 0.0
  %154 = vmatpush1.msra.mxu0 0.0
  %155 = vmatprep.subr.mxu0 0.0
  %156 = vmatpush1.msra.mxu0 0.0
  %157 = vmatprep.subr.mxu0 0.0
  %158 = vmatpush1.msra.mxu0 0.0
  %159 = vmatprep.subr.mxu0 0.0
  %160 = vmatpush1.msra.mxu0 0.0
  %161 = vmatprep.subr.mxu0 0.0
  %162 = vmatpush1.msra.mxu0 0.0
  %163 = vmatprep.subr.mxu0 0.0
  %164 = vmatpush1.msra.mxu0 0.0
  %165 = vmatprep.subr.mxu0 %v125
  %166 = vmatpush1.msra.mxu0 %v122
  %167 = vmatprep.subr.mxu0 %v59
  %168 = vmatpush1.msra.mxu0 %v58
  %169 = vmatprep.subr.mxu0 %v51
  %170 = vmatpush1.msra.mxu0 %v50
  %171 = vmatprep.subr.mxu0 %v43
  %172 = vmatpush1.msra.mxu0 %v42
  %173 = vmatprep.subr.mxu0 %v35
  %174 = vmatpush1.msra.mxu0 %v34
  %175 = vmatprep.subr.mxu0 %v27
  %176 = vmatpush1.msra.mxu0 %v26
  %177 = vmatprep.subr.mxu0 0.0
  %178 = vmatpush2.msra.mxu0 0.0
  %179 = vmatprep.subr.mxu0 0.0
  %180 = vmatpush2.msra.mxu0 0.0
  %181 = vmatprep.subr.mxu0 0.0
  %182 = vmatpush2.msra.mxu0 0.0
  %183 = vmatprep.subr.mxu0 0.0
  %184 = vmatpush2.msra.mxu0 0.0
  %185 = vmatprep.subr.mxu0 0.0
  %186 = vmatpush2.msra.mxu0 0.0
  %187 = vmatprep.subr.mxu0 0.0
  %188 = vmatpush2.msra.mxu0 0.0
  %189 = vmatprep.subr.mxu0 0.0
  %190 = vmatpush2.msra.mxu0 0.0
  %191 = vmatprep.subr.mxu0 0.0
  %192 = vmatpush2.msra.mxu0 0.0
  %193 = vmatprep.subr.mxu0 0.0
  %194 = vmatpush2.msra.mxu0 0.0
  %195 = vmatprep.subr.mxu0 0.0
  %196 = vmatpush2.msra.mxu0 0.0
  %197 = vmatprep.subr.mxu0 0.0
  %198 = vmatpush2.msra.mxu0 0.0
  %199 = vmatprep.subr.mxu0 0.0
  %200 = vmatpush2.msra.mxu0 0.0
  %201 = vmatprep.subr.mxu0 0.0
  %202 = vmatpush2.msra.mxu0 0.0
  %203 = vmatprep.subr.mxu0 0.0
  %204 = vmatpush2.msra.mxu0 0.0
  %205 = vmatprep.subr.mxu0 0.0
  %206 = vmatpush2.msra.mxu0 0.0
  %207 = vmatprep.subr.mxu0 0.0
  %208 = vmatpush2.msra.mxu0 0.0
  %209 = vmatprep.mubr.f32.mxu0 0.0
  %210 = vmatmul.mubr.f32.gmra.mxu0 %v118
  %v211 = vpop.f32.mrf.mxu0
  %v212 = vadd.f32 %v79, %v211
  %v213 = vpop.f32.mrf.mxu0
  %v214 = vadd.f32 %v83, %v213
  %215 = vdwg.mxu0
  %216 = vmatprep.subr.mxu0 0.0
  %217 = vmatpush1.msra.mxu0 0.0
  %218 = vmatprep.subr.mxu0 0.0
  %219 = vmatpush1.msra.mxu0 0.0
  %220 = vmatprep.subr.mxu0 0.0
  %221 = vmatpush1.msra.mxu0 0.0
  %222 = vmatprep.subr.mxu0 0.0
  %223 = vmatpush1.msra.mxu0 0.0
  %224 = vmatprep.subr.mxu0 0.0
  %225 = vmatpush1.msra.mxu0 0.0
  %226 = vmatprep.subr.mxu0 0.0
  %227 = vmatpush1.msra.mxu0 0.0
  %228 = vmatprep.subr.mxu0 0.0
  %229 = vmatpush1.msra.mxu0 0.0
  %230 = vmatprep.subr.mxu0 0.0
  %231 = vmatpush1.msra.mxu0 0.0
  %232 = vmatprep.subr.mxu0 0.0
  %233 = vmatpush1.msra.mxu0 0.0
  %234 = vmatprep.subr.mxu0 0.0
  %235 = vmatpush1.msra.mxu0 0.0
  %236 = vmatprep.subr.mxu0 %v131
  %237 = vmatpush1.msra.mxu0 %v128
  %238 = vmatprep.subr.mxu0 %v61
  %239 = vmatpush1.msra.mxu0 %v60
  %240 = vmatprep.subr.mxu0 %v53
  %241 = vmatpush1.msra.mxu0 %v52
  %242 = vmatprep.subr.mxu0 %v45
  %243 = vmatpush1.msra.mxu0 %v44
  %244 = vmatprep.subr.mxu0 %v37
  %245 = vmatpush1.msra.mxu0 %v36
  %246 = vmatprep.subr.mxu0 %v29
  %247 = vmatpush1.msra.mxu0 %v28
  %248 = vmatprep.subr.mxu0 0.0
  %249 = vmatpush2.msra.mxu0 0.0
  %250 = vmatprep.subr.mxu0 0.0
  %251 = vmatpush2.msra.mxu0 0.0
  %252 = vmatprep.subr.mxu0 0.0
  %253 = vmatpush2.msra.mxu0 0.0
  %254 = vmatprep.subr.mxu0 0.0
  %255 = vmatpush2.msra.mxu0 0.0
  %256 = vmatprep.subr.mxu0 0.0
  %257 = vmatpush2.msra.mxu0 0.0
  %258 = vmatprep.subr.mxu0 0.0
  %259 = vmatpush2.msra.mxu0 0.0
  %260 = vmatprep.subr.mxu0 0.0
  %261 = vmatpush2.msra.mxu0 0.0
  %262 = vmatprep.subr.mxu0 0.0
  %263 = vmatpush2.msra.mxu0 0.0
  %264 = vmatprep.subr.mxu0 0.0
  %265 = vmatpush2.msra.mxu0 0.0
  %266 = vmatprep.subr.mxu0 0.0
  %267 = vmatpush2.msra.mxu0 0.0
  %268 = vmatprep.subr.mxu0 0.0
  %269 = vmatpush2.msra.mxu0 0.0
  %270 = vmatprep.subr.mxu0 0.0
  %271 = vmatpush2.msra.mxu0 0.0
  %272 = vmatprep.subr.mxu0 0.0
  %273 = vmatpush2.msra.mxu0 0.0
  %274 = vmatprep.subr.mxu0 0.0
  %275 = vmatpush2.msra.mxu0 0.0
  %276 = vmatprep.subr.mxu0 0.0
  %277 = vmatpush2.msra.mxu0 0.0
  %278 = vmatprep.subr.mxu0 0.0
  %279 = vmatpush2.msra.mxu0 0.0
  %280 = vmatprep.mubr.f32.mxu0 0.0
  %281 = vmatmul.mubr.f32.gmra.mxu0 %v118
  %v282 = vpop.f32.mrf.mxu0
  %v283 = vadd.f32 %v87, %v282
  %v284 = vpop.f32.mrf.mxu0
  %v285 = vadd.f32 %v91, %v284
  %286 = vdwg.mxu0
  %287 = vmatprep.subr.mxu0 0.0
  %288 = vmatpush1.msra.mxu0 0.0
  %289 = vmatprep.subr.mxu0 0.0
  %290 = vmatpush1.msra.mxu0 0.0
  %291 = vmatprep.subr.mxu0 0.0
  %292 = vmatpush1.msra.mxu0 0.0
  %293 = vmatprep.subr.mxu0 0.0
  %294 = vmatpush1.msra.mxu0 0.0
  %295 = vmatprep.subr.mxu0 0.0
  %296 = vmatpush1.msra.mxu0 0.0
  %297 = vmatprep.subr.mxu0 0.0
  %298 = vmatpush1.msra.mxu0 0.0
  %299 = vmatprep.subr.mxu0 0.0
  %300 = vmatpush1.msra.mxu0 0.0
  %301 = vmatprep.subr.mxu0 0.0
  %302 = vmatpush1.msra.mxu0 0.0
  %303 = vmatprep.subr.mxu0 0.0
  %304 = vmatpush1.msra.mxu0 0.0
  %305 = vmatprep.subr.mxu0 0.0
  %306 = vmatpush1.msra.mxu0 0.0
  %307 = vmatprep.subr.mxu0 %v137
  %308 = vmatpush1.msra.mxu0 %v134
  %309 = vmatprep.subr.mxu0 %v63
  %310 = vmatpush1.msra.mxu0 %v62
  %311 = vmatprep.subr.mxu0 %v55
  %312 = vmatpush1.msra.mxu0 %v54
  %313 = vmatprep.subr.mxu0 %v47
  %314 = vmatpush1.msra.mxu0 %v46
  %315 = vmatprep.subr.mxu0 %v39
  %316 = vmatpush1.msra.mxu0 %v38
  %317 = vmatprep.subr.mxu0 %v31
  %318 = vmatpush1.msra.mxu0 %v30
  %319 = vmatprep.subr.mxu0 0.0
  %320 = vmatpush2.msra.mxu0 0.0
  %321 = vmatprep.subr.mxu0 0.0
  %322 = vmatpush2.msra.mxu0 0.0
  %323 = vmatprep.subr.mxu0 0.0
  %324 = vmatpush2.msra.mxu0 0.0
  %325 = vmatprep.subr.mxu0 0.0
  %326 = vmatpush2.msra.mxu0 0.0
  %327 = vmatprep.subr.mxu0 0.0
  %328 = vmatpush2.msra.mxu0 0.0
  %329 = vmatprep.subr.mxu0 0.0
  %330 = vmatpush2.msra.mxu0 0.0
  %331 = vmatprep.subr.mxu0 0.0
  %332 = vmatpush2.msra.mxu0 0.0
  %333 = vmatprep.subr.mxu0 0.0
  %334 = vmatpush2.msra.mxu0 0.0
  %335 = vmatprep.subr.mxu0 0.0
  %336 = vmatpush2.msra.mxu0 0.0
  %337 = vmatprep.subr.mxu0 0.0
  %338 = vmatpush2.msra.mxu0 0.0
  %339 = vmatprep.subr.mxu0 0.0
  %340 = vmatpush2.msra.mxu0 0.0
  %341 = vmatprep.subr.mxu0 0.0
  %342 = vmatpush2.msra.mxu0 0.0
  %343 = vmatprep.subr.mxu0 0.0
  %344 = vmatpush2.msra.mxu0 0.0
  %345 = vmatprep.subr.mxu0 0.0
  %346 = vmatpush2.msra.mxu0 0.0
  %347 = vmatprep.subr.mxu0 0.0
  %348 = vmatpush2.msra.mxu0 0.0
  %349 = vmatprep.subr.mxu0 0.0
  %350 = vmatpush2.msra.mxu0 0.0
  %351 = vmatprep.mubr.f32.mxu0 0.0
  %352 = vmatmul.mubr.f32.gmra.mxu0 %v118
  %v353 = vpop.f32.mrf.mxu0
  %v354 = vadd.f32 %v95, %v353
  %v355 = vpop.f32.mrf.mxu0
  %v356 = vadd.f32 %v99, %v355
  %357 = vdwg.mxu0
  %358 = vmatprep.subr.mxu0 0.0
  %359 = vmatpush1.msra.mxu0 0.0
  %360 = vmatprep.subr.mxu0 0.0
  %361 = vmatpush1.msra.mxu0 0.0
  %362 = vmatprep.subr.mxu0 0.0
  %363 = vmatpush1.msra.mxu0 0.0
  %364 = vmatprep.subr.mxu0 0.0
  %365 = vmatpush1.msra.mxu0 0.0
  %366 = vmatprep.subr.mxu0 0.0
  %367 = vmatpush1.msra.mxu0 0.0
  %368 = vmatprep.subr.mxu0 0.0
  %369 = vmatpush1.msra.mxu0 0.0
  %370 = vmatprep.subr.mxu0 0.0
  %371 = vmatpush1.msra.mxu0 0.0
  %372 = vmatprep.subr.mxu0 0.0
  %373 = vmatpush1.msra.mxu0 0.0
  %374 = vmatprep.subr.mxu0 0.0
  %375 = vmatpush1.msra.mxu0 0.0
  %376 = vmatprep.subr.mxu0 0.0
  %377 = vmatpush1.msra.mxu0 0.0
  %378 = vmatprep.subr.mxu0 %v143
  %379 = vmatpush1.msra.mxu0 %v140
  %380 = vmatprep.subr.mxu0 %v65
  %381 = vmatpush1.msra.mxu0 %v64
  %382 = vmatprep.subr.mxu0 %v57
  %383 = vmatpush1.msra.mxu0 %v56
  %384 = vmatprep.subr.mxu0 %v49
  %385 = vmatpush1.msra.mxu0 %v48
  %386 = vmatprep.subr.mxu0 %v41
  %387 = vmatpush1.msra.mxu0 %v40
  %388 = vmatprep.subr.mxu0 %v33
  %389 = vmatpush1.msra.mxu0 %v32
  %390 = vmatprep.subr.mxu0 0.0
  %391 = vmatpush2.msra.mxu0 0.0
  %392 = vmatprep.subr.mxu0 0.0
  %393 = vmatpush2.msra.mxu0 0.0
  %394 = vmatprep.subr.mxu0 0.0
  %395 = vmatpush2.msra.mxu0 0.0
  %396 = vmatprep.subr.mxu0 0.0
  %397 = vmatpush2.msra.mxu0 0.0
  %398 = vmatprep.subr.mxu0 0.0
  %399 = vmatpush2.msra.mxu0 0.0
  %400 = vmatprep.subr.mxu0 0.0
  %401 = vmatpush2.msra.mxu0 0.0
  %402 = vmatprep.subr.mxu0 0.0
  %403 = vmatpush2.msra.mxu0 0.0
  %404 = vmatprep.subr.mxu0 0.0
  %405 = vmatpush2.msra.mxu0 0.0
  %406 = vmatprep.subr.mxu0 0.0
  %407 = vmatpush2.msra.mxu0 0.0
  %408 = vmatprep.subr.mxu0 0.0
  %409 = vmatpush2.msra.mxu0 0.0
  %410 = vmatprep.subr.mxu0 0.0
  %411 = vmatpush2.msra.mxu0 0.0
  %412 = vmatprep.subr.mxu0 0.0
  %413 = vmatpush2.msra.mxu0 0.0
  %414 = vmatprep.subr.mxu0 0.0
  %415 = vmatpush2.msra.mxu0 0.0
  %416 = vmatprep.subr.mxu0 0.0
  %417 = vmatpush2.msra.mxu0 0.0
  %418 = vmatprep.subr.mxu0 0.0
  %419 = vmatpush2.msra.mxu0 0.0
  %420 = vmatprep.subr.mxu0 0.0
  %421 = vmatpush2.msra.mxu0 0.0
  %422 = vmatprep.mubr.f32.mxu0 0.0
  %423 = vmatmul.mubr.f32.gmra.mxu0 %v118
  %v424 = vpop.f32.mrf.mxu0
  %v425 = vadd.f32 %v103, %v424
  %v426 = vpop.f32.mrf.mxu0
  %v427 = vadd.f32 %v107, %v426
  %428 = vdwg.mxu0
  %v429 = vmax.f32 %v212, 0.0
  %v430 = vmax.f32 %v214, 0.0
  %v431 = vmax.f32 %v283, 0.0
  %v432 = vmax.f32 %v285, 0.0
  %v433 = vmax.f32 %v354, 0.0
  %v434 = vmax.f32 %v356, 0.0
  %v435 = vmax.f32 %v425, 0.0
  %v436 = vmax.f32 %v427, 0.0
  %v437 = vld [vmem:[%s3] sm:$0x3]
  %vm438 = vcmask 48128
  %v440 = vsel %vm438, %v437, 0
  %vm442 = vcmask 1045504
  %v444 = vsel %vm442, %v429, 0
  %v447 = vsel %vm442, %v430, 0
  %v450 = vsel %vm442, %v431, 0
  %v453 = vsel %vm442, %v432, 0
  %v456 = vsel %vm442, %v433, 0
  %v459 = vsel %vm442, %v434, 0
  %v462 = vsel %vm442, %v435, 0
  %v465 = vsel %vm442, %v436, 0
  %467 = vmatprep.subr.mxu0 0.0
  %468 = vmatpush1.msra.mxu0 0.0
  %469 = vmatprep.subr.mxu0 0.0
  %470 = vmatpush1.msra.mxu0 0.0
  %471 = vmatprep.subr.mxu0 0.0
  %472 = vmatpush1.msra.mxu0 0.0
  %473 = vmatprep.subr.mxu0 0.0
  %474 = vmatpush1.msra.mxu0 0.0
  %475 = vmatprep.subr.mxu0 0.0
  %476 = vmatpush1.msra.mxu0 0.0
  %477 = vmatprep.subr.mxu0 0.0
  %478 = vmatpush1.msra.mxu0 0.0
  %479 = vmatprep.subr.mxu0 0.0
  %480 = vmatpush1.msra.mxu0 0.0
  %481 = vmatprep.subr.mxu0 0.0
  %482 = vmatpush1.msra.mxu0 0.0
  %483 = vmatprep.subr.mxu0 0.0
  %484 = vmatpush1.msra.mxu0 0.0
  %485 = vmatprep.subr.mxu0 0.0
  %486 = vmatpush1.msra.mxu0 0.0
  %487 = vmatprep.subr.mxu0 0.0
  %488 = vmatpush1.msra.mxu0 0.0
  %489 = vmatprep.subr.mxu0 0.0
  %490 = vmatpush1.msra.mxu0 0.0
  %491 = vmatprep.subr.mxu0 0.0
  %492 = vmatpush1.msra.mxu0 0.0
  %493 = vmatprep.subr.mxu0 0.0
  %494 = vmatpush1.msra.mxu0 0.0
  %495 = vmatprep.subr.mxu0 0.0
  %496 = vmatpush1.msra.mxu0 0.0
  %497 = vmatprep.subr.mxu0 %v447
  %498 = vmatpush1.msra.mxu0 %v444
  %499 = vmatprep.subr.mxu0 0.0
  %500 = vmatpush2.msra.mxu0 0.0
  %501 = vmatprep.subr.mxu0 0.0
  %502 = vmatpush2.msra.mxu0 0.0
  %503 = vmatprep.subr.mxu0 0.0
  %504 = vmatpush2.msra.mxu0 0.0
  %505 = vmatprep.subr.mxu0 0.0
  %506 = vmatpush2.msra.mxu0 0.0
  %507 = vmatprep.subr.mxu0 0.0
  %508 = vmatpush2.msra.mxu0 0.0
  %509 = vmatprep.subr.mxu0 0.0
  %510 = vmatpush2.msra.mxu0 0.0
  %511 = vmatprep.subr.mxu0 0.0
  %512 = vmatpush2.msra.mxu0 0.0
  %513 = vmatprep.subr.mxu0 0.0
  %514 = vmatpush2.msra.mxu0 0.0
  %515 = vmatprep.subr.mxu0 0.0
  %516 = vmatpush2.msra.mxu0 0.0
  %517 = vmatprep.subr.mxu0 0.0
  %518 = vmatpush2.msra.mxu0 0.0
  %519 = vmatprep.subr.mxu0 0.0
  %520 = vmatpush2.msra.mxu0 0.0
  %521 = vmatprep.subr.mxu0 0.0
  %522 = vmatpush2.msra.mxu0 0.0
  %523 = vmatprep.subr.mxu0 0.0
  %524 = vmatpush2.msra.mxu0 0.0
  %525 = vmatprep.subr.mxu0 0.0
  %526 = vmatpush2.msra.mxu0 0.0
  %527 = vmatprep.subr.mxu0 0.0
  %528 = vmatpush2.msra.mxu0 0.0
  %529 = vmatprep.subr.mxu0 0.0
  %530 = vmatpush2.msra.mxu0 0.0
  %531 = vmatprep.mubr.f32.mxu0 0.0
  %532 = vmatmul.mubr.f32.gmra.mxu0 %v440
  %v533 = vpop.f32.mrf.mxu0
  %v534 = vadd.f32 0.0, %v533
  %v535 = vpop.f32.mrf.mxu0
  %v536 = vadd.f32 0.0, %v535
  %537 = vdwg.mxu0
  %538 = vmatprep.subr.mxu0 0.0
  %539 = vmatpush1.msra.mxu0 0.0
  %540 = vmatprep.subr.mxu0 0.0
  %541 = vmatpush1.msra.mxu0 0.0
  %542 = vmatprep.subr.mxu0 0.0
  %543 = vmatpush1.msra.mxu0 0.0
  %544 = vmatprep.subr.mxu0 0.0
  %545 = vmatpush1.msra.mxu0 0.0
  %546 = vmatprep.subr.mxu0 0.0
  %547 = vmatpush1.msra.mxu0 0.0
  %548 = vmatprep.subr.mxu0 0.0
  %549 = vmatpush1.msra.mxu0 0.0
  %550 = vmatprep.subr.mxu0 0.0
  %551 = vmatpush1.msra.mxu0 0.0
  %552 = vmatprep.subr.mxu0 0.0
  %553 = vmatpush1.msra.mxu0 0.0
  %554 = vmatprep.subr.mxu0 0.0
  %555 = vmatpush1.msra.mxu0 0.0
  %556 = vmatprep.subr.mxu0 0.0
  %557 = vmatpush1.msra.mxu0 0.0
  %558 = vmatprep.subr.mxu0 0.0
  %559 = vmatpush1.msra.mxu0 0.0
  %560 = vmatprep.subr.mxu0 0.0
  %561 = vmatpush1.msra.mxu0 0.0
  %562 = vmatprep.subr.mxu0 0.0
  %563 = vmatpush1.msra.mxu0 0.0
  %564 = vmatprep.subr.mxu0 0.0
  %565 = vmatpush1.msra.mxu0 0.0
  %566 = vmatprep.subr.mxu0 0.0
  %567 = vmatpush1.msra.mxu0 0.0
  %568 = vmatprep.subr.mxu0 %v453
  %569 = vmatpush1.msra.mxu0 %v450
  %570 = vmatprep.subr.mxu0 0.0
  %571 = vmatpush2.msra.mxu0 0.0
  %572 = vmatprep.subr.mxu0 0.0
  %573 = vmatpush2.msra.mxu0 0.0
  %574 = vmatprep.subr.mxu0 0.0
  %575 = vmatpush2.msra.mxu0 0.0
  %576 = vmatprep.subr.mxu0 0.0
  %577 = vmatpush2.msra.mxu0 0.0
  %578 = vmatprep.subr.mxu0 0.0
  %579 = vmatpush2.msra.mxu0 0.0
  %580 = vmatprep.subr.mxu0 0.0
  %581 = vmatpush2.msra.mxu0 0.0
  %582 = vmatprep.subr.mxu0 0.0
  %583 = vmatpush2.msra.mxu0 0.0
  %584 = vmatprep.subr.mxu0 0.0
  %585 = vmatpush2.msra.mxu0 0.0
  %586 = vmatprep.subr.mxu0 0.0
  %587 = vmatpush2.msra.mxu0 0.0
  %588 = vmatprep.subr.mxu0 0.0
  %589 = vmatpush2.msra.mxu0 0.0
  %590 = vmatprep.subr.mxu0 0.0
  %591 = vmatpush2.msra.mxu0 0.0
  %592 = vmatprep.subr.mxu0 0.0
  %593 = vmatpush2.msra.mxu0 0.0
  %594 = vmatprep.subr.mxu0 0.0
  %595 = vmatpush2.msra.mxu0 0.0
  %596 = vmatprep.subr.mxu0 0.0
  %597 = vmatpush2.msra.mxu0 0.0
  %598 = vmatprep.subr.mxu0 0.0
  %599 = vmatpush2.msra.mxu0 0.0
  %600 = vmatprep.subr.mxu0 0.0
  %601 = vmatpush2.msra.mxu0 0.0
  %602 = vmatprep.mubr.f32.mxu0 0.0
  %603 = vmatmul.mubr.f32.gmra.mxu0 %v440
  %v604 = vpop.f32.mrf.mxu0
  %v605 = vadd.f32 0.0, %v604
  %v606 = vpop.f32.mrf.mxu0
  %v607 = vadd.f32 0.0, %v606
  %608 = vdwg.mxu0
  %609 = vmatprep.subr.mxu0 0.0
  %610 = vmatpush1.msra.mxu0 0.0
  %611 = vmatprep.subr.mxu0 0.0
  %612 = vmatpush1.msra.mxu0 0.0
  %613 = vmatprep.subr.mxu0 0.0
  %614 = vmatpush1.msra.mxu0 0.0
  %615 = vmatprep.subr.mxu0 0.0
  %616 = vmatpush1.msra.mxu0 0.0
  %617 = vmatprep.subr.mxu0 0.0
  %618 = vmatpush1.msra.mxu0 0.0
  %619 = vmatprep.subr.mxu0 0.0
  %620 = vmatpush1.msra.mxu0 0.0
  %621 = vmatprep.subr.mxu0 0.0
  %622 = vmatpush1.msra.mxu0 0.0
  %623 = vmatprep.subr.mxu0 0.0
  %624 = vmatpush1.msra.mxu0 0.0
  %625 = vmatprep.subr.mxu0 0.0
  %626 = vmatpush1.msra.mxu0 0.0
  %627 = vmatprep.subr.mxu0 0.0
  %628 = vmatpush1.msra.mxu0 0.0
  %629 = vmatprep.subr.mxu0 0.0
  %630 = vmatpush1.msra.mxu0 0.0
  %631 = vmatprep.subr.mxu0 0.0
  %632 = vmatpush1.msra.mxu0 0.0
  %633 = vmatprep.subr.mxu0 0.0
  %634 = vmatpush1.msra.mxu0 0.0
  %635 = vmatprep.subr.mxu0 0.0
  %636 = vmatpush1.msra.mxu0 0.0
  %637 = vmatprep.subr.mxu0 0.0
  %638 = vmatpush1.msra.mxu0 0.0
  %639 = vmatprep.subr.mxu0 %v459
  %640 = vmatpush1.msra.mxu0 %v456
  %641 = vmatprep.subr.mxu0 0.0
  %642 = vmatpush2.msra.mxu0 0.0
  %643 = vmatprep.subr.mxu0 0.0
  %644 = vmatpush2.msra.mxu0 0.0
  %645 = vmatprep.subr.mxu0 0.0
  %646 = vmatpush2.msra.mxu0 0.0
  %647 = vmatprep.subr.mxu0 0.0
  %648 = vmatpush2.msra.mxu0 0.0
  %649 = vmatprep.subr.mxu0 0.0
  %650 = vmatpush2.msra.mxu0 0.0
  %651 = vmatprep.subr.mxu0 0.0
  %652 = vmatpush2.msra.mxu0 0.0
  %653 = vmatprep.subr.mxu0 0.0
  %654 = vmatpush2.msra.mxu0 0.0
  %655 = vmatprep.subr.mxu0 0.0
  %656 = vmatpush2.msra.mxu0 0.0
  %657 = vmatprep.subr.mxu0 0.0
  %658 = vmatpush2.msra.mxu0 0.0
  %659 = vmatprep.subr.mxu0 0.0
  %660 = vmatpush2.msra.mxu0 0.0
  %661 = vmatprep.subr.mxu0 0.0
  %662 = vmatpush2.msra.mxu0 0.0
  %663 = vmatprep.subr.mxu0 0.0
  %664 = vmatpush2.msra.mxu0 0.0
  %665 = vmatprep.subr.mxu0 0.0
  %666 = vmatpush2.msra.mxu0 0.0
  %667 = vmatprep.subr.mxu0 0.0
  %668 = vmatpush2.msra.mxu0 0.0
  %669 = vmatprep.subr.mxu0 0.0
  %670 = vmatpush2.msra.mxu0 0.0
  %671 = vmatprep.subr.mxu0 0.0
  %672 = vmatpush2.msra.mxu0 0.0
  %673 = vmatprep.mubr.f32.mxu0 0.0
  %674 = vmatmul.mubr.f32.gmra.mxu0 %v440
  %v675 = vpop.f32.mrf.mxu0
  %v676 = vadd.f32 0.0, %v675
  %v677 = vpop.f32.mrf.mxu0
  %v678 = vadd.f32 0.0, %v677
  %679 = vdwg.mxu0
  %680 = vmatprep.subr.mxu0 0.0
  %681 = vmatpush1.msra.mxu0 0.0
  %682 = vmatprep.subr.mxu0 0.0
  %683 = vmatpush1.msra.mxu0 0.0
  %684 = vmatprep.subr.mxu0 0.0
  %685 = vmatpush1.msra.mxu0 0.0
  %686 = vmatprep.subr.mxu0 0.0
  %687 = vmatpush1.msra.mxu0 0.0
  %688 = vmatprep.subr.mxu0 0.0
  %689 = vmatpush1.msra.mxu0 0.0
  %690 = vmatprep.subr.mxu0 0.0
  %691 = vmatpush1.msra.mxu0 0.0
  %692 = vmatprep.subr.mxu0 0.0
  %693 = vmatpush1.msra.mxu0 0.0
  %694 = vmatprep.subr.mxu0 0.0
  %695 = vmatpush1.msra.mxu0 0.0
  %696 = vmatprep.subr.mxu0 0.0
  %697 = vmatpush1.msra.mxu0 0.0
  %698 = vmatprep.subr.mxu0 0.0
  %699 = vmatpush1.msra.mxu0 0.0
  %700 = vmatprep.subr.mxu0 0.0
  %701 = vmatpush1.msra.mxu0 0.0
  %702 = vmatprep.subr.mxu0 0.0
  %703 = vmatpush1.msra.mxu0 0.0
  %704 = vmatprep.subr.mxu0 0.0
  %705 = vmatpush1.msra.mxu0 0.0
  %706 = vmatprep.subr.mxu0 0.0
  %707 = vmatpush1.msra.mxu0 0.0
  %708 = vmatprep.subr.mxu0 0.0
  %709 = vmatpush1.msra.mxu0 0.0
  %710 = vmatprep.subr.mxu0 %v465
  %711 = vmatpush1.msra.mxu0 %v462
  %712 = vmatprep.subr.mxu0 0.0
  %713 = vmatpush2.msra.mxu0 0.0
  %714 = vmatprep.subr.mxu0 0.0
  %715 = vmatpush2.msra.mxu0 0.0
  %716 = vmatprep.subr.mxu0 0.0
  %717 = vmatpush2.msra.mxu0 0.0
  %718 = vmatprep.subr.mxu0 0.0
  %719 = vmatpush2.msra.mxu0 0.0
  %720 = vmatprep.subr.mxu0 0.0
  %721 = vmatpush2.msra.mxu0 0.0
  %722 = vmatprep.subr.mxu0 0.0
  %723 = vmatpush2.msra.mxu0 0.0
  %724 = vmatprep.subr.mxu0 0.0
  %725 = vmatpush2.msra.mxu0 0.0
  %726 = vmatprep.subr.mxu0 0.0
  %727 = vmatpush2.msra.mxu0 0.0
  %728 = vmatprep.subr.mxu0 0.0
  %729 = vmatpush2.msra.mxu0 0.0
  %730 = vmatprep.subr.mxu0 0.0
  %731 = vmatpush2.msra.mxu0 0.0
  %732 = vmatprep.subr.mxu0 0.0
  %733 = vmatpush2.msra.mxu0 0.0
  %734 = vmatprep.subr.mxu0 0.0
  %735 = vmatpush2.msra.mxu0 0.0
  %736 = vmatprep.subr.mxu0 0.0
  %737 = vmatpush2.msra.mxu0 0.0
  %738 = vmatprep.subr.mxu0 0.0
  %739 = vmatpush2.msra.mxu0 0.0
  %740 = vmatprep.subr.mxu0 0.0
  %741 = vmatpush2.msra.mxu0 0.0
  %742 = vmatprep.subr.mxu0 0.0
  %743 = vmatpush2.msra.mxu0 0.0
  %744 = vmatprep.mubr.f32.mxu0 0.0
  %745 = vmatmul.mubr.f32.gmra.mxu0 %v440
  %v746 = vpop.f32.mrf.mxu0
  %v747 = vadd.f32 0.0, %v746
  %v748 = vpop.f32.mrf.mxu0
  %v749 = vadd.f32 0.0, %v748
  %750 = vdwg.mxu0
  %v751 = vld [vmem:[%s4] sm:$0xff]
  %v752 = vld [vmem:[%s4 + $0x8] sm:$0xff]
  %v753 = vld [vmem:[%s4 + $0x10] sm:$0xff]
  %v754 = vld [vmem:[%s4 + $0x18] sm:$0xff]
  %v755 = vld [vmem:[%s4 + $0x20] sm:$0xff]
  %v756 = vld [vmem:[%s4 + $0x28] sm:$0xff]
  %v757 = vld [vmem:[%s4 + $0x30] sm:$0xff]
  %v758 = vld [vmem:[%s4 + $0x38] sm:$0xff]
  %v759 = vld [vmem:[%s4 + $0x40] sm:$0xff]
  %v760 = vld [vmem:[%s4 + $0x48] sm:$0xff]
  %v761 = vld [vmem:[%s4 + $0x50] sm:$0xff]
  %v762 = vld [vmem:[%s4 + $0x58] sm:$0xff]
  %v763 = vld [vmem:[%s4 + $0x60] sm:$0xff]
  %v764 = vld [vmem:[%s4 + $0x68] sm:$0xff]
  %v765 = vld [vmem:[%s4 + $0x70] sm:$0xff]
  %v766 = vld [vmem:[%s4 + $0x78] sm:$0xff]
  %v767 = vld [vmem:[%s4 + $0x80] sm:$0xff]
  %v768 = vld [vmem:[%s4 + $0x88] sm:$0xff]
  %v769 = vld [vmem:[%s4 + $0x90] sm:$0xff]
  %v770 = vld [vmem:[%s4 + $0x98] sm:$0xff]
  %v771 = vld [vmem:[%s4 + $0xa0] sm:$0xff]
  %v772 = vld [vmem:[%s4 + $0xa8] sm:$0xff]
  %v773 = vld [vmem:[%s4 + $0xb0] sm:$0xff]
  %v774 = vld [vmem:[%s4 + $0xb8] sm:$0xff]
  %v775 = vld [vmem:[%s4 + $0xc0] sm:$0xff]
  %v776 = vld [vmem:[%s4 + $0xc8] sm:$0xff]
  %v777 = vld [vmem:[%s4 + $0xd0] sm:$0xff]
  %v778 = vld [vmem:[%s4 + $0xd8] sm:$0xff]
  %v779 = vld [vmem:[%s4 + $0xe0] sm:$0xff]
  %v780 = vld [vmem:[%s4 + $0xe8] sm:$0xff]
  %v781 = vld [vmem:[%s4 + $0xf0] sm:$0xff]
  %v782 = vld [vmem:[%s4 + $0xf8] sm:$0xff]
  %v783 = vld [vmem:[%s4 + $0x100] sm:$0xff]
  %v784 = vld [vmem:[%s4 + $0x108] sm:$0xff]
  %v785 = vld [vmem:[%s4 + $0x110] sm:$0xff]
  %v786 = vld [vmem:[%s4 + $0x118] sm:$0xff]
  %v787 = vld [vmem:[%s4 + $0x120] sm:$0xff]
  %v788 = vld [vmem:[%s4 + $0x128] sm:$0xff]
  %v789 = vld [vmem:[%s4 + $0x130] sm:$0xff]
  %v790 = vld [vmem:[%s4 + $0x138] sm:$0xff]
  %v791 = vld [vmem:[%s4 + $0x140] sm:$0xff]
  %v792 = vld [vmem:[%s4 + $0x148] sm:$0xff]
  %v793 = vld [vmem:[%s4 + $0x150] sm:$0xff]
  %v794 = vld [vmem:[%s4 + $0x158] sm:$0xff]
  %v795 = vld [vmem:[%s4 + $0x160] sm:$0xff]
  %v796 = vld [vmem:[%s4 + $0x168] sm:$0xff]
  %v797 = vld [vmem:[%s4 + $0x170] sm:$0xff]
  %v798 = vld [vmem:[%s4 + $0x178] sm:$0xff]
  %v799 = vld [vmem:[%s4 + $0x180] sm:$0xff]
  %v800 = vld [vmem:[%s4 + $0x188] sm:$0xff]
  %v801 = vld [vmem:[%s4 + $0x190] sm:$0xff]
  %v802 = vld [vmem:[%s4 + $0x198] sm:$0xff]
  %v803 = vld [vmem:[%s4 + $0x1a0] sm:$0xff]
  %v804 = vld [vmem:[%s4 + $0x1a8] sm:$0xff]
  %v805 = vld [vmem:[%s4 + $0x1b0] sm:$0xff]
  %v806 = vld [vmem:[%s4 + $0x1b8] sm:$0xff]
  %v807 = vld [vmem:[%s4 + $0x1c0] sm:$0xff]
  %v808 = vld [vmem:[%s4 + $0x1c8] sm:$0xff]
  %v809 = vld [vmem:[%s4 + $0x1d0] sm:$0xff]
  %v810 = vld [vmem:[%s4 + $0x1d8] sm:$0xff]
  %v811 = vld [vmem:[%s4 + $0x1e0] sm:$0xff]
  %v812 = vld [vmem:[%s4 + $0x1e8] sm:$0xff]
  %v813 = vld [vmem:[%s4 + $0x1f0] sm:$0xff]
  %v814 = vld [vmem:[%s4 + $0x1f8] sm:$0xff]
  %v815 = vld [vmem:[%s4 + $0x200] sm:$0xff]
  %v816 = vld [vmem:[%s4 + $0x208] sm:$0xff]
  %v817 = vld [vmem:[%s4 + $0x210] sm:$0xff]
  %v818 = vld [vmem:[%s4 + $0x218] sm:$0xff]
  %v819 = vld [vmem:[%s4 + $0x220] sm:$0xff]
  %v820 = vld [vmem:[%s4 + $0x228] sm:$0xff]
  %v821 = vld [vmem:[%s4 + $0x230] sm:$0xff]
  %v822 = vld [vmem:[%s4 + $0x238] sm:$0xff]
  %v823 = vld [vmem:[%s4 + $0x240] sm:$0xff]
  %v824 = vld [vmem:[%s4 + $0x248] sm:$0xff]
  %v825 = vld [vmem:[%s4 + $0x250] sm:$0xff]
  %v826 = vld [vmem:[%s4 + $0x258] sm:$0xff]
  %v827 = vld [vmem:[%s4 + $0x260] sm:$0xff]
  %v828 = vld [vmem:[%s4 + $0x268] sm:$0xff]
  %v829 = vld [vmem:[%s4 + $0x270] sm:$0xff]
  %v830 = vld [vmem:[%s4 + $0x278] sm:$0xff]
  %v831 = vld [vmem:[%s4 + $0x280] sm:$0xff]
  %v832 = vld [vmem:[%s4 + $0x288] sm:$0xff]
  %v833 = vld [vmem:[%s4 + $0x290] sm:$0xff]
  %v834 = vld [vmem:[%s4 + $0x298] sm:$0xff]
  %v835 = vld [vmem:[%s4 + $0x2a0] sm:$0xff]
  %v836 = vld [vmem:[%s4 + $0x2a8] sm:$0xff]
  %v837 = vld [vmem:[%s4 + $0x2b0] sm:$0xff]
  %v838 = vld [vmem:[%s4 + $0x2b8] sm:$0xff]
  %v839 = vld [vmem:[%s4 + $0x2c0] sm:$0xff]
  %v840 = vld [vmem:[%s4 + $0x2c8] sm:$0xff]
  %v841 = vld [vmem:[%s4 + $0x2d0] sm:$0xff]
  %v842 = vld [vmem:[%s4 + $0x2d8] sm:$0xff]
  %v843 = vld [vmem:[%s4 + $0x2e0] sm:$0xff]
  %v844 = vld [vmem:[%s4 + $0x2e8] sm:$0xff]
  %v845 = vld [vmem:[%s4 + $0x2f0] sm:$0xff]
  %v846 = vld [vmem:[%s4 + $0x2f8] sm:$0xff]
  %v847 = vld [vmem:[%s4 + $0x300] sm:$0xff]
  %v848 = vld [vmem:[%s4 + $0x308] sm:$0xff]
  %v849 = vld [vmem:[%s4 + $0x310] sm:$0xff]
  %v850 = vld [vmem:[%s4 + $0x318] sm:$0xff]
  %v851 = vld [vmem:[%s4 + $0x320] sm:$0xff]
  %v852 = vld [vmem:[%s4 + $0x328] sm:$0xff]
  %v853 = vld [vmem:[%s4 + $0x330] sm:$0xff]
  %v854 = vld [vmem:[%s4 + $0x338] sm:$0xff]
  %v855 = vld [vmem:[%s4 + $0x340] sm:$0xff]
  %v856 = vld [vmem:[%s4 + $0x348] sm:$0xff]
  %v857 = vld [vmem:[%s4 + $0x350] sm:$0xff]
  %v858 = vld [vmem:[%s4 + $0x358] sm:$0xff]
  %v859 = vld [vmem:[%s4 + $0x360] sm:$0xff]
  %v860 = vld [vmem:[%s4 + $0x368] sm:$0xff]
  %v861 = vld [vmem:[%s4 + $0x370] sm:$0xff]
  %v862 = vld [vmem:[%s4 + $0x378] sm:$0xff]
  %v863 = vld [vmem:[%s4 + $0x380] sm:$0xff]
  %v864 = vld [vmem:[%s4 + $0x388] sm:$0xff]
  %v865 = vld [vmem:[%s4 + $0x390] sm:$0xff]
  %v866 = vld [vmem:[%s4 + $0x398] sm:$0xff]
  %v867 = vld [vmem:[%s4 + $0x3a0] sm:$0xff]
  %v868 = vld [vmem:[%s4 + $0x3a8] sm:$0xff]
  %v869 = vld [vmem:[%s4 + $0x3b0] sm:$0xff]
  %v870 = vld [vmem:[%s4 + $0x3b8] sm:$0xff]
  %v871 = vld [vmem:[%s4 + $0x3c0] sm:$0xff]
  %v872 = vld [vmem:[%s4 + $0x3c8] sm:$0xff]
  %v873 = vld [vmem:[%s4 + $0x3d0] sm:$0xff]
  %v874 = vld [vmem:[%s4 + $0x3d8] sm:$0xff]
  %v875 = vld [vmem:[%s4 + $0x3e0] sm:$0xff]
  %v876 = vld [vmem:[%s4 + $0x3e8] sm:$0xff]
  %v877 = vld [vmem:[%s4 + $0x3f0] sm:$0xff]
  %v878 = vld [vmem:[%s4 + $0x3f8] sm:$0xff]
  %v879 = vld [vmem:[#allocation2] sm:$0x1]
  %v881 = vlaneseq
  %v882 = vshrl.u32 %v881, 7
  %v883 = vsub.s32 0, %v882
  %v884 = vrot.slane %v879, %v883
  %886 = vmatprep.subr.mxu0 0.0
  %887 = vmatpush1.msra.mxu0 %v766
  %888 = vmatprep.subr.mxu0 0.0
  %889 = vmatpush1.msra.mxu0 %v765
  %890 = vmatprep.subr.mxu0 0.0
  %891 = vmatpush1.msra.mxu0 %v764
  %892 = vmatprep.subr.mxu0 0.0
  %893 = vmatpush1.msra.mxu0 %v763
  %894 = vmatprep.subr.mxu0 0.0
  %895 = vmatpush1.msra.mxu0 %v762
  %896 = vmatprep.subr.mxu0 0.0
  %897 = vmatpush1.msra.mxu0 %v761
  %898 = vmatprep.subr.mxu0 0.0
  %899 = vmatpush1.msra.mxu0 %v760
  %900 = vmatprep.subr.mxu0 0.0
  %901 = vmatpush1.msra.mxu0 %v759
  %902 = vmatprep.subr.mxu0 0.0
  %903 = vmatpush1.msra.mxu0 %v758
  %904 = vmatprep.subr.mxu0 0.0
  %905 = vmatpush1.msra.mxu0 %v757
  %906 = vmatprep.subr.mxu0 0.0
  %907 = vmatpush1.msra.mxu0 %v756
  %908 = vmatprep.subr.mxu0 0.0
  %909 = vmatpush1.msra.mxu0 %v755
  %910 = vmatprep.subr.mxu0 0.0
  %911 = vmatpush1.msra.mxu0 %v754
  %912 = vmatprep.subr.mxu0 0.0
  %913 = vmatpush1.msra.mxu0 %v753
  %914 = vmatprep.subr.mxu0 0.0
  %915 = vmatpush1.msra.mxu0 %v752
  %916 = vmatprep.subr.mxu0 0.0
  %917 = vmatpush1.msra.mxu0 %v751
  %918 = vmatprep.subr.mxu0 0.0
  %919 = vmatpush2.msra.mxu0 %v782
  %920 = vmatprep.subr.mxu0 0.0
  %921 = vmatpush2.msra.mxu0 %v781
  %922 = vmatprep.subr.mxu0 0.0
  %923 = vmatpush2.msra.mxu0 %v780
  %924 = vmatprep.subr.mxu0 0.0
  %925 = vmatpush2.msra.mxu0 %v779
  %926 = vmatprep.subr.mxu0 0.0
  %927 = vmatpush2.msra.mxu0 %v778
  %928 = vmatprep.subr.mxu0 0.0
  %929 = vmatpush2.msra.mxu0 %v777
  %930 = vmatprep.subr.mxu0 0.0
  %931 = vmatpush2.msra.mxu0 %v776
  %932 = vmatprep.subr.mxu0 0.0
  %933 = vmatpush2.msra.mxu0 %v775
  %934 = vmatprep.subr.mxu0 0.0
  %935 = vmatpush2.msra.mxu0 %v774
  %936 = vmatprep.subr.mxu0 0.0
  %937 = vmatpush2.msra.mxu0 %v773
  %938 = vmatprep.subr.mxu0 0.0
  %939 = vmatpush2.msra.mxu0 %v772
  %940 = vmatprep.subr.mxu0 0.0
  %941 = vmatpush2.msra.mxu0 %v771
  %942 = vmatprep.subr.mxu0 0.0
  %943 = vmatpush2.msra.mxu0 %v770
  %944 = vmatprep.subr.mxu0 0.0
  %945 = vmatpush2.msra.mxu0 %v769
  %946 = vmatprep.subr.mxu0 0.0
  %947 = vmatpush2.msra.mxu0 %v768
  %948 = vmatprep.subr.mxu0 0.0
  %949 = vmatpush2.msra.mxu0 %v767
  %950 = vmatprep.mubr.f32.mxu0 %v536
  %951 = vmatmul.mubr.f32.gmra.mxu0 %v534
  %v952 = vpop.f32.mrf.mxu0
  %v953 = vadd.f32 %v884, %v952
  %v954 = vpop.f32.mrf.mxu0
  %955 = vdwg.mxu0
  %956 = vmatprep.subr.mxu0 0.0
  %957 = vmatpush1.msra.mxu0 %v798
  %958 = vmatprep.subr.mxu0 0.0
  %959 = vmatpush1.msra.mxu0 %v797
  %960 = vmatprep.subr.mxu0 0.0
  %961 = vmatpush1.msra.mxu0 %v796
  %962 = vmatprep.subr.mxu0 0.0
  %963 = vmatpush1.msra.mxu0 %v795
  %964 = vmatprep.subr.mxu0 0.0
  %965 = vmatpush1.msra.mxu0 %v794
  %966 = vmatprep.subr.mxu0 0.0
  %967 = vmatpush1.msra.mxu0 %v793
  %968 = vmatprep.subr.mxu0 0.0
  %969 = vmatpush1.msra.mxu0 %v792
  %970 = vmatprep.subr.mxu0 0.0
  %971 = vmatpush1.msra.mxu0 %v791
  %972 = vmatprep.subr.mxu0 0.0
  %973 = vmatpush1.msra.mxu0 %v790
  %974 = vmatprep.subr.mxu0 0.0
  %975 = vmatpush1.msra.mxu0 %v789
  %976 = vmatprep.subr.mxu0 0.0
  %977 = vmatpush1.msra.mxu0 %v788
  %978 = vmatprep.subr.mxu0 0.0
  %979 = vmatpush1.msra.mxu0 %v787
  %980 = vmatprep.subr.mxu0 0.0
  %981 = vmatpush1.msra.mxu0 %v786
  %982 = vmatprep.subr.mxu0 0.0
  %983 = vmatpush1.msra.mxu0 %v785
  %984 = vmatprep.subr.mxu0 0.0
  %985 = vmatpush1.msra.mxu0 %v784
  %986 = vmatprep.subr.mxu0 0.0
  %987 = vmatpush1.msra.mxu0 %v783
  %988 = vmatprep.subr.mxu0 0.0
  %989 = vmatpush2.msra.mxu0 %v814
  %990 = vmatprep.subr.mxu0 0.0
  %991 = vmatpush2.msra.mxu0 %v813
  %992 = vmatprep.subr.mxu0 0.0
  %993 = vmatpush2.msra.mxu0 %v812
  %994 = vmatprep.subr.mxu0 0.0
  %995 = vmatpush2.msra.mxu0 %v811
  %996 = vmatprep.subr.mxu0 0.0
  %997 = vmatpush2.msra.mxu0 %v810
  %998 = vmatprep.subr.mxu0 0.0
  %999 = vmatpush2.msra.mxu0 %v809
  %1000 = vmatprep.subr.mxu0 0.0
  %1001 = vmatpush2.msra.mxu0 %v808
  %1002 = vmatprep.subr.mxu0 0.0
  %1003 = vmatpush2.msra.mxu0 %v807
  %1004 = vmatprep.subr.mxu0 0.0
  %1005 = vmatpush2.msra.mxu0 %v806
  %1006 = vmatprep.subr.mxu0 0.0
  %1007 = vmatpush2.msra.mxu0 %v805
  %1008 = vmatprep.subr.mxu0 0.0
  %1009 = vmatpush2.msra.mxu0 %v804
  %1010 = vmatprep.subr.mxu0 0.0
  %1011 = vmatpush2.msra.mxu0 %v803
  %1012 = vmatprep.subr.mxu0 0.0
  %1013 = vmatpush2.msra.mxu0 %v802
  %1014 = vmatprep.subr.mxu0 0.0
  %1015 = vmatpush2.msra.mxu0 %v801
  %1016 = vmatprep.subr.mxu0 0.0
  %1017 = vmatpush2.msra.mxu0 %v800
  %1018 = vmatprep.subr.mxu0 0.0
  %1019 = vmatpush2.msra.mxu0 %v799
  %1020 = vmatprep.mubr.f32.mxu0 %v607
  %1021 = vmatmul.mubr.f32.gmra.mxu0 %v605
  %v1022 = vpop.f32.mrf.mxu0
  %v1023 = vadd.f32 %v953, %v1022
  %v1024 = vpop.f32.mrf.mxu0
  %1025 = vdwg.mxu0
  %1026 = vmatprep.subr.mxu0 0.0
  %1027 = vmatpush1.msra.mxu0 %v830
  %1028 = vmatprep.subr.mxu0 0.0
  %1029 = vmatpush1.msra.mxu0 %v829
  %1030 = vmatprep.subr.mxu0 0.0
  %1031 = vmatpush1.msra.mxu0 %v828
  %1032 = vmatprep.subr.mxu0 0.0
  %1033 = vmatpush1.msra.mxu0 %v827
  %1034 = vmatprep.subr.mxu0 0.0
  %1035 = vmatpush1.msra.mxu0 %v826
  %1036 = vmatprep.subr.mxu0 0.0
  %1037 = vmatpush1.msra.mxu0 %v825
  %1038 = vmatprep.subr.mxu0 0.0
  %1039 = vmatpush1.msra.mxu0 %v824
  %1040 = vmatprep.subr.mxu0 0.0
  %1041 = vmatpush1.msra.mxu0 %v823
  %1042 = vmatprep.subr.mxu0 0.0
  %1043 = vmatpush1.msra.mxu0 %v822
  %1044 = vmatprep.subr.mxu0 0.0
  %1045 = vmatpush1.msra.mxu0 %v821
  %1046 = vmatprep.subr.mxu0 0.0
  %1047 = vmatpush1.msra.mxu0 %v820
  %1048 = vmatprep.subr.mxu0 0.0
  %1049 = vmatpush1.msra.mxu0 %v819
  %1050 = vmatprep.subr.mxu0 0.0
  %1051 = vmatpush1.msra.mxu0 %v818
  %1052 = vmatprep.subr.mxu0 0.0
  %1053 = vmatpush1.msra.mxu0 %v817
  %1054 = vmatprep.subr.mxu0 0.0
  %1055 = vmatpush1.msra.mxu0 %v816
  %1056 = vmatprep.subr.mxu0 0.0
  %1057 = vmatpush1.msra.mxu0 %v815
  %1058 = vmatprep.subr.mxu0 0.0
  %1059 = vmatpush2.msra.mxu0 %v846
  %1060 = vmatprep.subr.mxu0 0.0
  %1061 = vmatpush2.msra.mxu0 %v845
  %1062 = vmatprep.subr.mxu0 0.0
  %1063 = vmatpush2.msra.mxu0 %v844
  %1064 = vmatprep.subr.mxu0 0.0
  %1065 = vmatpush2.msra.mxu0 %v843
  %1066 = vmatprep.subr.mxu0 0.0
  %1067 = vmatpush2.msra.mxu0 %v842
  %1068 = vmatprep.subr.mxu0 0.0
  %1069 = vmatpush2.msra.mxu0 %v841
  %1070 = vmatprep.subr.mxu0 0.0
  %1071 = vmatpush2.msra.mxu0 %v840
  %1072 = vmatprep.subr.mxu0 0.0
  %1073 = vmatpush2.msra.mxu0 %v839
  %1074 = vmatprep.subr.mxu0 0.0
  %1075 = vmatpush2.msra.mxu0 %v838
  %1076 = vmatprep.subr.mxu0 0.0
  %1077 = vmatpush2.msra.mxu0 %v837
  %1078 = vmatprep.subr.mxu0 0.0
  %1079 = vmatpush2.msra.mxu0 %v836
  %1080 = vmatprep.subr.mxu0 0.0
  %1081 = vmatpush2.msra.mxu0 %v835
  %1082 = vmatprep.subr.mxu0 0.0
  %1083 = vmatpush2.msra.mxu0 %v834
  %1084 = vmatprep.subr.mxu0 0.0
  %1085 = vmatpush2.msra.mxu0 %v833
  %1086 = vmatprep.subr.mxu0 0.0
  %1087 = vmatpush2.msra.mxu0 %v832
  %1088 = vmatprep.subr.mxu0 0.0
  %1089 = vmatpush2.msra.mxu0 %v831
  %1090 = vmatprep.mubr.f32.mxu0 %v678
  %1091 = vmatmul.mubr.f32.gmra.mxu0 %v676
  %v1092 = vpop.f32.mrf.mxu0
  %v1093 = vadd.f32 %v1023, %v1092
  %v1094 = vpop.f32.mrf.mxu0
  %1095 = vdwg.mxu0
  %1096 = vmatprep.subr.mxu0 0.0
  %1097 = vmatpush1.msra.mxu0 %v862
  %1098 = vmatprep.subr.mxu0 0.0
  %1099 = vmatpush1.msra.mxu0 %v861
  %1100 = vmatprep.subr.mxu0 0.0
  %1101 = vmatpush1.msra.mxu0 %v860
  %1102 = vmatprep.subr.mxu0 0.0
  %1103 = vmatpush1.msra.mxu0 %v859
  %1104 = vmatprep.subr.mxu0 0.0
  %1105 = vmatpush1.msra.mxu0 %v858
  %1106 = vmatprep.subr.mxu0 0.0
  %1107 = vmatpush1.msra.mxu0 %v857
  %1108 = vmatprep.subr.mxu0 0.0
  %1109 = vmatpush1.msra.mxu0 %v856
  %1110 = vmatprep.subr.mxu0 0.0
  %1111 = vmatpush1.msra.mxu0 %v855
  %1112 = vmatprep.subr.mxu0 0.0
  %1113 = vmatpush1.msra.mxu0 %v854
  %1114 = vmatprep.subr.mxu0 0.0
  %1115 = vmatpush1.msra.mxu0 %v853
  %1116 = vmatprep.subr.mxu0 0.0
  %1117 = vmatpush1.msra.mxu0 %v852
  %1118 = vmatprep.subr.mxu0 0.0
  %1119 = vmatpush1.msra.mxu0 %v851
  %1120 = vmatprep.subr.mxu0 0.0
  %1121 = vmatpush1.msra.mxu0 %v850
  %1122 = vmatprep.subr.mxu0 0.0
  %1123 = vmatpush1.msra.mxu0 %v849
  %1124 = vmatprep.subr.mxu0 0.0
  %1125 = vmatpush1.msra.mxu0 %v848
  %1126 = vmatprep.subr.mxu0 0.0
  %1127 = vmatpush1.msra.mxu0 %v847
  %1128 = vmatprep.subr.mxu0 0.0
  %1129 = vmatpush2.msra.mxu0 %v878
  %1130 = vmatprep.subr.mxu0 0.0
  %1131 = vmatpush2.msra.mxu0 %v877
  %1132 = vmatprep.subr.mxu0 0.0
  %1133 = vmatpush2.msra.mxu0 %v876
  %1134 = vmatprep.subr.mxu0 0.0
  %1135 = vmatpush2.msra.mxu0 %v875
  %1136 = vmatprep.subr.mxu0 0.0
  %1137 = vmatpush2.msra.mxu0 %v874
  %1138 = vmatprep.subr.mxu0 0.0
  %1139 = vmatpush2.msra.mxu0 %v873
  %1140 = vmatprep.subr.mxu0 0.0
  %1141 = vmatpush2.msra.mxu0 %v872
  %1142 = vmatprep.subr.mxu0 0.0
  %1143 = vmatpush2.msra.mxu0 %v871
  %1144 = vmatprep.subr.mxu0 0.0
  %1145 = vmatpush2.msra.mxu0 %v870
  %1146 = vmatprep.subr.mxu0 0.0
  %1147 = vmatpush2.msra.mxu0 %v869
  %1148 = vmatprep.subr.mxu0 0.0
  %1149 = vmatpush2.msra.mxu0 %v868
  %1150 = vmatprep.subr.mxu0 0.0
  %1151 = vmatpush2.msra.mxu0 %v867
  %1152 = vmatprep.subr.mxu0 0.0
  %1153 = vmatpush2.msra.mxu0 %v866
  %1154 = vmatprep.subr.mxu0 0.0
  %1155 = vmatpush2.msra.mxu0 %v865
  %1156 = vmatprep.subr.mxu0 0.0
  %1157 = vmatpush2.msra.mxu0 %v864
  %1158 = vmatprep.subr.mxu0 0.0
  %1159 = vmatpush2.msra.mxu0 %v863
  %1160 = vmatprep.mubr.f32.mxu0 %v749
  %1161 = vmatmul.mubr.f32.gmra.mxu0 %v747
  %v1162 = vpop.f32.mrf.mxu0
  %v1163 = vadd.f32 %v1093, %v1162
  %v1164 = vpop.f32.mrf.mxu0
  %1165 = vdwg.mxu0
  %v1166 = vsub.f32 0.0, %v1163
  %v1167 = vmul.f32 %v1166, 1.442695
  %v1168 = vpow.pop %v1167
  %v1169 = vadd.f32 %v1168, 1.0
  %v1170 = vrcp.pop %v1169
  %v1171 = vmul.f32 1.0, %v1170
  %vm1172 = vcmask 1024
  %1173 = vst.msk [vmem:[%s6] sm:$0x3] %vm1172, %v1171
  // Predicated region
  $region26: #{model_forward.5} parent=0 // pred_check
    _
  $region27: #{model_forward.5} parent=0 // pred_check_branch
    %1175 = sbr.rel (0) target = $region29
  $region28: #{model_forward.5} parent=0 // pred_region
    _
  $region29: #{model_forward.5} parent=0 // pred_fallthru
    _
  // Predicated region
  $region30: #{model_forward.5} parent=0 // pred_check
    _
  $region31: #{model_forward.5} parent=0 // pred_check_branch
    %1177 = sbr.rel (0) target = $region33
  $region32: #{model_forward.5} parent=0 // pred_region
    _
  $region33: #{model_forward.5} parent=0 // pred_fallthru
    _

</llo_original>
